<compile_context>
chip_gen: v7x
topology: tpu7x:2x2x1
jax: 0.10.0
libtpu: 0.0.40
codegen_flags: <defaults>
</compile_context>

<pallas_src>
import functools

import jax
import jax.numpy as jnp
import numpy as np
from jax.experimental import pallas as pl
from jax.experimental.pallas import tpu as pltpu


def _inception_b_kernel(p3_ref, xin_ref, mask_ref, w0_ref, w1_ref, w2_ref, w3_ref,
                        bias_ref, out_ref, *, hh, wh, ho, wo):
    """One batch element per grid step.

    p3_ref   : (1, ho*wo, 9*cin)  bf16  im2col patches for branch3x3
    xin_ref  : (1, 16*hh*wh, cin) bf16  16 pre-cropped parity pieces of padded x
    mask_ref : (16*hh*wh, 1)      f32   pad-ring multiply mask for the 1x1 conv
    w0_ref   : (9*cin, 384) bf16        BN-folded branch3x3 weight (im2col layout)
    w1_ref   : (cin, 64)    bf16        BN-folded 1x1 weight
    w2_ref   : (3,3,64,96)  bf16        BN-folded stack conv2 weight
    w3_ref   : (3,3,96,96)  bf16        BN-folded stack conv3 weight
    bias_ref : (4, 384)     f32         packed folded-BN biases [b0|b1|b2|b3]
    out_ref  : (1, ho*wo, 512) f32      [branch3x3 384 | stack 96 | zero pad]
    """
    f32, bf16 = jnp.float32, jnp.bfloat16
    c0 = w0_ref.shape[1]                  # 384
    c1 = w1_ref.shape[1]                  # 64
    c2 = w2_ref.shape[3]                  # 96
    c3 = w3_ref.shape[3]                  # 96
    no = ho * wo                          # 49
    frame = hh * wh                       # 64 rows per parity piece

    b0 = bias_ref[0:1, :c0]
    b1 = bias_ref[1:2, :c1]
    b2 = bias_ref[2:3, :c2]
    b3 = bias_ref[3:4, :c3]

    # ---------------- branch3x3: single MXU pass over im2col patches ----------
    out0 = jnp.dot(p3_ref[0], w0_ref[...], preferred_element_type=f32)
    out0 = jnp.maximum(out0 + b0, 0.0)                        # (no, 384) f32

    # ---------------- stack conv1 (1x1): one matmul over all 16 pieces --------
    # Each piece m holds zp[a][c][ro:ro+hh, o:o+wh] flattened row-major, so the
    # conv2 tap operand below is just rows [m*frame, (m+1)*frame) -- contiguous
    # and 64-row aligned (no reshape relayouts).
    z = jnp.dot(xin_ref[0], w1_ref[...], preferred_element_type=f32)
    z = (jnp.maximum(z + b1, 0.0) * mask_ref[...]).astype(bf16)   # (16*frame, 64)

    # ---------------- stack conv2 (3x3, pad=1) in output-parity form ----------
    yp = [[None, None], [None, None]]
    for p in range(2):
        for q in range(2):
            acc = jnp.zeros((frame, c2), f32)
            for dy in range(3):
                ry, sy = (p + dy) % 2, (p + dy) // 2
                for dx in range(3):
                    rx, sx = (q + dx) % 2, (q + dx) // 2
                    m = ((ry * 2 + rx) * 2 + sy) * 2 + sx
                    patch = z[m * frame:(m + 1) * frame, :]        # (64, 64) bf16
                    acc = acc + jnp.dot(patch, w2_ref[dy, dx],
                                        preferred_element_type=f32)
            yp[p][q] = jnp.maximum(acc + b2, 0.0)                  # (64, 96) f32

    # ---------------- stack conv3 (3x3, stride 2, valid) ----------------------
    # y[2i+dy, 2j+dx] = yp[dy%2][dx%2][i + dy//2, j + dx//2]
    acc3 = jnp.zeros((no, c3), f32)
    for dy in range(3):
        ry, sy = dy % 2, dy // 2
        for dx in range(3):
            rx, sx = dx % 2, dx // 2
            win = yp[ry][rx].reshape(hh, wh, c2)[sy:sy + ho, sx:sx + wo, :]
            acc3 = acc3 + jnp.dot(win.reshape(no, c2).astype(bf16),
                                  w3_ref[dy, dx], preferred_element_type=f32)
    out_stack = jnp.maximum(acc3 + b3, 0.0)                        # (no, 96) f32

    # ---------------- single lane-dense output slab ---------------------------
    out_ref[0, :, :c0] = out0
    out_ref[0, :, c0:c0 + c3] = out_stack
    out_ref[0, :, c0 + c3:] = jnp.zeros((no, out_ref.shape[2] - c0 - c3), f32)


def _fold_bn(w, gamma, beta, mean, var, eps=1e-5):
    """Fold eval-mode BN into the conv: (kh,kw,cin,cout) bf16 weight + (1,cout) f32 bias."""
    scale = gamma / jnp.sqrt(var + eps)
    bias = (beta - mean * scale).reshape(1, -1).astype(jnp.float32)
    wk = (jnp.transpose(w, (2, 3, 1, 0)) * scale).astype(jnp.bfloat16)
    return wk, bias


def inception_b(x, params):
    """x: (B, Cin, H, W) f32 NCHW.  params[name] = (conv_w, bn_gamma, bn_beta, bn_mean, bn_var)."""
    B, cin, H, W = x.shape
    assert H % 2 == 0 and W % 2 == 0 and H >= 4 and W >= 4
    ho, wo = (H - 3) // 2 + 1, (W - 3) // 2 + 1      # 7, 7
    hh, wh = H // 2, W // 2                          # 8, 8
    Hp, Wp = H + 2, W + 2
    frame = hh * wh

    w0, b0 = _fold_bn(*params["branch3x3"])          # (3,3,cin,384)
    w1, b1 = _fold_bn(*params["stack1"])             # (1,1,cin,64)
    w2, b2 = _fold_bn(*params["stack2"])             # (3,3,64,96)
    w3, b3 = _fold_bn(*params["stack3"])             # (3,3,96,96)
    c0, c1, c2, c3 = w0.shape[3], w1.shape[3], w2.shape[3], w3.shape[3]
    w0r = w0.reshape(9 * cin, c0)                    # im2col layout (dy,dx,cin)
    w1r = w1.reshape(cin, c1)
    cpad = pl.cdiv(c0 + c3, 128) * 128               # 512: lane-dense output width

    # Packed folded-BN biases: one DMA instead of four.
    bias_pack = jnp.zeros((4, c0), jnp.float32)
    bias_pack = bias_pack.at[0, :c0].set(b0[0])
    bias_pack = bias_pack.at[1, :c1].set(b1[0])
    bias_pack = bias_pack.at[2, :c2].set(b2[0])
    bias_pack = bias_pack.at[3, :c3].set(b3[0])

    x_nhwc = jnp.transpose(x, (0, 2, 3, 1)).astype(jnp.float32)

    # (1) branch3x3 im2col (tap order (dy, dx, cin) matches w0r's row order).
    taps = []
    for dy in range(3):
        for dx in range(3):
            taps.append(x_nhwc[:, dy:dy + 2 * ho:2, dx:dx + 2 * wo:2, :])
    p3 = jnp.concatenate(taps, axis=-1).reshape(B, ho * wo, 9 * cin)
    p3 = p3.astype(jnp.bfloat16)

    # (2) stack input: 16 pre-cropped (row-parity, col-parity, row-shift, col-shift)
    #     pieces of the zero-padded input, each flattened to (hh*wh, cin), plus the
    #     pad-ring mask for the 1x1-conv activation (relu(bias) on the ring -> 0).
    x_pad = jnp.pad(x_nhwc, ((0, 0), (1, 1), (1, 1), (0, 0)))
    pieces, masks = [], []
    for a in range(2):
        for c in range(2):
            xp_ac = x_pad[:, a::2, c::2, :]          # (B, H//2+1, W//2+1, cin)
            for ro in range(2):
                for o in range(2):
                    pieces.append(
                        xp_ac[:, ro:ro + hh, o:o + wh, :].reshape(B, frame, cin))
                    rows = 2 * (ro + np.arange(hh)) + a
                    cols = 2 * (o + np.arange(wh)) + c
                    keep = ((rows != 0) & (rows != Hp - 1))[:, None] & \
                           ((cols != 0) & (cols != Wp - 1))[None, :]
                    masks.append(keep.astype(np.float32).reshape(frame, 1))
    xin = jnp.concatenate(pieces, axis=1).astype(jnp.bfloat16)   # (B, 16*frame, cin)
    ring_mask = jnp.asarray(np.concatenate(masks, axis=0))       # (16*frame, 1) f32

    kernel = functools.partial(_inception_b_kernel, hh=hh, wh=wh, ho=ho, wo=wo)

    out = pl.pallas_call(
        kernel,
        out_shape=jax.ShapeDtypeStruct((B, ho * wo, cpad), jnp.float32),
        grid_spec=pltpu.PrefetchScalarGridSpec(
            num_scalar_prefetch=0,
            grid=(B,),
            in_specs=[
                pl.BlockSpec((1, ho * wo, 9 * cin), lambda b: (b, 0, 0)),
                pl.BlockSpec((1, 16 * frame, cin), lambda b: (b, 0, 0)),
                pl.BlockSpec((16 * frame, 1), lambda b: (0, 0)),
                pl.BlockSpec((9 * cin, c0), lambda b: (0, 0)),
                pl.BlockSpec((cin, c1), lambda b: (0, 0)),
                pl.BlockSpec((3, 3, c1, c2), lambda b: (0, 0, 0, 0)),
                pl.BlockSpec((3, 3, c2, c3), lambda b: (0, 0, 0, 0)),
                pl.BlockSpec((4, c0), lambda b: (0, 0)),
            ],
            out_specs=pl.BlockSpec((1, ho * wo, cpad), lambda b: (b, 0, 0)),
        ),
        compiler_params=pltpu.CompilerParams(
            dimension_semantics=("parallel",)),
    )(p3, xin, ring_mask, w0r, w1r, w2, w3, bias_pack)

    # branchpool: 3x3/2 max-pool on the tiny raw input, pure XLA (off the kernel's
    # critical path).  Channel order matches torch.cat([b3x3, stack, pool], dim=1).
    pool = jax.lax.reduce_window(x.astype(jnp.float32), -jnp.inf, jax.lax.max,
                                 (1, 1, 3, 3), (1, 1, 2, 2), "VALID")
    y = out[:, :, :c0 + c3].reshape(B, ho, wo, c0 + c3)
    y = jnp.transpose(y, (0, 3, 1, 2))               # (B, 480, ho, wo)
    return jnp.concatenate([y, pool], axis=1)


# ----------------------------- pure-JAX reference ------------------------------
def _conv_bn_relu_ref(x, w, gamma, beta, mean, var, stride, padding, eps=1e-5):
    out = jax.lax.conv_general_dilated(
        x, w, window_strides=(stride, stride),
        padding=[(padding, padding), (padding, padding)],
        dimension_numbers=("NCHW", "OIHW", "NCHW"),
        precision=jax.lax.Precision.HIGHEST)
    scale = gamma / jnp.sqrt(var + eps)
    bias = beta - mean * scale
    return jnp.maximum(out * scale[None, :, None, None] + bias[None, :, None, None], 0.0)


def inception_b_ref(x, params):
    b3 = _conv_bn_relu_ref(x, *params["branch3x3"], stride=2, padding=0)
    t = _conv_bn_relu_ref(x, *params["stack1"], stride=1, padding=0)
    t = _conv_bn_relu_ref(t, *params["stack2"], stride=1, padding=1)
    bs = _conv_bn_relu_ref(t, *params["stack3"], stride=2, padding=0)
    bp = jax.lax.reduce_window(x, -jnp.inf, jax.lax.max,
                               (1, 1, 3, 3), (1, 1, 2, 2), "VALID")
    return jnp.concatenate([b3, bs, bp], axis=1)


def _make_conv_bn_params(key, cout, cin, k):
    kw, kg, kb, km, kv = jax.random.split(key, 5)
    fan_in = cin * k * k
    bound = 1.0 / np.sqrt(fan_in)
    w = jax.random.uniform(kw, (cout, cin, k, k), jnp.float32, -bound, bound)
    gamma = jax.random.uniform(kg, (cout,), jnp.float32, 0.5, 1.5)
    beta = 0.1 * jax.random.normal(kb, (cout,), jnp.float32)
    mean = 0.1 * jax.random.normal(km, (cout,), jnp.float32)
    var = jax.random.uniform(kv, (cout,), jnp.float32, 0.5, 1.5)
    return (w, gamma, beta, mean, var)


if __name__ == "__main__":
    key = jax.random.PRNGKey(0)
    kx, k0, k1, k2, k3 = jax.random.split(key, 5)

    B, CIN, H, W = 2, 4, 16, 16
    x = jax.random.normal(kx, (B, CIN, H, W), jnp.float32)
    params = {
        "branch3x3": _make_conv_bn_params(k0, 384, CIN, 3),
        "stack1": _make_conv_bn_params(k1, 64, CIN, 1),
        "stack2": _make_conv_bn_params(k2, 96, 64, 3),
        "stack3": _make_conv_bn_params(k3, 96, 96, 3),
    }

    fwd = jax.jit(inception_b)
    out = jax.block_until_ready(fwd(x, params))
    ref = jax.block_until_ready(inception_b_ref(x, params))

    Ho = (H - 3) // 2 + 1
    assert out.shape == (B, 384 + 96 + CIN, Ho, Ho), out.shape
    # Tolerance covers bf16 MXU operands (f32 accumulation) vs the HIGHEST-precision
    # f32 XLA conv reference.
    np.testing.assert_allclose(np.asarray(out), np.asarray(ref), rtol=2e-2, atol=2e-2)
    print("KERNEL_OK")
</pallas_src>

<mosaic_0001>
module attributes {stable_mosaic.version = 11 : i64} {
  func.func @_inception_b_kernel(%arg0: i32, %arg1: memref<1x49x36xbf16, #tpu.memory_space<vmem>>, %arg2: memref<1x1024x4xbf16, #tpu.memory_space<vmem>>, %arg3: memref<1024x1xf32, #tpu.memory_space<vmem>>, %arg4: memref<36x384xbf16, #tpu.memory_space<vmem>>, %arg5: memref<4x64xbf16, #tpu.memory_space<vmem>>, %arg6: memref<3x3x64x96xbf16, #tpu.memory_space<vmem>>, %arg7: memref<3x3x96x96xbf16, #tpu.memory_space<vmem>>, %arg8: memref<4x384xf32, #tpu.memory_space<vmem>>, %arg9: memref<1x49x512xf32, #tpu.memory_space<vmem>>) attributes {dimension_semantics = [#tpu.dimension_semantics<parallel>], iteration_bounds = array<i64: 2>, scalar_prefetch = 0 : i64, scratch_operands = 0 : i64, tpu.core_type = #tpu.core_type<tc>, window_params = [{transform_indices = @transform_0, window_bounds = array<i64: 1, 49, 36>}, {transform_indices = @transform_1, window_bounds = array<i64: 1, 1024, 4>}, {pipeline_mode = #tpu.pipeline_mode<synchronous>, transform_indices = @transform_2, window_bounds = array<i64: 1024, 1>}, {pipeline_mode = #tpu.pipeline_mode<synchronous>, transform_indices = @transform_3, window_bounds = array<i64: 36, 384>}, {pipeline_mode = #tpu.pipeline_mode<synchronous>, transform_indices = @transform_4, window_bounds = array<i64: 4, 64>}, {pipeline_mode = #tpu.pipeline_mode<synchronous>, transform_indices = @transform_5, window_bounds = array<i64: 3, 3, 64, 96>}, {pipeline_mode = #tpu.pipeline_mode<synchronous>, transform_indices = @transform_6, window_bounds = array<i64: 3, 3, 96, 96>}, {pipeline_mode = #tpu.pipeline_mode<synchronous>, transform_indices = @transform_7, window_bounds = array<i64: 4, 384>}, {transform_indices = @transform_8, window_bounds = array<i64: 1, 49, 512>}]} {
    %c0 = arith.constant 0 : index
    %c0_0 = arith.constant 0 : index
    %0 = vector.load %arg8[%c0, %c0_0] : memref<4x384xf32, #tpu.memory_space<vmem>>, vector<1x384xf32>
    %c1 = arith.constant 1 : index
    %c0_1 = arith.constant 0 : index
    %1 = vector.load %arg8[%c1, %c0_1] : memref<4x384xf32, #tpu.memory_space<vmem>>, vector<1x64xf32>
    %c2 = arith.constant 2 : index
    %c0_2 = arith.constant 0 : index
    %2 = vector.load %arg8[%c2, %c0_2] : memref<4x384xf32, #tpu.memory_space<vmem>>, vector<1x96xf32>
    %c3 = arith.constant 3 : index
    %c0_3 = arith.constant 0 : index
    %3 = vector.load %arg8[%c3, %c0_3] : memref<4x384xf32, #tpu.memory_space<vmem>>, vector<1x96xf32>
    %c0_4 = arith.constant 0 : index
    %c0_5 = arith.constant 0 : index
    %c0_6 = arith.constant 0 : index
    %4 = vector.load %arg1[%c0_4, %c0_5, %c0_6] : memref<1x49x36xbf16, #tpu.memory_space<vmem>>, vector<1x49x36xbf16>
    %5 = vector.shape_cast %4 : vector<1x49x36xbf16> to vector<49x36xbf16>
    %c0_7 = arith.constant 0 : index
    %c0_8 = arith.constant 0 : index
    %6 = vector.load %arg4[%c0_7, %c0_8] : memref<36x384xbf16, #tpu.memory_space<vmem>>, vector<36x384xbf16>
    %cst = arith.constant dense<0.000000e+00> : vector<49x384xf32>
    %7 = tpu.matmul %5, %6, %cst {dimension_numbers = #tpu.dot_dimension_numbers<[1], [0], [0], [1], [0, 0, 1, 1], [], []>} : vector<49x36xbf16>, vector<36x384xbf16>, vector<49x384xf32> -> vector<49x384xf32>
    %8 = vector.broadcast %0 : vector<1x384xf32> to vector<49x384xf32>
    %9 = arith.addf %7, %8 : vector<49x384xf32>
    %cst_9 = arith.constant 0.000000e+00 : f32
    %10 = vector.broadcast %cst_9 : f32 to vector<49x384xf32>
    %11 = arith.maximumf %9, %10 : vector<49x384xf32>
    %c0_10 = arith.constant 0 : index
    %c0_11 = arith.constant 0 : index
    %c0_12 = arith.constant 0 : index
    %12 = vector.load %arg2[%c0_10, %c0_11, %c0_12] : memref<1x1024x4xbf16, #tpu.memory_space<vmem>>, vector<1x1024x4xbf16>
    %13 = vector.shape_cast %12 : vector<1x1024x4xbf16> to vector<1024x4xbf16>
    %c0_13 = arith.constant 0 : index
    %c0_14 = arith.constant 0 : index
    %14 = vector.load %arg5[%c0_13, %c0_14] : memref<4x64xbf16, #tpu.memory_space<vmem>>, vector<4x64xbf16>
    %cst_15 = arith.constant dense<0.000000e+00> : vector<1024x64xf32>
    %15 = tpu.matmul %13, %14, %cst_15 {dimension_numbers = #tpu.dot_dimension_numbers<[1], [0], [0], [1], [0, 0, 1, 1], [], []>} : vector<1024x4xbf16>, vector<4x64xbf16>, vector<1024x64xf32> -> vector<1024x64xf32>
    %16 = vector.broadcast %1 : vector<1x64xf32> to vector<1024x64xf32>
    %17 = arith.addf %15, %16 : vector<1024x64xf32>
    %cst_16 = arith.constant 0.000000e+00 : f32
    %18 = vector.broadcast %cst_16 : f32 to vector<1024x64xf32>
    %19 = arith.maximumf %17, %18 : vector<1024x64xf32>
    %c0_17 = arith.constant 0 : index
    %c0_18 = arith.constant 0 : index
    %20 = vector.load %arg3[%c0_17, %c0_18] : memref<1024x1xf32, #tpu.memory_space<vmem>>, vector<1024x1xf32>
    %21 = vector.broadcast %20 : vector<1024x1xf32> to vector<1024x64xf32>
    %22 = arith.mulf %19, %21 : vector<1024x64xf32>
    %23 = arith.truncf %22 : vector<1024x64xf32> to vector<1024x64xbf16>
    %cst_19 = arith.constant 0.000000e+00 : f32
    %24 = vector.broadcast %cst_19 : f32 to vector<64x96xf32>
    %25 = vector.extract_strided_slice %23 {offsets = [0, 0], sizes = [64, 64], strides = [1, 1]} : vector<1024x64xbf16> to vector<64x64xbf16>
    %c0_20 = arith.constant 0 : index
    %c0_21 = arith.constant 0 : index
    %c0_22 = arith.constant 0 : index
    %c0_23 = arith.constant 0 : index
    %26 = vector.load %arg6[%c0_20, %c0_21, %c0_22, %c0_23] : memref<3x3x64x96xbf16, #tpu.memory_space<vmem>>, vector<1x1x64x96xbf16>
    %27 = vector.shape_cast %26 : vector<1x1x64x96xbf16> to vector<64x96xbf16>
    %cst_24 = arith.constant dense<0.000000e+00> : vector<64x96xf32>
    %28 = tpu.matmul %25, %27, %cst_24 {dimension_numbers = #tpu.dot_dimension_numbers<[1], [0], [0], [1], [0, 0, 1, 1], [], []>} : vector<64x64xbf16>, vector<64x96xbf16>, vector<64x96xf32> -> vector<64x96xf32>
    %29 = arith.addf %24, %28 : vector<64x96xf32>
    %30 = vector.extract_strided_slice %23 {offsets = [256, 0], sizes = [64, 64], strides = [1, 1]} : vector<1024x64xbf16> to vector<64x64xbf16>
    %c0_25 = arith.constant 0 : index
    %c1_26 = arith.constant 1 : index
    %c0_27 = arith.constant 0 : index
    %c0_28 = arith.constant 0 : index
    %31 = vector.load %arg6[%c0_25, %c1_26, %c0_27, %c0_28] : memref<3x3x64x96xbf16, #tpu.memory_space<vmem>>, vector<1x1x64x96xbf16>
    %32 = vector.shape_cast %31 : vector<1x1x64x96xbf16> to vector<64x96xbf16>
    %cst_29 = arith.constant dense<0.000000e+00> : vector<64x96xf32>
    %33 = tpu.matmul %30, %32, %cst_29 {dimension_numbers = #tpu.dot_dimension_numbers<[1], [0], [0], [1], [0, 0, 1, 1], [], []>} : vector<64x64xbf16>, vector<64x96xbf16>, vector<64x96xf32> -> vector<64x96xf32>
    %34 = arith.addf %29, %33 : vector<64x96xf32>
    %35 = vector.extract_strided_slice %23 {offsets = [64, 0], sizes = [64, 64], strides = [1, 1]} : vector<1024x64xbf16> to vector<64x64xbf16>
    %c0_30 = arith.constant 0 : index
    %c2_31 = arith.constant 2 : index
    %c0_32 = arith.constant 0 : index
    %c0_33 = arith.constant 0 : index
    %36 = vector.load %arg6[%c0_30, %c2_31, %c0_32, %c0_33] : memref<3x3x64x96xbf16, #tpu.memory_space<vmem>>, vector<1x1x64x96xbf16>
    %37 = vector.shape_cast %36 : vector<1x1x64x96xbf16> to vector<64x96xbf16>
    %cst_34 = arith.constant dense<0.000000e+00> : vector<64x96xf32>
    %38 = tpu.matmul %35, %37, %cst_34 {dimension_numbers = #tpu.dot_dimension_numbers<[1], [0], [0], [1], [0, 0, 1, 1], [], []>} : vector<64x64xbf16>, vector<64x96xbf16>, vector<64x96xf32> -> vector<64x96xf32>
    %39 = arith.addf %34, %38 : vector<64x96xf32>
    %40 = vector.extract_strided_slice %23 {offsets = [512, 0], sizes = [64, 64], strides = [1, 1]} : vector<1024x64xbf16> to vector<64x64xbf16>
    %c1_35 = arith.constant 1 : index
    %c0_36 = arith.constant 0 : index
    %c0_37 = arith.constant 0 : index
    %c0_38 = arith.constant 0 : index
    %41 = vector.load %arg6[%c1_35, %c0_36, %c0_37, %c0_38] : memref<3x3x64x96xbf16, #tpu.memory_space<vmem>>, vector<1x1x64x96xbf16>
    %42 = vector.shape_cast %41 : vector<1x1x64x96xbf16> to vector<64x96xbf16>
    %cst_39 = arith.constant dense<0.000000e+00> : vector<64x96xf32>
    %43 = tpu.matmul %40, %42, %cst_39 {dimension_numbers = #tpu.dot_dimension_numbers<[1], [0], [0], [1], [0, 0, 1, 1], [], []>} : vector<64x64xbf16>, vector<64x96xbf16>, vector<64x96xf32> -> vector<64x96xf32>
    %44 = arith.addf %39, %43 : vector<64x96xf32>
    %45 = vector.extract_strided_slice %23 {offsets = [768, 0], sizes = [64, 64], strides = [1, 1]} : vector<1024x64xbf16> to vector<64x64xbf16>
    %c1_40 = arith.constant 1 : index
    %c1_41 = arith.constant 1 : index
    %c0_42 = arith.constant 0 : index
    %c0_43 = arith.constant 0 : index
    %46 = vector.load %arg6[%c1_40, %c1_41, %c0_42, %c0_43] : memref<3x3x64x96xbf16, #tpu.memory_space<vmem>>, vector<1x1x64x96xbf16>
    %47 = vector.shape_cast %46 : vector<1x1x64x96xbf16> to vector<64x96xbf16>
    %cst_44 = arith.constant dense<0.000000e+00> : vector<64x96xf32>
    %48 = tpu.matmul %45, %47, %cst_44 {dimension_numbers = #tpu.dot_dimension_numbers<[1], [0], [0], [1], [0, 0, 1, 1], [], []>} : vector<64x64xbf16>, vector<64x96xbf16>, vector<64x96xf32> -> vector<64x96xf32>
    %49 = arith.addf %44, %48 : vector<64x96xf32>
    %50 = vector.extract_strided_slice %23 {offsets = [576, 0], sizes = [64, 64], strides = [1, 1]} : vector<1024x64xbf16> to vector<64x64xbf16>
    %c1_45 = arith.constant 1 : index
    %c2_46 = arith.constant 2 : index
    %c0_47 = arith.constant 0 : index
    %c0_48 = arith.constant 0 : index
    %51 = vector.load %arg6[%c1_45, %c2_46, %c0_47, %c0_48] : memref<3x3x64x96xbf16, #tpu.memory_space<vmem>>, vector<1x1x64x96xbf16>
    %52 = vector.shape_cast %51 : vector<1x1x64x96xbf16> to vector<64x96xbf16>
    %cst_49 = arith.constant dense<0.000000e+00> : vector<64x96xf32>
    %53 = tpu.matmul %50, %52, %cst_49 {dimension_numbers = #tpu.dot_dimension_numbers<[1], [0], [0], [1], [0, 0, 1, 1], [], []>} : vector<64x64xbf16>, vector<64x96xbf16>, vector<64x96xf32> -> vector<64x96xf32>
    %54 = arith.addf %49, %53 : vector<64x96xf32>
    %55 = vector.extract_strided_slice %23 {offsets = [128, 0], sizes = [64, 64], strides = [1, 1]} : vector<1024x64xbf16> to vector<64x64xbf16>
    %c2_50 = arith.constant 2 : index
    %c0_51 = arith.constant 0 : index
    %c0_52 = arith.constant 0 : index
    %c0_53 = arith.constant 0 : index
    %56 = vector.load %arg6[%c2_50, %c0_51, %c0_52, %c0_53] : memref<3x3x64x96xbf16, #tpu.memory_space<vmem>>, vector<1x1x64x96xbf16>
    %57 = vector.shape_cast %56 : vector<1x1x64x96xbf16> to vector<64x96xbf16>
    %cst_54 = arith.constant dense<0.000000e+00> : vector<64x96xf32>
    %58 = tpu.matmul %55, %57, %cst_54 {dimension_numbers = #tpu.dot_dimension_numbers<[1], [0], [0], [1], [0, 0, 1, 1], [], []>} : vector<64x64xbf16>, vector<64x96xbf16>, vector<64x96xf32> -> vector<64x96xf32>
    %59 = arith.addf %54, %58 : vector<64x96xf32>
    %60 = vector.extract_strided_slice %23 {offsets = [384, 0], sizes = [64, 64], strides = [1, 1]} : vector<1024x64xbf16> to vector<64x64xbf16>
    %c2_55 = arith.constant 2 : index
    %c1_56 = arith.constant 1 : index
    %c0_57 = arith.constant 0 : index
    %c0_58 = arith.constant 0 : index
    %61 = vector.load %arg6[%c2_55, %c1_56, %c0_57, %c0_58] : memref<3x3x64x96xbf16, #tpu.memory_space<vmem>>, vector<1x1x64x96xbf16>
    %62 = vector.shape_cast %61 : vector<1x1x64x96xbf16> to vector<64x96xbf16>
    %cst_59 = arith.constant dense<0.000000e+00> : vector<64x96xf32>
    %63 = tpu.matmul %60, %62, %cst_59 {dimension_numbers = #tpu.dot_dimension_numbers<[1], [0], [0], [1], [0, 0, 1, 1], [], []>} : vector<64x64xbf16>, vector<64x96xbf16>, vector<64x96xf32> -> vector<64x96xf32>
    %64 = arith.addf %59, %63 : vector<64x96xf32>
    %65 = vector.extract_strided_slice %23 {offsets = [192, 0], sizes = [64, 64], strides = [1, 1]} : vector<1024x64xbf16> to vector<64x64xbf16>
    %c2_60 = arith.constant 2 : index
    %c2_61 = arith.constant 2 : index
    %c0_62 = arith.constant 0 : index
    %c0_63 = arith.constant 0 : index
    %66 = vector.load %arg6[%c2_60, %c2_61, %c0_62, %c0_63] : memref<3x3x64x96xbf16, #tpu.memory_space<vmem>>, vector<1x1x64x96xbf16>
    %67 = vector.shape_cast %66 : vector<1x1x64x96xbf16> to vector<64x96xbf16>
    %cst_64 = arith.constant dense<0.000000e+00> : vector<64x96xf32>
    %68 = tpu.matmul %65, %67, %cst_64 {dimension_numbers = #tpu.dot_dimension_numbers<[1], [0], [0], [1], [0, 0, 1, 1], [], []>} : vector<64x64xbf16>, vector<64x96xbf16>, vector<64x96xf32> -> vector<64x96xf32>
    %69 = arith.addf %64, %68 : vector<64x96xf32>
    %70 = vector.broadcast %2 : vector<1x96xf32> to vector<64x96xf32>
    %71 = arith.addf %69, %70 : vector<64x96xf32>
    %cst_65 = arith.constant 0.000000e+00 : f32
    %72 = vector.broadcast %cst_65 : f32 to vector<64x96xf32>
    %73 = arith.maximumf %71, %72 : vector<64x96xf32>
    %cst_66 = arith.constant 0.000000e+00 : f32
    %74 = vector.broadcast %cst_66 : f32 to vector<64x96xf32>
    %75 = vector.extract_strided_slice %23 {offsets = [256, 0], sizes = [64, 64], strides = [1, 1]} : vector<1024x64xbf16> to vector<64x64xbf16>
    %c0_67 = arith.constant 0 : index
    %c0_68 = arith.constant 0 : index
    %c0_69 = arith.constant 0 : index
    %c0_70 = arith.constant 0 : index
    %76 = vector.load %arg6[%c0_67, %c0_68, %c0_69, %c0_70] : memref<3x3x64x96xbf16, #tpu.memory_space<vmem>>, vector<1x1x64x96xbf16>
    %77 = vector.shape_cast %76 : vector<1x1x64x96xbf16> to vector<64x96xbf16>
    %cst_71 = arith.constant dense<0.000000e+00> : vector<64x96xf32>
    %78 = tpu.matmul %75, %77, %cst_71 {dimension_numbers = #tpu.dot_dimension_numbers<[1], [0], [0], [1], [0, 0, 1, 1], [], []>} : vector<64x64xbf16>, vector<64x96xbf16>, vector<64x96xf32> -> vector<64x96xf32>
    %79 = arith.addf %74, %78 : vector<64x96xf32>
    %80 = vector.extract_strided_slice %23 {offsets = [64, 0], sizes = [64, 64], strides = [1, 1]} : vector<1024x64xbf16> to vector<64x64xbf16>
    %c0_72 = arith.constant 0 : index
    %c1_73 = arith.constant 1 : index
    %c0_74 = arith.constant 0 : index
    %c0_75 = arith.constant 0 : index
    %81 = vector.load %arg6[%c0_72, %c1_73, %c0_74, %c0_75] : memref<3x3x64x96xbf16, #tpu.memory_space<vmem>>, vector<1x1x64x96xbf16>
    %82 = vector.shape_cast %81 : vector<1x1x64x96xbf16> to vector<64x96xbf16>
    %cst_76 = arith.constant dense<0.000000e+00> : vector<64x96xf32>
    %83 = tpu.matmul %80, %82, %cst_76 {dimension_numbers = #tpu.dot_dimension_numbers<[1], [0], [0], [1], [0, 0, 1, 1], [], []>} : vector<64x64xbf16>, vector<64x96xbf16>, vector<64x96xf32> -> vector<64x96xf32>
    %84 = arith.addf %79, %83 : vector<64x96xf32>
    %85 = vector.extract_strided_slice %23 {offsets = [320, 0], sizes = [64, 64], strides = [1, 1]} : vector<1024x64xbf16> to vector<64x64xbf16>
    %c0_77 = arith.constant 0 : index
    %c2_78 = arith.constant 2 : index
    %c0_79 = arith.constant 0 : index
    %c0_80 = arith.constant 0 : index
    %86 = vector.load %arg6[%c0_77, %c2_78, %c0_79, %c0_80] : memref<3x3x64x96xbf16, #tpu.memory_space<vmem>>, vector<1x1x64x96xbf16>
    %87 = vector.shape_cast %86 : vector<1x1x64x96xbf16> to vector<64x96xbf16>
    %cst_81 = arith.constant dense<0.000000e+00> : vector<64x96xf32>
    %88 = tpu.matmul %85, %87, %cst_81 {dimension_numbers = #tpu.dot_dimension_numbers<[1], [0], [0], [1], [0, 0, 1, 1], [], []>} : vector<64x64xbf16>, vector<64x96xbf16>, vector<64x96xf32> -> vector<64x96xf32>
    %89 = arith.addf %84, %88 : vector<64x96xf32>
    %90 = vector.extract_strided_slice %23 {offsets = [768, 0], sizes = [64, 64], strides = [1, 1]} : vector<1024x64xbf16> to vector<64x64xbf16>
    %c1_82 = arith.constant 1 : index
    %c0_83 = arith.constant 0 : index
    %c0_84 = arith.constant 0 : index
    %c0_85 = arith.constant 0 : index
    %91 = vector.load %arg6[%c1_82, %c0_83, %c0_84, %c0_85] : memref<3x3x64x96xbf16, #tpu.memory_space<vmem>>, vector<1x1x64x96xbf16>
    %92 = vector.shape_cast %91 : vector<1x1x64x96xbf16> to vector<64x96xbf16>
    %cst_86 = arith.constant dense<0.000000e+00> : vector<64x96xf32>
    %93 = tpu.matmul %90, %92, %cst_86 {dimension_numbers = #tpu.dot_dimension_numbers<[1], [0], [0], [1], [0, 0, 1, 1], [], []>} : vector<64x64xbf16>, vector<64x96xbf16>, vector<64x96xf32> -> vector<64x96xf32>
    %94 = arith.addf %89, %93 : vector<64x96xf32>
    %95 = vector.extract_strided_slice %23 {offsets = [576, 0], sizes = [64, 64], strides = [1, 1]} : vector<1024x64xbf16> to vector<64x64xbf16>
    %c1_87 = arith.constant 1 : index
    %c1_88 = arith.constant 1 : index
    %c0_89 = arith.constant 0 : index
    %c0_90 = arith.constant 0 : index
    %96 = vector.load %arg6[%c1_87, %c1_88, %c0_89, %c0_90] : memref<3x3x64x96xbf16, #tpu.memory_space<vmem>>, vector<1x1x64x96xbf16>
    %97 = vector.shape_cast %96 : vector<1x1x64x96xbf16> to vector<64x96xbf16>
    %cst_91 = arith.constant dense<0.000000e+00> : vector<64x96xf32>
    %98 = tpu.matmul %95, %97, %cst_91 {dimension_numbers = #tpu.dot_dimension_numbers<[1], [0], [0], [1], [0, 0, 1, 1], [], []>} : vector<64x64xbf16>, vector<64x96xbf16>, vector<64x96xf32> -> vector<64x96xf32>
    %99 = arith.addf %94, %98 : vector<64x96xf32>
    %100 = vector.extract_strided_slice %23 {offsets = [832, 0], sizes = [64, 64], strides = [1, 1]} : vector<1024x64xbf16> to vector<64x64xbf16>
    %c1_92 = arith.constant 1 : index
    %c2_93 = arith.constant 2 : index
    %c0_94 = arith.constant 0 : index
    %c0_95 = arith.constant 0 : index
    %101 = vector.load %arg6[%c1_92, %c2_93, %c0_94, %c0_95] : memref<3x3x64x96xbf16, #tpu.memory_space<vmem>>, vector<1x1x64x96xbf16>
    %102 = vector.shape_cast %101 : vector<1x1x64x96xbf16> to vector<64x96xbf16>
    %cst_96 = arith.constant dense<0.000000e+00> : vector<64x96xf32>
    %103 = tpu.matmul %100, %102, %cst_96 {dimension_numbers = #tpu.dot_dimension_numbers<[1], [0], [0], [1], [0, 0, 1, 1], [], []>} : vector<64x64xbf16>, vector<64x96xbf16>, vector<64x96xf32> -> vector<64x96xf32>
    %104 = arith.addf %99, %103 : vector<64x96xf32>
    %105 = vector.extract_strided_slice %23 {offsets = [384, 0], sizes = [64, 64], strides = [1, 1]} : vector<1024x64xbf16> to vector<64x64xbf16>
    %c2_97 = arith.constant 2 : index
    %c0_98 = arith.constant 0 : index
    %c0_99 = arith.constant 0 : index
    %c0_100 = arith.constant 0 : index
    %106 = vector.load %arg6[%c2_97, %c0_98, %c0_99, %c0_100] : memref<3x3x64x96xbf16, #tpu.memory_space<vmem>>, vector<1x1x64x96xbf16>
    %107 = vector.shape_cast %106 : vector<1x1x64x96xbf16> to vector<64x96xbf16>
    %cst_101 = arith.constant dense<0.000000e+00> : vector<64x96xf32>
    %108 = tpu.matmul %105, %107, %cst_101 {dimension_numbers = #tpu.dot_dimension_numbers<[1], [0], [0], [1], [0, 0, 1, 1], [], []>} : vector<64x64xbf16>, vector<64x96xbf16>, vector<64x96xf32> -> vector<64x96xf32>
    %109 = arith.addf %104, %108 : vector<64x96xf32>
    %110 = vector.extract_strided_slice %23 {offsets = [192, 0], sizes = [64, 64], strides = [1, 1]} : vector<1024x64xbf16> to vector<64x64xbf16>
    %c2_102 = arith.constant 2 : index
    %c1_103 = arith.constant 1 : index
    %c0_104 = arith.constant 0 : index
    %c0_105 = arith.constant 0 : index
    %111 = vector.load %arg6[%c2_102, %c1_103, %c0_104, %c0_105] : memref<3x3x64x96xbf16, #tpu.memory_space<vmem>>, vector<1x1x64x96xbf16>
    %112 = vector.shape_cast %111 : vector<1x1x64x96xbf16> to vector<64x96xbf16>
    %cst_106 = arith.constant dense<0.000000e+00> : vector<64x96xf32>
    %113 = tpu.matmul %110, %112, %cst_106 {dimension_numbers = #tpu.dot_dimension_numbers<[1], [0], [0], [1], [0, 0, 1, 1], [], []>} : vector<64x64xbf16>, vector<64x96xbf16>, vector<64x96xf32> -> vector<64x96xf32>
    %114 = arith.addf %109, %113 : vector<64x96xf32>
    %115 = vector.extract_strided_slice %23 {offsets = [448, 0], sizes = [64, 64], strides = [1, 1]} : vector<1024x64xbf16> to vector<64x64xbf16>
    %c2_107 = arith.constant 2 : index
    %c2_108 = arith.constant 2 : index
    %c0_109 = arith.constant 0 : index
    %c0_110 = arith.constant 0 : index
    %116 = vector.load %arg6[%c2_107, %c2_108, %c0_109, %c0_110] : memref<3x3x64x96xbf16, #tpu.memory_space<vmem>>, vector<1x1x64x96xbf16>
    %117 = vector.shape_cast %116 : vector<1x1x64x96xbf16> to vector<64x96xbf16>
    %cst_111 = arith.constant dense<0.000000e+00> : vector<64x96xf32>
    %118 = tpu.matmul %115, %117, %cst_111 {dimension_numbers = #tpu.dot_dimension_numbers<[1], [0], [0], [1], [0, 0, 1, 1], [], []>} : vector<64x64xbf16>, vector<64x96xbf16>, vector<64x96xf32> -> vector<64x96xf32>
    %119 = arith.addf %114, %118 : vector<64x96xf32>
    %120 = vector.broadcast %2 : vector<1x96xf32> to vector<64x96xf32>
    %121 = arith.addf %119, %120 : vector<64x96xf32>
    %cst_112 = arith.constant 0.000000e+00 : f32
    %122 = vector.broadcast %cst_112 : f32 to vector<64x96xf32>
    %123 = arith.maximumf %121, %122 : vector<64x96xf32>
    %cst_113 = arith.constant 0.000000e+00 : f32
    %124 = vector.broadcast %cst_113 : f32 to vector<64x96xf32>
    %125 = vector.extract_strided_slice %23 {offsets = [512, 0], sizes = [64, 64], strides = [1, 1]} : vector<1024x64xbf16> to vector<64x64xbf16>
    %c0_114 = arith.constant 0 : index
    %c0_115 = arith.constant 0 : index
    %c0_116 = arith.constant 0 : index
    %c0_117 = arith.constant 0 : index
    %126 = vector.load %arg6[%c0_114, %c0_115, %c0_116, %c0_117] : memref<3x3x64x96xbf16, #tpu.memory_space<vmem>>, vector<1x1x64x96xbf16>
    %127 = vector.shape_cast %126 : vector<1x1x64x96xbf16> to vector<64x96xbf16>
    %cst_118 = arith.constant dense<0.000000e+00> : vector<64x96xf32>
    %128 = tpu.matmul %125, %127, %cst_118 {dimension_numbers = #tpu.dot_dimension_numbers<[1], [0], [0], [1], [0, 0, 1, 1], [], []>} : vector<64x64xbf16>, vector<64x96xbf16>, vector<64x96xf32> -> vector<64x96xf32>
    %129 = arith.addf %124, %128 : vector<64x96xf32>
    %130 = vector.extract_strided_slice %23 {offsets = [768, 0], sizes = [64, 64], strides = [1, 1]} : vector<1024x64xbf16> to vector<64x64xbf16>
    %c0_119 = arith.constant 0 : index
    %c1_120 = arith.constant 1 : index
    %c0_121 = arith.constant 0 : index
    %c0_122 = arith.constant 0 : index
    %131 = vector.load %arg6[%c0_119, %c1_120, %c0_121, %c0_122] : memref<3x3x64x96xbf16, #tpu.memory_space<vmem>>, vector<1x1x64x96xbf16>
    %132 = vector.shape_cast %131 : vector<1x1x64x96xbf16> to vector<64x96xbf16>
    %cst_123 = arith.constant dense<0.000000e+00> : vector<64x96xf32>
    %133 = tpu.matmul %130, %132, %cst_123 {dimension_numbers = #tpu.dot_dimension_numbers<[1], [0], [0], [1], [0, 0, 1, 1], [], []>} : vector<64x64xbf16>, vector<64x96xbf16>, vector<64x96xf32> -> vector<64x96xf32>
    %134 = arith.addf %129, %133 : vector<64x96xf32>
    %135 = vector.extract_strided_slice %23 {offsets = [576, 0], sizes = [64, 64], strides = [1, 1]} : vector<1024x64xbf16> to vector<64x64xbf16>
    %c0_124 = arith.constant 0 : index
    %c2_125 = arith.constant 2 : index
    %c0_126 = arith.constant 0 : index
    %c0_127 = arith.constant 0 : index
    %136 = vector.load %arg6[%c0_124, %c2_125, %c0_126, %c0_127] : memref<3x3x64x96xbf16, #tpu.memory_space<vmem>>, vector<1x1x64x96xbf16>
    %137 = vector.shape_cast %136 : vector<1x1x64x96xbf16> to vector<64x96xbf16>
    %cst_128 = arith.constant dense<0.000000e+00> : vector<64x96xf32>
    %138 = tpu.matmul %135, %137, %cst_128 {dimension_numbers = #tpu.dot_dimension_numbers<[1], [0], [0], [1], [0, 0, 1, 1], [], []>} : vector<64x64xbf16>, vector<64x96xbf16>, vector<64x96xf32> -> vector<64x96xf32>
    %139 = arith.addf %134, %138 : vector<64x96xf32>
    %140 = vector.extract_strided_slice %23 {offsets = [128, 0], sizes = [64, 64], strides = [1, 1]} : vector<1024x64xbf16> to vector<64x64xbf16>
    %c1_129 = arith.constant 1 : index
    %c0_130 = arith.constant 0 : index
    %c0_131 = arith.constant 0 : index
    %c0_132 = arith.constant 0 : index
    %141 = vector.load %arg6[%c1_129, %c0_130, %c0_131, %c0_132] : memref<3x3x64x96xbf16, #tpu.memory_space<vmem>>, vector<1x1x64x96xbf16>
    %142 = vector.shape_cast %141 : vector<1x1x64x96xbf16> to vector<64x96xbf16>
    %cst_133 = arith.constant dense<0.000000e+00> : vector<64x96xf32>
    %143 = tpu.matmul %140, %142, %cst_133 {dimension_numbers = #tpu.dot_dimension_numbers<[1], [0], [0], [1], [0, 0, 1, 1], [], []>} : vector<64x64xbf16>, vector<64x96xbf16>, vector<64x96xf32> -> vector<64x96xf32>
    %144 = arith.addf %139, %143 : vector<64x96xf32>
    %145 = vector.extract_strided_slice %23 {offsets = [384, 0], sizes = [64, 64], strides = [1, 1]} : vector<1024x64xbf16> to vector<64x64xbf16>
    %c1_134 = arith.constant 1 : index
    %c1_135 = arith.constant 1 : index
    %c0_136 = arith.constant 0 : index
    %c0_137 = arith.constant 0 : index
    %146 = vector.load %arg6[%c1_134, %c1_135, %c0_136, %c0_137] : memref<3x3x64x96xbf16, #tpu.memory_space<vmem>>, vector<1x1x64x96xbf16>
    %147 = vector.shape_cast %146 : vector<1x1x64x96xbf16> to vector<64x96xbf16>
    %cst_138 = arith.constant dense<0.000000e+00> : vector<64x96xf32>
    %148 = tpu.matmul %145, %147, %cst_138 {dimension_numbers = #tpu.dot_dimension_numbers<[1], [0], [0], [1], [0, 0, 1, 1], [], []>} : vector<64x64xbf16>, vector<64x96xbf16>, vector<64x96xf32> -> vector<64x96xf32>
    %149 = arith.addf %144, %148 : vector<64x96xf32>
    %150 = vector.extract_strided_slice %23 {offsets = [192, 0], sizes = [64, 64], strides = [1, 1]} : vector<1024x64xbf16> to vector<64x64xbf16>
    %c1_139 = arith.constant 1 : index
    %c2_140 = arith.constant 2 : index
    %c0_141 = arith.constant 0 : index
    %c0_142 = arith.constant 0 : index
    %151 = vector.load %arg6[%c1_139, %c2_140, %c0_141, %c0_142] : memref<3x3x64x96xbf16, #tpu.memory_space<vmem>>, vector<1x1x64x96xbf16>
    %152 = vector.shape_cast %151 : vector<1x1x64x96xbf16> to vector<64x96xbf16>
    %cst_143 = arith.constant dense<0.000000e+00> : vector<64x96xf32>
    %153 = tpu.matmul %150, %152, %cst_143 {dimension_numbers = #tpu.dot_dimension_numbers<[1], [0], [0], [1], [0, 0, 1, 1], [], []>} : vector<64x64xbf16>, vector<64x96xbf16>, vector<64x96xf32> -> vector<64x96xf32>
    %154 = arith.addf %149, %153 : vector<64x96xf32>
    %155 = vector.extract_strided_slice %23 {offsets = [640, 0], sizes = [64, 64], strides = [1, 1]} : vector<1024x64xbf16> to vector<64x64xbf16>
    %c2_144 = arith.constant 2 : index
    %c0_145 = arith.constant 0 : index
    %c0_146 = arith.constant 0 : index
    %c0_147 = arith.constant 0 : index
    %156 = vector.load %arg6[%c2_144, %c0_145, %c0_146, %c0_147] : memref<3x3x64x96xbf16, #tpu.memory_space<vmem>>, vector<1x1x64x96xbf16>
    %157 = vector.shape_cast %156 : vector<1x1x64x96xbf16> to vector<64x96xbf16>
    %cst_148 = arith.constant dense<0.000000e+00> : vector<64x96xf32>
    %158 = tpu.matmul %155, %157, %cst_148 {dimension_numbers = #tpu.dot_dimension_numbers<[1], [0], [0], [1], [0, 0, 1, 1], [], []>} : vector<64x64xbf16>, vector<64x96xbf16>, vector<64x96xf32> -> vector<64x96xf32>
    %159 = arith.addf %154, %158 : vector<64x96xf32>
    %160 = vector.extract_strided_slice %23 {offsets = [896, 0], sizes = [64, 64], strides = [1, 1]} : vector<1024x64xbf16> to vector<64x64xbf16>
    %c2_149 = arith.constant 2 : index
    %c1_150 = arith.constant 1 : index
    %c0_151 = arith.constant 0 : index
    %c0_152 = arith.constant 0 : index
    %161 = vector.load %arg6[%c2_149, %c1_150, %c0_151, %c0_152] : memref<3x3x64x96xbf16, #tpu.memory_space<vmem>>, vector<1x1x64x96xbf16>
    %162 = vector.shape_cast %161 : vector<1x1x64x96xbf16> to vector<64x96xbf16>
    %cst_153 = arith.constant dense<0.000000e+00> : vector<64x96xf32>
    %163 = tpu.matmul %160, %162, %cst_153 {dimension_numbers = #tpu.dot_dimension_numbers<[1], [0], [0], [1], [0, 0, 1, 1], [], []>} : vector<64x64xbf16>, vector<64x96xbf16>, vector<64x96xf32> -> vector<64x96xf32>
    %164 = arith.addf %159, %163 : vector<64x96xf32>
    %165 = vector.extract_strided_slice %23 {offsets = [704, 0], sizes = [64, 64], strides = [1, 1]} : vector<1024x64xbf16> to vector<64x64xbf16>
    %c2_154 = arith.constant 2 : index
    %c2_155 = arith.constant 2 : index
    %c0_156 = arith.constant 0 : index
    %c0_157 = arith.constant 0 : index
    %166 = vector.load %arg6[%c2_154, %c2_155, %c0_156, %c0_157] : memref<3x3x64x96xbf16, #tpu.memory_space<vmem>>, vector<1x1x64x96xbf16>
    %167 = vector.shape_cast %166 : vector<1x1x64x96xbf16> to vector<64x96xbf16>
    %cst_158 = arith.constant dense<0.000000e+00> : vector<64x96xf32>
    %168 = tpu.matmul %165, %167, %cst_158 {dimension_numbers = #tpu.dot_dimension_numbers<[1], [0], [0], [1], [0, 0, 1, 1], [], []>} : vector<64x64xbf16>, vector<64x96xbf16>, vector<64x96xf32> -> vector<64x96xf32>
    %169 = arith.addf %164, %168 : vector<64x96xf32>
    %170 = vector.broadcast %2 : vector<1x96xf32> to vector<64x96xf32>
    %171 = arith.addf %169, %170 : vector<64x96xf32>
    %cst_159 = arith.constant 0.000000e+00 : f32
    %172 = vector.broadcast %cst_159 : f32 to vector<64x96xf32>
    %173 = arith.maximumf %171, %172 : vector<64x96xf32>
    %cst_160 = arith.constant 0.000000e+00 : f32
    %174 = vector.broadcast %cst_160 : f32 to vector<64x96xf32>
    %175 = vector.extract_strided_slice %23 {offsets = [768, 0], sizes = [64, 64], strides = [1, 1]} : vector<1024x64xbf16> to vector<64x64xbf16>
    %c0_161 = arith.constant 0 : index
    %c0_162 = arith.constant 0 : index
    %c0_163 = arith.constant 0 : index
    %c0_164 = arith.constant 0 : index
    %176 = vector.load %arg6[%c0_161, %c0_162, %c0_163, %c0_164] : memref<3x3x64x96xbf16, #tpu.memory_space<vmem>>, vector<1x1x64x96xbf16>
    %177 = vector.shape_cast %176 : vector<1x1x64x96xbf16> to vector<64x96xbf16>
    %cst_165 = arith.constant dense<0.000000e+00> : vector<64x96xf32>
    %178 = tpu.matmul %175, %177, %cst_165 {dimension_numbers = #tpu.dot_dimension_numbers<[1], [0], [0], [1], [0, 0, 1, 1], [], []>} : vector<64x64xbf16>, vector<64x96xbf16>, vector<64x96xf32> -> vector<64x96xf32>
    %179 = arith.addf %174, %178 : vector<64x96xf32>
    %180 = vector.extract_strided_slice %23 {offsets = [576, 0], sizes = [64, 64], strides = [1, 1]} : vector<1024x64xbf16> to vector<64x64xbf16>
    %c0_166 = arith.constant 0 : index
    %c1_167 = arith.constant 1 : index
    %c0_168 = arith.constant 0 : index
    %c0_169 = arith.constant 0 : index
    %181 = vector.load %arg6[%c0_166, %c1_167, %c0_168, %c0_169] : memref<3x3x64x96xbf16, #tpu.memory_space<vmem>>, vector<1x1x64x96xbf16>
    %182 = vector.shape_cast %181 : vector<1x1x64x96xbf16> to vector<64x96xbf16>
    %cst_170 = arith.constant dense<0.000000e+00> : vector<64x96xf32>
    %183 = tpu.matmul %180, %182, %cst_170 {dimension_numbers = #tpu.dot_dimension_numbers<[1], [0], [0], [1], [0, 0, 1, 1], [], []>} : vector<64x64xbf16>, vector<64x96xbf16>, vector<64x96xf32> -> vector<64x96xf32>
    %184 = arith.addf %179, %183 : vector<64x96xf32>
    %185 = vector.extract_strided_slice %23 {offsets = [832, 0], sizes = [64, 64], strides = [1, 1]} : vector<1024x64xbf16> to vector<64x64xbf16>
    %c0_171 = arith.constant 0 : index
    %c2_172 = arith.constant 2 : index
    %c0_173 = arith.constant 0 : index
    %c0_174 = arith.constant 0 : index
    %186 = vector.load %arg6[%c0_171, %c2_172, %c0_173, %c0_174] : memref<3x3x64x96xbf16, #tpu.memory_space<vmem>>, vector<1x1x64x96xbf16>
    %187 = vector.shape_cast %186 : vector<1x1x64x96xbf16> to vector<64x96xbf16>
    %cst_175 = arith.constant dense<0.000000e+00> : vector<64x96xf32>
    %188 = tpu.matmul %185, %187, %cst_175 {dimension_numbers = #tpu.dot_dimension_numbers<[1], [0], [0], [1], [0, 0, 1, 1], [], []>} : vector<64x64xbf16>, vector<64x96xbf16>, vector<64x96xf32> -> vector<64x96xf32>
    %189 = arith.addf %184, %188 : vector<64x96xf32>
    %190 = vector.extract_strided_slice %23 {offsets = [384, 0], sizes = [64, 64], strides = [1, 1]} : vector<1024x64xbf16> to vector<64x64xbf16>
    %c1_176 = arith.constant 1 : index
    %c0_177 = arith.constant 0 : index
    %c0_178 = arith.constant 0 : index
    %c0_179 = arith.constant 0 : index
    %191 = vector.load %arg6[%c1_176, %c0_177, %c0_178, %c0_179] : memref<3x3x64x96xbf16, #tpu.memory_space<vmem>>, vector<1x1x64x96xbf16>
    %192 = vector.shape_cast %191 : vector<1x1x64x96xbf16> to vector<64x96xbf16>
    %cst_180 = arith.constant dense<0.000000e+00> : vector<64x96xf32>
    %193 = tpu.matmul %190, %192, %cst_180 {dimension_numbers = #tpu.dot_dimension_numbers<[1], [0], [0], [1], [0, 0, 1, 1], [], []>} : vector<64x64xbf16>, vector<64x96xbf16>, vector<64x96xf32> -> vector<64x96xf32>
    %194 = arith.addf %189, %193 : vector<64x96xf32>
    %195 = vector.extract_strided_slice %23 {offsets = [192, 0], sizes = [64, 64], strides = [1, 1]} : vector<1024x64xbf16> to vector<64x64xbf16>
    %c1_181 = arith.constant 1 : index
    %c1_182 = arith.constant 1 : index
    %c0_183 = arith.constant 0 : index
    %c0_184 = arith.constant 0 : index
    %196 = vector.load %arg6[%c1_181, %c1_182, %c0_183, %c0_184] : memref<3x3x64x96xbf16, #tpu.memory_space<vmem>>, vector<1x1x64x96xbf16>
    %197 = vector.shape_cast %196 : vector<1x1x64x96xbf16> to vector<64x96xbf16>
    %cst_185 = arith.constant dense<0.000000e+00> : vector<64x96xf32>
    %198 = tpu.matmul %195, %197, %cst_185 {dimension_numbers = #tpu.dot_dimension_numbers<[1], [0], [0], [1], [0, 0, 1, 1], [], []>} : vector<64x64xbf16>, vector<64x96xbf16>, vector<64x96xf32> -> vector<64x96xf32>
    %199 = arith.addf %194, %198 : vector<64x96xf32>
    %200 = vector.extract_strided_slice %23 {offsets = [448, 0], sizes = [64, 64], strides = [1, 1]} : vector<1024x64xbf16> to vector<64x64xbf16>
    %c1_186 = arith.constant 1 : index
    %c2_187 = arith.constant 2 : index
    %c0_188 = arith.constant 0 : index
    %c0_189 = arith.constant 0 : index
    %201 = vector.load %arg6[%c1_186, %c2_187, %c0_188, %c0_189] : memref<3x3x64x96xbf16, #tpu.memory_space<vmem>>, vector<1x1x64x96xbf16>
    %202 = vector.shape_cast %201 : vector<1x1x64x96xbf16> to vector<64x96xbf16>
    %cst_190 = arith.constant dense<0.000000e+00> : vector<64x96xf32>
    %203 = tpu.matmul %200, %202, %cst_190 {dimension_numbers = #tpu.dot_dimension_numbers<[1], [0], [0], [1], [0, 0, 1, 1], [], []>} : vector<64x64xbf16>, vector<64x96xbf16>, vector<64x96xf32> -> vector<64x96xf32>
    %204 = arith.addf %199, %203 : vector<64x96xf32>
    %205 = vector.extract_strided_slice %23 {offsets = [896, 0], sizes = [64, 64], strides = [1, 1]} : vector<1024x64xbf16> to vector<64x64xbf16>
    %c2_191 = arith.constant 2 : index
    %c0_192 = arith.constant 0 : index
    %c0_193 = arith.constant 0 : index
    %c0_194 = arith.constant 0 : index
    %206 = vector.load %arg6[%c2_191, %c0_192, %c0_193, %c0_194] : memref<3x3x64x96xbf16, #tpu.memory_space<vmem>>, vector<1x1x64x96xbf16>
    %207 = vector.shape_cast %206 : vector<1x1x64x96xbf16> to vector<64x96xbf16>
    %cst_195 = arith.constant dense<0.000000e+00> : vector<64x96xf32>
    %208 = tpu.matmul %205, %207, %cst_195 {dimension_numbers = #tpu.dot_dimension_numbers<[1], [0], [0], [1], [0, 0, 1, 1], [], []>} : vector<64x64xbf16>, vector<64x96xbf16>, vector<64x96xf32> -> vector<64x96xf32>
    %209 = arith.addf %204, %208 : vector<64x96xf32>
    %210 = vector.extract_strided_slice %23 {offsets = [704, 0], sizes = [64, 64], strides = [1, 1]} : vector<1024x64xbf16> to vector<64x64xbf16>
    %c2_196 = arith.constant 2 : index
    %c1_197 = arith.constant 1 : index
    %c0_198 = arith.constant 0 : index
    %c0_199 = arith.constant 0 : index
    %211 = vector.load %arg6[%c2_196, %c1_197, %c0_198, %c0_199] : memref<3x3x64x96xbf16, #tpu.memory_space<vmem>>, vector<1x1x64x96xbf16>
    %212 = vector.shape_cast %211 : vector<1x1x64x96xbf16> to vector<64x96xbf16>
    %cst_200 = arith.constant dense<0.000000e+00> : vector<64x96xf32>
    %213 = tpu.matmul %210, %212, %cst_200 {dimension_numbers = #tpu.dot_dimension_numbers<[1], [0], [0], [1], [0, 0, 1, 1], [], []>} : vector<64x64xbf16>, vector<64x96xbf16>, vector<64x96xf32> -> vector<64x96xf32>
    %214 = arith.addf %209, %213 : vector<64x96xf32>
    %215 = vector.extract_strided_slice %23 {offsets = [960, 0], sizes = [64, 64], strides = [1, 1]} : vector<1024x64xbf16> to vector<64x64xbf16>
    %c2_201 = arith.constant 2 : index
    %c2_202 = arith.constant 2 : index
    %c0_203 = arith.constant 0 : index
    %c0_204 = arith.constant 0 : index
    %216 = vector.load %arg6[%c2_201, %c2_202, %c0_203, %c0_204] : memref<3x3x64x96xbf16, #tpu.memory_space<vmem>>, vector<1x1x64x96xbf16>
    %217 = vector.shape_cast %216 : vector<1x1x64x96xbf16> to vector<64x96xbf16>
    %cst_205 = arith.constant dense<0.000000e+00> : vector<64x96xf32>
    %218 = tpu.matmul %215, %217, %cst_205 {dimension_numbers = #tpu.dot_dimension_numbers<[1], [0], [0], [1], [0, 0, 1, 1], [], []>} : vector<64x64xbf16>, vector<64x96xbf16>, vector<64x96xf32> -> vector<64x96xf32>
    %219 = arith.addf %214, %218 : vector<64x96xf32>
    %220 = vector.broadcast %2 : vector<1x96xf32> to vector<64x96xf32>
    %221 = arith.addf %219, %220 : vector<64x96xf32>
    %cst_206 = arith.constant 0.000000e+00 : f32
    %222 = vector.broadcast %cst_206 : f32 to vector<64x96xf32>
    %223 = arith.maximumf %221, %222 : vector<64x96xf32>
    %cst_207 = arith.constant 0.000000e+00 : f32
    %224 = vector.broadcast %cst_207 : f32 to vector<49x96xf32>
    %225 = vector.shape_cast %73 : vector<64x96xf32> to vector<8x8x96xf32>
    %226 = vector.extract_strided_slice %225 {offsets = [0, 0, 0], sizes = [7, 7, 96], strides = [1, 1, 1]} : vector<8x8x96xf32> to vector<7x7x96xf32>
    %227 = vector.shape_cast %226 : vector<7x7x96xf32> to vector<49x96xf32>
    %228 = arith.truncf %227 : vector<49x96xf32> to vector<49x96xbf16>
    %c0_208 = arith.constant 0 : index
    %c0_209 = arith.constant 0 : index
    %c0_210 = arith.constant 0 : index
    %c0_211 = arith.constant 0 : index
    %229 = vector.load %arg7[%c0_208, %c0_209, %c0_210, %c0_211] : memref<3x3x96x96xbf16, #tpu.memory_space<vmem>>, vector<1x1x96x96xbf16>
    %230 = vector.shape_cast %229 : vector<1x1x96x96xbf16> to vector<96x96xbf16>
    %cst_212 = arith.constant dense<0.000000e+00> : vector<49x96xf32>
    %231 = tpu.matmul %228, %230, %cst_212 {dimension_numbers = #tpu.dot_dimension_numbers<[1], [0], [0], [1], [0, 0, 1, 1], [], []>} : vector<49x96xbf16>, vector<96x96xbf16>, vector<49x96xf32> -> vector<49x96xf32>
    %232 = arith.addf %224, %231 : vector<49x96xf32>
    %233 = vector.shape_cast %123 : vector<64x96xf32> to vector<8x8x96xf32>
    %234 = vector.extract_strided_slice %233 {offsets = [0, 0, 0], sizes = [7, 7, 96], strides = [1, 1, 1]} : vector<8x8x96xf32> to vector<7x7x96xf32>
    %235 = vector.shape_cast %234 : vector<7x7x96xf32> to vector<49x96xf32>
    %236 = arith.truncf %235 : vector<49x96xf32> to vector<49x96xbf16>
    %c0_213 = arith.constant 0 : index
    %c1_214 = arith.constant 1 : index
    %c0_215 = arith.constant 0 : index
    %c0_216 = arith.constant 0 : index
    %237 = vector.load %arg7[%c0_213, %c1_214, %c0_215, %c0_216] : memref<3x3x96x96xbf16, #tpu.memory_space<vmem>>, vector<1x1x96x96xbf16>
    %238 = vector.shape_cast %237 : vector<1x1x96x96xbf16> to vector<96x96xbf16>
    %cst_217 = arith.constant dense<0.000000e+00> : vector<49x96xf32>
    %239 = tpu.matmul %236, %238, %cst_217 {dimension_numbers = #tpu.dot_dimension_numbers<[1], [0], [0], [1], [0, 0, 1, 1], [], []>} : vector<49x96xbf16>, vector<96x96xbf16>, vector<49x96xf32> -> vector<49x96xf32>
    %240 = arith.addf %232, %239 : vector<49x96xf32>
    %241 = vector.shape_cast %73 : vector<64x96xf32> to vector<8x8x96xf32>
    %242 = vector.extract_strided_slice %241 {offsets = [0, 1, 0], sizes = [7, 7, 96], strides = [1, 1, 1]} : vector<8x8x96xf32> to vector<7x7x96xf32>
    %243 = vector.shape_cast %242 : vector<7x7x96xf32> to vector<49x96xf32>
    %244 = arith.truncf %243 : vector<49x96xf32> to vector<49x96xbf16>
    %c0_218 = arith.constant 0 : index
    %c2_219 = arith.constant 2 : index
    %c0_220 = arith.constant 0 : index
    %c0_221 = arith.constant 0 : index
    %245 = vector.load %arg7[%c0_218, %c2_219, %c0_220, %c0_221] : memref<3x3x96x96xbf16, #tpu.memory_space<vmem>>, vector<1x1x96x96xbf16>
    %246 = vector.shape_cast %245 : vector<1x1x96x96xbf16> to vector<96x96xbf16>
    %cst_222 = arith.constant dense<0.000000e+00> : vector<49x96xf32>
    %247 = tpu.matmul %244, %246, %cst_222 {dimension_numbers = #tpu.dot_dimension_numbers<[1], [0], [0], [1], [0, 0, 1, 1], [], []>} : vector<49x96xbf16>, vector<96x96xbf16>, vector<49x96xf32> -> vector<49x96xf32>
    %248 = arith.addf %240, %247 : vector<49x96xf32>
    %249 = vector.shape_cast %173 : vector<64x96xf32> to vector<8x8x96xf32>
    %250 = vector.extract_strided_slice %249 {offsets = [0, 0, 0], sizes = [7, 7, 96], strides = [1, 1, 1]} : vector<8x8x96xf32> to vector<7x7x96xf32>
    %251 = vector.shape_cast %250 : vector<7x7x96xf32> to vector<49x96xf32>
    %252 = arith.truncf %251 : vector<49x96xf32> to vector<49x96xbf16>
    %c1_223 = arith.constant 1 : index
    %c0_224 = arith.constant 0 : index
    %c0_225 = arith.constant 0 : index
    %c0_226 = arith.constant 0 : index
    %253 = vector.load %arg7[%c1_223, %c0_224, %c0_225, %c0_226] : memref<3x3x96x96xbf16, #tpu.memory_space<vmem>>, vector<1x1x96x96xbf16>
    %254 = vector.shape_cast %253 : vector<1x1x96x96xbf16> to vector<96x96xbf16>
    %cst_227 = arith.constant dense<0.000000e+00> : vector<49x96xf32>
    %255 = tpu.matmul %252, %254, %cst_227 {dimension_numbers = #tpu.dot_dimension_numbers<[1], [0], [0], [1], [0, 0, 1, 1], [], []>} : vector<49x96xbf16>, vector<96x96xbf16>, vector<49x96xf32> -> vector<49x96xf32>
    %256 = arith.addf %248, %255 : vector<49x96xf32>
    %257 = vector.shape_cast %223 : vector<64x96xf32> to vector<8x8x96xf32>
    %258 = vector.extract_strided_slice %257 {offsets = [0, 0, 0], sizes = [7, 7, 96], strides = [1, 1, 1]} : vector<8x8x96xf32> to vector<7x7x96xf32>
    %259 = vector.shape_cast %258 : vector<7x7x96xf32> to vector<49x96xf32>
    %260 = arith.truncf %259 : vector<49x96xf32> to vector<49x96xbf16>
    %c1_228 = arith.constant 1 : index
    %c1_229 = arith.constant 1 : index
    %c0_230 = arith.constant 0 : index
    %c0_231 = arith.constant 0 : index
    %261 = vector.load %arg7[%c1_228, %c1_229, %c0_230, %c0_231] : memref<3x3x96x96xbf16, #tpu.memory_space<vmem>>, vector<1x1x96x96xbf16>
    %262 = vector.shape_cast %261 : vector<1x1x96x96xbf16> to vector<96x96xbf16>
    %cst_232 = arith.constant dense<0.000000e+00> : vector<49x96xf32>
    %263 = tpu.matmul %260, %262, %cst_232 {dimension_numbers = #tpu.dot_dimension_numbers<[1], [0], [0], [1], [0, 0, 1, 1], [], []>} : vector<49x96xbf16>, vector<96x96xbf16>, vector<49x96xf32> -> vector<49x96xf32>
    %264 = arith.addf %256, %263 : vector<49x96xf32>
    %265 = vector.shape_cast %173 : vector<64x96xf32> to vector<8x8x96xf32>
    %266 = vector.extract_strided_slice %265 {offsets = [0, 1, 0], sizes = [7, 7, 96], strides = [1, 1, 1]} : vector<8x8x96xf32> to vector<7x7x96xf32>
    %267 = vector.shape_cast %266 : vector<7x7x96xf32> to vector<49x96xf32>
    %268 = arith.truncf %267 : vector<49x96xf32> to vector<49x96xbf16>
    %c1_233 = arith.constant 1 : index
    %c2_234 = arith.constant 2 : index
    %c0_235 = arith.constant 0 : index
    %c0_236 = arith.constant 0 : index
    %269 = vector.load %arg7[%c1_233, %c2_234, %c0_235, %c0_236] : memref<3x3x96x96xbf16, #tpu.memory_space<vmem>>, vector<1x1x96x96xbf16>
    %270 = vector.shape_cast %269 : vector<1x1x96x96xbf16> to vector<96x96xbf16>
    %cst_237 = arith.constant dense<0.000000e+00> : vector<49x96xf32>
    %271 = tpu.matmul %268, %270, %cst_237 {dimension_numbers = #tpu.dot_dimension_numbers<[1], [0], [0], [1], [0, 0, 1, 1], [], []>} : vector<49x96xbf16>, vector<96x96xbf16>, vector<49x96xf32> -> vector<49x96xf32>
    %272 = arith.addf %264, %271 : vector<49x96xf32>
    %273 = vector.shape_cast %73 : vector<64x96xf32> to vector<8x8x96xf32>
    %274 = vector.extract_strided_slice %273 {offsets = [1, 0, 0], sizes = [7, 7, 96], strides = [1, 1, 1]} : vector<8x8x96xf32> to vector<7x7x96xf32>
    %275 = vector.shape_cast %274 : vector<7x7x96xf32> to vector<49x96xf32>
    %276 = arith.truncf %275 : vector<49x96xf32> to vector<49x96xbf16>
    %c2_238 = arith.constant 2 : index
    %c0_239 = arith.constant 0 : index
    %c0_240 = arith.constant 0 : index
    %c0_241 = arith.constant 0 : index
    %277 = vector.load %arg7[%c2_238, %c0_239, %c0_240, %c0_241] : memref<3x3x96x96xbf16, #tpu.memory_space<vmem>>, vector<1x1x96x96xbf16>
    %278 = vector.shape_cast %277 : vector<1x1x96x96xbf16> to vector<96x96xbf16>
    %cst_242 = arith.constant dense<0.000000e+00> : vector<49x96xf32>
    %279 = tpu.matmul %276, %278, %cst_242 {dimension_numbers = #tpu.dot_dimension_numbers<[1], [0], [0], [1], [0, 0, 1, 1], [], []>} : vector<49x96xbf16>, vector<96x96xbf16>, vector<49x96xf32> -> vector<49x96xf32>
    %280 = arith.addf %272, %279 : vector<49x96xf32>
    %281 = vector.shape_cast %123 : vector<64x96xf32> to vector<8x8x96xf32>
    %282 = vector.extract_strided_slice %281 {offsets = [1, 0, 0], sizes = [7, 7, 96], strides = [1, 1, 1]} : vector<8x8x96xf32> to vector<7x7x96xf32>
    %283 = vector.shape_cast %282 : vector<7x7x96xf32> to vector<49x96xf32>
    %284 = arith.truncf %283 : vector<49x96xf32> to vector<49x96xbf16>
    %c2_243 = arith.constant 2 : index
    %c1_244 = arith.constant 1 : index
    %c0_245 = arith.constant 0 : index
    %c0_246 = arith.constant 0 : index
    %285 = vector.load %arg7[%c2_243, %c1_244, %c0_245, %c0_246] : memref<3x3x96x96xbf16, #tpu.memory_space<vmem>>, vector<1x1x96x96xbf16>
    %286 = vector.shape_cast %285 : vector<1x1x96x96xbf16> to vector<96x96xbf16>
    %cst_247 = arith.constant dense<0.000000e+00> : vector<49x96xf32>
    %287 = tpu.matmul %284, %286, %cst_247 {dimension_numbers = #tpu.dot_dimension_numbers<[1], [0], [0], [1], [0, 0, 1, 1], [], []>} : vector<49x96xbf16>, vector<96x96xbf16>, vector<49x96xf32> -> vector<49x96xf32>
    %288 = arith.addf %280, %287 : vector<49x96xf32>
    %289 = vector.shape_cast %73 : vector<64x96xf32> to vector<8x8x96xf32>
    %290 = vector.extract_strided_slice %289 {offsets = [1, 1, 0], sizes = [7, 7, 96], strides = [1, 1, 1]} : vector<8x8x96xf32> to vector<7x7x96xf32>
    %291 = vector.shape_cast %290 : vector<7x7x96xf32> to vector<49x96xf32>
    %292 = arith.truncf %291 : vector<49x96xf32> to vector<49x96xbf16>
    %c2_248 = arith.constant 2 : index
    %c2_249 = arith.constant 2 : index
    %c0_250 = arith.constant 0 : index
    %c0_251 = arith.constant 0 : index
    %293 = vector.load %arg7[%c2_248, %c2_249, %c0_250, %c0_251] : memref<3x3x96x96xbf16, #tpu.memory_space<vmem>>, vector<1x1x96x96xbf16>
    %294 = vector.shape_cast %293 : vector<1x1x96x96xbf16> to vector<96x96xbf16>
    %cst_252 = arith.constant dense<0.000000e+00> : vector<49x96xf32>
    %295 = tpu.matmul %292, %294, %cst_252 {dimension_numbers = #tpu.dot_dimension_numbers<[1], [0], [0], [1], [0, 0, 1, 1], [], []>} : vector<49x96xbf16>, vector<96x96xbf16>, vector<49x96xf32> -> vector<49x96xf32>
    %296 = arith.addf %288, %295 : vector<49x96xf32>
    %297 = vector.broadcast %3 : vector<1x96xf32> to vector<49x96xf32>
    %298 = arith.addf %296, %297 : vector<49x96xf32>
    %cst_253 = arith.constant 0.000000e+00 : f32
    %299 = vector.broadcast %cst_253 : f32 to vector<49x96xf32>
    %300 = arith.maximumf %298, %299 : vector<49x96xf32>
    %c0_254 = arith.constant 0 : index
    %c0_255 = arith.constant 0 : index
    %c0_256 = arith.constant 0 : index
    %301 = vector.load %arg9[%c0_254, %c0_255, %c0_256] : memref<1x49x512xf32, #tpu.memory_space<vmem>>, vector<1x49x384xf32>
    %302 = vector.shape_cast %301 : vector<1x49x384xf32> to vector<49x384xf32>
    %303 = vector.shape_cast %11 : vector<49x384xf32> to vector<1x49x384xf32>
    tpu.vector_store %arg9[%c0_254, %c0_255, %c0_256], %303 {strides = array<i32>} : memref<1x49x512xf32, #tpu.memory_space<vmem>>, vector<1x49x384xf32>,
    %c0_257 = arith.constant 0 : index
    %c0_258 = arith.constant 0 : index
    %c384 = arith.constant 384 : index
    %304 = vector.load %arg9[%c0_257, %c0_258, %c384] : memref<1x49x512xf32, #tpu.memory_space<vmem>>, vector<1x49x96xf32>
    %305 = vector.shape_cast %304 : vector<1x49x96xf32> to vector<49x96xf32>
    %306 = vector.shape_cast %300 : vector<49x96xf32> to vector<1x49x96xf32>
    tpu.vector_store %arg9[%c0_257, %c0_258, %c384], %306 {strides = array<i32>} : memref<1x49x512xf32, #tpu.memory_space<vmem>>, vector<1x49x96xf32>,
    %cst_259 = arith.constant 0.000000e+00 : f32
    %307 = vector.broadcast %cst_259 : f32 to vector<49x32xf32>
    %c0_260 = arith.constant 0 : index
    %c0_261 = arith.constant 0 : index
    %c480 = arith.constant 480 : index
    %308 = vector.load %arg9[%c0_260, %c0_261, %c480] : memref<1x49x512xf32, #tpu.memory_space<vmem>>, vector<1x49x32xf32>
    %309 = vector.shape_cast %308 : vector<1x49x32xf32> to vector<49x32xf32>
    %310 = vector.shape_cast %307 : vector<49x32xf32> to vector<1x49x32xf32>
    tpu.vector_store %arg9[%c0_260, %c0_261, %c480], %310 {strides = array<i32>} : memref<1x49x512xf32, #tpu.memory_space<vmem>>, vector<1x49x32xf32>,
    return
  }
  func.func @transform_0(%arg0: i32) -> (i32, i32, i32) {
    %c0_i32 = arith.constant 0 : i32
    %c0_i32_0 = arith.constant 0 : i32
    %c0_i32_1 = arith.constant 0 : i32
    return %arg0, %c0_i32, %c0_i32_0 : i32, i32, i32
  }
  func.func @transform_1(%arg0: i32) -> (i32, i32, i32) {
    %c0_i32 = arith.constant 0 : i32
    %c0_i32_0 = arith.constant 0 : i32
    %c0_i32_1 = arith.constant 0 : i32
    return %arg0, %c0_i32, %c0_i32_0 : i32, i32, i32
  }
  func.func @transform_2(%arg0: i32) -> (i32, i32) {
    %c0_i32 = arith.constant 0 : i32
    %c0_i32_0 = arith.constant 0 : i32
    %c0_i32_1 = arith.constant 0 : i32
    return %c0_i32, %c0_i32_0 : i32, i32
  }
  func.func @transform_3(%arg0: i32) -> (i32, i32) {
    %c0_i32 = arith.constant 0 : i32
    %c0_i32_0 = arith.constant 0 : i32
    %c0_i32_1 = arith.constant 0 : i32
    return %c0_i32, %c0_i32_0 : i32, i32
  }
  func.func @transform_4(%arg0: i32) -> (i32, i32) {
    %c0_i32 = arith.constant 0 : i32
    %c0_i32_0 = arith.constant 0 : i32
    %c0_i32_1 = arith.constant 0 : i32
    return %c0_i32, %c0_i32_0 : i32, i32
  }
  func.func @transform_5(%arg0: i32) -> (i32, i32, i32, i32) {
    %c0_i32 = arith.constant 0 : i32
    %c0_i32_0 = arith.constant 0 : i32
    %c0_i32_1 = arith.constant 0 : i32
    %c0_i32_2 = arith.constant 0 : i32
    %c0_i32_3 = arith.constant 0 : i32
    return %c0_i32, %c0_i32_0, %c0_i32_1, %c0_i32_2 : i32, i32, i32, i32
  }
  func.func @transform_6(%arg0: i32) -> (i32, i32, i32, i32) {
    %c0_i32 = arith.constant 0 : i32
    %c0_i32_0 = arith.constant 0 : i32
    %c0_i32_1 = arith.constant 0 : i32
    %c0_i32_2 = arith.constant 0 : i32
    %c0_i32_3 = arith.constant 0 : i32
    return %c0_i32, %c0_i32_0, %c0_i32_1, %c0_i32_2 : i32, i32, i32, i32
  }
  func.func @transform_7(%arg0: i32) -> (i32, i32) {
    %c0_i32 = arith.constant 0 : i32
    %c0_i32_0 = arith.constant 0 : i32
    %c0_i32_1 = arith.constant 0 : i32
    return %c0_i32, %c0_i32_0 : i32, i32
  }
  func.func @transform_8(%arg0: i32) -> (i32, i32, i32) {
    %c0_i32 = arith.constant 0 : i32
    %c0_i32_0 = arith.constant 0 : i32
    %c0_i32_1 = arith.constant 0 : i32
    return %arg0, %c0_i32, %c0_i32_0 : i32, i32, i32
  }
}

</mosaic_0001>

<llo_original>
// kernel: inception_b.1
$region0: #{inception_b.1}
  #allocation0 [shape = 'u32[]', space=smem, size = 0x4, offset = 0x4, fixed_abs, tag = 'smem constant byte address 0x4 - core index']
  #allocation1 [shape = 'u32[144,128]{1,0:T(1,128)}', space=vmem, size = 0x12000, scoped, tag = 'internal scratch']
  %s0 = inlined_call_operand.vmem [shape: bf16[2,49,36], index: 0, kind: input, shape index: {}]
  %s1 = inlined_call_operand.vmem [shape: bf16[2,1024,4], index: 1, kind: input, shape index: {}]
  %s2 = inlined_call_operand.vmem [shape: f32[1024,1], index: 2, kind: input, shape index: {}]
  %s3 = inlined_call_operand.vmem [shape: bf16[36,384], index: 3, kind: input, shape index: {}]
  %s4 = inlined_call_operand.vmem [shape: bf16[4,64], index: 4, kind: input, shape index: {}]
  %s5 = inlined_call_operand.vmem [shape: bf16[3,3,64,96], index: 5, kind: input, shape index: {}]
  %s6 = inlined_call_operand.vmem [shape: bf16[3,3,96,96], index: 6, kind: input, shape index: {}]
  %s7 = inlined_call_operand.vmem [shape: f32[4,384], index: 7, kind: input, shape index: {}]
  %s8 = inlined_call_operand.vmem [shape: f32[2,49,512], index: 8, kind: output, shape index: {}]
  %s9 = sld [smem:[#allocation0]]
  $region65: #{inception_b.1} parent=0
    _
  %s11 = ssub.s32 1, %s9
  %s12 = scalar_select 0, %s11, %s9
  loop: start=0, step=1, limit=4
  $region2: #{inception_b.1} parent=0 // loop_pre_header
    _
  $region3: #{inception_b.1} parent=0 // loop_header
    %s14 = sphi 0, %s18
    %p15 = scmp.ge.s32.totalorder %s14, 4
    %s24 = sphi 0, %s26
    %s27 = sphi 0, %s24
    %s28 = sphi 0, %s27
    %s44 = sphi 0, %s28
    %s50 = sphi 0, %s52
    %s53 = sphi 0, %s50
    %s54 = sphi 0, %s53
    %s70 = sphi 0, %s54
    %s74 = sphi 0, %s74
    %s76 = sphi 0, %s74
    %s77 = sphi 0, %s76
    %s91 = sphi 0, %s77
    %s95 = sphi 0, %s95
    %s97 = sphi 0, %s95
    %s98 = sphi 0, %s97
    %s112 = sphi 0, %s98
    %s116 = sphi 0, %s116
    %s118 = sphi 0, %s116
    %s119 = sphi 0, %s118
    %s133 = sphi 0, %s119
    %s137 = sphi 0, %s137
    %s139 = sphi 0, %s137
    %s140 = sphi 0, %s139
    %s154 = sphi 0, %s140
    %s158 = sphi 0, %s158
    %s160 = sphi 0, %s158
    %s161 = sphi 0, %s160
    %s175 = sphi 0, %s161
    %s179 = sphi 0, %s179
    %s181 = sphi 0, %s179
    %s182 = sphi 0, %s181
    %s196 = sphi 0, %s182
    %s202 = sphi 0, %s204
    %s205 = sphi 0, %s202
    %s206 = sphi 0, %s205
    %s222 = sphi 0, %s206
  $region4: #{inception_b.1} parent=0 // loop_header_branch
    %17 = sbr.rel (%p15) target = $region8
  $region5: #{inception_b.1} parent=0 // loop_body
    %s19 = ssub.s32 %s14, 1
    %s20 = ssub.s32 %s14, 2
    %s21 = sadd.s32 %s14, 1
    %s22 = ssub.s32 %s14, %s21
    %p23 = scmp.eq.s32.totalorder %s22, 0
    %s25 = sadd.s32 %s24, 1
    %s26 = scalar_select %p23, %s24, %s25
    %p29 = pneg %p23
    %p30 = scmp.eq.s32.totalorder %s14, 1
    %p31 = por %p29, %p30
    %p32 = scmp.ne.s32.totalorder %s24, %s27
    %p33 = scmp.eq.s32.totalorder %s14, 0
    %p34 = por %p32, %p33
    %p35 = scmp.ne.s32.totalorder %s24, %s27
    %p36 = scmp.eq.s32.totalorder %s19, 1
    %p37 = por %p35, %p36
    %p38 = scmp.ne.s32.totalorder %s27, %s28
    %p39 = scmp.eq.s32.totalorder %s19, 0
    %p40 = por %p38, %p39
    %p41 = scmp.ne.s32.totalorder %s27, %s28
    %p42 = scmp.eq.s32.totalorder %s20, 1
    %p43 = por %p41, %p42
    %p45 = scmp.ne.s32.totalorder %s28, %s44
    %p46 = scmp.eq.s32.totalorder %s20, 0
    %p47 = por %p45, %p46
    %s48 = ssub.s32 %s14, %s21
    %p49 = scmp.eq.s32.totalorder %s48, 0
    %s51 = sadd.s32 %s50, 1
    %s52 = scalar_select %p49, %s50, %s51
    %p55 = pneg %p49
    %p56 = scmp.eq.s32.totalorder %s14, 1
    %p57 = por %p55, %p56
    %p58 = scmp.ne.s32.totalorder %s50, %s53
    %p59 = scmp.eq.s32.totalorder %s14, 0
    %p60 = por %p58, %p59
    %p61 = scmp.ne.s32.totalorder %s50, %s53
    %p62 = scmp.eq.s32.totalorder %s19, 1
    %p63 = por %p61, %p62
    %p64 = scmp.ne.s32.totalorder %s53, %s54
    %p65 = scmp.eq.s32.totalorder %s19, 0
    %p66 = por %p64, %p65
    %p67 = scmp.ne.s32.totalorder %s53, %s54
    %p68 = scmp.eq.s32.totalorder %s20, 1
    %p69 = por %p67, %p68
    %p71 = scmp.ne.s32.totalorder %s54, %s70
    %p72 = scmp.eq.s32.totalorder %s20, 0
    %p73 = por %p71, %p72
    %s75 = sadd.s32 %s74, 1
    %p78 = scmp.eq.s32.totalorder %s14, 1
    %p79 = scmp.ne.s32.totalorder %s74, %s76
    %p80 = scmp.eq.s32.totalorder %s14, 0
    %p81 = por %p79, %p80
    %p82 = scmp.ne.s32.totalorder %s74, %s76
    %p83 = scmp.eq.s32.totalorder %s19, 1
    %p84 = por %p82, %p83
    %p85 = scmp.ne.s32.totalorder %s76, %s77
    %p86 = scmp.eq.s32.totalorder %s19, 0
    %p87 = por %p85, %p86
    %p88 = scmp.ne.s32.totalorder %s76, %s77
    %p89 = scmp.eq.s32.totalorder %s20, 1
    %p90 = por %p88, %p89
    %p92 = scmp.ne.s32.totalorder %s77, %s91
    %p93 = scmp.eq.s32.totalorder %s20, 0
    %p94 = por %p92, %p93
    %s96 = sadd.s32 %s95, 1
    %p99 = scmp.eq.s32.totalorder %s14, 1
    %p100 = scmp.ne.s32.totalorder %s95, %s97
    %p101 = scmp.eq.s32.totalorder %s14, 0
    %p102 = por %p100, %p101
    %p103 = scmp.ne.s32.totalorder %s95, %s97
    %p104 = scmp.eq.s32.totalorder %s19, 1
    %p105 = por %p103, %p104
    %p106 = scmp.ne.s32.totalorder %s97, %s98
    %p107 = scmp.eq.s32.totalorder %s19, 0
    %p108 = por %p106, %p107
    %p109 = scmp.ne.s32.totalorder %s97, %s98
    %p110 = scmp.eq.s32.totalorder %s20, 1
    %p111 = por %p109, %p110
    %p113 = scmp.ne.s32.totalorder %s98, %s112
    %p114 = scmp.eq.s32.totalorder %s20, 0
    %p115 = por %p113, %p114
    %s117 = sadd.s32 %s116, 1
    %p120 = scmp.eq.s32.totalorder %s14, 1
    %p121 = scmp.ne.s32.totalorder %s116, %s118
    %p122 = scmp.eq.s32.totalorder %s14, 0
    %p123 = por %p121, %p122
    %p124 = scmp.ne.s32.totalorder %s116, %s118
    %p125 = scmp.eq.s32.totalorder %s19, 1
    %p126 = por %p124, %p125
    %p127 = scmp.ne.s32.totalorder %s118, %s119
    %p128 = scmp.eq.s32.totalorder %s19, 0
    %p129 = por %p127, %p128
    %p130 = scmp.ne.s32.totalorder %s118, %s119
    %p131 = scmp.eq.s32.totalorder %s20, 1
    %p132 = por %p130, %p131
    %p134 = scmp.ne.s32.totalorder %s119, %s133
    %p135 = scmp.eq.s32.totalorder %s20, 0
    %p136 = por %p134, %p135
    %s138 = sadd.s32 %s137, 1
    %p141 = scmp.eq.s32.totalorder %s14, 1
    %p142 = scmp.ne.s32.totalorder %s137, %s139
    %p143 = scmp.eq.s32.totalorder %s14, 0
    %p144 = por %p142, %p143
    %p145 = scmp.ne.s32.totalorder %s137, %s139
    %p146 = scmp.eq.s32.totalorder %s19, 1
    %p147 = por %p145, %p146
    %p148 = scmp.ne.s32.totalorder %s139, %s140
    %p149 = scmp.eq.s32.totalorder %s19, 0
    %p150 = por %p148, %p149
    %p151 = scmp.ne.s32.totalorder %s139, %s140
    %p152 = scmp.eq.s32.totalorder %s20, 1
    %p153 = por %p151, %p152
    %p155 = scmp.ne.s32.totalorder %s140, %s154
    %p156 = scmp.eq.s32.totalorder %s20, 0
    %p157 = por %p155, %p156
    %s159 = sadd.s32 %s158, 1
    %p162 = scmp.eq.s32.totalorder %s14, 1
    %p163 = scmp.ne.s32.totalorder %s158, %s160
    %p164 = scmp.eq.s32.totalorder %s14, 0
    %p165 = por %p163, %p164
    %p166 = scmp.ne.s32.totalorder %s158, %s160
    %p167 = scmp.eq.s32.totalorder %s19, 1
    %p168 = por %p166, %p167
    %p169 = scmp.ne.s32.totalorder %s160, %s161
    %p170 = scmp.eq.s32.totalorder %s19, 0
    %p171 = por %p169, %p170
    %p172 = scmp.ne.s32.totalorder %s160, %s161
    %p173 = scmp.eq.s32.totalorder %s20, 1
    %p174 = por %p172, %p173
    %p176 = scmp.ne.s32.totalorder %s161, %s175
    %p177 = scmp.eq.s32.totalorder %s20, 0
    %p178 = por %p176, %p177
    %s180 = sadd.s32 %s179, 1
    %p183 = scmp.eq.s32.totalorder %s14, 1
    %p184 = scmp.ne.s32.totalorder %s179, %s181
    %p185 = scmp.eq.s32.totalorder %s14, 0
    %p186 = por %p184, %p185
    %p187 = scmp.ne.s32.totalorder %s179, %s181
    %p188 = scmp.eq.s32.totalorder %s19, 1
    %p189 = por %p187, %p188
    %p190 = scmp.ne.s32.totalorder %s181, %s182
    %p191 = scmp.eq.s32.totalorder %s19, 0
    %p192 = por %p190, %p191
    %p193 = scmp.ne.s32.totalorder %s181, %s182
    %p194 = scmp.eq.s32.totalorder %s20, 1
    %p195 = por %p193, %p194
    %p197 = scmp.ne.s32.totalorder %s182, %s196
    %p198 = scmp.eq.s32.totalorder %s20, 0
    %p199 = por %p197, %p198
    %s200 = ssub.s32 %s14, %s21
    %p201 = scmp.eq.s32.totalorder %s200, 0
    %s203 = sadd.s32 %s202, 1
    %s204 = scalar_select %p201, %s202, %s203
    %p207 = pneg %p201
    %p208 = scmp.eq.s32.totalorder %s14, 1
    %p209 = por %p207, %p208
    %p210 = scmp.ne.s32.totalorder %s202, %s205
    %p211 = scmp.eq.s32.totalorder %s14, 0
    %p212 = por %p210, %p211
    %p213 = scmp.ne.s32.totalorder %s202, %s205
    %p214 = scmp.eq.s32.totalorder %s19, 1
    %p215 = por %p213, %p214
    %p216 = scmp.ne.s32.totalorder %s205, %s206
    %p217 = scmp.eq.s32.totalorder %s19, 0
    %p218 = por %p216, %p217
    %p219 = scmp.ne.s32.totalorder %s205, %s206
    %p220 = scmp.eq.s32.totalorder %s20, 1
    %p221 = por %p219, %p220
    %p223 = scmp.ne.s32.totalorder %s206, %s222
    %p224 = scmp.eq.s32.totalorder %s20, 0
    %p225 = por %p223, %p224
    %p226 = scmp.le.s32.totalorder 1, %s14
    %p227 = scmp.lt.s32.totalorder %s14, 3
    %p228 = pnand %p226, %p227
    %p229 = pneg %p228
    // Predicated region
    $region9: #{inception_b.1} parent=5 // pred_check
      _
    $region10: #{inception_b.1} parent=5 // pred_check_branch
      %231 = sbr.rel (%p228) target = $region12
    $region11: #{inception_b.1} parent=5 // pred_region
      %s232 = ssub.s32 %s14, 1
      // Predicated region
      $region13: #{inception_b.1} parent=11 // pred_check
        %p233 = pneg %p87
      $region14: #{inception_b.1} parent=11 // pred_check_branch
        %235 = sbr.rel (%p233) target = $region16
      $region15: #{inception_b.1} parent=11 // pred_region
        _
      $region16: #{inception_b.1} parent=11 // pred_fallthru
        _
      // Predicated region
      $region17: #{inception_b.1} parent=11 // pred_check
        %p236 = pneg %p108
      $region18: #{inception_b.1} parent=11 // pred_check_branch
        %238 = sbr.rel (%p236) target = $region20
      $region19: #{inception_b.1} parent=11 // pred_region
        _
      $region20: #{inception_b.1} parent=11 // pred_fallthru
        _
      // Predicated region
      $region21: #{inception_b.1} parent=11 // pred_check
        %p239 = pneg %p129
      $region22: #{inception_b.1} parent=11 // pred_check_branch
        %241 = sbr.rel (%p239) target = $region24
      $region23: #{inception_b.1} parent=11 // pred_region
        _
      $region24: #{inception_b.1} parent=11 // pred_fallthru
        _
      // Predicated region
      $region25: #{inception_b.1} parent=11 // pred_check
        %p242 = pneg %p150
      $region26: #{inception_b.1} parent=11 // pred_check_branch
        %244 = sbr.rel (%p242) target = $region28
      $region27: #{inception_b.1} parent=11 // pred_region
        _
      $region28: #{inception_b.1} parent=11 // pred_fallthru
        _
      // Predicated region
      $region29: #{inception_b.1} parent=11 // pred_check
        %p245 = pneg %p171
      $region30: #{inception_b.1} parent=11 // pred_check_branch
        %247 = sbr.rel (%p245) target = $region32
      $region31: #{inception_b.1} parent=11 // pred_region
        _
      $region32: #{inception_b.1} parent=11 // pred_fallthru
        _
      // Predicated region
      $region33: #{inception_b.1} parent=11 // pred_check
        %p248 = pneg %p192
      $region34: #{inception_b.1} parent=11 // pred_check_branch
        %250 = sbr.rel (%p248) target = $region36
      $region35: #{inception_b.1} parent=11 // pred_region
        _
      $region36: #{inception_b.1} parent=11 // pred_fallthru
        _
    $region12: #{inception_b.1} parent=5 // pred_fallthru
      _
    %p251 = scmp.lt.s32.totalorder %s14, 2
    // Predicated region
    $region37: #{inception_b.1} parent=5 // pred_check
      %p252 = pneg %p251
    $region38: #{inception_b.1} parent=5 // pred_check_branch
      %254 = sbr.rel (%p252) target = $region40
    $region39: #{inception_b.1} parent=5 // pred_region
      // Predicated region
      $region41: #{inception_b.1} parent=39 // pred_check
        %p255 = pneg %p34
      $region42: #{inception_b.1} parent=39 // pred_check_branch
        %257 = sbr.rel (%p255) target = $region44
      $region43: #{inception_b.1} parent=39 // pred_region
        %p258 = scmp.lt.s32.totalorder %s14, 1
        %s259 = scalar_select %p258, %s14, 1
        %s260 = smul.addr %s259, 7
        %s261 = smul.addr %s260, 4
        %s262 = scalar_lea.vmem %s0, %s261
      $region44: #{inception_b.1} parent=39 // pred_fallthru
        _
      // Predicated region
      $region45: #{inception_b.1} parent=39 // pred_check
        %p263 = pneg %p60
      $region46: #{inception_b.1} parent=39 // pred_check_branch
        %265 = sbr.rel (%p263) target = $region48
      $region47: #{inception_b.1} parent=39 // pred_region
        %p266 = scmp.lt.s32.totalorder %s14, 1
        %s267 = scalar_select %p266, %s14, 1
        %s268 = smul.addr %s267, 128
        %s269 = smul.addr %s268, 4
        %s270 = scalar_lea.vmem %s1, %s269
      $region48: #{inception_b.1} parent=39 // pred_fallthru
        _
    $region40: #{inception_b.1} parent=5 // pred_fallthru
      _
    %p271 = scmp.le.s32.totalorder 1, %s14
    %p272 = scmp.lt.s32.totalorder %s14, 3
    %p273 = pnand %p271, %p272
    %p274 = pneg %p273
    // Predicated region
    $region49: #{inception_b.1} parent=5 // pred_check
      _
    $region50: #{inception_b.1} parent=5 // pred_check_branch
      %276 = sbr.rel (%p273) target = $region52
    $region51: #{inception_b.1} parent=5 // pred_region
      %s277 = ssub.s32 %s14, 1
      %p278 = scmp.lt.s32.totalorder %s19, 1
      %s279 = scalar_select %p278, %s19, 1
      %s280 = smul.addr %s279, 7
      %s281 = smul.addr %s280, 4
      %s282 = scalar_lea.vmem %s0, %s281
      %p283 = pneg %p40
      %p284 = pneg %p37
      %p285 = scmp.lt.s32.totalorder %s19, 1
      %s286 = scalar_select %p285, %s19, 1
      %s287 = smul.addr %s286, 128
      %s288 = smul.addr %s287, 4
      %s289 = scalar_lea.vmem %s1, %s288
      %p290 = pneg %p66
      %p291 = pneg %p63
      %p292 = pneg %p87
      %p293 = pneg %p84
      %p294 = pneg %p108
      %p295 = pneg %p105
      %p296 = pneg %p129
      %p297 = pneg %p126
      %p298 = pneg %p150
      %p299 = pneg %p147
      %p300 = pneg %p171
      %p301 = pneg %p168
      %p302 = pneg %p192
      %p303 = pneg %p189
      %p304 = pneg %p218
      %p305 = pneg %p215
      %p306 = scmp.lt.s32.totalorder %s19, 1
      %s307 = scalar_select %p306, %s19, 1
      %s308 = smul.addr %s307, 28
      %s309 = smul.addr %s308, 8
      %s310 = scalar_lea.vmem %s8, %s309
      %p311 = scmp.lt.s32.totalorder %s19, 1
      %s312 = scalar_select %p311, %s19, 1
      %s313 = smul.addr %s312, 7
      %s314 = smul.addr %s313, 4
      %s315 = scalar_lea.vmem %s0, %s314
      %p316 = scmp.lt.s32.totalorder %s19, 1
      %s317 = scalar_select %p316, %s19, 1
      %s318 = smul.addr %s317, 128
      %s319 = smul.addr %s318, 4
      %s320 = scalar_lea.vmem %s1, %s319
      %p321 = scmp.lt.s32.totalorder %s19, 1
      %s322 = scalar_select %p321, %s19, 1
      %s323 = smul.addr %s322, 28
      %s324 = smul.addr %s323, 8
      %s325 = scalar_lea.vmem %s8, %s324
      %v327 = vld [vmem:[%s7] ss:$4 sm:$0x7]
      %v328 = vld [vmem:[%s7 + $0x1] sm:$0x1]
      %v329 = vld [vmem:[%s7 + $0x2] sm:$0x1]
      %v330 = vld [vmem:[%s7 + $0x3] sm:$0x1]
      %v331 = vld [vmem:[%s315] sm:$0xf]
      %v332 = vld [vmem:[%s315 + $0x4] sm:$0xf]
      %v333 = vld [vmem:[%s315 + $0x8] sm:$0xf]
      %v334 = vld [vmem:[%s315 + $0xc] sm:$0xf]
      %v335 = vld [vmem:[%s315 + $0x10] sm:$0xf]
      %v336 = vld [vmem:[%s315 + $0x14] sm:$0xf]
      %v337 = vld [vmem:[%s315 + $0x18] sm:$0x1]
      %v338 = vld [vmem:[%s3] sm:$0xff]
      %v339 = vld [vmem:[%s3 + $0x8] sm:$0xf]
      %v340 = vld [vmem:[%s3 + $0xc] sm:$0xff]
      %v341 = vld [vmem:[%s3 + $0x14] sm:$0xf]
      %v342 = vld [vmem:[%s3 + $0x18] sm:$0xff]
      %v343 = vld [vmem:[%s3 + $0x20] sm:$0xf]
      %v344 = vld [vmem:[%s3 + $0x24] sm:$0xff]
      %v345 = vld [vmem:[%s3 + $0x2c] sm:$0xf]
      %v346 = vld [vmem:[%s3 + $0x30] sm:$0x33]
      %v347 = vld [vmem:[%s3 + $0x38] sm:$0x3]
      %v349 = vlaneseq
      %v350 = vshrl.u32 %v349, 7
      %v351 = vsub.s32 0, %v350
      %v352 = vrot.slane %v327, %v351
      %v353 = vlaneseq
      %v354 = vshrl.u32 %v353, 7
      %v355 = vsub.s32 1, %v354
      %v356 = vrot.slane %v327, %v355
      %v357 = vlaneseq
      %v358 = vshrl.u32 %v357, 7
      %v359 = vsub.s32 2, %v358
      %v360 = vrot.slane %v327, %v359
      %v371 = vunpack.c.l.b16 %v331
      %v372 = vunpack.c.l.b16 %v332
      %v373 = vunpack.c.l.b16 %v333
      %v374 = vunpack.c.l.b16 %v334
      %v375 = vunpack.c.l.b16 %v335
      %v376 = vunpack.c.l.b16 %v336
      %v377 = vunpack.c.l.b16 %v337
      %v378 = vpack.c.b16 %v372, %v371
      %v379 = vpack.c.b16 %v374, %v373
      %v380 = vpack.c.b16 %v376, %v375
      %v381 = vpack.c.b16 %v377, %v377
      %v392 = vunpack.c.l.b16 %v338
      %v393 = vunpack.c.h.b16 %v338
      %v394 = vunpack.c.l.b16 %v339
      %v395 = vunpack.c.l.b16 %v340
      %v396 = vunpack.c.h.b16 %v340
      %v397 = vunpack.c.l.b16 %v341
      %v398 = vunpack.c.l.b16 %v342
      %v399 = vunpack.c.h.b16 %v342
      %v400 = vunpack.c.l.b16 %v343
      %v401 = vunpack.c.l.b16 %v344
      %v402 = vunpack.c.h.b16 %v344
      %v403 = vunpack.c.l.b16 %v345
      %v404 = vunpack.c.l.b16 %v346
      %v405 = vunpack.c.h.b16 %v346
      %v406 = vunpack.c.l.b16 %v347
      %v407 = vpack.c.b16 %v395, %v392
      %v408 = vpack.c.b16 %v396, %v393
      %v409 = vpack.c.b16 %v397, %v394
      %v410 = vpack.c.b16 %v401, %v398
      %v411 = vpack.c.b16 %v402, %v399
      %v412 = vpack.c.b16 %v403, %v400
      %v413 = vpack.c.b16 %v404, %v404
      %v414 = vpack.c.b16 %v405, %v405
      %v415 = vpack.c.b16 %v406, %v406
      %vm422 = vcmask 293888
      %v424 = vsel %vm422, %v378, 0
      %v427 = vsel %vm422, %v379, 0
      %v430 = vsel %vm422, %v380, 0
      %v433 = vsel %vm422, %v381, 0
      %vm435 = vcmask 1041408
      %v437 = vsel %vm435, %v413, 0
      %v440 = vsel %vm435, %v414, 0
      %v443 = vsel %vm435, %v415, 0
      %445 = vmatprep.subr.bf16.mxu0 %v408
      %446 = vmatpush1.bf16.msra.mxu0 %v407
      %447 = vmatprep.subr.bf16.mxu0 %v411
      %448 = vmatpush1.bf16.msra.mxu0 %v410
      %449 = vmatprep.subr.bf16.mxu0 %v440
      %450 = vmatpush1.bf16.msra.mxu0 %v437
      %451 = vmatprep.subr.bf16.mxu0 0
      %452 = vmatpush1.bf16.msra.mxu0 0
      %453 = vmatprep.subr.bf16.mxu0 0
      %454 = vmatpush1.bf16.msra.mxu0 0
      %455 = vmatprep.subr.bf16.mxu0 0
      %456 = vmatpush1.bf16.msra.mxu0 0
      %457 = vmatprep.subr.bf16.mxu0 0
      %458 = vmatpush1.bf16.msra.mxu0 0
      %459 = vmatprep.subr.bf16.mxu0 0
      %460 = vmatpush1.bf16.msra.mxu0 0
      %461 = vmatprep.subr.bf16.mxu0 0
      %462 = vmatpush1.bf16.msra.mxu0 0
      %463 = vmatprep.subr.bf16.mxu0 0
      %464 = vmatpush1.bf16.msra.mxu0 0
      %465 = vmatprep.subr.bf16.mxu0 0
      %466 = vmatpush1.bf16.msra.mxu0 0
      %467 = vmatprep.subr.bf16.mxu0 0
      %468 = vmatpush1.bf16.msra.mxu0 0
      %469 = vmatprep.subr.bf16.mxu0 0
      %470 = vmatpush1.bf16.msra.mxu0 0
      %471 = vmatprep.subr.bf16.mxu0 0
      %472 = vmatpush1.bf16.msra.mxu0 0
      %473 = vmatprep.subr.bf16.mxu0 0
      %474 = vmatpush1.bf16.msra.mxu0 0
      %475 = vmatprep.subr.bf16.mxu0 0
      %476 = vmatpush1.bf16.msra.mxu0 0
      %477 = vmatprep.mubr.bf16.mxu0 0
      %478 = vmatmul.mubr.bf16.gmra.mrb[0].mxu0 %v424
      %v479 = vpop.f32.mrb[0].mxu0
      %v480 = vadd.f32 %v352, %v479
      %v481 = vpop.f32.mrb[0].mxu0
      %v482 = vadd.f32 %v356, %v481
      %v483 = vpop.f32.mrb[0].mxu0
      %v484 = vadd.f32 %v352, %v483
      %v485 = vpop.f32.mrb[0].mxu0
      %v486 = vadd.f32 %v356, %v485
      %487 = vmatprep.mubr.bf16.mxu0 0
      %488 = vmatmul.mubr.bf16.gmra.mrb[0].mxu0 %v427
      %v489 = vpop.f32.mrb[0].mxu0
      %v490 = vadd.f32 %v352, %v489
      %v491 = vpop.f32.mrb[0].mxu0
      %v492 = vadd.f32 %v356, %v491
      %v493 = vpop.f32.mrb[0].mxu0
      %v494 = vadd.f32 %v352, %v493
      %v495 = vpop.f32.mrb[0].mxu0
      %v496 = vadd.f32 %v356, %v495
      %497 = vmatprep.mubr.bf16.mxu0 0
      %498 = vmatmul.mubr.bf16.gmra.mrb[0].mxu0 %v430
      %v499 = vpop.f32.mrb[0].mxu0
      %v500 = vadd.f32 %v352, %v499
      %v501 = vpop.f32.mrb[0].mxu0
      %v502 = vadd.f32 %v356, %v501
      %v503 = vpop.f32.mrb[0].mxu0
      %v504 = vadd.f32 %v352, %v503
      %v505 = vpop.f32.mrb[0].mxu0
      %v506 = vadd.f32 %v356, %v505
      %507 = vmatprep.mubr.bf16.mxu0 0
      %508 = vmatmul.mubr.bf16.gmra.mrb[0].mxu0 %v433
      %v509 = vpop.f32.mrb[0].mxu0
      %v510 = vadd.f32 %v352, %v509
      %v511 = vpop.f32.mrb[0].mxu0
      %v512 = vadd.f32 %v356, %v511
      %v513 = vpop.f32.mrb[0].mxu0
      %v514 = vpop.f32.mrb[0].mxu0
      %515 = vdwg.mxu0
      %516 = vmatprep.subr.bf16.mxu0 0
      %517 = vmatpush1.bf16.msra.mxu0 %v409
      %518 = vmatprep.subr.bf16.mxu0 0
      %519 = vmatpush1.bf16.msra.mxu0 %v412
      %520 = vmatprep.subr.bf16.mxu0 0
      %521 = vmatpush1.bf16.msra.mxu0 %v443
      %522 = vmatprep.subr.bf16.mxu0 0
      %523 = vmatpush1.bf16.msra.mxu0 0
      %524 = vmatprep.subr.bf16.mxu0 0
      %525 = vmatpush1.bf16.msra.mxu0 0
      %526 = vmatprep.subr.bf16.mxu0 0
      %527 = vmatpush1.bf16.msra.mxu0 0
      %528 = vmatprep.subr.bf16.mxu0 0
      %529 = vmatpush1.bf16.msra.mxu0 0
      %530 = vmatprep.subr.bf16.mxu0 0
      %531 = vmatpush1.bf16.msra.mxu0 0
      %532 = vmatprep.subr.bf16.mxu0 0
      %533 = vmatpush1.bf16.msra.mxu0 0
      %534 = vmatprep.subr.bf16.mxu0 0
      %535 = vmatpush1.bf16.msra.mxu0 0
      %536 = vmatprep.subr.bf16.mxu0 0
      %537 = vmatpush1.bf16.msra.mxu0 0
      %538 = vmatprep.subr.bf16.mxu0 0
      %539 = vmatpush1.bf16.msra.mxu0 0
      %540 = vmatprep.subr.bf16.mxu0 0
      %541 = vmatpush1.bf16.msra.mxu0 0
      %542 = vmatprep.subr.bf16.mxu0 0
      %543 = vmatpush1.bf16.msra.mxu0 0
      %544 = vmatprep.subr.bf16.mxu0 0
      %545 = vmatpush1.bf16.msra.mxu0 0
      %546 = vmatprep.subr.bf16.mxu0 0
      %547 = vmatpush1.bf16.msra.mxu0 0
      %548 = vmatprep.mubr.bf16.mxu0 0
      %549 = vmatmul.mubr.bf16.gmra.mrb[0].mxu0 %v424
      %v550 = vpop.f32.mrb[0].mxu0
      %v551 = vadd.f32 %v360, %v550
      %v552 = vpop.f32.mrb[0].mxu0
      %v553 = vpop.f32.mrb[0].mxu0
      %v554 = vadd.f32 %v360, %v553
      %v555 = vpop.f32.mrb[0].mxu0
      %556 = vmatprep.mubr.bf16.mxu0 0
      %557 = vmatmul.mubr.bf16.gmra.mrb[0].mxu0 %v427
      %v558 = vpop.f32.mrb[0].mxu0
      %v559 = vadd.f32 %v360, %v558
      %v560 = vpop.f32.mrb[0].mxu0
      %v561 = vpop.f32.mrb[0].mxu0
      %v562 = vadd.f32 %v360, %v561
      %v563 = vpop.f32.mrb[0].mxu0
      %564 = vmatprep.mubr.bf16.mxu0 0
      %565 = vmatmul.mubr.bf16.gmra.mrb[0].mxu0 %v430
      %v566 = vpop.f32.mrb[0].mxu0
      %v567 = vadd.f32 %v360, %v566
      %v568 = vpop.f32.mrb[0].mxu0
      %v569 = vpop.f32.mrb[0].mxu0
      %v570 = vadd.f32 %v360, %v569
      %v571 = vpop.f32.mrb[0].mxu0
      %572 = vmatprep.mubr.bf16.mxu0 0
      %573 = vmatmul.mubr.bf16.gmra.mrb[0].mxu0 %v433
      %v574 = vpop.f32.mrb[0].mxu0
      %v575 = vadd.f32 %v360, %v574
      %v576 = vpop.f32.mrb[0].mxu0
      %v577 = vpop.f32.mrb[0].mxu0
      %v578 = vpop.f32.mrb[0].mxu0
      %579 = vdwg.mxu0
      %v580 = vmax.f32 %v480, 0.0
      %v581 = vmax.f32 %v482, 0.0
      %v582 = vmax.f32 %v551, 0.0
      %v583 = vmax.f32 %v484, 0.0
      %v584 = vmax.f32 %v486, 0.0
      %v585 = vmax.f32 %v554, 0.0
      %v586 = vmax.f32 %v490, 0.0
      %v587 = vmax.f32 %v492, 0.0
      %v588 = vmax.f32 %v559, 0.0
      %v589 = vmax.f32 %v494, 0.0
      %v590 = vmax.f32 %v496, 0.0
      %v591 = vmax.f32 %v562, 0.0
      %v592 = vmax.f32 %v500, 0.0
      %v593 = vmax.f32 %v502, 0.0
      %v594 = vmax.f32 %v567, 0.0
      %v595 = vmax.f32 %v504, 0.0
      %v596 = vmax.f32 %v506, 0.0
      %v597 = vmax.f32 %v570, 0.0
      %v598 = vmax.f32 %v510, 0.0
      %v599 = vmax.f32 %v512, 0.0
      %v600 = vmax.f32 %v575, 0.0
      %v601 = vld [vmem:[%s320] sm:$0xf]
      %v602 = vld [vmem:[%s320 + $0x4] sm:$0xf]
      %v603 = vld [vmem:[%s320 + $0x8] sm:$0xf]
      %v604 = vld [vmem:[%s320 + $0xc] sm:$0xf]
      %v605 = vld [vmem:[%s320 + $0x10] sm:$0xf]
      %v606 = vld [vmem:[%s320 + $0x14] sm:$0xf]
      %v607 = vld [vmem:[%s320 + $0x18] sm:$0xf]
      %v608 = vld [vmem:[%s320 + $0x1c] sm:$0xf]
      %v609 = vld [vmem:[%s320 + $0x20] sm:$0xf]
      %v610 = vld [vmem:[%s320 + $0x24] sm:$0xf]
      %v611 = vld [vmem:[%s320 + $0x28] sm:$0xf]
      %v612 = vld [vmem:[%s320 + $0x2c] sm:$0xf]
      %v613 = vld [vmem:[%s320 + $0x30] sm:$0xf]
      %v614 = vld [vmem:[%s320 + $0x34] sm:$0xf]
      %v615 = vld [vmem:[%s320 + $0x38] sm:$0xf]
      %v616 = vld [vmem:[%s320 + $0x3c] sm:$0xf]
      %v617 = vld [vmem:[%s320 + $0x40] sm:$0xf]
      %v618 = vld [vmem:[%s320 + $0x44] sm:$0xf]
      %v619 = vld [vmem:[%s320 + $0x48] sm:$0xf]
      %v620 = vld [vmem:[%s320 + $0x4c] sm:$0xf]
      %v621 = vld [vmem:[%s320 + $0x50] sm:$0xf]
      %v622 = vld [vmem:[%s320 + $0x54] sm:$0xf]
      %v623 = vld [vmem:[%s320 + $0x58] sm:$0xf]
      %v624 = vld [vmem:[%s320 + $0x5c] sm:$0xf]
      %v625 = vld [vmem:[%s320 + $0x60] sm:$0xf]
      %v626 = vld [vmem:[%s320 + $0x64] sm:$0xf]
      %v627 = vld [vmem:[%s320 + $0x68] sm:$0xf]
      %v628 = vld [vmem:[%s320 + $0x6c] sm:$0xf]
      %v629 = vld [vmem:[%s320 + $0x70] sm:$0xf]
      %v630 = vld [vmem:[%s320 + $0x74] sm:$0xf]
      %v631 = vld [vmem:[%s320 + $0x78] sm:$0xf]
      %v632 = vld [vmem:[%s320 + $0x7c] sm:$0xf]
      %v633 = vld [vmem:[%s320 + $0x80] sm:$0xf]
      %v634 = vld [vmem:[%s320 + $0x84] sm:$0xf]
      %v635 = vld [vmem:[%s320 + $0x88] sm:$0xf]
      %v636 = vld [vmem:[%s320 + $0x8c] sm:$0xf]
      %v637 = vld [vmem:[%s320 + $0x90] sm:$0xf]
      %v638 = vld [vmem:[%s320 + $0x94] sm:$0xf]
      %v639 = vld [vmem:[%s320 + $0x98] sm:$0xf]
      %v640 = vld [vmem:[%s320 + $0x9c] sm:$0xf]
      %v641 = vld [vmem:[%s320 + $0xa0] sm:$0xf]
      %v642 = vld [vmem:[%s320 + $0xa4] sm:$0xf]
      %v643 = vld [vmem:[%s320 + $0xa8] sm:$0xf]
      %v644 = vld [vmem:[%s320 + $0xac] sm:$0xf]
      %v645 = vld [vmem:[%s320 + $0xb0] sm:$0xf]
      %v646 = vld [vmem:[%s320 + $0xb4] sm:$0xf]
      %v647 = vld [vmem:[%s320 + $0xb8] sm:$0xf]
      %v648 = vld [vmem:[%s320 + $0xbc] sm:$0xf]
      %v649 = vld [vmem:[%s320 + $0xc0] sm:$0xf]
      %v650 = vld [vmem:[%s320 + $0xc4] sm:$0xf]
      %v651 = vld [vmem:[%s320 + $0xc8] sm:$0xf]
      %v652 = vld [vmem:[%s320 + $0xcc] sm:$0xf]
      %v653 = vld [vmem:[%s320 + $0xd0] sm:$0xf]
      %v654 = vld [vmem:[%s320 + $0xd4] sm:$0xf]
      %v655 = vld [vmem:[%s320 + $0xd8] sm:$0xf]
      %v656 = vld [vmem:[%s320 + $0xdc] sm:$0xf]
      %v657 = vld [vmem:[%s320 + $0xe0] sm:$0xf]
      %v658 = vld [vmem:[%s320 + $0xe4] sm:$0xf]
      %v659 = vld [vmem:[%s320 + $0xe8] sm:$0xf]
      %v660 = vld [vmem:[%s320 + $0xec] sm:$0xf]
      %v661 = vld [vmem:[%s320 + $0xf0] sm:$0xf]
      %v662 = vld [vmem:[%s320 + $0xf4] sm:$0xf]
      %v663 = vld [vmem:[%s320 + $0xf8] sm:$0xf]
      %v664 = vld [vmem:[%s320 + $0xfc] sm:$0xf]
      %v665 = vld [vmem:[%s320 + $0x100] sm:$0xf]
      %v666 = vld [vmem:[%s320 + $0x104] sm:$0xf]
      %v667 = vld [vmem:[%s320 + $0x108] sm:$0xf]
      %v668 = vld [vmem:[%s320 + $0x10c] sm:$0xf]
      %v669 = vld [vmem:[%s320 + $0x110] sm:$0xf]
      %v670 = vld [vmem:[%s320 + $0x114] sm:$0xf]
      %v671 = vld [vmem:[%s320 + $0x118] sm:$0xf]
      %v672 = vld [vmem:[%s320 + $0x11c] sm:$0xf]
      %v673 = vld [vmem:[%s320 + $0x120] sm:$0xf]
      %v674 = vld [vmem:[%s320 + $0x124] sm:$0xf]
      %v675 = vld [vmem:[%s320 + $0x128] sm:$0xf]
      %v676 = vld [vmem:[%s320 + $0x12c] sm:$0xf]
      %v677 = vld [vmem:[%s320 + $0x130] sm:$0xf]
      %v678 = vld [vmem:[%s320 + $0x134] sm:$0xf]
      %v679 = vld [vmem:[%s320 + $0x138] sm:$0xf]
      %v680 = vld [vmem:[%s320 + $0x13c] sm:$0xf]
      %v681 = vld [vmem:[%s320 + $0x140] sm:$0xf]
      %v682 = vld [vmem:[%s320 + $0x144] sm:$0xf]
      %v683 = vld [vmem:[%s320 + $0x148] sm:$0xf]
      %v684 = vld [vmem:[%s320 + $0x14c] sm:$0xf]
      %v685 = vld [vmem:[%s320 + $0x150] sm:$0xf]
      %v686 = vld [vmem:[%s320 + $0x154] sm:$0xf]
      %v687 = vld [vmem:[%s320 + $0x158] sm:$0xf]
      %v688 = vld [vmem:[%s320 + $0x15c] sm:$0xf]
      %v689 = vld [vmem:[%s320 + $0x160] sm:$0xf]
      %v690 = vld [vmem:[%s320 + $0x164] sm:$0xf]
      %v691 = vld [vmem:[%s320 + $0x168] sm:$0xf]
      %v692 = vld [vmem:[%s320 + $0x16c] sm:$0xf]
      %v693 = vld [vmem:[%s320 + $0x170] sm:$0xf]
      %v694 = vld [vmem:[%s320 + $0x174] sm:$0xf]
      %v695 = vld [vmem:[%s320 + $0x178] sm:$0xf]
      %v696 = vld [vmem:[%s320 + $0x17c] sm:$0xf]
      %v697 = vld [vmem:[%s320 + $0x180] sm:$0xf]
      %v698 = vld [vmem:[%s320 + $0x184] sm:$0xf]
      %v699 = vld [vmem:[%s320 + $0x188] sm:$0xf]
      %v700 = vld [vmem:[%s320 + $0x18c] sm:$0xf]
      %v701 = vld [vmem:[%s320 + $0x190] sm:$0xf]
      %v702 = vld [vmem:[%s320 + $0x194] sm:$0xf]
      %v703 = vld [vmem:[%s320 + $0x198] sm:$0xf]
      %v704 = vld [vmem:[%s320 + $0x19c] sm:$0xf]
      %v705 = vld [vmem:[%s320 + $0x1a0] sm:$0xf]
      %v706 = vld [vmem:[%s320 + $0x1a4] sm:$0xf]
      %v707 = vld [vmem:[%s320 + $0x1a8] sm:$0xf]
      %v708 = vld [vmem:[%s320 + $0x1ac] sm:$0xf]
      %v709 = vld [vmem:[%s320 + $0x1b0] sm:$0xf]
      %v710 = vld [vmem:[%s320 + $0x1b4] sm:$0xf]
      %v711 = vld [vmem:[%s320 + $0x1b8] sm:$0xf]
      %v712 = vld [vmem:[%s320 + $0x1bc] sm:$0xf]
      %v713 = vld [vmem:[%s320 + $0x1c0] sm:$0xf]
      %v714 = vld [vmem:[%s320 + $0x1c4] sm:$0xf]
      %v715 = vld [vmem:[%s320 + $0x1c8] sm:$0xf]
      %v716 = vld [vmem:[%s320 + $0x1cc] sm:$0xf]
      %v717 = vld [vmem:[%s320 + $0x1d0] sm:$0xf]
      %v718 = vld [vmem:[%s320 + $0x1d4] sm:$0xf]
      %v719 = vld [vmem:[%s320 + $0x1d8] sm:$0xf]
      %v720 = vld [vmem:[%s320 + $0x1dc] sm:$0xf]
      %v721 = vld [vmem:[%s320 + $0x1e0] sm:$0xf]
      %v722 = vld [vmem:[%s320 + $0x1e4] sm:$0xf]
      %v723 = vld [vmem:[%s320 + $0x1e8] sm:$0xf]
      %v724 = vld [vmem:[%s320 + $0x1ec] sm:$0xf]
      %v725 = vld [vmem:[%s320 + $0x1f0] sm:$0xf]
      %v726 = vld [vmem:[%s320 + $0x1f4] sm:$0xf]
      %v727 = vld [vmem:[%s320 + $0x1f8] sm:$0xf]
      %v728 = vld [vmem:[%s320 + $0x1fc] sm:$0xf]
      %v729 = vld [vmem:[%s4] sm:$0x3]
      %v730 = vlaneseq
      %v731 = vshrl.u32 %v730, 7
      %v732 = vsub.s32 0, %v731
      %v733 = vrot.slane %v328, %v732
      %v862 = vunpack.c.l.b16 %v601
      %v863 = vunpack.c.l.b16 %v602
      %v864 = vunpack.c.l.b16 %v603
      %v865 = vunpack.c.l.b16 %v604
      %v866 = vunpack.c.l.b16 %v605
      %v867 = vunpack.c.l.b16 %v606
      %v868 = vunpack.c.l.b16 %v607
      %v869 = vunpack.c.l.b16 %v608
      %v870 = vunpack.c.l.b16 %v609
      %v871 = vunpack.c.l.b16 %v610
      %v872 = vunpack.c.l.b16 %v611
      %v873 = vunpack.c.l.b16 %v612
      %v874 = vunpack.c.l.b16 %v613
      %v875 = vunpack.c.l.b16 %v614
      %v876 = vunpack.c.l.b16 %v615
      %v877 = vunpack.c.l.b16 %v616
      %v878 = vunpack.c.l.b16 %v617
      %v879 = vunpack.c.l.b16 %v618
      %v880 = vunpack.c.l.b16 %v619
      %v881 = vunpack.c.l.b16 %v620
      %v882 = vunpack.c.l.b16 %v621
      %v883 = vunpack.c.l.b16 %v622
      %v884 = vunpack.c.l.b16 %v623
      %v885 = vunpack.c.l.b16 %v624
      %v886 = vunpack.c.l.b16 %v625
      %v887 = vunpack.c.l.b16 %v626
      %v888 = vunpack.c.l.b16 %v627
      %v889 = vunpack.c.l.b16 %v628
      %v890 = vunpack.c.l.b16 %v629
      %v891 = vunpack.c.l.b16 %v630
      %v892 = vunpack.c.l.b16 %v631
      %v893 = vunpack.c.l.b16 %v632
      %v894 = vunpack.c.l.b16 %v633
      %v895 = vunpack.c.l.b16 %v634
      %v896 = vunpack.c.l.b16 %v635
      %v897 = vunpack.c.l.b16 %v636
      %v898 = vunpack.c.l.b16 %v637
      %v899 = vunpack.c.l.b16 %v638
      %v900 = vunpack.c.l.b16 %v639
      %v901 = vunpack.c.l.b16 %v640
      %v902 = vunpack.c.l.b16 %v641
      %v903 = vunpack.c.l.b16 %v642
      %v904 = vunpack.c.l.b16 %v643
      %v905 = vunpack.c.l.b16 %v644
      %v906 = vunpack.c.l.b16 %v645
      %v907 = vunpack.c.l.b16 %v646
      %v908 = vunpack.c.l.b16 %v647
      %v909 = vunpack.c.l.b16 %v648
      %v910 = vunpack.c.l.b16 %v649
      %v911 = vunpack.c.l.b16 %v650
      %v912 = vunpack.c.l.b16 %v651
      %v913 = vunpack.c.l.b16 %v652
      %v914 = vunpack.c.l.b16 %v653
      %v915 = vunpack.c.l.b16 %v654
      %v916 = vunpack.c.l.b16 %v655
      %v917 = vunpack.c.l.b16 %v656
      %v918 = vunpack.c.l.b16 %v657
      %v919 = vunpack.c.l.b16 %v658
      %v920 = vunpack.c.l.b16 %v659
      %v921 = vunpack.c.l.b16 %v660
      %v922 = vunpack.c.l.b16 %v661
      %v923 = vunpack.c.l.b16 %v662
      %v924 = vunpack.c.l.b16 %v663
      %v925 = vunpack.c.l.b16 %v664
      %v926 = vunpack.c.l.b16 %v665
      %v927 = vunpack.c.l.b16 %v666
      %v928 = vunpack.c.l.b16 %v667
      %v929 = vunpack.c.l.b16 %v668
      %v930 = vunpack.c.l.b16 %v669
      %v931 = vunpack.c.l.b16 %v670
      %v932 = vunpack.c.l.b16 %v671
      %v933 = vunpack.c.l.b16 %v672
      %v934 = vunpack.c.l.b16 %v673
      %v935 = vunpack.c.l.b16 %v674
      %v936 = vunpack.c.l.b16 %v675
      %v937 = vunpack.c.l.b16 %v676
      %v938 = vunpack.c.l.b16 %v677
      %v939 = vunpack.c.l.b16 %v678
      %v940 = vunpack.c.l.b16 %v679
      %v941 = vunpack.c.l.b16 %v680
      %v942 = vunpack.c.l.b16 %v681
      %v943 = vunpack.c.l.b16 %v682
      %v944 = vunpack.c.l.b16 %v683
      %v945 = vunpack.c.l.b16 %v684
      %v946 = vunpack.c.l.b16 %v685
      %v947 = vunpack.c.l.b16 %v686
      %v948 = vunpack.c.l.b16 %v687
      %v949 = vunpack.c.l.b16 %v688
      %v950 = vunpack.c.l.b16 %v689
      %v951 = vunpack.c.l.b16 %v690
      %v952 = vunpack.c.l.b16 %v691
      %v953 = vunpack.c.l.b16 %v692
      %v954 = vunpack.c.l.b16 %v693
      %v955 = vunpack.c.l.b16 %v694
      %v956 = vunpack.c.l.b16 %v695
      %v957 = vunpack.c.l.b16 %v696
      %v958 = vunpack.c.l.b16 %v697
      %v959 = vunpack.c.l.b16 %v698
      %v960 = vunpack.c.l.b16 %v699
      %v961 = vunpack.c.l.b16 %v700
      %v962 = vunpack.c.l.b16 %v701
      %v963 = vunpack.c.l.b16 %v702
      %v964 = vunpack.c.l.b16 %v703
      %v965 = vunpack.c.l.b16 %v704
      %v966 = vunpack.c.l.b16 %v705
      %v967 = vunpack.c.l.b16 %v706
      %v968 = vunpack.c.l.b16 %v707
      %v969 = vunpack.c.l.b16 %v708
      %v970 = vunpack.c.l.b16 %v709
      %v971 = vunpack.c.l.b16 %v710
      %v972 = vunpack.c.l.b16 %v711
      %v973 = vunpack.c.l.b16 %v712
      %v974 = vunpack.c.l.b16 %v713
      %v975 = vunpack.c.l.b16 %v714
      %v976 = vunpack.c.l.b16 %v715
      %v977 = vunpack.c.l.b16 %v716
      %v978 = vunpack.c.l.b16 %v717
      %v979 = vunpack.c.l.b16 %v718
      %v980 = vunpack.c.l.b16 %v719
      %v981 = vunpack.c.l.b16 %v720
      %v982 = vunpack.c.l.b16 %v721
      %v983 = vunpack.c.l.b16 %v722
      %v984 = vunpack.c.l.b16 %v723
      %v985 = vunpack.c.l.b16 %v724
      %v986 = vunpack.c.l.b16 %v725
      %v987 = vunpack.c.l.b16 %v726
      %v988 = vunpack.c.l.b16 %v727
      %v989 = vunpack.c.l.b16 %v728
      %v990 = vpack.c.b16 %v863, %v862
      %v991 = vpack.c.b16 %v865, %v864
      %v992 = vpack.c.b16 %v867, %v866
      %v993 = vpack.c.b16 %v869, %v868
      %v994 = vpack.c.b16 %v871, %v870
      %v995 = vpack.c.b16 %v873, %v872
      %v996 = vpack.c.b16 %v875, %v874
      %v997 = vpack.c.b16 %v877, %v876
      %v998 = vpack.c.b16 %v879, %v878
      %v999 = vpack.c.b16 %v881, %v880
      %v1000 = vpack.c.b16 %v883, %v882
      %v1001 = vpack.c.b16 %v885, %v884
      %v1002 = vpack.c.b16 %v887, %v886
      %v1003 = vpack.c.b16 %v889, %v888
      %v1004 = vpack.c.b16 %v891, %v890
      %v1005 = vpack.c.b16 %v893, %v892
      %v1006 = vpack.c.b16 %v895, %v894
      %v1007 = vpack.c.b16 %v897, %v896
      %v1008 = vpack.c.b16 %v899, %v898
      %v1009 = vpack.c.b16 %v901, %v900
      %v1010 = vpack.c.b16 %v903, %v902
      %v1011 = vpack.c.b16 %v905, %v904
      %v1012 = vpack.c.b16 %v907, %v906
      %v1013 = vpack.c.b16 %v909, %v908
      %v1014 = vpack.c.b16 %v911, %v910
      %v1015 = vpack.c.b16 %v913, %v912
      %v1016 = vpack.c.b16 %v915, %v914
      %v1017 = vpack.c.b16 %v917, %v916
      %v1018 = vpack.c.b16 %v919, %v918
      %v1019 = vpack.c.b16 %v921, %v920
      %v1020 = vpack.c.b16 %v923, %v922
      %v1021 = vpack.c.b16 %v925, %v924
      %v1022 = vpack.c.b16 %v927, %v926
      %v1023 = vpack.c.b16 %v929, %v928
      %v1024 = vpack.c.b16 %v931, %v930
      %v1025 = vpack.c.b16 %v933, %v932
      %v1026 = vpack.c.b16 %v935, %v934
      %v1027 = vpack.c.b16 %v937, %v936
      %v1028 = vpack.c.b16 %v939, %v938
      %v1029 = vpack.c.b16 %v941, %v940
      %v1030 = vpack.c.b16 %v943, %v942
      %v1031 = vpack.c.b16 %v945, %v944
      %v1032 = vpack.c.b16 %v947, %v946
      %v1033 = vpack.c.b16 %v949, %v948
      %v1034 = vpack.c.b16 %v951, %v950
      %v1035 = vpack.c.b16 %v953, %v952
      %v1036 = vpack.c.b16 %v955, %v954
      %v1037 = vpack.c.b16 %v957, %v956
      %v1038 = vpack.c.b16 %v959, %v958
      %v1039 = vpack.c.b16 %v961, %v960
      %v1040 = vpack.c.b16 %v963, %v962
      %v1041 = vpack.c.b16 %v965, %v964
      %v1042 = vpack.c.b16 %v967, %v966
      %v1043 = vpack.c.b16 %v969, %v968
      %v1044 = vpack.c.b16 %v971, %v970
      %v1045 = vpack.c.b16 %v973, %v972
      %v1046 = vpack.c.b16 %v975, %v974
      %v1047 = vpack.c.b16 %v977, %v976
      %v1048 = vpack.c.b16 %v979, %v978
      %v1049 = vpack.c.b16 %v981, %v980
      %v1050 = vpack.c.b16 %v983, %v982
      %v1051 = vpack.c.b16 %v985, %v984
      %v1052 = vpack.c.b16 %v987, %v986
      %v1053 = vpack.c.b16 %v989, %v988
      %vm1054 = vcmask 31744
      %v1056 = vsel %vm1054, %v990, 0
      %v1059 = vsel %vm1054, %v991, 0
      %v1062 = vsel %vm1054, %v992, 0
      %v1065 = vsel %vm1054, %v993, 0
      %v1068 = vsel %vm1054, %v994, 0
      %v1071 = vsel %vm1054, %v995, 0
      %v1074 = vsel %vm1054, %v996, 0
      %v1077 = vsel %vm1054, %v997, 0
      %v1080 = vsel %vm1054, %v998, 0
      %v1083 = vsel %vm1054, %v999, 0
      %v1086 = vsel %vm1054, %v1000, 0
      %v1089 = vsel %vm1054, %v1001, 0
      %v1092 = vsel %vm1054, %v1002, 0
      %v1095 = vsel %vm1054, %v1003, 0
      %v1098 = vsel %vm1054, %v1004, 0
      %v1101 = vsel %vm1054, %v1005, 0
      %v1104 = vsel %vm1054, %v1006, 0
      %v1107 = vsel %vm1054, %v1007, 0
      %v1110 = vsel %vm1054, %v1008, 0
      %v1113 = vsel %vm1054, %v1009, 0
      %v1116 = vsel %vm1054, %v1010, 0
      %v1119 = vsel %vm1054, %v1011, 0
      %v1122 = vsel %vm1054, %v1012, 0
      %v1125 = vsel %vm1054, %v1013, 0
      %v1128 = vsel %vm1054, %v1014, 0
      %v1131 = vsel %vm1054, %v1015, 0
      %v1134 = vsel %vm1054, %v1016, 0
      %v1137 = vsel %vm1054, %v1017, 0
      %v1140 = vsel %vm1054, %v1018, 0
      %v1143 = vsel %vm1054, %v1019, 0
      %v1146 = vsel %vm1054, %v1020, 0
      %v1149 = vsel %vm1054, %v1021, 0
      %v1152 = vsel %vm1054, %v1022, 0
      %v1155 = vsel %vm1054, %v1023, 0
      %v1158 = vsel %vm1054, %v1024, 0
      %v1161 = vsel %vm1054, %v1025, 0
      %v1164 = vsel %vm1054, %v1026, 0
      %v1167 = vsel %vm1054, %v1027, 0
      %v1170 = vsel %vm1054, %v1028, 0
      %v1173 = vsel %vm1054, %v1029, 0
      %v1176 = vsel %vm1054, %v1030, 0
      %v1179 = vsel %vm1054, %v1031, 0
      %v1182 = vsel %vm1054, %v1032, 0
      %v1185 = vsel %vm1054, %v1033, 0
      %v1188 = vsel %vm1054, %v1034, 0
      %v1191 = vsel %vm1054, %v1035, 0
      %v1194 = vsel %vm1054, %v1036, 0
      %v1197 = vsel %vm1054, %v1037, 0
      %v1200 = vsel %vm1054, %v1038, 0
      %v1203 = vsel %vm1054, %v1039, 0
      %v1206 = vsel %vm1054, %v1040, 0
      %v1209 = vsel %vm1054, %v1041, 0
      %v1212 = vsel %vm1054, %v1042, 0
      %v1215 = vsel %vm1054, %v1043, 0
      %v1218 = vsel %vm1054, %v1044, 0
      %v1221 = vsel %vm1054, %v1045, 0
      %v1224 = vsel %vm1054, %v1046, 0
      %v1227 = vsel %vm1054, %v1047, 0
      %v1230 = vsel %vm1054, %v1048, 0
      %v1233 = vsel %vm1054, %v1049, 0
      %v1236 = vsel %vm1054, %v1050, 0
      %v1239 = vsel %vm1054, %v1051, 0
      %v1242 = vsel %vm1054, %v1052, 0
      %v1245 = vsel %vm1054, %v1053, 0
      %v1248 = vsel %vm435, %v729, 0
      %1250 = vmatprep.subr.bf16.mxu0 0
      %1251 = vmatpush1.bf16.msra.mxu0 %v1248
      %1252 = vmatprep.subr.bf16.mxu0 0
      %1253 = vmatpush1.bf16.msra.mxu0 0
      %1254 = vmatprep.subr.bf16.mxu0 0
      %1255 = vmatpush1.bf16.msra.mxu0 0
      %1256 = vmatprep.subr.bf16.mxu0 0
      %1257 = vmatpush1.bf16.msra.mxu0 0
      %1258 = vmatprep.subr.bf16.mxu0 0
      %1259 = vmatpush1.bf16.msra.mxu0 0
      %1260 = vmatprep.subr.bf16.mxu0 0
      %1261 = vmatpush1.bf16.msra.mxu0 0
      %1262 = vmatprep.subr.bf16.mxu0 0
      %1263 = vmatpush1.bf16.msra.mxu0 0
      %1264 = vmatprep.subr.bf16.mxu0 0
      %1265 = vmatpush1.bf16.msra.mxu0 0
      %1266 = vmatprep.subr.bf16.mxu0 0
      %1267 = vmatpush1.bf16.msra.mxu0 0
      %1268 = vmatprep.subr.bf16.mxu0 0
      %1269 = vmatpush1.bf16.msra.mxu0 0
      %1270 = vmatprep.subr.bf16.mxu0 0
      %1271 = vmatpush1.bf16.msra.mxu0 0
      %1272 = vmatprep.subr.bf16.mxu0 0
      %1273 = vmatpush1.bf16.msra.mxu0 0
      %1274 = vmatprep.subr.bf16.mxu0 0
      %1275 = vmatpush1.bf16.msra.mxu0 0
      %1276 = vmatprep.subr.bf16.mxu0 0
      %1277 = vmatpush1.bf16.msra.mxu0 0
      %1278 = vmatprep.subr.bf16.mxu0 0
      %1279 = vmatpush1.bf16.msra.mxu0 0
      %1280 = vmatprep.subr.bf16.mxu0 0
      %1281 = vmatpush1.bf16.msra.mxu0 0
      %1282 = vmatprep.mubr.bf16.mxu0 0
      %1283 = vmatmul.mubr.bf16.gmra.mrb[0].mxu0 %v1056
      %v1284 = vpop.f32.mrb[0].mxu0
      %v1285 = vadd.f32 %v733, %v1284
      %v1286 = vpop.f32.mrb[0].mxu0
      %v1287 = vpop.f32.mrb[0].mxu0
      %v1288 = vadd.f32 %v733, %v1287
      %v1289 = vpop.f32.mrb[0].mxu0
      %1290 = vmatprep.mubr.bf16.mxu0 0
      %1291 = vmatmul.mubr.bf16.gmra.mrb[0].mxu0 %v1059
      %v1292 = vpop.f32.mrb[0].mxu0
      %v1293 = vadd.f32 %v733, %v1292
      %v1294 = vpop.f32.mrb[0].mxu0
      %v1295 = vpop.f32.mrb[0].mxu0
      %v1296 = vadd.f32 %v733, %v1295
      %v1297 = vpop.f32.mrb[0].mxu0
      %1298 = vmatprep.mubr.bf16.mxu0 0
      %1299 = vmatmul.mubr.bf16.gmra.mrb[0].mxu0 %v1062
      %v1300 = vpop.f32.mrb[0].mxu0
      %v1301 = vadd.f32 %v733, %v1300
      %v1302 = vpop.f32.mrb[0].mxu0
      %v1303 = vpop.f32.mrb[0].mxu0
      %v1304 = vadd.f32 %v733, %v1303
      %v1305 = vpop.f32.mrb[0].mxu0
      %1306 = vmatprep.mubr.bf16.mxu0 0
      %1307 = vmatmul.mubr.bf16.gmra.mrb[0].mxu0 %v1065
      %v1308 = vpop.f32.mrb[0].mxu0
      %v1309 = vadd.f32 %v733, %v1308
      %v1310 = vpop.f32.mrb[0].mxu0
      %v1311 = vpop.f32.mrb[0].mxu0
      %v1312 = vadd.f32 %v733, %v1311
      %v1313 = vpop.f32.mrb[0].mxu0
      %1314 = vmatprep.mubr.bf16.mxu0 0
      %1315 = vmatmul.mubr.bf16.gmra.mrb[0].mxu0 %v1068
      %v1316 = vpop.f32.mrb[0].mxu0
      %v1317 = vadd.f32 %v733, %v1316
      %v1318 = vpop.f32.mrb[0].mxu0
      %v1319 = vpop.f32.mrb[0].mxu0
      %v1320 = vadd.f32 %v733, %v1319
      %v1321 = vpop.f32.mrb[0].mxu0
      %1322 = vmatprep.mubr.bf16.mxu0 0
      %1323 = vmatmul.mubr.bf16.gmra.mrb[0].mxu0 %v1071
      %v1324 = vpop.f32.mrb[0].mxu0
      %v1325 = vadd.f32 %v733, %v1324
      %v1326 = vpop.f32.mrb[0].mxu0
      %v1327 = vpop.f32.mrb[0].mxu0
      %v1328 = vadd.f32 %v733, %v1327
      %v1329 = vpop.f32.mrb[0].mxu0
      %1330 = vmatprep.mubr.bf16.mxu0 0
      %1331 = vmatmul.mubr.bf16.gmra.mrb[0].mxu0 %v1074
      %v1332 = vpop.f32.mrb[0].mxu0
      %v1333 = vadd.f32 %v733, %v1332
      %v1334 = vpop.f32.mrb[0].mxu0
      %v1335 = vpop.f32.mrb[0].mxu0
      %v1336 = vadd.f32 %v733, %v1335
      %v1337 = vpop.f32.mrb[0].mxu0
      %1338 = vmatprep.mubr.bf16.mxu0 0
      %1339 = vmatmul.mubr.bf16.gmra.mrb[0].mxu0 %v1077
      %v1340 = vpop.f32.mrb[0].mxu0
      %v1341 = vadd.f32 %v733, %v1340
      %v1342 = vpop.f32.mrb[0].mxu0
      %v1343 = vpop.f32.mrb[0].mxu0
      %v1344 = vadd.f32 %v733, %v1343
      %v1345 = vpop.f32.mrb[0].mxu0
      %1346 = vmatprep.mubr.bf16.mxu0 0
      %1347 = vmatmul.mubr.bf16.gmra.mrb[0].mxu0 %v1080
      %v1348 = vpop.f32.mrb[0].mxu0
      %v1349 = vadd.f32 %v733, %v1348
      %v1350 = vpop.f32.mrb[0].mxu0
      %v1351 = vpop.f32.mrb[0].mxu0
      %v1352 = vadd.f32 %v733, %v1351
      %v1353 = vpop.f32.mrb[0].mxu0
      %1354 = vmatprep.mubr.bf16.mxu0 0
      %1355 = vmatmul.mubr.bf16.gmra.mrb[0].mxu0 %v1083
      %v1356 = vpop.f32.mrb[0].mxu0
      %v1357 = vadd.f32 %v733, %v1356
      %v1358 = vpop.f32.mrb[0].mxu0
      %v1359 = vpop.f32.mrb[0].mxu0
      %v1360 = vadd.f32 %v733, %v1359
      %v1361 = vpop.f32.mrb[0].mxu0
      %1362 = vmatprep.mubr.bf16.mxu0 0
      %1363 = vmatmul.mubr.bf16.gmra.mrb[0].mxu0 %v1086
      %v1364 = vpop.f32.mrb[0].mxu0
      %v1365 = vadd.f32 %v733, %v1364
      %v1366 = vpop.f32.mrb[0].mxu0
      %v1367 = vpop.f32.mrb[0].mxu0
      %v1368 = vadd.f32 %v733, %v1367
      %v1369 = vpop.f32.mrb[0].mxu0
      %1370 = vmatprep.mubr.bf16.mxu0 0
      %1371 = vmatmul.mubr.bf16.gmra.mrb[0].mxu0 %v1089
      %v1372 = vpop.f32.mrb[0].mxu0
      %v1373 = vadd.f32 %v733, %v1372
      %v1374 = vpop.f32.mrb[0].mxu0
      %v1375 = vpop.f32.mrb[0].mxu0
      %v1376 = vadd.f32 %v733, %v1375
      %v1377 = vpop.f32.mrb[0].mxu0
      %1378 = vmatprep.mubr.bf16.mxu0 0
      %1379 = vmatmul.mubr.bf16.gmra.mrb[0].mxu0 %v1092
      %v1380 = vpop.f32.mrb[0].mxu0
      %v1381 = vadd.f32 %v733, %v1380
      %v1382 = vpop.f32.mrb[0].mxu0
      %v1383 = vpop.f32.mrb[0].mxu0
      %v1384 = vadd.f32 %v733, %v1383
      %v1385 = vpop.f32.mrb[0].mxu0
      %1386 = vmatprep.mubr.bf16.mxu0 0
      %1387 = vmatmul.mubr.bf16.gmra.mrb[0].mxu0 %v1095
      %v1388 = vpop.f32.mrb[0].mxu0
      %v1389 = vadd.f32 %v733, %v1388
      %v1390 = vpop.f32.mrb[0].mxu0
      %v1391 = vpop.f32.mrb[0].mxu0
      %v1392 = vadd.f32 %v733, %v1391
      %v1393 = vpop.f32.mrb[0].mxu0
      %1394 = vmatprep.mubr.bf16.mxu0 0
      %1395 = vmatmul.mubr.bf16.gmra.mrb[0].mxu0 %v1098
      %v1396 = vpop.f32.mrb[0].mxu0
      %v1397 = vadd.f32 %v733, %v1396
      %v1398 = vpop.f32.mrb[0].mxu0
      %v1399 = vpop.f32.mrb[0].mxu0
      %v1400 = vadd.f32 %v733, %v1399
      %v1401 = vpop.f32.mrb[0].mxu0
      %1402 = vmatprep.mubr.bf16.mxu0 0
      %1403 = vmatmul.mubr.bf16.gmra.mrb[0].mxu0 %v1101
      %v1404 = vpop.f32.mrb[0].mxu0
      %v1405 = vadd.f32 %v733, %v1404
      %v1406 = vpop.f32.mrb[0].mxu0
      %v1407 = vpop.f32.mrb[0].mxu0
      %v1408 = vadd.f32 %v733, %v1407
      %v1409 = vpop.f32.mrb[0].mxu0
      %1410 = vmatprep.mubr.bf16.mxu0 0
      %1411 = vmatmul.mubr.bf16.gmra.mrb[0].mxu0 %v1104
      %v1412 = vpop.f32.mrb[0].mxu0
      %v1413 = vadd.f32 %v733, %v1412
      %v1414 = vpop.f32.mrb[0].mxu0
      %v1415 = vpop.f32.mrb[0].mxu0
      %v1416 = vadd.f32 %v733, %v1415
      %v1417 = vpop.f32.mrb[0].mxu0
      %1418 = vmatprep.mubr.bf16.mxu0 0
      %1419 = vmatmul.mubr.bf16.gmra.mrb[0].mxu0 %v1107
      %v1420 = vpop.f32.mrb[0].mxu0
      %v1421 = vadd.f32 %v733, %v1420
      %v1422 = vpop.f32.mrb[0].mxu0
      %v1423 = vpop.f32.mrb[0].mxu0
      %v1424 = vadd.f32 %v733, %v1423
      %v1425 = vpop.f32.mrb[0].mxu0
      %1426 = vmatprep.mubr.bf16.mxu0 0
      %1427 = vmatmul.mubr.bf16.gmra.mrb[0].mxu0 %v1110
      %v1428 = vpop.f32.mrb[0].mxu0
      %v1429 = vadd.f32 %v733, %v1428
      %v1430 = vpop.f32.mrb[0].mxu0
      %v1431 = vpop.f32.mrb[0].mxu0
      %v1432 = vadd.f32 %v733, %v1431
      %v1433 = vpop.f32.mrb[0].mxu0
      %1434 = vmatprep.mubr.bf16.mxu0 0
      %1435 = vmatmul.mubr.bf16.gmra.mrb[0].mxu0 %v1113
      %v1436 = vpop.f32.mrb[0].mxu0
      %v1437 = vadd.f32 %v733, %v1436
      %v1438 = vpop.f32.mrb[0].mxu0
      %v1439 = vpop.f32.mrb[0].mxu0
      %v1440 = vadd.f32 %v733, %v1439
      %v1441 = vpop.f32.mrb[0].mxu0
      %1442 = vmatprep.mubr.bf16.mxu0 0
      %1443 = vmatmul.mubr.bf16.gmra.mrb[0].mxu0 %v1116
      %v1444 = vpop.f32.mrb[0].mxu0
      %v1445 = vadd.f32 %v733, %v1444
      %v1446 = vpop.f32.mrb[0].mxu0
      %v1447 = vpop.f32.mrb[0].mxu0
      %v1448 = vadd.f32 %v733, %v1447
      %v1449 = vpop.f32.mrb[0].mxu0
      %1450 = vmatprep.mubr.bf16.mxu0 0
      %1451 = vmatmul.mubr.bf16.gmra.mrb[0].mxu0 %v1119
      %v1452 = vpop.f32.mrb[0].mxu0
      %v1453 = vadd.f32 %v733, %v1452
      %v1454 = vpop.f32.mrb[0].mxu0
      %v1455 = vpop.f32.mrb[0].mxu0
      %v1456 = vadd.f32 %v733, %v1455
      %v1457 = vpop.f32.mrb[0].mxu0
      %1458 = vmatprep.mubr.bf16.mxu0 0
      %1459 = vmatmul.mubr.bf16.gmra.mrb[0].mxu0 %v1122
      %v1460 = vpop.f32.mrb[0].mxu0
      %v1461 = vadd.f32 %v733, %v1460
      %v1462 = vpop.f32.mrb[0].mxu0
      %v1463 = vpop.f32.mrb[0].mxu0
      %v1464 = vadd.f32 %v733, %v1463
      %v1465 = vpop.f32.mrb[0].mxu0
      %1466 = vmatprep.mubr.bf16.mxu0 0
      %1467 = vmatmul.mubr.bf16.gmra.mrb[0].mxu0 %v1125
      %v1468 = vpop.f32.mrb[0].mxu0
      %v1469 = vadd.f32 %v733, %v1468
      %v1470 = vpop.f32.mrb[0].mxu0
      %v1471 = vpop.f32.mrb[0].mxu0
      %v1472 = vadd.f32 %v733, %v1471
      %v1473 = vpop.f32.mrb[0].mxu0
      %1474 = vmatprep.mubr.bf16.mxu0 0
      %1475 = vmatmul.mubr.bf16.gmra.mrb[0].mxu0 %v1128
      %v1476 = vpop.f32.mrb[0].mxu0
      %v1477 = vadd.f32 %v733, %v1476
      %v1478 = vpop.f32.mrb[0].mxu0
      %v1479 = vpop.f32.mrb[0].mxu0
      %v1480 = vadd.f32 %v733, %v1479
      %v1481 = vpop.f32.mrb[0].mxu0
      %1482 = vmatprep.mubr.bf16.mxu0 0
      %1483 = vmatmul.mubr.bf16.gmra.mrb[0].mxu0 %v1131
      %v1484 = vpop.f32.mrb[0].mxu0
      %v1485 = vadd.f32 %v733, %v1484
      %v1486 = vpop.f32.mrb[0].mxu0
      %v1487 = vpop.f32.mrb[0].mxu0
      %v1488 = vadd.f32 %v733, %v1487
      %v1489 = vpop.f32.mrb[0].mxu0
      %1490 = vmatprep.mubr.bf16.mxu0 0
      %1491 = vmatmul.mubr.bf16.gmra.mrb[0].mxu0 %v1134
      %v1492 = vpop.f32.mrb[0].mxu0
      %v1493 = vadd.f32 %v733, %v1492
      %v1494 = vpop.f32.mrb[0].mxu0
      %v1495 = vpop.f32.mrb[0].mxu0
      %v1496 = vadd.f32 %v733, %v1495
      %v1497 = vpop.f32.mrb[0].mxu0
      %1498 = vmatprep.mubr.bf16.mxu0 0
      %1499 = vmatmul.mubr.bf16.gmra.mrb[0].mxu0 %v1137
      %v1500 = vpop.f32.mrb[0].mxu0
      %v1501 = vadd.f32 %v733, %v1500
      %v1502 = vpop.f32.mrb[0].mxu0
      %v1503 = vpop.f32.mrb[0].mxu0
      %v1504 = vadd.f32 %v733, %v1503
      %v1505 = vpop.f32.mrb[0].mxu0
      %1506 = vmatprep.mubr.bf16.mxu0 0
      %1507 = vmatmul.mubr.bf16.gmra.mrb[0].mxu0 %v1140
      %v1508 = vpop.f32.mrb[0].mxu0
      %v1509 = vadd.f32 %v733, %v1508
      %v1510 = vpop.f32.mrb[0].mxu0
      %v1511 = vpop.f32.mrb[0].mxu0
      %v1512 = vadd.f32 %v733, %v1511
      %v1513 = vpop.f32.mrb[0].mxu0
      %1514 = vmatprep.mubr.bf16.mxu0 0
      %1515 = vmatmul.mubr.bf16.gmra.mrb[0].mxu0 %v1143
      %v1516 = vpop.f32.mrb[0].mxu0
      %v1517 = vadd.f32 %v733, %v1516
      %v1518 = vpop.f32.mrb[0].mxu0
      %v1519 = vpop.f32.mrb[0].mxu0
      %v1520 = vadd.f32 %v733, %v1519
      %v1521 = vpop.f32.mrb[0].mxu0
      %1522 = vmatprep.mubr.bf16.mxu0 0
      %1523 = vmatmul.mubr.bf16.gmra.mrb[0].mxu0 %v1146
      %v1524 = vpop.f32.mrb[0].mxu0
      %v1525 = vadd.f32 %v733, %v1524
      %v1526 = vpop.f32.mrb[0].mxu0
      %v1527 = vpop.f32.mrb[0].mxu0
      %v1528 = vadd.f32 %v733, %v1527
      %v1529 = vpop.f32.mrb[0].mxu0
      %1530 = vmatprep.mubr.bf16.mxu0 0
      %1531 = vmatmul.mubr.bf16.gmra.mrb[0].mxu0 %v1149
      %v1532 = vpop.f32.mrb[0].mxu0
      %v1533 = vadd.f32 %v733, %v1532
      %v1534 = vpop.f32.mrb[0].mxu0
      %v1535 = vpop.f32.mrb[0].mxu0
      %v1536 = vadd.f32 %v733, %v1535
      %v1537 = vpop.f32.mrb[0].mxu0
      %1538 = vmatprep.mubr.bf16.mxu0 0
      %1539 = vmatmul.mubr.bf16.gmra.mrb[0].mxu0 %v1152
      %v1540 = vpop.f32.mrb[0].mxu0
      %v1541 = vadd.f32 %v733, %v1540
      %v1542 = vpop.f32.mrb[0].mxu0
      %v1543 = vpop.f32.mrb[0].mxu0
      %v1544 = vadd.f32 %v733, %v1543
      %v1545 = vpop.f32.mrb[0].mxu0
      %1546 = vmatprep.mubr.bf16.mxu0 0
      %1547 = vmatmul.mubr.bf16.gmra.mrb[0].mxu0 %v1155
      %v1548 = vpop.f32.mrb[0].mxu0
      %v1549 = vadd.f32 %v733, %v1548
      %v1550 = vpop.f32.mrb[0].mxu0
      %v1551 = vpop.f32.mrb[0].mxu0
      %v1552 = vadd.f32 %v733, %v1551
      %v1553 = vpop.f32.mrb[0].mxu0
      %1554 = vmatprep.mubr.bf16.mxu0 0
      %1555 = vmatmul.mubr.bf16.gmra.mrb[0].mxu0 %v1158
      %v1556 = vpop.f32.mrb[0].mxu0
      %v1557 = vadd.f32 %v733, %v1556
      %v1558 = vpop.f32.mrb[0].mxu0
      %v1559 = vpop.f32.mrb[0].mxu0
      %v1560 = vadd.f32 %v733, %v1559
      %v1561 = vpop.f32.mrb[0].mxu0
      %1562 = vmatprep.mubr.bf16.mxu0 0
      %1563 = vmatmul.mubr.bf16.gmra.mrb[0].mxu0 %v1161
      %v1564 = vpop.f32.mrb[0].mxu0
      %v1565 = vadd.f32 %v733, %v1564
      %v1566 = vpop.f32.mrb[0].mxu0
      %v1567 = vpop.f32.mrb[0].mxu0
      %v1568 = vadd.f32 %v733, %v1567
      %v1569 = vpop.f32.mrb[0].mxu0
      %1570 = vmatprep.mubr.bf16.mxu0 0
      %1571 = vmatmul.mubr.bf16.gmra.mrb[0].mxu0 %v1164
      %v1572 = vpop.f32.mrb[0].mxu0
      %v1573 = vadd.f32 %v733, %v1572
      %v1574 = vpop.f32.mrb[0].mxu0
      %v1575 = vpop.f32.mrb[0].mxu0
      %v1576 = vadd.f32 %v733, %v1575
      %v1577 = vpop.f32.mrb[0].mxu0
      %1578 = vmatprep.mubr.bf16.mxu0 0
      %1579 = vmatmul.mubr.bf16.gmra.mrb[0].mxu0 %v1167
      %v1580 = vpop.f32.mrb[0].mxu0
      %v1581 = vadd.f32 %v733, %v1580
      %v1582 = vpop.f32.mrb[0].mxu0
      %v1583 = vpop.f32.mrb[0].mxu0
      %v1584 = vadd.f32 %v733, %v1583
      %v1585 = vpop.f32.mrb[0].mxu0
      %1586 = vmatprep.mubr.bf16.mxu0 0
      %1587 = vmatmul.mubr.bf16.gmra.mrb[0].mxu0 %v1170
      %v1588 = vpop.f32.mrb[0].mxu0
      %v1589 = vadd.f32 %v733, %v1588
      %v1590 = vpop.f32.mrb[0].mxu0
      %v1591 = vpop.f32.mrb[0].mxu0
      %v1592 = vadd.f32 %v733, %v1591
      %v1593 = vpop.f32.mrb[0].mxu0
      %1594 = vmatprep.mubr.bf16.mxu0 0
      %1595 = vmatmul.mubr.bf16.gmra.mrb[0].mxu0 %v1173
      %v1596 = vpop.f32.mrb[0].mxu0
      %v1597 = vadd.f32 %v733, %v1596
      %v1598 = vpop.f32.mrb[0].mxu0
      %v1599 = vpop.f32.mrb[0].mxu0
      %v1600 = vadd.f32 %v733, %v1599
      %v1601 = vpop.f32.mrb[0].mxu0
      %1602 = vmatprep.mubr.bf16.mxu0 0
      %1603 = vmatmul.mubr.bf16.gmra.mrb[0].mxu0 %v1176
      %v1604 = vpop.f32.mrb[0].mxu0
      %v1605 = vadd.f32 %v733, %v1604
      %v1606 = vpop.f32.mrb[0].mxu0
      %v1607 = vpop.f32.mrb[0].mxu0
      %v1608 = vadd.f32 %v733, %v1607
      %v1609 = vpop.f32.mrb[0].mxu0
      %1610 = vmatprep.mubr.bf16.mxu0 0
      %1611 = vmatmul.mubr.bf16.gmra.mrb[0].mxu0 %v1179
      %v1612 = vpop.f32.mrb[0].mxu0
      %v1613 = vadd.f32 %v733, %v1612
      %v1614 = vpop.f32.mrb[0].mxu0
      %v1615 = vpop.f32.mrb[0].mxu0
      %v1616 = vadd.f32 %v733, %v1615
      %v1617 = vpop.f32.mrb[0].mxu0
      %1618 = vmatprep.mubr.bf16.mxu0 0
      %1619 = vmatmul.mubr.bf16.gmra.mrb[0].mxu0 %v1182
      %v1620 = vpop.f32.mrb[0].mxu0
      %v1621 = vadd.f32 %v733, %v1620
      %v1622 = vpop.f32.mrb[0].mxu0
      %v1623 = vpop.f32.mrb[0].mxu0
      %v1624 = vadd.f32 %v733, %v1623
      %v1625 = vpop.f32.mrb[0].mxu0
      %1626 = vmatprep.mubr.bf16.mxu0 0
      %1627 = vmatmul.mubr.bf16.gmra.mrb[0].mxu0 %v1185
      %v1628 = vpop.f32.mrb[0].mxu0
      %v1629 = vadd.f32 %v733, %v1628
      %v1630 = vpop.f32.mrb[0].mxu0
      %v1631 = vpop.f32.mrb[0].mxu0
      %v1632 = vadd.f32 %v733, %v1631
      %v1633 = vpop.f32.mrb[0].mxu0
      %1634 = vmatprep.mubr.bf16.mxu0 0
      %1635 = vmatmul.mubr.bf16.gmra.mrb[0].mxu0 %v1188
      %v1636 = vpop.f32.mrb[0].mxu0
      %v1637 = vadd.f32 %v733, %v1636
      %v1638 = vpop.f32.mrb[0].mxu0
      %v1639 = vpop.f32.mrb[0].mxu0
      %v1640 = vadd.f32 %v733, %v1639
      %v1641 = vpop.f32.mrb[0].mxu0
      %1642 = vmatprep.mubr.bf16.mxu0 0
      %1643 = vmatmul.mubr.bf16.gmra.mrb[0].mxu0 %v1191
      %v1644 = vpop.f32.mrb[0].mxu0
      %v1645 = vadd.f32 %v733, %v1644
      %v1646 = vpop.f32.mrb[0].mxu0
      %v1647 = vpop.f32.mrb[0].mxu0
      %v1648 = vadd.f32 %v733, %v1647
      %v1649 = vpop.f32.mrb[0].mxu0
      %1650 = vmatprep.mubr.bf16.mxu0 0
      %1651 = vmatmul.mubr.bf16.gmra.mrb[0].mxu0 %v1194
      %v1652 = vpop.f32.mrb[0].mxu0
      %v1653 = vadd.f32 %v733, %v1652
      %v1654 = vpop.f32.mrb[0].mxu0
      %v1655 = vpop.f32.mrb[0].mxu0
      %v1656 = vadd.f32 %v733, %v1655
      %v1657 = vpop.f32.mrb[0].mxu0
      %1658 = vmatprep.mubr.bf16.mxu0 0
      %1659 = vmatmul.mubr.bf16.gmra.mrb[0].mxu0 %v1197
      %v1660 = vpop.f32.mrb[0].mxu0
      %v1661 = vadd.f32 %v733, %v1660
      %v1662 = vpop.f32.mrb[0].mxu0
      %v1663 = vpop.f32.mrb[0].mxu0
      %v1664 = vadd.f32 %v733, %v1663
      %v1665 = vpop.f32.mrb[0].mxu0
      %1666 = vmatprep.mubr.bf16.mxu0 0
      %1667 = vmatmul.mubr.bf16.gmra.mrb[0].mxu0 %v1200
      %v1668 = vpop.f32.mrb[0].mxu0
      %v1669 = vadd.f32 %v733, %v1668
      %v1670 = vpop.f32.mrb[0].mxu0
      %v1671 = vpop.f32.mrb[0].mxu0
      %v1672 = vadd.f32 %v733, %v1671
      %v1673 = vpop.f32.mrb[0].mxu0
      %1674 = vmatprep.mubr.bf16.mxu0 0
      %1675 = vmatmul.mubr.bf16.gmra.mrb[0].mxu0 %v1203
      %v1676 = vpop.f32.mrb[0].mxu0
      %v1677 = vadd.f32 %v733, %v1676
      %v1678 = vpop.f32.mrb[0].mxu0
      %v1679 = vpop.f32.mrb[0].mxu0
      %v1680 = vadd.f32 %v733, %v1679
      %v1681 = vpop.f32.mrb[0].mxu0
      %1682 = vmatprep.mubr.bf16.mxu0 0
      %1683 = vmatmul.mubr.bf16.gmra.mrb[0].mxu0 %v1206
      %v1684 = vpop.f32.mrb[0].mxu0
      %v1685 = vadd.f32 %v733, %v1684
      %v1686 = vpop.f32.mrb[0].mxu0
      %v1687 = vpop.f32.mrb[0].mxu0
      %v1688 = vadd.f32 %v733, %v1687
      %v1689 = vpop.f32.mrb[0].mxu0
      %1690 = vmatprep.mubr.bf16.mxu0 0
      %1691 = vmatmul.mubr.bf16.gmra.mrb[0].mxu0 %v1209
      %v1692 = vpop.f32.mrb[0].mxu0
      %v1693 = vadd.f32 %v733, %v1692
      %v1694 = vpop.f32.mrb[0].mxu0
      %v1695 = vpop.f32.mrb[0].mxu0
      %v1696 = vadd.f32 %v733, %v1695
      %v1697 = vpop.f32.mrb[0].mxu0
      %1698 = vmatprep.mubr.bf16.mxu0 0
      %1699 = vmatmul.mubr.bf16.gmra.mrb[0].mxu0 %v1212
      %v1700 = vpop.f32.mrb[0].mxu0
      %v1701 = vadd.f32 %v733, %v1700
      %v1702 = vpop.f32.mrb[0].mxu0
      %v1703 = vpop.f32.mrb[0].mxu0
      %v1704 = vadd.f32 %v733, %v1703
      %v1705 = vpop.f32.mrb[0].mxu0
      %1706 = vmatprep.mubr.bf16.mxu0 0
      %1707 = vmatmul.mubr.bf16.gmra.mrb[0].mxu0 %v1215
      %v1708 = vpop.f32.mrb[0].mxu0
      %v1709 = vadd.f32 %v733, %v1708
      %v1710 = vpop.f32.mrb[0].mxu0
      %v1711 = vpop.f32.mrb[0].mxu0
      %v1712 = vadd.f32 %v733, %v1711
      %v1713 = vpop.f32.mrb[0].mxu0
      %1714 = vmatprep.mubr.bf16.mxu0 0
      %1715 = vmatmul.mubr.bf16.gmra.mrb[0].mxu0 %v1218
      %v1716 = vpop.f32.mrb[0].mxu0
      %v1717 = vadd.f32 %v733, %v1716
      %v1718 = vpop.f32.mrb[0].mxu0
      %v1719 = vpop.f32.mrb[0].mxu0
      %v1720 = vadd.f32 %v733, %v1719
      %v1721 = vpop.f32.mrb[0].mxu0
      %1722 = vmatprep.mubr.bf16.mxu0 0
      %1723 = vmatmul.mubr.bf16.gmra.mrb[0].mxu0 %v1221
      %v1724 = vpop.f32.mrb[0].mxu0
      %v1725 = vadd.f32 %v733, %v1724
      %v1726 = vpop.f32.mrb[0].mxu0
      %v1727 = vpop.f32.mrb[0].mxu0
      %v1728 = vadd.f32 %v733, %v1727
      %v1729 = vpop.f32.mrb[0].mxu0
      %1730 = vmatprep.mubr.bf16.mxu0 0
      %1731 = vmatmul.mubr.bf16.gmra.mrb[0].mxu0 %v1224
      %v1732 = vpop.f32.mrb[0].mxu0
      %v1733 = vadd.f32 %v733, %v1732
      %v1734 = vpop.f32.mrb[0].mxu0
      %v1735 = vpop.f32.mrb[0].mxu0
      %v1736 = vadd.f32 %v733, %v1735
      %v1737 = vpop.f32.mrb[0].mxu0
      %1738 = vmatprep.mubr.bf16.mxu0 0
      %1739 = vmatmul.mubr.bf16.gmra.mrb[0].mxu0 %v1227
      %v1740 = vpop.f32.mrb[0].mxu0
      %v1741 = vadd.f32 %v733, %v1740
      %v1742 = vpop.f32.mrb[0].mxu0
      %v1743 = vpop.f32.mrb[0].mxu0
      %v1744 = vadd.f32 %v733, %v1743
      %v1745 = vpop.f32.mrb[0].mxu0
      %1746 = vmatprep.mubr.bf16.mxu0 0
      %1747 = vmatmul.mubr.bf16.gmra.mrb[0].mxu0 %v1230
      %v1748 = vpop.f32.mrb[0].mxu0
      %v1749 = vadd.f32 %v733, %v1748
      %v1750 = vpop.f32.mrb[0].mxu0
      %v1751 = vpop.f32.mrb[0].mxu0
      %v1752 = vadd.f32 %v733, %v1751
      %v1753 = vpop.f32.mrb[0].mxu0
      %1754 = vmatprep.mubr.bf16.mxu0 0
      %1755 = vmatmul.mubr.bf16.gmra.mrb[0].mxu0 %v1233
      %v1756 = vpop.f32.mrb[0].mxu0
      %v1757 = vadd.f32 %v733, %v1756
      %v1758 = vpop.f32.mrb[0].mxu0
      %v1759 = vpop.f32.mrb[0].mxu0
      %v1760 = vadd.f32 %v733, %v1759
      %v1761 = vpop.f32.mrb[0].mxu0
      %1762 = vmatprep.mubr.bf16.mxu0 0
      %1763 = vmatmul.mubr.bf16.gmra.mrb[0].mxu0 %v1236
      %v1764 = vpop.f32.mrb[0].mxu0
      %v1765 = vadd.f32 %v733, %v1764
      %v1766 = vpop.f32.mrb[0].mxu0
      %v1767 = vpop.f32.mrb[0].mxu0
      %v1768 = vadd.f32 %v733, %v1767
      %v1769 = vpop.f32.mrb[0].mxu0
      %1770 = vmatprep.mubr.bf16.mxu0 0
      %1771 = vmatmul.mubr.bf16.gmra.mrb[0].mxu0 %v1239
      %v1772 = vpop.f32.mrb[0].mxu0
      %v1773 = vadd.f32 %v733, %v1772
      %v1774 = vpop.f32.mrb[0].mxu0
      %v1775 = vpop.f32.mrb[0].mxu0
      %v1776 = vadd.f32 %v733, %v1775
      %v1777 = vpop.f32.mrb[0].mxu0
      %1778 = vmatprep.mubr.bf16.mxu0 0
      %1779 = vmatmul.mubr.bf16.gmra.mrb[0].mxu0 %v1242
      %v1780 = vpop.f32.mrb[0].mxu0
      %v1781 = vadd.f32 %v733, %v1780
      %v1782 = vpop.f32.mrb[0].mxu0
      %v1783 = vpop.f32.mrb[0].mxu0
      %v1784 = vadd.f32 %v733, %v1783
      %v1785 = vpop.f32.mrb[0].mxu0
      %1786 = vmatprep.mubr.bf16.mxu0 0
      %1787 = vmatmul.mubr.bf16.gmra.mrb[0].mxu0 %v1245
      %v1788 = vpop.f32.mrb[0].mxu0
      %v1789 = vadd.f32 %v733, %v1788
      %v1790 = vpop.f32.mrb[0].mxu0
      %v1791 = vpop.f32.mrb[0].mxu0
      %v1792 = vadd.f32 %v733, %v1791
      %v1793 = vpop.f32.mrb[0].mxu0
      %1794 = vdwg.mxu0
      %v1795 = vmax.f32 %v1285, 0.0
      %v1796 = vmax.f32 %v1288, 0.0
      %v1797 = vmax.f32 %v1293, 0.0
      %v1798 = vmax.f32 %v1296, 0.0
      %v1799 = vmax.f32 %v1301, 0.0
      %v1800 = vmax.f32 %v1304, 0.0
      %v1801 = vmax.f32 %v1309, 0.0
      %v1802 = vmax.f32 %v1312, 0.0
      %v1803 = vmax.f32 %v1317, 0.0
      %v1804 = vmax.f32 %v1320, 0.0
      %v1805 = vmax.f32 %v1325, 0.0
      %v1806 = vmax.f32 %v1328, 0.0
      %v1807 = vmax.f32 %v1333, 0.0
      %v1808 = vmax.f32 %v1336, 0.0
      %v1809 = vmax.f32 %v1341, 0.0
      %v1810 = vmax.f32 %v1344, 0.0
      %v1811 = vmax.f32 %v1349, 0.0
      %v1812 = vmax.f32 %v1352, 0.0
      %v1813 = vmax.f32 %v1357, 0.0
      %v1814 = vmax.f32 %v1360, 0.0
      %v1815 = vmax.f32 %v1365, 0.0
      %v1816 = vmax.f32 %v1368, 0.0
      %v1817 = vmax.f32 %v1373, 0.0
      %v1818 = vmax.f32 %v1376, 0.0
      %v1819 = vmax.f32 %v1381, 0.0
      %v1820 = vmax.f32 %v1384, 0.0
      %v1821 = vmax.f32 %v1389, 0.0
      %v1822 = vmax.f32 %v1392, 0.0
      %v1823 = vmax.f32 %v1397, 0.0
      %v1824 = vmax.f32 %v1400, 0.0
      %v1825 = vmax.f32 %v1405, 0.0
      %v1826 = vmax.f32 %v1408, 0.0
      %v1827 = vmax.f32 %v1413, 0.0
      %v1828 = vmax.f32 %v1416, 0.0
      %v1829 = vmax.f32 %v1421, 0.0
      %v1830 = vmax.f32 %v1424, 0.0
      %v1831 = vmax.f32 %v1429, 0.0
      %v1832 = vmax.f32 %v1432, 0.0
      %v1833 = vmax.f32 %v1437, 0.0
      %v1834 = vmax.f32 %v1440, 0.0
      %v1835 = vmax.f32 %v1445, 0.0
      %v1836 = vmax.f32 %v1448, 0.0
      %v1837 = vmax.f32 %v1453, 0.0
      %v1838 = vmax.f32 %v1456, 0.0
      %v1839 = vmax.f32 %v1461, 0.0
      %v1840 = vmax.f32 %v1464, 0.0
      %v1841 = vmax.f32 %v1469, 0.0
      %v1842 = vmax.f32 %v1472, 0.0
      %v1843 = vmax.f32 %v1477, 0.0
      %v1844 = vmax.f32 %v1480, 0.0
      %v1845 = vmax.f32 %v1485, 0.0
      %v1846 = vmax.f32 %v1488, 0.0
      %v1847 = vmax.f32 %v1493, 0.0
      %v1848 = vmax.f32 %v1496, 0.0
      %v1849 = vmax.f32 %v1501, 0.0
      %v1850 = vmax.f32 %v1504, 0.0
      %v1851 = vmax.f32 %v1509, 0.0
      %v1852 = vmax.f32 %v1512, 0.0
      %v1853 = vmax.f32 %v1517, 0.0
      %v1854 = vmax.f32 %v1520, 0.0
      %v1855 = vmax.f32 %v1525, 0.0
      %v1856 = vmax.f32 %v1528, 0.0
      %v1857 = vmax.f32 %v1533, 0.0
      %v1858 = vmax.f32 %v1536, 0.0
      %v1859 = vmax.f32 %v1541, 0.0
      %v1860 = vmax.f32 %v1544, 0.0
      %v1861 = vmax.f32 %v1549, 0.0
      %v1862 = vmax.f32 %v1552, 0.0
      %v1863 = vmax.f32 %v1557, 0.0
      %v1864 = vmax.f32 %v1560, 0.0
      %v1865 = vmax.f32 %v1565, 0.0
      %v1866 = vmax.f32 %v1568, 0.0
      %v1867 = vmax.f32 %v1573, 0.0
      %v1868 = vmax.f32 %v1576, 0.0
      %v1869 = vmax.f32 %v1581, 0.0
      %v1870 = vmax.f32 %v1584, 0.0
      %v1871 = vmax.f32 %v1589, 0.0
      %v1872 = vmax.f32 %v1592, 0.0
      %v1873 = vmax.f32 %v1597, 0.0
      %v1874 = vmax.f32 %v1600, 0.0
      %v1875 = vmax.f32 %v1605, 0.0
      %v1876 = vmax.f32 %v1608, 0.0
      %v1877 = vmax.f32 %v1613, 0.0
      %v1878 = vmax.f32 %v1616, 0.0
      %v1879 = vmax.f32 %v1621, 0.0
      %v1880 = vmax.f32 %v1624, 0.0
      %v1881 = vmax.f32 %v1629, 0.0
      %v1882 = vmax.f32 %v1632, 0.0
      %v1883 = vmax.f32 %v1637, 0.0
      %v1884 = vmax.f32 %v1640, 0.0
      %v1885 = vmax.f32 %v1645, 0.0
      %v1886 = vmax.f32 %v1648, 0.0
      %v1887 = vmax.f32 %v1653, 0.0
      %v1888 = vmax.f32 %v1656, 0.0
      %v1889 = vmax.f32 %v1661, 0.0
      %v1890 = vmax.f32 %v1664, 0.0
      %v1891 = vmax.f32 %v1669, 0.0
      %v1892 = vmax.f32 %v1672, 0.0
      %v1893 = vmax.f32 %v1677, 0.0
      %v1894 = vmax.f32 %v1680, 0.0
      %v1895 = vmax.f32 %v1685, 0.0
      %v1896 = vmax.f32 %v1688, 0.0
      %v1897 = vmax.f32 %v1693, 0.0
      %v1898 = vmax.f32 %v1696, 0.0
      %v1899 = vmax.f32 %v1701, 0.0
      %v1900 = vmax.f32 %v1704, 0.0
      %v1901 = vmax.f32 %v1709, 0.0
      %v1902 = vmax.f32 %v1712, 0.0
      %v1903 = vmax.f32 %v1717, 0.0
      %v1904 = vmax.f32 %v1720, 0.0
      %v1905 = vmax.f32 %v1725, 0.0
      %v1906 = vmax.f32 %v1728, 0.0
      %v1907 = vmax.f32 %v1733, 0.0
      %v1908 = vmax.f32 %v1736, 0.0
      %v1909 = vmax.f32 %v1741, 0.0
      %v1910 = vmax.f32 %v1744, 0.0
      %v1911 = vmax.f32 %v1749, 0.0
      %v1912 = vmax.f32 %v1752, 0.0
      %v1913 = vmax.f32 %v1757, 0.0
      %v1914 = vmax.f32 %v1760, 0.0
      %v1915 = vmax.f32 %v1765, 0.0
      %v1916 = vmax.f32 %v1768, 0.0
      %v1917 = vmax.f32 %v1773, 0.0
      %v1918 = vmax.f32 %v1776, 0.0
      %v1919 = vmax.f32 %v1781, 0.0
      %v1920 = vmax.f32 %v1784, 0.0
      %v1921 = vmax.f32 %v1789, 0.0
      %v1922 = vmax.f32 %v1792, 0.0
      %v1923 = vld [vmem:[%s2] sm:$0xff]
      %v1924 = vld [vmem:[%s2 + $0x8] sm:$0xff]
      %v1925 = vld [vmem:[%s2 + $0x10] sm:$0xff]
      %v1926 = vld [vmem:[%s2 + $0x18] sm:$0xff]
      %v1927 = vld [vmem:[%s2 + $0x20] sm:$0xff]
      %v1928 = vld [vmem:[%s2 + $0x28] sm:$0xff]
      %v1929 = vld [vmem:[%s2 + $0x30] sm:$0xff]
      %v1930 = vld [vmem:[%s2 + $0x38] sm:$0xff]
      %v1931 = vld [vmem:[%s2 + $0x40] sm:$0xff]
      %v1932 = vld [vmem:[%s2 + $0x48] sm:$0xff]
      %v1933 = vld [vmem:[%s2 + $0x50] sm:$0xff]
      %v1934 = vld [vmem:[%s2 + $0x58] sm:$0xff]
      %v1935 = vld [vmem:[%s2 + $0x60] sm:$0xff]
      %v1936 = vld [vmem:[%s2 + $0x68] sm:$0xff]
      %v1937 = vld [vmem:[%s2 + $0x70] sm:$0xff]
      %v1938 = vld [vmem:[%s2 + $0x78] sm:$0xff]
      %v1939 = vld [vmem:[%s2 + $0x80] sm:$0xff]
      %v1940 = vld [vmem:[%s2 + $0x88] sm:$0xff]
      %v1941 = vld [vmem:[%s2 + $0x90] sm:$0xff]
      %v1942 = vld [vmem:[%s2 + $0x98] sm:$0xff]
      %v1943 = vld [vmem:[%s2 + $0xa0] sm:$0xff]
      %v1944 = vld [vmem:[%s2 + $0xa8] sm:$0xff]
      %v1945 = vld [vmem:[%s2 + $0xb0] sm:$0xff]
      %v1946 = vld [vmem:[%s2 + $0xb8] sm:$0xff]
      %v1947 = vld [vmem:[%s2 + $0xc0] sm:$0xff]
      %v1948 = vld [vmem:[%s2 + $0xc8] sm:$0xff]
      %v1949 = vld [vmem:[%s2 + $0xd0] sm:$0xff]
      %v1950 = vld [vmem:[%s2 + $0xd8] sm:$0xff]
      %v1951 = vld [vmem:[%s2 + $0xe0] sm:$0xff]
      %v1952 = vld [vmem:[%s2 + $0xe8] sm:$0xff]
      %v1953 = vld [vmem:[%s2 + $0xf0] sm:$0xff]
      %v1954 = vld [vmem:[%s2 + $0xf8] sm:$0xff]
      %v1955 = vld [vmem:[%s2 + $0x100] sm:$0xff]
      %v1956 = vld [vmem:[%s2 + $0x108] sm:$0xff]
      %v1957 = vld [vmem:[%s2 + $0x110] sm:$0xff]
      %v1958 = vld [vmem:[%s2 + $0x118] sm:$0xff]
      %v1959 = vld [vmem:[%s2 + $0x120] sm:$0xff]
      %v1960 = vld [vmem:[%s2 + $0x128] sm:$0xff]
      %v1961 = vld [vmem:[%s2 + $0x130] sm:$0xff]
      %v1962 = vld [vmem:[%s2 + $0x138] sm:$0xff]
      %v1963 = vld [vmem:[%s2 + $0x140] sm:$0xff]
      %v1964 = vld [vmem:[%s2 + $0x148] sm:$0xff]
      %v1965 = vld [vmem:[%s2 + $0x150] sm:$0xff]
      %v1966 = vld [vmem:[%s2 + $0x158] sm:$0xff]
      %v1967 = vld [vmem:[%s2 + $0x160] sm:$0xff]
      %v1968 = vld [vmem:[%s2 + $0x168] sm:$0xff]
      %v1969 = vld [vmem:[%s2 + $0x170] sm:$0xff]
      %v1970 = vld [vmem:[%s2 + $0x178] sm:$0xff]
      %v1971 = vld [vmem:[%s2 + $0x180] sm:$0xff]
      %v1972 = vld [vmem:[%s2 + $0x188] sm:$0xff]
      %v1973 = vld [vmem:[%s2 + $0x190] sm:$0xff]
      %v1974 = vld [vmem:[%s2 + $0x198] sm:$0xff]
      %v1975 = vld [vmem:[%s2 + $0x1a0] sm:$0xff]
      %v1976 = vld [vmem:[%s2 + $0x1a8] sm:$0xff]
      %v1977 = vld [vmem:[%s2 + $0x1b0] sm:$0xff]
      %v1978 = vld [vmem:[%s2 + $0x1b8] sm:$0xff]
      %v1979 = vld [vmem:[%s2 + $0x1c0] sm:$0xff]
      %v1980 = vld [vmem:[%s2 + $0x1c8] sm:$0xff]
      %v1981 = vld [vmem:[%s2 + $0x1d0] sm:$0xff]
      %v1982 = vld [vmem:[%s2 + $0x1d8] sm:$0xff]
      %v1983 = vld [vmem:[%s2 + $0x1e0] sm:$0xff]
      %v1984 = vld [vmem:[%s2 + $0x1e8] sm:$0xff]
      %v1985 = vld [vmem:[%s2 + $0x1f0] sm:$0xff]
      %v1986 = vld [vmem:[%s2 + $0x1f8] sm:$0xff]
      %v1987 = vld [vmem:[%s2 + $0x200] sm:$0xff]
      %v1988 = vld [vmem:[%s2 + $0x208] sm:$0xff]
      %v1989 = vld [vmem:[%s2 + $0x210] sm:$0xff]
      %v1990 = vld [vmem:[%s2 + $0x218] sm:$0xff]
      %v1991 = vld [vmem:[%s2 + $0x220] sm:$0xff]
      %v1992 = vld [vmem:[%s2 + $0x228] sm:$0xff]
      %v1993 = vld [vmem:[%s2 + $0x230] sm:$0xff]
      %v1994 = vld [vmem:[%s2 + $0x238] sm:$0xff]
      %v1995 = vld [vmem:[%s2 + $0x240] sm:$0xff]
      %v1996 = vld [vmem:[%s2 + $0x248] sm:$0xff]
      %v1997 = vld [vmem:[%s2 + $0x250] sm:$0xff]
      %v1998 = vld [vmem:[%s2 + $0x258] sm:$0xff]
      %v1999 = vld [vmem:[%s2 + $0x260] sm:$0xff]
      %v2000 = vld [vmem:[%s2 + $0x268] sm:$0xff]
      %v2001 = vld [vmem:[%s2 + $0x270] sm:$0xff]
      %v2002 = vld [vmem:[%s2 + $0x278] sm:$0xff]
      %v2003 = vld [vmem:[%s2 + $0x280] sm:$0xff]
      %v2004 = vld [vmem:[%s2 + $0x288] sm:$0xff]
      %v2005 = vld [vmem:[%s2 + $0x290] sm:$0xff]
      %v2006 = vld [vmem:[%s2 + $0x298] sm:$0xff]
      %v2007 = vld [vmem:[%s2 + $0x2a0] sm:$0xff]
      %v2008 = vld [vmem:[%s2 + $0x2a8] sm:$0xff]
      %v2009 = vld [vmem:[%s2 + $0x2b0] sm:$0xff]
      %v2010 = vld [vmem:[%s2 + $0x2b8] sm:$0xff]
      %v2011 = vld [vmem:[%s2 + $0x2c0] sm:$0xff]
      %v2012 = vld [vmem:[%s2 + $0x2c8] sm:$0xff]
      %v2013 = vld [vmem:[%s2 + $0x2d0] sm:$0xff]
      %v2014 = vld [vmem:[%s2 + $0x2d8] sm:$0xff]
      %v2015 = vld [vmem:[%s2 + $0x2e0] sm:$0xff]
      %v2016 = vld [vmem:[%s2 + $0x2e8] sm:$0xff]
      %v2017 = vld [vmem:[%s2 + $0x2f0] sm:$0xff]
      %v2018 = vld [vmem:[%s2 + $0x2f8] sm:$0xff]
      %v2019 = vld [vmem:[%s2 + $0x300] sm:$0xff]
      %v2020 = vld [vmem:[%s2 + $0x308] sm:$0xff]
      %v2021 = vld [vmem:[%s2 + $0x310] sm:$0xff]
      %v2022 = vld [vmem:[%s2 + $0x318] sm:$0xff]
      %v2023 = vld [vmem:[%s2 + $0x320] sm:$0xff]
      %v2024 = vld [vmem:[%s2 + $0x328] sm:$0xff]
      %v2025 = vld [vmem:[%s2 + $0x330] sm:$0xff]
      %v2026 = vld [vmem:[%s2 + $0x338] sm:$0xff]
      %v2027 = vld [vmem:[%s2 + $0x340] sm:$0xff]
      %v2028 = vld [vmem:[%s2 + $0x348] sm:$0xff]
      %v2029 = vld [vmem:[%s2 + $0x350] sm:$0xff]
      %v2030 = vld [vmem:[%s2 + $0x358] sm:$0xff]
      %v2031 = vld [vmem:[%s2 + $0x360] sm:$0xff]
      %v2032 = vld [vmem:[%s2 + $0x368] sm:$0xff]
      %v2033 = vld [vmem:[%s2 + $0x370] sm:$0xff]
      %v2034 = vld [vmem:[%s2 + $0x378] sm:$0xff]
      %v2035 = vld [vmem:[%s2 + $0x380] sm:$0xff]
      %v2036 = vld [vmem:[%s2 + $0x388] sm:$0xff]
      %v2037 = vld [vmem:[%s2 + $0x390] sm:$0xff]
      %v2038 = vld [vmem:[%s2 + $0x398] sm:$0xff]
      %v2039 = vld [vmem:[%s2 + $0x3a0] sm:$0xff]
      %v2040 = vld [vmem:[%s2 + $0x3a8] sm:$0xff]
      %v2041 = vld [vmem:[%s2 + $0x3b0] sm:$0xff]
      %v2042 = vld [vmem:[%s2 + $0x3b8] sm:$0xff]
      %v2043 = vld [vmem:[%s2 + $0x3c0] sm:$0xff]
      %v2044 = vld [vmem:[%s2 + $0x3c8] sm:$0xff]
      %v2045 = vld [vmem:[%s2 + $0x3d0] sm:$0xff]
      %v2046 = vld [vmem:[%s2 + $0x3d8] sm:$0xff]
      %v2047 = vld [vmem:[%s2 + $0x3e0] sm:$0xff]
      %v2048 = vld [vmem:[%s2 + $0x3e8] sm:$0xff]
      %v2049 = vld [vmem:[%s2 + $0x3f0] sm:$0xff]
      %v2050 = vld [vmem:[%s2 + $0x3f8] sm:$0xff]
      %2052 = vset.pattern.permute.xlu0 0
      %2053 = vperm.xlu0 %2052, %v1923
      %v2054 = vpop.permute.xlu0 %2053
      %2057 = vset.pattern.permute.xlu0 0
      %2058 = vperm.xlu0 %2057, %v1924
      %v2059 = vpop.permute.xlu0 %2058
      %2062 = vset.pattern.permute.xlu0 0
      %2063 = vperm.xlu0 %2062, %v1925
      %v2064 = vpop.permute.xlu0 %2063
      %2067 = vset.pattern.permute.xlu0 0
      %2068 = vperm.xlu0 %2067, %v1926
      %v2069 = vpop.permute.xlu0 %2068
      %2072 = vset.pattern.permute.xlu0 0
      %2073 = vperm.xlu0 %2072, %v1927
      %v2074 = vpop.permute.xlu0 %2073
      %2077 = vset.pattern.permute.xlu0 0
      %2078 = vperm.xlu0 %2077, %v1928
      %v2079 = vpop.permute.xlu0 %2078
      %2082 = vset.pattern.permute.xlu0 0
      %2083 = vperm.xlu0 %2082, %v1929
      %v2084 = vpop.permute.xlu0 %2083
      %2087 = vset.pattern.permute.xlu0 0
      %2088 = vperm.xlu0 %2087, %v1930
      %v2089 = vpop.permute.xlu0 %2088
      %2092 = vset.pattern.permute.xlu0 0
      %2093 = vperm.xlu0 %2092, %v1931
      %v2094 = vpop.permute.xlu0 %2093
      %2097 = vset.pattern.permute.xlu0 0
      %2098 = vperm.xlu0 %2097, %v1932
      %v2099 = vpop.permute.xlu0 %2098
      %2102 = vset.pattern.permute.xlu0 0
      %2103 = vperm.xlu0 %2102, %v1933
      %v2104 = vpop.permute.xlu0 %2103
      %2107 = vset.pattern.permute.xlu0 0
      %2108 = vperm.xlu0 %2107, %v1934
      %v2109 = vpop.permute.xlu0 %2108
      %2112 = vset.pattern.permute.xlu0 0
      %2113 = vperm.xlu0 %2112, %v1935
      %v2114 = vpop.permute.xlu0 %2113
      %2117 = vset.pattern.permute.xlu0 0
      %2118 = vperm.xlu0 %2117, %v1936
      %v2119 = vpop.permute.xlu0 %2118
      %2122 = vset.pattern.permute.xlu0 0
      %2123 = vperm.xlu0 %2122, %v1937
      %v2124 = vpop.permute.xlu0 %2123
      %2127 = vset.pattern.permute.xlu0 0
      %2128 = vperm.xlu0 %2127, %v1938
      %v2129 = vpop.permute.xlu0 %2128
      %2132 = vset.pattern.permute.xlu0 0
      %2133 = vperm.xlu0 %2132, %v1939
      %v2134 = vpop.permute.xlu0 %2133
      %2137 = vset.pattern.permute.xlu0 0
      %2138 = vperm.xlu0 %2137, %v1940
      %v2139 = vpop.permute.xlu0 %2138
      %2142 = vset.pattern.permute.xlu0 0
      %2143 = vperm.xlu0 %2142, %v1941
      %v2144 = vpop.permute.xlu0 %2143
      %2147 = vset.pattern.permute.xlu0 0
      %2148 = vperm.xlu0 %2147, %v1942
      %v2149 = vpop.permute.xlu0 %2148
      %2152 = vset.pattern.permute.xlu0 0
      %2153 = vperm.xlu0 %2152, %v1943
      %v2154 = vpop.permute.xlu0 %2153
      %2157 = vset.pattern.permute.xlu0 0
      %2158 = vperm.xlu0 %2157, %v1944
      %v2159 = vpop.permute.xlu0 %2158
      %2162 = vset.pattern.permute.xlu0 0
      %2163 = vperm.xlu0 %2162, %v1945
      %v2164 = vpop.permute.xlu0 %2163
      %2167 = vset.pattern.permute.xlu0 0
      %2168 = vperm.xlu0 %2167, %v1946
      %v2169 = vpop.permute.xlu0 %2168
      %2172 = vset.pattern.permute.xlu0 0
      %2173 = vperm.xlu0 %2172, %v1947
      %v2174 = vpop.permute.xlu0 %2173
      %2177 = vset.pattern.permute.xlu0 0
      %2178 = vperm.xlu0 %2177, %v1948
      %v2179 = vpop.permute.xlu0 %2178
      %2182 = vset.pattern.permute.xlu0 0
      %2183 = vperm.xlu0 %2182, %v1949
      %v2184 = vpop.permute.xlu0 %2183
      %2187 = vset.pattern.permute.xlu0 0
      %2188 = vperm.xlu0 %2187, %v1950
      %v2189 = vpop.permute.xlu0 %2188
      %2192 = vset.pattern.permute.xlu0 0
      %2193 = vperm.xlu0 %2192, %v1951
      %v2194 = vpop.permute.xlu0 %2193
      %2197 = vset.pattern.permute.xlu0 0
      %2198 = vperm.xlu0 %2197, %v1952
      %v2199 = vpop.permute.xlu0 %2198
      %2202 = vset.pattern.permute.xlu0 0
      %2203 = vperm.xlu0 %2202, %v1953
      %v2204 = vpop.permute.xlu0 %2203
      %2207 = vset.pattern.permute.xlu0 0
      %2208 = vperm.xlu0 %2207, %v1954
      %v2209 = vpop.permute.xlu0 %2208
      %2212 = vset.pattern.permute.xlu0 0
      %2213 = vperm.xlu0 %2212, %v1955
      %v2214 = vpop.permute.xlu0 %2213
      %2217 = vset.pattern.permute.xlu0 0
      %2218 = vperm.xlu0 %2217, %v1956
      %v2219 = vpop.permute.xlu0 %2218
      %2222 = vset.pattern.permute.xlu0 0
      %2223 = vperm.xlu0 %2222, %v1957
      %v2224 = vpop.permute.xlu0 %2223
      %2227 = vset.pattern.permute.xlu0 0
      %2228 = vperm.xlu0 %2227, %v1958
      %v2229 = vpop.permute.xlu0 %2228
      %2232 = vset.pattern.permute.xlu0 0
      %2233 = vperm.xlu0 %2232, %v1959
      %v2234 = vpop.permute.xlu0 %2233
      %2237 = vset.pattern.permute.xlu0 0
      %2238 = vperm.xlu0 %2237, %v1960
      %v2239 = vpop.permute.xlu0 %2238
      %2242 = vset.pattern.permute.xlu0 0
      %2243 = vperm.xlu0 %2242, %v1961
      %v2244 = vpop.permute.xlu0 %2243
      %2247 = vset.pattern.permute.xlu0 0
      %2248 = vperm.xlu0 %2247, %v1962
      %v2249 = vpop.permute.xlu0 %2248
      %2252 = vset.pattern.permute.xlu0 0
      %2253 = vperm.xlu0 %2252, %v1963
      %v2254 = vpop.permute.xlu0 %2253
      %2257 = vset.pattern.permute.xlu0 0
      %2258 = vperm.xlu0 %2257, %v1964
      %v2259 = vpop.permute.xlu0 %2258
      %2262 = vset.pattern.permute.xlu0 0
      %2263 = vperm.xlu0 %2262, %v1965
      %v2264 = vpop.permute.xlu0 %2263
      %2267 = vset.pattern.permute.xlu0 0
      %2268 = vperm.xlu0 %2267, %v1966
      %v2269 = vpop.permute.xlu0 %2268
      %2272 = vset.pattern.permute.xlu0 0
      %2273 = vperm.xlu0 %2272, %v1967
      %v2274 = vpop.permute.xlu0 %2273
      %2277 = vset.pattern.permute.xlu0 0
      %2278 = vperm.xlu0 %2277, %v1968
      %v2279 = vpop.permute.xlu0 %2278
      %2282 = vset.pattern.permute.xlu0 0
      %2283 = vperm.xlu0 %2282, %v1969
      %v2284 = vpop.permute.xlu0 %2283
      %2287 = vset.pattern.permute.xlu0 0
      %2288 = vperm.xlu0 %2287, %v1970
      %v2289 = vpop.permute.xlu0 %2288
      %2292 = vset.pattern.permute.xlu0 0
      %2293 = vperm.xlu0 %2292, %v1971
      %v2294 = vpop.permute.xlu0 %2293
      %2297 = vset.pattern.permute.xlu0 0
      %2298 = vperm.xlu0 %2297, %v1972
      %v2299 = vpop.permute.xlu0 %2298
      %2302 = vset.pattern.permute.xlu0 0
      %2303 = vperm.xlu0 %2302, %v1973
      %v2304 = vpop.permute.xlu0 %2303
      %2307 = vset.pattern.permute.xlu0 0
      %2308 = vperm.xlu0 %2307, %v1974
      %v2309 = vpop.permute.xlu0 %2308
      %2312 = vset.pattern.permute.xlu0 0
      %2313 = vperm.xlu0 %2312, %v1975
      %v2314 = vpop.permute.xlu0 %2313
      %2317 = vset.pattern.permute.xlu0 0
      %2318 = vperm.xlu0 %2317, %v1976
      %v2319 = vpop.permute.xlu0 %2318
      %2322 = vset.pattern.permute.xlu0 0
      %2323 = vperm.xlu0 %2322, %v1977
      %v2324 = vpop.permute.xlu0 %2323
      %2327 = vset.pattern.permute.xlu0 0
      %2328 = vperm.xlu0 %2327, %v1978
      %v2329 = vpop.permute.xlu0 %2328
      %2332 = vset.pattern.permute.xlu0 0
      %2333 = vperm.xlu0 %2332, %v1979
      %v2334 = vpop.permute.xlu0 %2333
      %2337 = vset.pattern.permute.xlu0 0
      %2338 = vperm.xlu0 %2337, %v1980
      %v2339 = vpop.permute.xlu0 %2338
      %2342 = vset.pattern.permute.xlu0 0
      %2343 = vperm.xlu0 %2342, %v1981
      %v2344 = vpop.permute.xlu0 %2343
      %2347 = vset.pattern.permute.xlu0 0
      %2348 = vperm.xlu0 %2347, %v1982
      %v2349 = vpop.permute.xlu0 %2348
      %2352 = vset.pattern.permute.xlu0 0
      %2353 = vperm.xlu0 %2352, %v1983
      %v2354 = vpop.permute.xlu0 %2353
      %2357 = vset.pattern.permute.xlu0 0
      %2358 = vperm.xlu0 %2357, %v1984
      %v2359 = vpop.permute.xlu0 %2358
      %2362 = vset.pattern.permute.xlu0 0
      %2363 = vperm.xlu0 %2362, %v1985
      %v2364 = vpop.permute.xlu0 %2363
      %2367 = vset.pattern.permute.xlu0 0
      %2368 = vperm.xlu0 %2367, %v1986
      %v2369 = vpop.permute.xlu0 %2368
      %2372 = vset.pattern.permute.xlu0 0
      %2373 = vperm.xlu0 %2372, %v1987
      %v2374 = vpop.permute.xlu0 %2373
      %2377 = vset.pattern.permute.xlu0 0
      %2378 = vperm.xlu0 %2377, %v1988
      %v2379 = vpop.permute.xlu0 %2378
      %2382 = vset.pattern.permute.xlu0 0
      %2383 = vperm.xlu0 %2382, %v1989
      %v2384 = vpop.permute.xlu0 %2383
      %2387 = vset.pattern.permute.xlu0 0
      %2388 = vperm.xlu0 %2387, %v1990
      %v2389 = vpop.permute.xlu0 %2388
      %2392 = vset.pattern.permute.xlu0 0
      %2393 = vperm.xlu0 %2392, %v1991
      %v2394 = vpop.permute.xlu0 %2393
      %2397 = vset.pattern.permute.xlu0 0
      %2398 = vperm.xlu0 %2397, %v1992
      %v2399 = vpop.permute.xlu0 %2398
      %2402 = vset.pattern.permute.xlu0 0
      %2403 = vperm.xlu0 %2402, %v1993
      %v2404 = vpop.permute.xlu0 %2403
      %2407 = vset.pattern.permute.xlu0 0
      %2408 = vperm.xlu0 %2407, %v1994
      %v2409 = vpop.permute.xlu0 %2408
      %2412 = vset.pattern.permute.xlu0 0
      %2413 = vperm.xlu0 %2412, %v1995
      %v2414 = vpop.permute.xlu0 %2413
      %2417 = vset.pattern.permute.xlu0 0
      %2418 = vperm.xlu0 %2417, %v1996
      %v2419 = vpop.permute.xlu0 %2418
      %2422 = vset.pattern.permute.xlu0 0
      %2423 = vperm.xlu0 %2422, %v1997
      %v2424 = vpop.permute.xlu0 %2423
      %2427 = vset.pattern.permute.xlu0 0
      %2428 = vperm.xlu0 %2427, %v1998
      %v2429 = vpop.permute.xlu0 %2428
      %2432 = vset.pattern.permute.xlu0 0
      %2433 = vperm.xlu0 %2432, %v1999
      %v2434 = vpop.permute.xlu0 %2433
      %2437 = vset.pattern.permute.xlu0 0
      %2438 = vperm.xlu0 %2437, %v2000
      %v2439 = vpop.permute.xlu0 %2438
      %2442 = vset.pattern.permute.xlu0 0
      %2443 = vperm.xlu0 %2442, %v2001
      %v2444 = vpop.permute.xlu0 %2443
      %2447 = vset.pattern.permute.xlu0 0
      %2448 = vperm.xlu0 %2447, %v2002
      %v2449 = vpop.permute.xlu0 %2448
      %2452 = vset.pattern.permute.xlu0 0
      %2453 = vperm.xlu0 %2452, %v2003
      %v2454 = vpop.permute.xlu0 %2453
      %2457 = vset.pattern.permute.xlu0 0
      %2458 = vperm.xlu0 %2457, %v2004
      %v2459 = vpop.permute.xlu0 %2458
      %2462 = vset.pattern.permute.xlu0 0
      %2463 = vperm.xlu0 %2462, %v2005
      %v2464 = vpop.permute.xlu0 %2463
      %2467 = vset.pattern.permute.xlu0 0
      %2468 = vperm.xlu0 %2467, %v2006
      %v2469 = vpop.permute.xlu0 %2468
      %2472 = vset.pattern.permute.xlu0 0
      %2473 = vperm.xlu0 %2472, %v2007
      %v2474 = vpop.permute.xlu0 %2473
      %2477 = vset.pattern.permute.xlu0 0
      %2478 = vperm.xlu0 %2477, %v2008
      %v2479 = vpop.permute.xlu0 %2478
      %2482 = vset.pattern.permute.xlu0 0
      %2483 = vperm.xlu0 %2482, %v2009
      %v2484 = vpop.permute.xlu0 %2483
      %2487 = vset.pattern.permute.xlu0 0
      %2488 = vperm.xlu0 %2487, %v2010
      %v2489 = vpop.permute.xlu0 %2488
      %2492 = vset.pattern.permute.xlu0 0
      %2493 = vperm.xlu0 %2492, %v2011
      %v2494 = vpop.permute.xlu0 %2493
      %2497 = vset.pattern.permute.xlu0 0
      %2498 = vperm.xlu0 %2497, %v2012
      %v2499 = vpop.permute.xlu0 %2498
      %2502 = vset.pattern.permute.xlu0 0
      %2503 = vperm.xlu0 %2502, %v2013
      %v2504 = vpop.permute.xlu0 %2503
      %2507 = vset.pattern.permute.xlu0 0
      %2508 = vperm.xlu0 %2507, %v2014
      %v2509 = vpop.permute.xlu0 %2508
      %2512 = vset.pattern.permute.xlu0 0
      %2513 = vperm.xlu0 %2512, %v2015
      %v2514 = vpop.permute.xlu0 %2513
      %2517 = vset.pattern.permute.xlu0 0
      %2518 = vperm.xlu0 %2517, %v2016
      %v2519 = vpop.permute.xlu0 %2518
      %2522 = vset.pattern.permute.xlu0 0
      %2523 = vperm.xlu0 %2522, %v2017
      %v2524 = vpop.permute.xlu0 %2523
      %2527 = vset.pattern.permute.xlu0 0
      %2528 = vperm.xlu0 %2527, %v2018
      %v2529 = vpop.permute.xlu0 %2528
      %2532 = vset.pattern.permute.xlu0 0
      %2533 = vperm.xlu0 %2532, %v2019
      %v2534 = vpop.permute.xlu0 %2533
      %2537 = vset.pattern.permute.xlu0 0
      %2538 = vperm.xlu0 %2537, %v2020
      %v2539 = vpop.permute.xlu0 %2538
      %2542 = vset.pattern.permute.xlu0 0
      %2543 = vperm.xlu0 %2542, %v2021
      %v2544 = vpop.permute.xlu0 %2543
      %2547 = vset.pattern.permute.xlu0 0
      %2548 = vperm.xlu0 %2547, %v2022
      %v2549 = vpop.permute.xlu0 %2548
      %2552 = vset.pattern.permute.xlu0 0
      %2553 = vperm.xlu0 %2552, %v2023
      %v2554 = vpop.permute.xlu0 %2553
      %2557 = vset.pattern.permute.xlu0 0
      %2558 = vperm.xlu0 %2557, %v2024
      %v2559 = vpop.permute.xlu0 %2558
      %2562 = vset.pattern.permute.xlu0 0
      %2563 = vperm.xlu0 %2562, %v2025
      %v2564 = vpop.permute.xlu0 %2563
      %2567 = vset.pattern.permute.xlu0 0
      %2568 = vperm.xlu0 %2567, %v2026
      %v2569 = vpop.permute.xlu0 %2568
      %2572 = vset.pattern.permute.xlu0 0
      %2573 = vperm.xlu0 %2572, %v2027
      %v2574 = vpop.permute.xlu0 %2573
      %2577 = vset.pattern.permute.xlu0 0
      %2578 = vperm.xlu0 %2577, %v2028
      %v2579 = vpop.permute.xlu0 %2578
      %2582 = vset.pattern.permute.xlu0 0
      %2583 = vperm.xlu0 %2582, %v2029
      %v2584 = vpop.permute.xlu0 %2583
      %2587 = vset.pattern.permute.xlu0 0
      %2588 = vperm.xlu0 %2587, %v2030
      %v2589 = vpop.permute.xlu0 %2588
      %2592 = vset.pattern.permute.xlu0 0
      %2593 = vperm.xlu0 %2592, %v2031
      %v2594 = vpop.permute.xlu0 %2593
      %2597 = vset.pattern.permute.xlu0 0
      %2598 = vperm.xlu0 %2597, %v2032
      %v2599 = vpop.permute.xlu0 %2598
      %2602 = vset.pattern.permute.xlu0 0
      %2603 = vperm.xlu0 %2602, %v2033
      %v2604 = vpop.permute.xlu0 %2603
      %2607 = vset.pattern.permute.xlu0 0
      %2608 = vperm.xlu0 %2607, %v2034
      %v2609 = vpop.permute.xlu0 %2608
      %2612 = vset.pattern.permute.xlu0 0
      %2613 = vperm.xlu0 %2612, %v2035
      %v2614 = vpop.permute.xlu0 %2613
      %2617 = vset.pattern.permute.xlu0 0
      %2618 = vperm.xlu0 %2617, %v2036
      %v2619 = vpop.permute.xlu0 %2618
      %2622 = vset.pattern.permute.xlu0 0
      %2623 = vperm.xlu0 %2622, %v2037
      %v2624 = vpop.permute.xlu0 %2623
      %2627 = vset.pattern.permute.xlu0 0
      %2628 = vperm.xlu0 %2627, %v2038
      %v2629 = vpop.permute.xlu0 %2628
      %2632 = vset.pattern.permute.xlu0 0
      %2633 = vperm.xlu0 %2632, %v2039
      %v2634 = vpop.permute.xlu0 %2633
      %2637 = vset.pattern.permute.xlu0 0
      %2638 = vperm.xlu0 %2637, %v2040
      %v2639 = vpop.permute.xlu0 %2638
      %2642 = vset.pattern.permute.xlu0 0
      %2643 = vperm.xlu0 %2642, %v2041
      %v2644 = vpop.permute.xlu0 %2643
      %2647 = vset.pattern.permute.xlu0 0
      %2648 = vperm.xlu0 %2647, %v2042
      %v2649 = vpop.permute.xlu0 %2648
      %2652 = vset.pattern.permute.xlu0 0
      %2653 = vperm.xlu0 %2652, %v2043
      %v2654 = vpop.permute.xlu0 %2653
      %2657 = vset.pattern.permute.xlu0 0
      %2658 = vperm.xlu0 %2657, %v2044
      %v2659 = vpop.permute.xlu0 %2658
      %2662 = vset.pattern.permute.xlu0 0
      %2663 = vperm.xlu0 %2662, %v2045
      %v2664 = vpop.permute.xlu0 %2663
      %2667 = vset.pattern.permute.xlu0 0
      %2668 = vperm.xlu0 %2667, %v2046
      %v2669 = vpop.permute.xlu0 %2668
      %2672 = vset.pattern.permute.xlu0 0
      %2673 = vperm.xlu0 %2672, %v2047
      %v2674 = vpop.permute.xlu0 %2673
      %2677 = vset.pattern.permute.xlu0 0
      %2678 = vperm.xlu0 %2677, %v2048
      %v2679 = vpop.permute.xlu0 %2678
      %2682 = vset.pattern.permute.xlu0 0
      %2683 = vperm.xlu0 %2682, %v2049
      %v2684 = vpop.permute.xlu0 %2683
      %2687 = vset.pattern.permute.xlu0 0
      %2688 = vperm.xlu0 %2687, %v2050
      %v2689 = vpop.permute.xlu0 %2688
      %v2691 = vmul.f32 %v1795, %v2054
      %v2692 = vmul.f32 %v1796, %v2059
      %v2693 = vmul.f32 %v1797, %v2064
      %v2694 = vmul.f32 %v1798, %v2069
      %v2695 = vmul.f32 %v1799, %v2074
      %v2696 = vmul.f32 %v1800, %v2079
      %v2697 = vmul.f32 %v1801, %v2084
      %v2698 = vmul.f32 %v1802, %v2089
      %v2699 = vmul.f32 %v1803, %v2094
      %v2700 = vmul.f32 %v1804, %v2099
      %v2701 = vmul.f32 %v1805, %v2104
      %v2702 = vmul.f32 %v1806, %v2109
      %v2703 = vmul.f32 %v1807, %v2114
      %v2704 = vmul.f32 %v1808, %v2119
      %v2705 = vmul.f32 %v1809, %v2124
      %v2706 = vmul.f32 %v1810, %v2129
      %v2707 = vmul.f32 %v1811, %v2134
      %v2708 = vmul.f32 %v1812, %v2139
      %v2709 = vmul.f32 %v1813, %v2144
      %v2710 = vmul.f32 %v1814, %v2149
      %v2711 = vmul.f32 %v1815, %v2154
      %v2712 = vmul.f32 %v1816, %v2159
      %v2713 = vmul.f32 %v1817, %v2164
      %v2714 = vmul.f32 %v1818, %v2169
      %v2715 = vmul.f32 %v1819, %v2174
      %v2716 = vmul.f32 %v1820, %v2179
      %v2717 = vmul.f32 %v1821, %v2184
      %v2718 = vmul.f32 %v1822, %v2189
      %v2719 = vmul.f32 %v1823, %v2194
      %v2720 = vmul.f32 %v1824, %v2199
      %v2721 = vmul.f32 %v1825, %v2204
      %v2722 = vmul.f32 %v1826, %v2209
      %v2723 = vmul.f32 %v1827, %v2214
      %v2724 = vmul.f32 %v1828, %v2219
      %v2725 = vmul.f32 %v1829, %v2224
      %v2726 = vmul.f32 %v1830, %v2229
      %v2727 = vmul.f32 %v1831, %v2234
      %v2728 = vmul.f32 %v1832, %v2239
      %v2729 = vmul.f32 %v1833, %v2244
      %v2730 = vmul.f32 %v1834, %v2249
      %v2731 = vmul.f32 %v1835, %v2254
      %v2732 = vmul.f32 %v1836, %v2259
      %v2733 = vmul.f32 %v1837, %v2264
      %v2734 = vmul.f32 %v1838, %v2269
      %v2735 = vmul.f32 %v1839, %v2274
      %v2736 = vmul.f32 %v1840, %v2279
      %v2737 = vmul.f32 %v1841, %v2284
      %v2738 = vmul.f32 %v1842, %v2289
      %v2739 = vmul.f32 %v1843, %v2294
      %v2740 = vmul.f32 %v1844, %v2299
      %v2741 = vmul.f32 %v1845, %v2304
      %v2742 = vmul.f32 %v1846, %v2309
      %v2743 = vmul.f32 %v1847, %v2314
      %v2744 = vmul.f32 %v1848, %v2319
      %v2745 = vmul.f32 %v1849, %v2324
      %v2746 = vmul.f32 %v1850, %v2329
      %v2747 = vmul.f32 %v1851, %v2334
      %v2748 = vmul.f32 %v1852, %v2339
      %v2749 = vmul.f32 %v1853, %v2344
      %v2750 = vmul.f32 %v1854, %v2349
      %v2751 = vmul.f32 %v1855, %v2354
      %v2752 = vmul.f32 %v1856, %v2359
      %v2753 = vmul.f32 %v1857, %v2364
      %v2754 = vmul.f32 %v1858, %v2369
      %v2755 = vmul.f32 %v1859, %v2374
      %v2756 = vmul.f32 %v1860, %v2379
      %v2757 = vmul.f32 %v1861, %v2384
      %v2758 = vmul.f32 %v1862, %v2389
      %v2759 = vmul.f32 %v1863, %v2394
      %v2760 = vmul.f32 %v1864, %v2399
      %v2761 = vmul.f32 %v1865, %v2404
      %v2762 = vmul.f32 %v1866, %v2409
      %v2763 = vmul.f32 %v1867, %v2414
      %v2764 = vmul.f32 %v1868, %v2419
      %v2765 = vmul.f32 %v1869, %v2424
      %v2766 = vmul.f32 %v1870, %v2429
      %v2767 = vmul.f32 %v1871, %v2434
      %v2768 = vmul.f32 %v1872, %v2439
      %v2769 = vmul.f32 %v1873, %v2444
      %v2770 = vmul.f32 %v1874, %v2449
      %v2771 = vmul.f32 %v1875, %v2454
      %v2772 = vmul.f32 %v1876, %v2459
      %v2773 = vmul.f32 %v1877, %v2464
      %v2774 = vmul.f32 %v1878, %v2469
      %v2775 = vmul.f32 %v1879, %v2474
      %v2776 = vmul.f32 %v1880, %v2479
      %v2777 = vmul.f32 %v1881, %v2484
      %v2778 = vmul.f32 %v1882, %v2489
      %v2779 = vmul.f32 %v1883, %v2494
      %v2780 = vmul.f32 %v1884, %v2499
      %v2781 = vmul.f32 %v1885, %v2504
      %v2782 = vmul.f32 %v1886, %v2509
      %v2783 = vmul.f32 %v1887, %v2514
      %v2784 = vmul.f32 %v1888, %v2519
      %v2785 = vmul.f32 %v1889, %v2524
      %v2786 = vmul.f32 %v1890, %v2529
      %v2787 = vmul.f32 %v1891, %v2534
      %v2788 = vmul.f32 %v1892, %v2539
      %v2789 = vmul.f32 %v1893, %v2544
      %v2790 = vmul.f32 %v1894, %v2549
      %v2791 = vmul.f32 %v1895, %v2554
      %v2792 = vmul.f32 %v1896, %v2559
      %v2793 = vmul.f32 %v1897, %v2564
      %v2794 = vmul.f32 %v1898, %v2569
      %v2795 = vmul.f32 %v1899, %v2574
      %v2796 = vmul.f32 %v1900, %v2579
      %v2797 = vmul.f32 %v1901, %v2584
      %v2798 = vmul.f32 %v1902, %v2589
      %v2799 = vmul.f32 %v1903, %v2594
      %v2800 = vmul.f32 %v1904, %v2599
      %v2801 = vmul.f32 %v1905, %v2604
      %v2802 = vmul.f32 %v1906, %v2609
      %v2803 = vmul.f32 %v1907, %v2614
      %v2804 = vmul.f32 %v1908, %v2619
      %v2805 = vmul.f32 %v1909, %v2624
      %v2806 = vmul.f32 %v1910, %v2629
      %v2807 = vmul.f32 %v1911, %v2634
      %v2808 = vmul.f32 %v1912, %v2639
      %v2809 = vmul.f32 %v1913, %v2644
      %v2810 = vmul.f32 %v1914, %v2649
      %v2811 = vmul.f32 %v1915, %v2654
      %v2812 = vmul.f32 %v1916, %v2659
      %v2813 = vmul.f32 %v1917, %v2664
      %v2814 = vmul.f32 %v1918, %v2669
      %v2815 = vmul.f32 %v1919, %v2674
      %v2816 = vmul.f32 %v1920, %v2679
      %v2817 = vmul.f32 %v1921, %v2684
      %v2818 = vmul.f32 %v1922, %v2689
      %v2819 = vpack.c.bf16 %v2692, %v2691
      %v2820 = vpack.c.bf16 %v2694, %v2693
      %v2821 = vpack.c.bf16 %v2696, %v2695
      %v2822 = vpack.c.bf16 %v2698, %v2697
      %v2823 = vpack.c.bf16 %v2700, %v2699
      %v2824 = vpack.c.bf16 %v2702, %v2701
      %v2825 = vpack.c.bf16 %v2704, %v2703
      %v2826 = vpack.c.bf16 %v2706, %v2705
      %v2827 = vpack.c.bf16 %v2708, %v2707
      %v2828 = vpack.c.bf16 %v2710, %v2709
      %v2829 = vpack.c.bf16 %v2712, %v2711
      %v2830 = vpack.c.bf16 %v2714, %v2713
      %v2831 = vpack.c.bf16 %v2716, %v2715
      %v2832 = vpack.c.bf16 %v2718, %v2717
      %v2833 = vpack.c.bf16 %v2720, %v2719
      %v2834 = vpack.c.bf16 %v2722, %v2721
      %v2835 = vpack.c.bf16 %v2724, %v2723
      %v2836 = vpack.c.bf16 %v2726, %v2725
      %v2837 = vpack.c.bf16 %v2728, %v2727
      %v2838 = vpack.c.bf16 %v2730, %v2729
      %v2839 = vpack.c.bf16 %v2732, %v2731
      %v2840 = vpack.c.bf16 %v2734, %v2733
      %v2841 = vpack.c.bf16 %v2736, %v2735
      %v2842 = vpack.c.bf16 %v2738, %v2737
      %v2843 = vpack.c.bf16 %v2740, %v2739
      %v2844 = vpack.c.bf16 %v2742, %v2741
      %v2845 = vpack.c.bf16 %v2744, %v2743
      %v2846 = vpack.c.bf16 %v2746, %v2745
      %v2847 = vpack.c.bf16 %v2748, %v2747
      %v2848 = vpack.c.bf16 %v2750, %v2749
      %v2849 = vpack.c.bf16 %v2752, %v2751
      %v2850 = vpack.c.bf16 %v2754, %v2753
      %v2851 = vpack.c.bf16 %v2756, %v2755
      %v2852 = vpack.c.bf16 %v2758, %v2757
      %v2853 = vpack.c.bf16 %v2760, %v2759
      %v2854 = vpack.c.bf16 %v2762, %v2761
      %v2855 = vpack.c.bf16 %v2764, %v2763
      %v2856 = vpack.c.bf16 %v2766, %v2765
      %v2857 = vpack.c.bf16 %v2768, %v2767
      %v2858 = vpack.c.bf16 %v2770, %v2769
      %v2859 = vpack.c.bf16 %v2772, %v2771
      %v2860 = vpack.c.bf16 %v2774, %v2773
      %v2861 = vpack.c.bf16 %v2776, %v2775
      %v2862 = vpack.c.bf16 %v2778, %v2777
      %v2863 = vpack.c.bf16 %v2780, %v2779
      %v2864 = vpack.c.bf16 %v2782, %v2781
      %v2865 = vpack.c.bf16 %v2784, %v2783
      %v2866 = vpack.c.bf16 %v2786, %v2785
      %v2867 = vpack.c.bf16 %v2788, %v2787
      %v2868 = vpack.c.bf16 %v2790, %v2789
      %v2869 = vpack.c.bf16 %v2792, %v2791
      %v2870 = vpack.c.bf16 %v2794, %v2793
      %v2871 = vpack.c.bf16 %v2796, %v2795
      %v2872 = vpack.c.bf16 %v2798, %v2797
      %v2873 = vpack.c.bf16 %v2800, %v2799
      %v2874 = vpack.c.bf16 %v2802, %v2801
      %v2875 = vpack.c.bf16 %v2804, %v2803
      %v2876 = vpack.c.bf16 %v2806, %v2805
      %v2877 = vpack.c.bf16 %v2808, %v2807
      %v2878 = vpack.c.bf16 %v2810, %v2809
      %v2879 = vpack.c.bf16 %v2812, %v2811
      %v2880 = vpack.c.bf16 %v2814, %v2813
      %v2881 = vpack.c.bf16 %v2816, %v2815
      %v2882 = vpack.c.bf16 %v2818, %v2817
      %v2883 = vld [vmem:[%s5] sm:$0xf]
      %v2884 = vld [vmem:[%s5 + $0x4] sm:$0xf]
      %v2885 = vld [vmem:[%s5 + $0x8] sm:$0xf]
      %v2886 = vld [vmem:[%s5 + $0xc] sm:$0xf]
      %v2887 = vld [vmem:[%s5 + $0x10] sm:$0xf]
      %v2888 = vld [vmem:[%s5 + $0x14] sm:$0xf]
      %v2889 = vld [vmem:[%s5 + $0x18] sm:$0xf]
      %v2890 = vld [vmem:[%s5 + $0x1c] sm:$0xf]
      %s2891 = scalar_lea.vmem %s5, 32
      %v2892 = vld [vmem:[%s2891] sm:$0xf]
      %v2893 = vld [vmem:[%s2891 + $0x4] sm:$0xf]
      %v2894 = vld [vmem:[%s2891 + $0x8] sm:$0xf]
      %v2895 = vld [vmem:[%s2891 + $0xc] sm:$0xf]
      %v2896 = vld [vmem:[%s2891 + $0x10] sm:$0xf]
      %v2897 = vld [vmem:[%s2891 + $0x14] sm:$0xf]
      %v2898 = vld [vmem:[%s2891 + $0x18] sm:$0xf]
      %v2899 = vld [vmem:[%s2891 + $0x1c] sm:$0xf]
      %v2908 = vunpack.c.l.b16 %v2892
      %v2909 = vunpack.c.l.b16 %v2893
      %v2910 = vunpack.c.l.b16 %v2894
      %v2911 = vunpack.c.l.b16 %v2895
      %v2912 = vunpack.c.l.b16 %v2896
      %v2913 = vunpack.c.l.b16 %v2897
      %v2914 = vunpack.c.l.b16 %v2898
      %v2915 = vunpack.c.l.b16 %v2899
      %v2916 = vpack.c.b16 %v2909, %v2908
      %v2917 = vpack.c.b16 %v2911, %v2910
      %v2918 = vpack.c.b16 %v2913, %v2912
      %v2919 = vpack.c.b16 %v2915, %v2914
      %vm2924 = vcmask 523264
      %v2926 = vsel %vm2924, %v2835, 0
      %v2929 = vsel %vm2924, %v2836, 0
      %v2932 = vsel %vm2924, %v2837, 0
      %v2935 = vsel %vm2924, %v2838, 0
      %2937 = vmatprep.subr.bf16.mxu0 0
      %2938 = vmatpush1.bf16.msra.mxu0 %v2916
      %2939 = vmatprep.subr.bf16.mxu0 0
      %2940 = vmatpush1.bf16.msra.mxu0 %v2917
      %2941 = vmatprep.subr.bf16.mxu0 0
      %2942 = vmatpush1.bf16.msra.mxu0 %v2918
      %2943 = vmatprep.subr.bf16.mxu0 0
      %2944 = vmatpush1.bf16.msra.mxu0 %v2919
      %2945 = vmatprep.subr.bf16.mxu0 0
      %2946 = vmatpush1.bf16.msra.mxu0 0
      %2947 = vmatprep.subr.bf16.mxu0 0
      %2948 = vmatpush1.bf16.msra.mxu0 0
      %2949 = vmatprep.subr.bf16.mxu0 0
      %2950 = vmatpush1.bf16.msra.mxu0 0
      %2951 = vmatprep.subr.bf16.mxu0 0
      %2952 = vmatpush1.bf16.msra.mxu0 0
      %2953 = vmatprep.subr.bf16.mxu0 0
      %2954 = vmatpush1.bf16.msra.mxu0 0
      %2955 = vmatprep.subr.bf16.mxu0 0
      %2956 = vmatpush1.bf16.msra.mxu0 0
      %2957 = vmatprep.subr.bf16.mxu0 0
      %2958 = vmatpush1.bf16.msra.mxu0 0
      %2959 = vmatprep.subr.bf16.mxu0 0
      %2960 = vmatpush1.bf16.msra.mxu0 0
      %2961 = vmatprep.subr.bf16.mxu0 0
      %2962 = vmatpush1.bf16.msra.mxu0 0
      %2963 = vmatprep.subr.bf16.mxu0 0
      %2964 = vmatpush1.bf16.msra.mxu0 0
      %2965 = vmatprep.subr.bf16.mxu0 0
      %2966 = vmatpush1.bf16.msra.mxu0 0
      %2967 = vmatprep.subr.bf16.mxu0 0
      %2968 = vmatpush1.bf16.msra.mxu0 0
      %2969 = vmatprep.mubr.bf16.mxu0 0
      %2970 = vmatmul.mubr.bf16.gmra.mrb[0].mxu0 %v2926
      %v2971 = vpop.f32.mrb[0].mxu0
      %v2972 = vadd.f32 0.0, %v2971
      %v2973 = vpop.f32.mrb[0].mxu0
      %v2974 = vpop.f32.mrb[0].mxu0
      %v2975 = vadd.f32 0.0, %v2974
      %v2976 = vpop.f32.mrb[0].mxu0
      %2977 = vmatprep.mubr.bf16.mxu0 0
      %2978 = vmatmul.mubr.bf16.gmra.mrb[0].mxu0 %v2929
      %v2979 = vpop.f32.mrb[0].mxu0
      %v2980 = vadd.f32 0.0, %v2979
      %v2981 = vpop.f32.mrb[0].mxu0
      %v2982 = vpop.f32.mrb[0].mxu0
      %v2983 = vadd.f32 0.0, %v2982
      %v2984 = vpop.f32.mrb[0].mxu0
      %2985 = vmatprep.mubr.bf16.mxu0 0
      %2986 = vmatmul.mubr.bf16.gmra.mrb[0].mxu0 %v2932
      %v2987 = vpop.f32.mrb[0].mxu0
      %v2988 = vadd.f32 0.0, %v2987
      %v2989 = vpop.f32.mrb[0].mxu0
      %v2990 = vpop.f32.mrb[0].mxu0
      %v2991 = vadd.f32 0.0, %v2990
      %v2992 = vpop.f32.mrb[0].mxu0
      %2993 = vmatprep.mubr.bf16.mxu0 0
      %2994 = vmatmul.mubr.bf16.gmra.mrb[0].mxu0 %v2935
      %v2995 = vpop.f32.mrb[0].mxu0
      %v2996 = vadd.f32 0.0, %v2995
      %v2997 = vpop.f32.mrb[0].mxu0
      %v2998 = vpop.f32.mrb[0].mxu0
      %v2999 = vadd.f32 0.0, %v2998
      %v3000 = vpop.f32.mrb[0].mxu0
      %3001 = vdwg.mxu0
      %v3010 = vunpack.c.l.b16 %v2883
      %v3011 = vunpack.c.l.b16 %v2884
      %v3012 = vunpack.c.l.b16 %v2885
      %v3013 = vunpack.c.l.b16 %v2886
      %v3014 = vunpack.c.l.b16 %v2887
      %v3015 = vunpack.c.l.b16 %v2888
      %v3016 = vunpack.c.l.b16 %v2889
      %v3017 = vunpack.c.l.b16 %v2890
      %v3018 = vpack.c.b16 %v3011, %v3010
      %v3019 = vpack.c.b16 %v3013, %v3012
      %v3020 = vpack.c.b16 %v3015, %v3014
      %v3021 = vpack.c.b16 %v3017, %v3016
      %v3027 = vsel %vm2924, %v2819, 0
      %v3030 = vsel %vm2924, %v2820, 0
      %v3033 = vsel %vm2924, %v2821, 0
      %v3036 = vsel %vm2924, %v2822, 0
      %3038 = vmatprep.subr.bf16.mxu0 0
      %3039 = vmatpush1.bf16.msra.mxu0 %v3018
      %3040 = vmatprep.subr.bf16.mxu0 0
      %3041 = vmatpush1.bf16.msra.mxu0 %v3019
      %3042 = vmatprep.subr.bf16.mxu0 0
      %3043 = vmatpush1.bf16.msra.mxu0 %v3020
      %3044 = vmatprep.subr.bf16.mxu0 0
      %3045 = vmatpush1.bf16.msra.mxu0 %v3021
      %3046 = vmatprep.subr.bf16.mxu0 0
      %3047 = vmatpush1.bf16.msra.mxu0 0
      %3048 = vmatprep.subr.bf16.mxu0 0
      %3049 = vmatpush1.bf16.msra.mxu0 0
      %3050 = vmatprep.subr.bf16.mxu0 0
      %3051 = vmatpush1.bf16.msra.mxu0 0
      %3052 = vmatprep.subr.bf16.mxu0 0
      %3053 = vmatpush1.bf16.msra.mxu0 0
      %3054 = vmatprep.subr.bf16.mxu0 0
      %3055 = vmatpush1.bf16.msra.mxu0 0
      %3056 = vmatprep.subr.bf16.mxu0 0
      %3057 = vmatpush1.bf16.msra.mxu0 0
      %3058 = vmatprep.subr.bf16.mxu0 0
      %3059 = vmatpush1.bf16.msra.mxu0 0
      %3060 = vmatprep.subr.bf16.mxu0 0
      %3061 = vmatpush1.bf16.msra.mxu0 0
      %3062 = vmatprep.subr.bf16.mxu0 0
      %3063 = vmatpush1.bf16.msra.mxu0 0
      %3064 = vmatprep.subr.bf16.mxu0 0
      %3065 = vmatpush1.bf16.msra.mxu0 0
      %3066 = vmatprep.subr.bf16.mxu0 0
      %3067 = vmatpush1.bf16.msra.mxu0 0
      %3068 = vmatprep.subr.bf16.mxu0 0
      %3069 = vmatpush1.bf16.msra.mxu0 0
      %3070 = vmatprep.mubr.bf16.mxu0 0
      %3071 = vmatmul.mubr.bf16.gmra.mrb[0].mxu0 %v3027
      %v3072 = vpop.f32.mrb[0].mxu0
      %v3073 = vadd.f32 %v2972, %v3072
      %v3074 = vpop.f32.mrb[0].mxu0
      %v3075 = vpop.f32.mrb[0].mxu0
      %v3076 = vadd.f32 %v2975, %v3075
      %v3077 = vpop.f32.mrb[0].mxu0
      %3078 = vmatprep.mubr.bf16.mxu0 0
      %3079 = vmatmul.mubr.bf16.gmra.mrb[0].mxu0 %v3030
      %v3080 = vpop.f32.mrb[0].mxu0
      %v3081 = vadd.f32 %v2980, %v3080
      %v3082 = vpop.f32.mrb[0].mxu0
      %v3083 = vpop.f32.mrb[0].mxu0
      %v3084 = vadd.f32 %v2983, %v3083
      %v3085 = vpop.f32.mrb[0].mxu0
      %3086 = vmatprep.mubr.bf16.mxu0 0
      %3087 = vmatmul.mubr.bf16.gmra.mrb[0].mxu0 %v3033
      %v3088 = vpop.f32.mrb[0].mxu0
      %v3089 = vadd.f32 %v2988, %v3088
      %v3090 = vpop.f32.mrb[0].mxu0
      %v3091 = vpop.f32.mrb[0].mxu0
      %v3092 = vadd.f32 %v2991, %v3091
      %v3093 = vpop.f32.mrb[0].mxu0
      %3094 = vmatprep.mubr.bf16.mxu0 0
      %3095 = vmatmul.mubr.bf16.gmra.mrb[0].mxu0 %v3036
      %v3096 = vpop.f32.mrb[0].mxu0
      %v3097 = vadd.f32 %v2996, %v3096
      %v3098 = vpop.f32.mrb[0].mxu0
      %v3099 = vpop.f32.mrb[0].mxu0
      %v3100 = vadd.f32 %v2999, %v3099
      %v3101 = vpop.f32.mrb[0].mxu0
      %3102 = vdwg.mxu0
      %s3103 = scalar_lea.vmem %s5, 64
      %v3104 = vld [vmem:[%s3103] sm:$0xf]
      %v3105 = vld [vmem:[%s3103 + $0x4] sm:$0xf]
      %v3106 = vld [vmem:[%s3103 + $0x8] sm:$0xf]
      %v3107 = vld [vmem:[%s3103 + $0xc] sm:$0xf]
      %v3108 = vld [vmem:[%s3103 + $0x10] sm:$0xf]
      %v3109 = vld [vmem:[%s3103 + $0x14] sm:$0xf]
      %v3110 = vld [vmem:[%s3103 + $0x18] sm:$0xf]
      %v3111 = vld [vmem:[%s3103 + $0x1c] sm:$0xf]
      %v3120 = vunpack.c.l.b16 %v3104
      %v3121 = vunpack.c.l.b16 %v3105
      %v3122 = vunpack.c.l.b16 %v3106
      %v3123 = vunpack.c.l.b16 %v3107
      %v3124 = vunpack.c.l.b16 %v3108
      %v3125 = vunpack.c.l.b16 %v3109
      %v3126 = vunpack.c.l.b16 %v3110
      %v3127 = vunpack.c.l.b16 %v3111
      %v3128 = vpack.c.b16 %v3121, %v3120
      %v3129 = vpack.c.b16 %v3123, %v3122
      %v3130 = vpack.c.b16 %v3125, %v3124
      %v3131 = vpack.c.b16 %v3127, %v3126
      %v3137 = vsel %vm2924, %v2823, 0
      %v3140 = vsel %vm2924, %v2824, 0
      %v3143 = vsel %vm2924, %v2825, 0
      %v3146 = vsel %vm2924, %v2826, 0
      %3148 = vmatprep.subr.bf16.mxu0 0
      %3149 = vmatpush1.bf16.msra.mxu0 %v3128
      %3150 = vmatprep.subr.bf16.mxu0 0
      %3151 = vmatpush1.bf16.msra.mxu0 %v3129
      %3152 = vmatprep.subr.bf16.mxu0 0
      %3153 = vmatpush1.bf16.msra.mxu0 %v3130
      %3154 = vmatprep.subr.bf16.mxu0 0
      %3155 = vmatpush1.bf16.msra.mxu0 %v3131
      %3156 = vmatprep.subr.bf16.mxu0 0
      %3157 = vmatpush1.bf16.msra.mxu0 0
      %3158 = vmatprep.subr.bf16.mxu0 0
      %3159 = vmatpush1.bf16.msra.mxu0 0
      %3160 = vmatprep.subr.bf16.mxu0 0
      %3161 = vmatpush1.bf16.msra.mxu0 0
      %3162 = vmatprep.subr.bf16.mxu0 0
      %3163 = vmatpush1.bf16.msra.mxu0 0
      %3164 = vmatprep.subr.bf16.mxu0 0
      %3165 = vmatpush1.bf16.msra.mxu0 0
      %3166 = vmatprep.subr.bf16.mxu0 0
      %3167 = vmatpush1.bf16.msra.mxu0 0
      %3168 = vmatprep.subr.bf16.mxu0 0
      %3169 = vmatpush1.bf16.msra.mxu0 0
      %3170 = vmatprep.subr.bf16.mxu0 0
      %3171 = vmatpush1.bf16.msra.mxu0 0
      %3172 = vmatprep.subr.bf16.mxu0 0
      %3173 = vmatpush1.bf16.msra.mxu0 0
      %3174 = vmatprep.subr.bf16.mxu0 0
      %3175 = vmatpush1.bf16.msra.mxu0 0
      %3176 = vmatprep.subr.bf16.mxu0 0
      %3177 = vmatpush1.bf16.msra.mxu0 0
      %3178 = vmatprep.subr.bf16.mxu0 0
      %3179 = vmatpush1.bf16.msra.mxu0 0
      %3180 = vmatprep.mubr.bf16.mxu0 0
      %3181 = vmatmul.mubr.bf16.gmra.mrb[0].mxu0 %v3137
      %v3182 = vpop.f32.mrb[0].mxu0
      %v3183 = vadd.f32 0.0, %v3182
      %v3184 = vpop.f32.mrb[0].mxu0
      %v3185 = vpop.f32.mrb[0].mxu0
      %v3186 = vadd.f32 0.0, %v3185
      %v3187 = vpop.f32.mrb[0].mxu0
      %3188 = vmatprep.mubr.bf16.mxu0 0
      %3189 = vmatmul.mubr.bf16.gmra.mrb[0].mxu0 %v3140
      %v3190 = vpop.f32.mrb[0].mxu0
      %v3191 = vadd.f32 0.0, %v3190
      %v3192 = vpop.f32.mrb[0].mxu0
      %v3193 = vpop.f32.mrb[0].mxu0
      %v3194 = vadd.f32 0.0, %v3193
      %v3195 = vpop.f32.mrb[0].mxu0
      %3196 = vmatprep.mubr.bf16.mxu0 0
      %3197 = vmatmul.mubr.bf16.gmra.mrb[0].mxu0 %v3143
      %v3198 = vpop.f32.mrb[0].mxu0
      %v3199 = vadd.f32 0.0, %v3198
      %v3200 = vpop.f32.mrb[0].mxu0
      %v3201 = vpop.f32.mrb[0].mxu0
      %v3202 = vadd.f32 0.0, %v3201
      %v3203 = vpop.f32.mrb[0].mxu0
      %3204 = vmatprep.mubr.bf16.mxu0 0
      %3205 = vmatmul.mubr.bf16.gmra.mrb[0].mxu0 %v3146
      %v3206 = vpop.f32.mrb[0].mxu0
      %v3207 = vadd.f32 0.0, %v3206
      %v3208 = vpop.f32.mrb[0].mxu0
      %v3209 = vpop.f32.mrb[0].mxu0
      %v3210 = vadd.f32 0.0, %v3209
      %v3211 = vpop.f32.mrb[0].mxu0
      %3212 = vdwg.mxu0
      %v3213 = vadd.f32 %v3073, %v3183
      %v3214 = vadd.f32 %v3076, %v3186
      %v3215 = vadd.f32 %v3081, %v3191
      %v3216 = vadd.f32 %v3084, %v3194
      %v3217 = vadd.f32 %v3089, %v3199
      %v3218 = vadd.f32 %v3092, %v3202
      %v3219 = vadd.f32 %v3097, %v3207
      %v3220 = vadd.f32 %v3100, %v3210
      %s3221 = scalar_lea.vmem %s5, 96
      %v3222 = vld [vmem:[%s3221] sm:$0xf]
      %v3223 = vld [vmem:[%s3221 + $0x4] sm:$0xf]
      %v3224 = vld [vmem:[%s3221 + $0x8] sm:$0xf]
      %v3225 = vld [vmem:[%s3221 + $0xc] sm:$0xf]
      %v3226 = vld [vmem:[%s3221 + $0x10] sm:$0xf]
      %v3227 = vld [vmem:[%s3221 + $0x14] sm:$0xf]
      %v3228 = vld [vmem:[%s3221 + $0x18] sm:$0xf]
      %v3229 = vld [vmem:[%s3221 + $0x1c] sm:$0xf]
      %v3238 = vunpack.c.l.b16 %v3222
      %v3239 = vunpack.c.l.b16 %v3223
      %v3240 = vunpack.c.l.b16 %v3224
      %v3241 = vunpack.c.l.b16 %v3225
      %v3242 = vunpack.c.l.b16 %v3226
      %v3243 = vunpack.c.l.b16 %v3227
      %v3244 = vunpack.c.l.b16 %v3228
      %v3245 = vunpack.c.l.b16 %v3229
      %v3246 = vpack.c.b16 %v3239, %v3238
      %v3247 = vpack.c.b16 %v3241, %v3240
      %v3248 = vpack.c.b16 %v3243, %v3242
      %v3249 = vpack.c.b16 %v3245, %v3244
      %v3255 = vsel %vm2924, %v2851, 0
      %v3258 = vsel %vm2924, %v2852, 0
      %v3261 = vsel %vm2924, %v2853, 0
      %v3264 = vsel %vm2924, %v2854, 0
      %3266 = vmatprep.subr.bf16.mxu0 0
      %3267 = vmatpush1.bf16.msra.mxu0 %v3246
      %3268 = vmatprep.subr.bf16.mxu0 0
      %3269 = vmatpush1.bf16.msra.mxu0 %v3247
      %3270 = vmatprep.subr.bf16.mxu0 0
      %3271 = vmatpush1.bf16.msra.mxu0 %v3248
      %3272 = vmatprep.subr.bf16.mxu0 0
      %3273 = vmatpush1.bf16.msra.mxu0 %v3249
      %3274 = vmatprep.subr.bf16.mxu0 0
      %3275 = vmatpush1.bf16.msra.mxu0 0
      %3276 = vmatprep.subr.bf16.mxu0 0
      %3277 = vmatpush1.bf16.msra.mxu0 0
      %3278 = vmatprep.subr.bf16.mxu0 0
      %3279 = vmatpush1.bf16.msra.mxu0 0
      %3280 = vmatprep.subr.bf16.mxu0 0
      %3281 = vmatpush1.bf16.msra.mxu0 0
      %3282 = vmatprep.subr.bf16.mxu0 0
      %3283 = vmatpush1.bf16.msra.mxu0 0
      %3284 = vmatprep.subr.bf16.mxu0 0
      %3285 = vmatpush1.bf16.msra.mxu0 0
      %3286 = vmatprep.subr.bf16.mxu0 0
      %3287 = vmatpush1.bf16.msra.mxu0 0
      %3288 = vmatprep.subr.bf16.mxu0 0
      %3289 = vmatpush1.bf16.msra.mxu0 0
      %3290 = vmatprep.subr.bf16.mxu0 0
      %3291 = vmatpush1.bf16.msra.mxu0 0
      %3292 = vmatprep.subr.bf16.mxu0 0
      %3293 = vmatpush1.bf16.msra.mxu0 0
      %3294 = vmatprep.subr.bf16.mxu0 0
      %3295 = vmatpush1.bf16.msra.mxu0 0
      %3296 = vmatprep.subr.bf16.mxu0 0
      %3297 = vmatpush1.bf16.msra.mxu0 0
      %3298 = vmatprep.mubr.bf16.mxu0 0
      %3299 = vmatmul.mubr.bf16.gmra.mrb[0].mxu0 %v3255
      %v3300 = vpop.f32.mrb[0].mxu0
      %v3301 = vadd.f32 0.0, %v3300
      %v3302 = vpop.f32.mrb[0].mxu0
      %v3303 = vpop.f32.mrb[0].mxu0
      %v3304 = vadd.f32 0.0, %v3303
      %v3305 = vpop.f32.mrb[0].mxu0
      %3306 = vmatprep.mubr.bf16.mxu0 0
      %3307 = vmatmul.mubr.bf16.gmra.mrb[0].mxu0 %v3258
      %v3308 = vpop.f32.mrb[0].mxu0
      %v3309 = vadd.f32 0.0, %v3308
      %v3310 = vpop.f32.mrb[0].mxu0
      %v3311 = vpop.f32.mrb[0].mxu0
      %v3312 = vadd.f32 0.0, %v3311
      %v3313 = vpop.f32.mrb[0].mxu0
      %3314 = vmatprep.mubr.bf16.mxu0 0
      %3315 = vmatmul.mubr.bf16.gmra.mrb[0].mxu0 %v3261
      %v3316 = vpop.f32.mrb[0].mxu0
      %v3317 = vadd.f32 0.0, %v3316
      %v3318 = vpop.f32.mrb[0].mxu0
      %v3319 = vpop.f32.mrb[0].mxu0
      %v3320 = vadd.f32 0.0, %v3319
      %v3321 = vpop.f32.mrb[0].mxu0
      %3322 = vmatprep.mubr.bf16.mxu0 0
      %3323 = vmatmul.mubr.bf16.gmra.mrb[0].mxu0 %v3264
      %v3324 = vpop.f32.mrb[0].mxu0
      %v3325 = vadd.f32 0.0, %v3324
      %v3326 = vpop.f32.mrb[0].mxu0
      %v3327 = vpop.f32.mrb[0].mxu0
      %v3328 = vadd.f32 0.0, %v3327
      %v3329 = vpop.f32.mrb[0].mxu0
      %3330 = vdwg.mxu0
      %v3331 = vadd.f32 %v3213, %v3301
      %v3332 = vadd.f32 %v3214, %v3304
      %v3333 = vadd.f32 %v3215, %v3309
      %v3334 = vadd.f32 %v3216, %v3312
      %v3335 = vadd.f32 %v3217, %v3317
      %v3336 = vadd.f32 %v3218, %v3320
      %v3337 = vadd.f32 %v3219, %v3325
      %v3338 = vadd.f32 %v3220, %v3328
      %s3339 = scalar_lea.vmem %s5, 128
      %v3340 = vld [vmem:[%s3339] sm:$0xf]
      %v3341 = vld [vmem:[%s3339 + $0x4] sm:$0xf]
      %v3342 = vld [vmem:[%s3339 + $0x8] sm:$0xf]
      %v3343 = vld [vmem:[%s3339 + $0xc] sm:$0xf]
      %v3344 = vld [vmem:[%s3339 + $0x10] sm:$0xf]
      %v3345 = vld [vmem:[%s3339 + $0x14] sm:$0xf]
      %v3346 = vld [vmem:[%s3339 + $0x18] sm:$0xf]
      %v3347 = vld [vmem:[%s3339 + $0x1c] sm:$0xf]
      %v3356 = vunpack.c.l.b16 %v3340
      %v3357 = vunpack.c.l.b16 %v3341
      %v3358 = vunpack.c.l.b16 %v3342
      %v3359 = vunpack.c.l.b16 %v3343
      %v3360 = vunpack.c.l.b16 %v3344
      %v3361 = vunpack.c.l.b16 %v3345
      %v3362 = vunpack.c.l.b16 %v3346
      %v3363 = vunpack.c.l.b16 %v3347
      %v3364 = vpack.c.b16 %v3357, %v3356
      %v3365 = vpack.c.b16 %v3359, %v3358
      %v3366 = vpack.c.b16 %v3361, %v3360
      %v3367 = vpack.c.b16 %v3363, %v3362
      %v3373 = vsel %vm2924, %v2867, 0
      %v3376 = vsel %vm2924, %v2868, 0
      %v3379 = vsel %vm2924, %v2869, 0
      %v3382 = vsel %vm2924, %v2870, 0
      %3384 = vmatprep.subr.bf16.mxu0 0
      %3385 = vmatpush1.bf16.msra.mxu0 %v3364
      %3386 = vmatprep.subr.bf16.mxu0 0
      %3387 = vmatpush1.bf16.msra.mxu0 %v3365
      %3388 = vmatprep.subr.bf16.mxu0 0
      %3389 = vmatpush1.bf16.msra.mxu0 %v3366
      %3390 = vmatprep.subr.bf16.mxu0 0
      %3391 = vmatpush1.bf16.msra.mxu0 %v3367
      %3392 = vmatprep.subr.bf16.mxu0 0
      %3393 = vmatpush1.bf16.msra.mxu0 0
      %3394 = vmatprep.subr.bf16.mxu0 0
      %3395 = vmatpush1.bf16.msra.mxu0 0
      %3396 = vmatprep.subr.bf16.mxu0 0
      %3397 = vmatpush1.bf16.msra.mxu0 0
      %3398 = vmatprep.subr.bf16.mxu0 0
      %3399 = vmatpush1.bf16.msra.mxu0 0
      %3400 = vmatprep.subr.bf16.mxu0 0
      %3401 = vmatpush1.bf16.msra.mxu0 0
      %3402 = vmatprep.subr.bf16.mxu0 0
      %3403 = vmatpush1.bf16.msra.mxu0 0
      %3404 = vmatprep.subr.bf16.mxu0 0
      %3405 = vmatpush1.bf16.msra.mxu0 0
      %3406 = vmatprep.subr.bf16.mxu0 0
      %3407 = vmatpush1.bf16.msra.mxu0 0
      %3408 = vmatprep.subr.bf16.mxu0 0
      %3409 = vmatpush1.bf16.msra.mxu0 0
      %3410 = vmatprep.subr.bf16.mxu0 0
      %3411 = vmatpush1.bf16.msra.mxu0 0
      %3412 = vmatprep.subr.bf16.mxu0 0
      %3413 = vmatpush1.bf16.msra.mxu0 0
      %3414 = vmatprep.subr.bf16.mxu0 0
      %3415 = vmatpush1.bf16.msra.mxu0 0
      %3416 = vmatprep.mubr.bf16.mxu0 0
      %3417 = vmatmul.mubr.bf16.gmra.mrb[0].mxu0 %v3373
      %v3418 = vpop.f32.mrb[0].mxu0
      %v3419 = vadd.f32 0.0, %v3418
      %v3420 = vpop.f32.mrb[0].mxu0
      %v3421 = vpop.f32.mrb[0].mxu0
      %v3422 = vadd.f32 0.0, %v3421
      %v3423 = vpop.f32.mrb[0].mxu0
      %3424 = vmatprep.mubr.bf16.mxu0 0
      %3425 = vmatmul.mubr.bf16.gmra.mrb[0].mxu0 %v3376
      %v3426 = vpop.f32.mrb[0].mxu0
      %v3427 = vadd.f32 0.0, %v3426
      %v3428 = vpop.f32.mrb[0].mxu0
      %v3429 = vpop.f32.mrb[0].mxu0
      %v3430 = vadd.f32 0.0, %v3429
      %v3431 = vpop.f32.mrb[0].mxu0
      %3432 = vmatprep.mubr.bf16.mxu0 0
      %3433 = vmatmul.mubr.bf16.gmra.mrb[0].mxu0 %v3379
      %v3434 = vpop.f32.mrb[0].mxu0
      %v3435 = vadd.f32 0.0, %v3434
      %v3436 = vpop.f32.mrb[0].mxu0
      %v3437 = vpop.f32.mrb[0].mxu0
      %v3438 = vadd.f32 0.0, %v3437
      %v3439 = vpop.f32.mrb[0].mxu0
      %3440 = vmatprep.mubr.bf16.mxu0 0
      %3441 = vmatmul.mubr.bf16.gmra.mrb[0].mxu0 %v3382
      %v3442 = vpop.f32.mrb[0].mxu0
      %v3443 = vadd.f32 0.0, %v3442
      %v3444 = vpop.f32.mrb[0].mxu0
      %v3445 = vpop.f32.mrb[0].mxu0
      %v3446 = vadd.f32 0.0, %v3445
      %v3447 = vpop.f32.mrb[0].mxu0
      %3448 = vdwg.mxu0
      %v3449 = vadd.f32 %v3331, %v3419
      %v3450 = vadd.f32 %v3332, %v3422
      %v3451 = vadd.f32 %v3333, %v3427
      %v3452 = vadd.f32 %v3334, %v3430
      %v3453 = vadd.f32 %v3335, %v3435
      %v3454 = vadd.f32 %v3336, %v3438
      %v3455 = vadd.f32 %v3337, %v3443
      %v3456 = vadd.f32 %v3338, %v3446
      %s3457 = scalar_lea.vmem %s5, 160
      %v3458 = vld [vmem:[%s3457] sm:$0xf]
      %v3459 = vld [vmem:[%s3457 + $0x4] sm:$0xf]
      %v3460 = vld [vmem:[%s3457 + $0x8] sm:$0xf]
      %v3461 = vld [vmem:[%s3457 + $0xc] sm:$0xf]
      %v3462 = vld [vmem:[%s3457 + $0x10] sm:$0xf]
      %v3463 = vld [vmem:[%s3457 + $0x14] sm:$0xf]
      %v3464 = vld [vmem:[%s3457 + $0x18] sm:$0xf]
      %v3465 = vld [vmem:[%s3457 + $0x1c] sm:$0xf]
      %v3474 = vunpack.c.l.b16 %v3458
      %v3475 = vunpack.c.l.b16 %v3459
      %v3476 = vunpack.c.l.b16 %v3460
      %v3477 = vunpack.c.l.b16 %v3461
      %v3478 = vunpack.c.l.b16 %v3462
      %v3479 = vunpack.c.l.b16 %v3463
      %v3480 = vunpack.c.l.b16 %v3464
      %v3481 = vunpack.c.l.b16 %v3465
      %v3482 = vpack.c.b16 %v3475, %v3474
      %v3483 = vpack.c.b16 %v3477, %v3476
      %v3484 = vpack.c.b16 %v3479, %v3478
      %v3485 = vpack.c.b16 %v3481, %v3480
      %v3491 = vsel %vm2924, %v2855, 0
      %v3494 = vsel %vm2924, %v2856, 0
      %v3497 = vsel %vm2924, %v2857, 0
      %v3500 = vsel %vm2924, %v2858, 0
      %3502 = vmatprep.subr.bf16.mxu0 0
      %3503 = vmatpush1.bf16.msra.mxu0 %v3482
      %3504 = vmatprep.subr.bf16.mxu0 0
      %3505 = vmatpush1.bf16.msra.mxu0 %v3483
      %3506 = vmatprep.subr.bf16.mxu0 0
      %3507 = vmatpush1.bf16.msra.mxu0 %v3484
      %3508 = vmatprep.subr.bf16.mxu0 0
      %3509 = vmatpush1.bf16.msra.mxu0 %v3485
      %3510 = vmatprep.subr.bf16.mxu0 0
      %3511 = vmatpush1.bf16.msra.mxu0 0
      %3512 = vmatprep.subr.bf16.mxu0 0
      %3513 = vmatpush1.bf16.msra.mxu0 0
      %3514 = vmatprep.subr.bf16.mxu0 0
      %3515 = vmatpush1.bf16.msra.mxu0 0
      %3516 = vmatprep.subr.bf16.mxu0 0
      %3517 = vmatpush1.bf16.msra.mxu0 0
      %3518 = vmatprep.subr.bf16.mxu0 0
      %3519 = vmatpush1.bf16.msra.mxu0 0
      %3520 = vmatprep.subr.bf16.mxu0 0
      %3521 = vmatpush1.bf16.msra.mxu0 0
      %3522 = vmatprep.subr.bf16.mxu0 0
      %3523 = vmatpush1.bf16.msra.mxu0 0
      %3524 = vmatprep.subr.bf16.mxu0 0
      %3525 = vmatpush1.bf16.msra.mxu0 0
      %3526 = vmatprep.subr.bf16.mxu0 0
      %3527 = vmatpush1.bf16.msra.mxu0 0
      %3528 = vmatprep.subr.bf16.mxu0 0
      %3529 = vmatpush1.bf16.msra.mxu0 0
      %3530 = vmatprep.subr.bf16.mxu0 0
      %3531 = vmatpush1.bf16.msra.mxu0 0
      %3532 = vmatprep.subr.bf16.mxu0 0
      %3533 = vmatpush1.bf16.msra.mxu0 0
      %3534 = vmatprep.mubr.bf16.mxu0 0
      %3535 = vmatmul.mubr.bf16.gmra.mrb[0].mxu0 %v3491
      %v3536 = vpop.f32.mrb[0].mxu0
      %v3537 = vadd.f32 0.0, %v3536
      %v3538 = vpop.f32.mrb[0].mxu0
      %v3539 = vpop.f32.mrb[0].mxu0
      %v3540 = vadd.f32 0.0, %v3539
      %v3541 = vpop.f32.mrb[0].mxu0
      %3542 = vmatprep.mubr.bf16.mxu0 0
      %3543 = vmatmul.mubr.bf16.gmra.mrb[0].mxu0 %v3494
      %v3544 = vpop.f32.mrb[0].mxu0
      %v3545 = vadd.f32 0.0, %v3544
      %v3546 = vpop.f32.mrb[0].mxu0
      %v3547 = vpop.f32.mrb[0].mxu0
      %v3548 = vadd.f32 0.0, %v3547
      %v3549 = vpop.f32.mrb[0].mxu0
      %3550 = vmatprep.mubr.bf16.mxu0 0
      %3551 = vmatmul.mubr.bf16.gmra.mrb[0].mxu0 %v3497
      %v3552 = vpop.f32.mrb[0].mxu0
      %v3553 = vadd.f32 0.0, %v3552
      %v3554 = vpop.f32.mrb[0].mxu0
      %v3555 = vpop.f32.mrb[0].mxu0
      %v3556 = vadd.f32 0.0, %v3555
      %v3557 = vpop.f32.mrb[0].mxu0
      %3558 = vmatprep.mubr.bf16.mxu0 0
      %3559 = vmatmul.mubr.bf16.gmra.mrb[0].mxu0 %v3500
      %v3560 = vpop.f32.mrb[0].mxu0
      %v3561 = vadd.f32 0.0, %v3560
      %v3562 = vpop.f32.mrb[0].mxu0
      %v3563 = vpop.f32.mrb[0].mxu0
      %v3564 = vadd.f32 0.0, %v3563
      %v3565 = vpop.f32.mrb[0].mxu0
      %3566 = vdwg.mxu0
      %v3567 = vadd.f32 %v3449, %v3537
      %v3568 = vadd.f32 %v3450, %v3540
      %v3569 = vadd.f32 %v3451, %v3545
      %v3570 = vadd.f32 %v3452, %v3548
      %v3571 = vadd.f32 %v3453, %v3553
      %v3572 = vadd.f32 %v3454, %v3556
      %v3573 = vadd.f32 %v3455, %v3561
      %v3574 = vadd.f32 %v3456, %v3564
      %s3575 = scalar_lea.vmem %s5, 192
      %v3576 = vld [vmem:[%s3575] sm:$0xf]
      %v3577 = vld [vmem:[%s3575 + $0x4] sm:$0xf]
      %v3578 = vld [vmem:[%s3575 + $0x8] sm:$0xf]
      %v3579 = vld [vmem:[%s3575 + $0xc] sm:$0xf]
      %v3580 = vld [vmem:[%s3575 + $0x10] sm:$0xf]
      %v3581 = vld [vmem:[%s3575 + $0x14] sm:$0xf]
      %v3582 = vld [vmem:[%s3575 + $0x18] sm:$0xf]
      %v3583 = vld [vmem:[%s3575 + $0x1c] sm:$0xf]
      %v3592 = vunpack.c.l.b16 %v3576
      %v3593 = vunpack.c.l.b16 %v3577
      %v3594 = vunpack.c.l.b16 %v3578
      %v3595 = vunpack.c.l.b16 %v3579
      %v3596 = vunpack.c.l.b16 %v3580
      %v3597 = vunpack.c.l.b16 %v3581
      %v3598 = vunpack.c.l.b16 %v3582
      %v3599 = vunpack.c.l.b16 %v3583
      %v3600 = vpack.c.b16 %v3593, %v3592
      %v3601 = vpack.c.b16 %v3595, %v3594
      %v3602 = vpack.c.b16 %v3597, %v3596
      %v3603 = vpack.c.b16 %v3599, %v3598
      %v3609 = vsel %vm2924, %v2827, 0
      %v3612 = vsel %vm2924, %v2828, 0
      %v3615 = vsel %vm2924, %v2829, 0
      %v3618 = vsel %vm2924, %v2830, 0
      %3620 = vmatprep.subr.bf16.mxu0 0
      %3621 = vmatpush1.bf16.msra.mxu0 %v3600
      %3622 = vmatprep.subr.bf16.mxu0 0
      %3623 = vmatpush1.bf16.msra.mxu0 %v3601
      %3624 = vmatprep.subr.bf16.mxu0 0
      %3625 = vmatpush1.bf16.msra.mxu0 %v3602
      %3626 = vmatprep.subr.bf16.mxu0 0
      %3627 = vmatpush1.bf16.msra.mxu0 %v3603
      %3628 = vmatprep.subr.bf16.mxu0 0
      %3629 = vmatpush1.bf16.msra.mxu0 0
      %3630 = vmatprep.subr.bf16.mxu0 0
      %3631 = vmatpush1.bf16.msra.mxu0 0
      %3632 = vmatprep.subr.bf16.mxu0 0
      %3633 = vmatpush1.bf16.msra.mxu0 0
      %3634 = vmatprep.subr.bf16.mxu0 0
      %3635 = vmatpush1.bf16.msra.mxu0 0
      %3636 = vmatprep.subr.bf16.mxu0 0
      %3637 = vmatpush1.bf16.msra.mxu0 0
      %3638 = vmatprep.subr.bf16.mxu0 0
      %3639 = vmatpush1.bf16.msra.mxu0 0
      %3640 = vmatprep.subr.bf16.mxu0 0
      %3641 = vmatpush1.bf16.msra.mxu0 0
      %3642 = vmatprep.subr.bf16.mxu0 0
      %3643 = vmatpush1.bf16.msra.mxu0 0
      %3644 = vmatprep.subr.bf16.mxu0 0
      %3645 = vmatpush1.bf16.msra.mxu0 0
      %3646 = vmatprep.subr.bf16.mxu0 0
      %3647 = vmatpush1.bf16.msra.mxu0 0
      %3648 = vmatprep.subr.bf16.mxu0 0
      %3649 = vmatpush1.bf16.msra.mxu0 0
      %3650 = vmatprep.subr.bf16.mxu0 0
      %3651 = vmatpush1.bf16.msra.mxu0 0
      %3652 = vmatprep.mubr.bf16.mxu0 0
      %3653 = vmatmul.mubr.bf16.gmra.mrb[0].mxu0 %v3609
      %v3654 = vpop.f32.mrb[0].mxu0
      %v3655 = vadd.f32 0.0, %v3654
      %v3656 = vpop.f32.mrb[0].mxu0
      %v3657 = vpop.f32.mrb[0].mxu0
      %v3658 = vadd.f32 0.0, %v3657
      %v3659 = vpop.f32.mrb[0].mxu0
      %3660 = vmatprep.mubr.bf16.mxu0 0
      %3661 = vmatmul.mubr.bf16.gmra.mrb[0].mxu0 %v3612
      %v3662 = vpop.f32.mrb[0].mxu0
      %v3663 = vadd.f32 0.0, %v3662
      %v3664 = vpop.f32.mrb[0].mxu0
      %v3665 = vpop.f32.mrb[0].mxu0
      %v3666 = vadd.f32 0.0, %v3665
      %v3667 = vpop.f32.mrb[0].mxu0
      %3668 = vmatprep.mubr.bf16.mxu0 0
      %3669 = vmatmul.mubr.bf16.gmra.mrb[0].mxu0 %v3615
      %v3670 = vpop.f32.mrb[0].mxu0
      %v3671 = vadd.f32 0.0, %v3670
      %v3672 = vpop.f32.mrb[0].mxu0
      %v3673 = vpop.f32.mrb[0].mxu0
      %v3674 = vadd.f32 0.0, %v3673
      %v3675 = vpop.f32.mrb[0].mxu0
      %3676 = vmatprep.mubr.bf16.mxu0 0
      %3677 = vmatmul.mubr.bf16.gmra.mrb[0].mxu0 %v3618
      %v3678 = vpop.f32.mrb[0].mxu0
      %v3679 = vadd.f32 0.0, %v3678
      %v3680 = vpop.f32.mrb[0].mxu0
      %v3681 = vpop.f32.mrb[0].mxu0
      %v3682 = vadd.f32 0.0, %v3681
      %v3683 = vpop.f32.mrb[0].mxu0
      %3684 = vdwg.mxu0
      %v3685 = vadd.f32 %v3567, %v3655
      %v3686 = vadd.f32 %v3568, %v3658
      %v3687 = vadd.f32 %v3569, %v3663
      %v3688 = vadd.f32 %v3570, %v3666
      %v3689 = vadd.f32 %v3571, %v3671
      %v3690 = vadd.f32 %v3572, %v3674
      %v3691 = vadd.f32 %v3573, %v3679
      %v3692 = vadd.f32 %v3574, %v3682
      %s3693 = scalar_lea.vmem %s5, 224
      %v3694 = vld [vmem:[%s3693] sm:$0xf]
      %v3695 = vld [vmem:[%s3693 + $0x4] sm:$0xf]
      %v3696 = vld [vmem:[%s3693 + $0x8] sm:$0xf]
      %v3697 = vld [vmem:[%s3693 + $0xc] sm:$0xf]
      %v3698 = vld [vmem:[%s3693 + $0x10] sm:$0xf]
      %v3699 = vld [vmem:[%s3693 + $0x14] sm:$0xf]
      %v3700 = vld [vmem:[%s3693 + $0x18] sm:$0xf]
      %v3701 = vld [vmem:[%s3693 + $0x1c] sm:$0xf]
      %v3710 = vunpack.c.l.b16 %v3694
      %v3711 = vunpack.c.l.b16 %v3695
      %v3712 = vunpack.c.l.b16 %v3696
      %v3713 = vunpack.c.l.b16 %v3697
      %v3714 = vunpack.c.l.b16 %v3698
      %v3715 = vunpack.c.l.b16 %v3699
      %v3716 = vunpack.c.l.b16 %v3700
      %v3717 = vunpack.c.l.b16 %v3701
      %v3718 = vpack.c.b16 %v3711, %v3710
      %v3719 = vpack.c.b16 %v3713, %v3712
      %v3720 = vpack.c.b16 %v3715, %v3714
      %v3721 = vpack.c.b16 %v3717, %v3716
      %v3727 = vsel %vm2924, %v2843, 0
      %v3730 = vsel %vm2924, %v2844, 0
      %v3733 = vsel %vm2924, %v2845, 0
      %v3736 = vsel %vm2924, %v2846, 0
      %3738 = vmatprep.subr.bf16.mxu0 0
      %3739 = vmatpush1.bf16.msra.mxu0 %v3718
      %3740 = vmatprep.subr.bf16.mxu0 0
      %3741 = vmatpush1.bf16.msra.mxu0 %v3719
      %3742 = vmatprep.subr.bf16.mxu0 0
      %3743 = vmatpush1.bf16.msra.mxu0 %v3720
      %3744 = vmatprep.subr.bf16.mxu0 0
      %3745 = vmatpush1.bf16.msra.mxu0 %v3721
      %3746 = vmatprep.subr.bf16.mxu0 0
      %3747 = vmatpush1.bf16.msra.mxu0 0
      %3748 = vmatprep.subr.bf16.mxu0 0
      %3749 = vmatpush1.bf16.msra.mxu0 0
      %3750 = vmatprep.subr.bf16.mxu0 0
      %3751 = vmatpush1.bf16.msra.mxu0 0
      %3752 = vmatprep.subr.bf16.mxu0 0
      %3753 = vmatpush1.bf16.msra.mxu0 0
      %3754 = vmatprep.subr.bf16.mxu0 0
      %3755 = vmatpush1.bf16.msra.mxu0 0
      %3756 = vmatprep.subr.bf16.mxu0 0
      %3757 = vmatpush1.bf16.msra.mxu0 0
      %3758 = vmatprep.subr.bf16.mxu0 0
      %3759 = vmatpush1.bf16.msra.mxu0 0
      %3760 = vmatprep.subr.bf16.mxu0 0
      %3761 = vmatpush1.bf16.msra.mxu0 0
      %3762 = vmatprep.subr.bf16.mxu0 0
      %3763 = vmatpush1.bf16.msra.mxu0 0
      %3764 = vmatprep.subr.bf16.mxu0 0
      %3765 = vmatpush1.bf16.msra.mxu0 0
      %3766 = vmatprep.subr.bf16.mxu0 0
      %3767 = vmatpush1.bf16.msra.mxu0 0
      %3768 = vmatprep.subr.bf16.mxu0 0
      %3769 = vmatpush1.bf16.msra.mxu0 0
      %3770 = vmatprep.mubr.bf16.mxu0 0
      %3771 = vmatmul.mubr.bf16.gmra.mrb[0].mxu0 %v3727
      %v3772 = vpop.f32.mrb[0].mxu0
      %v3773 = vadd.f32 0.0, %v3772
      %v3774 = vpop.f32.mrb[0].mxu0
      %v3775 = vpop.f32.mrb[0].mxu0
      %v3776 = vadd.f32 0.0, %v3775
      %v3777 = vpop.f32.mrb[0].mxu0
      %3778 = vmatprep.mubr.bf16.mxu0 0
      %3779 = vmatmul.mubr.bf16.gmra.mrb[0].mxu0 %v3730
      %v3780 = vpop.f32.mrb[0].mxu0
      %v3781 = vadd.f32 0.0, %v3780
      %v3782 = vpop.f32.mrb[0].mxu0
      %v3783 = vpop.f32.mrb[0].mxu0
      %v3784 = vadd.f32 0.0, %v3783
      %v3785 = vpop.f32.mrb[0].mxu0
      %3786 = vmatprep.mubr.bf16.mxu0 0
      %3787 = vmatmul.mubr.bf16.gmra.mrb[0].mxu0 %v3733
      %v3788 = vpop.f32.mrb[0].mxu0
      %v3789 = vadd.f32 0.0, %v3788
      %v3790 = vpop.f32.mrb[0].mxu0
      %v3791 = vpop.f32.mrb[0].mxu0
      %v3792 = vadd.f32 0.0, %v3791
      %v3793 = vpop.f32.mrb[0].mxu0
      %3794 = vmatprep.mubr.bf16.mxu0 0
      %3795 = vmatmul.mubr.bf16.gmra.mrb[0].mxu0 %v3736
      %v3796 = vpop.f32.mrb[0].mxu0
      %v3797 = vadd.f32 0.0, %v3796
      %v3798 = vpop.f32.mrb[0].mxu0
      %v3799 = vpop.f32.mrb[0].mxu0
      %v3800 = vadd.f32 0.0, %v3799
      %v3801 = vpop.f32.mrb[0].mxu0
      %3802 = vdwg.mxu0
      %v3803 = vadd.f32 %v3685, %v3773
      %v3804 = vadd.f32 %v3686, %v3776
      %v3805 = vadd.f32 %v3687, %v3781
      %v3806 = vadd.f32 %v3688, %v3784
      %v3807 = vadd.f32 %v3689, %v3789
      %v3808 = vadd.f32 %v3690, %v3792
      %v3809 = vadd.f32 %v3691, %v3797
      %v3810 = vadd.f32 %v3692, %v3800
      %s3811 = scalar_lea.vmem %s5, 256
      %v3812 = vld [vmem:[%s3811] sm:$0xf]
      %v3813 = vld [vmem:[%s3811 + $0x4] sm:$0xf]
      %v3814 = vld [vmem:[%s3811 + $0x8] sm:$0xf]
      %v3815 = vld [vmem:[%s3811 + $0xc] sm:$0xf]
      %v3816 = vld [vmem:[%s3811 + $0x10] sm:$0xf]
      %v3817 = vld [vmem:[%s3811 + $0x14] sm:$0xf]
      %v3818 = vld [vmem:[%s3811 + $0x18] sm:$0xf]
      %v3819 = vld [vmem:[%s3811 + $0x1c] sm:$0xf]
      %v3828 = vunpack.c.l.b16 %v3812
      %v3829 = vunpack.c.l.b16 %v3813
      %v3830 = vunpack.c.l.b16 %v3814
      %v3831 = vunpack.c.l.b16 %v3815
      %v3832 = vunpack.c.l.b16 %v3816
      %v3833 = vunpack.c.l.b16 %v3817
      %v3834 = vunpack.c.l.b16 %v3818
      %v3835 = vunpack.c.l.b16 %v3819
      %v3836 = vpack.c.b16 %v3829, %v3828
      %v3837 = vpack.c.b16 %v3831, %v3830
      %v3838 = vpack.c.b16 %v3833, %v3832
      %v3839 = vpack.c.b16 %v3835, %v3834
      %v3845 = vsel %vm2924, %v2831, 0
      %v3848 = vsel %vm2924, %v2832, 0
      %v3851 = vsel %vm2924, %v2833, 0
      %v3854 = vsel %vm2924, %v2834, 0
      %3856 = vmatprep.subr.bf16.mxu0 0
      %3857 = vmatpush1.bf16.msra.mxu0 %v3836
      %3858 = vmatprep.subr.bf16.mxu0 0
      %3859 = vmatpush1.bf16.msra.mxu0 %v3837
      %3860 = vmatprep.subr.bf16.mxu0 0
      %3861 = vmatpush1.bf16.msra.mxu0 %v3838
      %3862 = vmatprep.subr.bf16.mxu0 0
      %3863 = vmatpush1.bf16.msra.mxu0 %v3839
      %3864 = vmatprep.subr.bf16.mxu0 0
      %3865 = vmatpush1.bf16.msra.mxu0 0
      %3866 = vmatprep.subr.bf16.mxu0 0
      %3867 = vmatpush1.bf16.msra.mxu0 0
      %3868 = vmatprep.subr.bf16.mxu0 0
      %3869 = vmatpush1.bf16.msra.mxu0 0
      %3870 = vmatprep.subr.bf16.mxu0 0
      %3871 = vmatpush1.bf16.msra.mxu0 0
      %3872 = vmatprep.subr.bf16.mxu0 0
      %3873 = vmatpush1.bf16.msra.mxu0 0
      %3874 = vmatprep.subr.bf16.mxu0 0
      %3875 = vmatpush1.bf16.msra.mxu0 0
      %3876 = vmatprep.subr.bf16.mxu0 0
      %3877 = vmatpush1.bf16.msra.mxu0 0
      %3878 = vmatprep.subr.bf16.mxu0 0
      %3879 = vmatpush1.bf16.msra.mxu0 0
      %3880 = vmatprep.subr.bf16.mxu0 0
      %3881 = vmatpush1.bf16.msra.mxu0 0
      %3882 = vmatprep.subr.bf16.mxu0 0
      %3883 = vmatpush1.bf16.msra.mxu0 0
      %3884 = vmatprep.subr.bf16.mxu0 0
      %3885 = vmatpush1.bf16.msra.mxu0 0
      %3886 = vmatprep.subr.bf16.mxu0 0
      %3887 = vmatpush1.bf16.msra.mxu0 0
      %3888 = vmatprep.mubr.bf16.mxu0 0
      %3889 = vmatmul.mubr.bf16.gmra.mrb[0].mxu0 %v3845
      %v3890 = vpop.f32.mrb[0].mxu0
      %v3891 = vadd.f32 0.0, %v3890
      %v3892 = vpop.f32.mrb[0].mxu0
      %v3893 = vpop.f32.mrb[0].mxu0
      %v3894 = vadd.f32 0.0, %v3893
      %v3895 = vpop.f32.mrb[0].mxu0
      %3896 = vmatprep.mubr.bf16.mxu0 0
      %3897 = vmatmul.mubr.bf16.gmra.mrb[0].mxu0 %v3848
      %v3898 = vpop.f32.mrb[0].mxu0
      %v3899 = vadd.f32 0.0, %v3898
      %v3900 = vpop.f32.mrb[0].mxu0
      %v3901 = vpop.f32.mrb[0].mxu0
      %v3902 = vadd.f32 0.0, %v3901
      %v3903 = vpop.f32.mrb[0].mxu0
      %3904 = vmatprep.mubr.bf16.mxu0 0
      %3905 = vmatmul.mubr.bf16.gmra.mrb[0].mxu0 %v3851
      %v3906 = vpop.f32.mrb[0].mxu0
      %v3907 = vadd.f32 0.0, %v3906
      %v3908 = vpop.f32.mrb[0].mxu0
      %v3909 = vpop.f32.mrb[0].mxu0
      %v3910 = vadd.f32 0.0, %v3909
      %v3911 = vpop.f32.mrb[0].mxu0
      %3912 = vmatprep.mubr.bf16.mxu0 0
      %3913 = vmatmul.mubr.bf16.gmra.mrb[0].mxu0 %v3854
      %v3914 = vpop.f32.mrb[0].mxu0
      %v3915 = vadd.f32 0.0, %v3914
      %v3916 = vpop.f32.mrb[0].mxu0
      %v3917 = vpop.f32.mrb[0].mxu0
      %v3918 = vadd.f32 0.0, %v3917
      %v3919 = vpop.f32.mrb[0].mxu0
      %3920 = vdwg.mxu0
      %v3921 = vadd.f32 %v3803, %v3891
      %v3922 = vadd.f32 %v3804, %v3894
      %v3923 = vadd.f32 %v3805, %v3899
      %v3924 = vadd.f32 %v3806, %v3902
      %v3925 = vadd.f32 %v3807, %v3907
      %v3926 = vadd.f32 %v3808, %v3910
      %v3927 = vadd.f32 %v3809, %v3915
      %v3928 = vadd.f32 %v3810, %v3918
      %v3929 = vlaneseq
      %v3930 = vshrl.u32 %v3929, 7
      %v3931 = vsub.s32 0, %v3930
      %v3932 = vrot.slane %v329, %v3931
      %v3933 = vadd.f32 %v3921, %v3932
      %v3934 = vadd.f32 %v3922, %v3932
      %v3935 = vadd.f32 %v3923, %v3932
      %v3936 = vadd.f32 %v3924, %v3932
      %v3937 = vadd.f32 %v3925, %v3932
      %v3938 = vadd.f32 %v3926, %v3932
      %v3939 = vadd.f32 %v3927, %v3932
      %v3940 = vadd.f32 %v3928, %v3932
      %v3941 = vmax.f32 %v3933, 0.0
      %v3942 = vmax.f32 %v3934, 0.0
      %v3943 = vmax.f32 %v3935, 0.0
      %v3944 = vmax.f32 %v3936, 0.0
      %v3945 = vmax.f32 %v3937, 0.0
      %v3946 = vmax.f32 %v3938, 0.0
      %v3947 = vmax.f32 %v3939, 0.0
      %v3948 = vmax.f32 %v3940, 0.0
      %3949 = vmatprep.subr.bf16.mxu0 0
      %3950 = vmatpush1.bf16.msra.mxu0 %v2916
      %3951 = vmatprep.subr.bf16.mxu0 0
      %3952 = vmatpush1.bf16.msra.mxu0 %v2917
      %3953 = vmatprep.subr.bf16.mxu0 0
      %3954 = vmatpush1.bf16.msra.mxu0 %v2918
      %3955 = vmatprep.subr.bf16.mxu0 0
      %3956 = vmatpush1.bf16.msra.mxu0 %v2919
      %3957 = vmatprep.subr.bf16.mxu0 0
      %3958 = vmatpush1.bf16.msra.mxu0 0
      %3959 = vmatprep.subr.bf16.mxu0 0
      %3960 = vmatpush1.bf16.msra.mxu0 0
      %3961 = vmatprep.subr.bf16.mxu0 0
      %3962 = vmatpush1.bf16.msra.mxu0 0
      %3963 = vmatprep.subr.bf16.mxu0 0
      %3964 = vmatpush1.bf16.msra.mxu0 0
      %3965 = vmatprep.subr.bf16.mxu0 0
      %3966 = vmatpush1.bf16.msra.mxu0 0
      %3967 = vmatprep.subr.bf16.mxu0 0
      %3968 = vmatpush1.bf16.msra.mxu0 0
      %3969 = vmatprep.subr.bf16.mxu0 0
      %3970 = vmatpush1.bf16.msra.mxu0 0
      %3971 = vmatprep.subr.bf16.mxu0 0
      %3972 = vmatpush1.bf16.msra.mxu0 0
      %3973 = vmatprep.subr.bf16.mxu0 0
      %3974 = vmatpush1.bf16.msra.mxu0 0
      %3975 = vmatprep.subr.bf16.mxu0 0
      %3976 = vmatpush1.bf16.msra.mxu0 0
      %3977 = vmatprep.subr.bf16.mxu0 0
      %3978 = vmatpush1.bf16.msra.mxu0 0
      %3979 = vmatprep.subr.bf16.mxu0 0
      %3980 = vmatpush1.bf16.msra.mxu0 0
      %3981 = vmatprep.mubr.bf16.mxu0 0
      %3982 = vmatmul.mubr.bf16.gmra.mrb[0].mxu0 %v3137
      %v3983 = vpop.f32.mrb[0].mxu0
      %v3984 = vadd.f32 0.0, %v3983
      %v3985 = vpop.f32.mrb[0].mxu0
      %v3986 = vpop.f32.mrb[0].mxu0
      %v3987 = vadd.f32 0.0, %v3986
      %v3988 = vpop.f32.mrb[0].mxu0
      %3989 = vmatprep.mubr.bf16.mxu0 0
      %3990 = vmatmul.mubr.bf16.gmra.mrb[0].mxu0 %v3140
      %v3991 = vpop.f32.mrb[0].mxu0
      %v3992 = vadd.f32 0.0, %v3991
      %v3993 = vpop.f32.mrb[0].mxu0
      %v3994 = vpop.f32.mrb[0].mxu0
      %v3995 = vadd.f32 0.0, %v3994
      %v3996 = vpop.f32.mrb[0].mxu0
      %3997 = vmatprep.mubr.bf16.mxu0 0
      %3998 = vmatmul.mubr.bf16.gmra.mrb[0].mxu0 %v3143
      %v3999 = vpop.f32.mrb[0].mxu0
      %v4000 = vadd.f32 0.0, %v3999
      %v4001 = vpop.f32.mrb[0].mxu0
      %v4002 = vpop.f32.mrb[0].mxu0
      %v4003 = vadd.f32 0.0, %v4002
      %v4004 = vpop.f32.mrb[0].mxu0
      %4005 = vmatprep.mubr.bf16.mxu0 0
      %4006 = vmatmul.mubr.bf16.gmra.mrb[0].mxu0 %v3146
      %v4007 = vpop.f32.mrb[0].mxu0
      %v4008 = vadd.f32 0.0, %v4007
      %v4009 = vpop.f32.mrb[0].mxu0
      %v4010 = vpop.f32.mrb[0].mxu0
      %v4011 = vadd.f32 0.0, %v4010
      %v4012 = vpop.f32.mrb[0].mxu0
      %4013 = vdwg.mxu0
      %4014 = vmatprep.subr.bf16.mxu0 0
      %4015 = vmatpush1.bf16.msra.mxu0 %v3018
      %4016 = vmatprep.subr.bf16.mxu0 0
      %4017 = vmatpush1.bf16.msra.mxu0 %v3019
      %4018 = vmatprep.subr.bf16.mxu0 0
      %4019 = vmatpush1.bf16.msra.mxu0 %v3020
      %4020 = vmatprep.subr.bf16.mxu0 0
      %4021 = vmatpush1.bf16.msra.mxu0 %v3021
      %4022 = vmatprep.subr.bf16.mxu0 0
      %4023 = vmatpush1.bf16.msra.mxu0 0
      %4024 = vmatprep.subr.bf16.mxu0 0
      %4025 = vmatpush1.bf16.msra.mxu0 0
      %4026 = vmatprep.subr.bf16.mxu0 0
      %4027 = vmatpush1.bf16.msra.mxu0 0
      %4028 = vmatprep.subr.bf16.mxu0 0
      %4029 = vmatpush1.bf16.msra.mxu0 0
      %4030 = vmatprep.subr.bf16.mxu0 0
      %4031 = vmatpush1.bf16.msra.mxu0 0
      %4032 = vmatprep.subr.bf16.mxu0 0
      %4033 = vmatpush1.bf16.msra.mxu0 0
      %4034 = vmatprep.subr.bf16.mxu0 0
      %4035 = vmatpush1.bf16.msra.mxu0 0
      %4036 = vmatprep.subr.bf16.mxu0 0
      %4037 = vmatpush1.bf16.msra.mxu0 0
      %4038 = vmatprep.subr.bf16.mxu0 0
      %4039 = vmatpush1.bf16.msra.mxu0 0
      %4040 = vmatprep.subr.bf16.mxu0 0
      %4041 = vmatpush1.bf16.msra.mxu0 0
      %4042 = vmatprep.subr.bf16.mxu0 0
      %4043 = vmatpush1.bf16.msra.mxu0 0
      %4044 = vmatprep.subr.bf16.mxu0 0
      %4045 = vmatpush1.bf16.msra.mxu0 0
      %4046 = vmatprep.mubr.bf16.mxu0 0
      %4047 = vmatmul.mubr.bf16.gmra.mrb[0].mxu0 %v2926
      %v4048 = vpop.f32.mrb[0].mxu0
      %v4049 = vadd.f32 %v3984, %v4048
      %v4050 = vpop.f32.mrb[0].mxu0
      %v4051 = vpop.f32.mrb[0].mxu0
      %v4052 = vadd.f32 %v3987, %v4051
      %v4053 = vpop.f32.mrb[0].mxu0
      %4054 = vmatprep.mubr.bf16.mxu0 0
      %4055 = vmatmul.mubr.bf16.gmra.mrb[0].mxu0 %v2929
      %v4056 = vpop.f32.mrb[0].mxu0
      %v4057 = vadd.f32 %v3992, %v4056
      %v4058 = vpop.f32.mrb[0].mxu0
      %v4059 = vpop.f32.mrb[0].mxu0
      %v4060 = vadd.f32 %v3995, %v4059
      %v4061 = vpop.f32.mrb[0].mxu0
      %4062 = vmatprep.mubr.bf16.mxu0 0
      %4063 = vmatmul.mubr.bf16.gmra.mrb[0].mxu0 %v2932
      %v4064 = vpop.f32.mrb[0].mxu0
      %v4065 = vadd.f32 %v4000, %v4064
      %v4066 = vpop.f32.mrb[0].mxu0
      %v4067 = vpop.f32.mrb[0].mxu0
      %v4068 = vadd.f32 %v4003, %v4067
      %v4069 = vpop.f32.mrb[0].mxu0
      %4070 = vmatprep.mubr.bf16.mxu0 0
      %4071 = vmatmul.mubr.bf16.gmra.mrb[0].mxu0 %v2935
      %v4072 = vpop.f32.mrb[0].mxu0
      %v4073 = vadd.f32 %v4008, %v4072
      %v4074 = vpop.f32.mrb[0].mxu0
      %v4075 = vpop.f32.mrb[0].mxu0
      %v4076 = vadd.f32 %v4011, %v4075
      %v4077 = vpop.f32.mrb[0].mxu0
      %4078 = vdwg.mxu0
      %v4080 = vsel %vm2924, %v2839, 0
      %v4083 = vsel %vm2924, %v2840, 0
      %v4086 = vsel %vm2924, %v2841, 0
      %v4089 = vsel %vm2924, %v2842, 0
      %4091 = vmatprep.subr.bf16.mxu0 0
      %4092 = vmatpush1.bf16.msra.mxu0 %v3128
      %4093 = vmatprep.subr.bf16.mxu0 0
      %4094 = vmatpush1.bf16.msra.mxu0 %v3129
      %4095 = vmatprep.subr.bf16.mxu0 0
      %4096 = vmatpush1.bf16.msra.mxu0 %v3130
      %4097 = vmatprep.subr.bf16.mxu0 0
      %4098 = vmatpush1.bf16.msra.mxu0 %v3131
      %4099 = vmatprep.subr.bf16.mxu0 0
      %4100 = vmatpush1.bf16.msra.mxu0 0
      %4101 = vmatprep.subr.bf16.mxu0 0
      %4102 = vmatpush1.bf16.msra.mxu0 0
      %4103 = vmatprep.subr.bf16.mxu0 0
      %4104 = vmatpush1.bf16.msra.mxu0 0
      %4105 = vmatprep.subr.bf16.mxu0 0
      %4106 = vmatpush1.bf16.msra.mxu0 0
      %4107 = vmatprep.subr.bf16.mxu0 0
      %4108 = vmatpush1.bf16.msra.mxu0 0
      %4109 = vmatprep.subr.bf16.mxu0 0
      %4110 = vmatpush1.bf16.msra.mxu0 0
      %4111 = vmatprep.subr.bf16.mxu0 0
      %4112 = vmatpush1.bf16.msra.mxu0 0
      %4113 = vmatprep.subr.bf16.mxu0 0
      %4114 = vmatpush1.bf16.msra.mxu0 0
      %4115 = vmatprep.subr.bf16.mxu0 0
      %4116 = vmatpush1.bf16.msra.mxu0 0
      %4117 = vmatprep.subr.bf16.mxu0 0
      %4118 = vmatpush1.bf16.msra.mxu0 0
      %4119 = vmatprep.subr.bf16.mxu0 0
      %4120 = vmatpush1.bf16.msra.mxu0 0
      %4121 = vmatprep.subr.bf16.mxu0 0
      %4122 = vmatpush1.bf16.msra.mxu0 0
      %4123 = vmatprep.mubr.bf16.mxu0 0
      %4124 = vmatmul.mubr.bf16.gmra.mrb[0].mxu0 %v4080
      %v4125 = vpop.f32.mrb[0].mxu0
      %v4126 = vadd.f32 0.0, %v4125
      %v4127 = vpop.f32.mrb[0].mxu0
      %v4128 = vpop.f32.mrb[0].mxu0
      %v4129 = vadd.f32 0.0, %v4128
      %v4130 = vpop.f32.mrb[0].mxu0
      %4131 = vmatprep.mubr.bf16.mxu0 0
      %4132 = vmatmul.mubr.bf16.gmra.mrb[0].mxu0 %v4083
      %v4133 = vpop.f32.mrb[0].mxu0
      %v4134 = vadd.f32 0.0, %v4133
      %v4135 = vpop.f32.mrb[0].mxu0
      %v4136 = vpop.f32.mrb[0].mxu0
      %v4137 = vadd.f32 0.0, %v4136
      %v4138 = vpop.f32.mrb[0].mxu0
      %4139 = vmatprep.mubr.bf16.mxu0 0
      %4140 = vmatmul.mubr.bf16.gmra.mrb[0].mxu0 %v4086
      %v4141 = vpop.f32.mrb[0].mxu0
      %v4142 = vadd.f32 0.0, %v4141
      %v4143 = vpop.f32.mrb[0].mxu0
      %v4144 = vpop.f32.mrb[0].mxu0
      %v4145 = vadd.f32 0.0, %v4144
      %v4146 = vpop.f32.mrb[0].mxu0
      %4147 = vmatprep.mubr.bf16.mxu0 0
      %4148 = vmatmul.mubr.bf16.gmra.mrb[0].mxu0 %v4089
      %v4149 = vpop.f32.mrb[0].mxu0
      %v4150 = vadd.f32 0.0, %v4149
      %v4151 = vpop.f32.mrb[0].mxu0
      %v4152 = vpop.f32.mrb[0].mxu0
      %v4153 = vadd.f32 0.0, %v4152
      %v4154 = vpop.f32.mrb[0].mxu0
      %4155 = vdwg.mxu0
      %v4156 = vadd.f32 %v4049, %v4126
      %v4157 = vadd.f32 %v4052, %v4129
      %v4158 = vadd.f32 %v4057, %v4134
      %v4159 = vadd.f32 %v4060, %v4137
      %v4160 = vadd.f32 %v4065, %v4142
      %v4161 = vadd.f32 %v4068, %v4145
      %v4162 = vadd.f32 %v4073, %v4150
      %v4163 = vadd.f32 %v4076, %v4153
      %4164 = vmatprep.subr.bf16.mxu0 0
      %4165 = vmatpush1.bf16.msra.mxu0 %v3246
      %4166 = vmatprep.subr.bf16.mxu0 0
      %4167 = vmatpush1.bf16.msra.mxu0 %v3247
      %4168 = vmatprep.subr.bf16.mxu0 0
      %4169 = vmatpush1.bf16.msra.mxu0 %v3248
      %4170 = vmatprep.subr.bf16.mxu0 0
      %4171 = vmatpush1.bf16.msra.mxu0 %v3249
      %4172 = vmatprep.subr.bf16.mxu0 0
      %4173 = vmatpush1.bf16.msra.mxu0 0
      %4174 = vmatprep.subr.bf16.mxu0 0
      %4175 = vmatpush1.bf16.msra.mxu0 0
      %4176 = vmatprep.subr.bf16.mxu0 0
      %4177 = vmatpush1.bf16.msra.mxu0 0
      %4178 = vmatprep.subr.bf16.mxu0 0
      %4179 = vmatpush1.bf16.msra.mxu0 0
      %4180 = vmatprep.subr.bf16.mxu0 0
      %4181 = vmatpush1.bf16.msra.mxu0 0
      %4182 = vmatprep.subr.bf16.mxu0 0
      %4183 = vmatpush1.bf16.msra.mxu0 0
      %4184 = vmatprep.subr.bf16.mxu0 0
      %4185 = vmatpush1.bf16.msra.mxu0 0
      %4186 = vmatprep.subr.bf16.mxu0 0
      %4187 = vmatpush1.bf16.msra.mxu0 0
      %4188 = vmatprep.subr.bf16.mxu0 0
      %4189 = vmatpush1.bf16.msra.mxu0 0
      %4190 = vmatprep.subr.bf16.mxu0 0
      %4191 = vmatpush1.bf16.msra.mxu0 0
      %4192 = vmatprep.subr.bf16.mxu0 0
      %4193 = vmatpush1.bf16.msra.mxu0 0
      %4194 = vmatprep.subr.bf16.mxu0 0
      %4195 = vmatpush1.bf16.msra.mxu0 0
      %4196 = vmatprep.mubr.bf16.mxu0 0
      %4197 = vmatmul.mubr.bf16.gmra.mrb[0].mxu0 %v3373
      %v4198 = vpop.f32.mrb[0].mxu0
      %v4199 = vadd.f32 0.0, %v4198
      %v4200 = vpop.f32.mrb[0].mxu0
      %v4201 = vpop.f32.mrb[0].mxu0
      %v4202 = vadd.f32 0.0, %v4201
      %v4203 = vpop.f32.mrb[0].mxu0
      %4204 = vmatprep.mubr.bf16.mxu0 0
      %4205 = vmatmul.mubr.bf16.gmra.mrb[0].mxu0 %v3376
      %v4206 = vpop.f32.mrb[0].mxu0
      %v4207 = vadd.f32 0.0, %v4206
      %v4208 = vpop.f32.mrb[0].mxu0
      %v4209 = vpop.f32.mrb[0].mxu0
      %v4210 = vadd.f32 0.0, %v4209
      %v4211 = vpop.f32.mrb[0].mxu0
      %4212 = vmatprep.mubr.bf16.mxu0 0
      %4213 = vmatmul.mubr.bf16.gmra.mrb[0].mxu0 %v3379
      %v4214 = vpop.f32.mrb[0].mxu0
      %v4215 = vadd.f32 0.0, %v4214
      %v4216 = vpop.f32.mrb[0].mxu0
      %v4217 = vpop.f32.mrb[0].mxu0
      %v4218 = vadd.f32 0.0, %v4217
      %v4219 = vpop.f32.mrb[0].mxu0
      %4220 = vmatprep.mubr.bf16.mxu0 0
      %4221 = vmatmul.mubr.bf16.gmra.mrb[0].mxu0 %v3382
      %v4222 = vpop.f32.mrb[0].mxu0
      %v4223 = vadd.f32 0.0, %v4222
      %v4224 = vpop.f32.mrb[0].mxu0
      %v4225 = vpop.f32.mrb[0].mxu0
      %v4226 = vadd.f32 0.0, %v4225
      %v4227 = vpop.f32.mrb[0].mxu0
      %4228 = vdwg.mxu0
      %v4229 = vadd.f32 %v4156, %v4199
      %v4230 = vadd.f32 %v4157, %v4202
      %v4231 = vadd.f32 %v4158, %v4207
      %v4232 = vadd.f32 %v4159, %v4210
      %v4233 = vadd.f32 %v4160, %v4215
      %v4234 = vadd.f32 %v4161, %v4218
      %v4235 = vadd.f32 %v4162, %v4223
      %v4236 = vadd.f32 %v4163, %v4226
      %4237 = vmatprep.subr.bf16.mxu0 0
      %4238 = vmatpush1.bf16.msra.mxu0 %v3364
      %4239 = vmatprep.subr.bf16.mxu0 0
      %4240 = vmatpush1.bf16.msra.mxu0 %v3365
      %4241 = vmatprep.subr.bf16.mxu0 0
      %4242 = vmatpush1.bf16.msra.mxu0 %v3366
      %4243 = vmatprep.subr.bf16.mxu0 0
      %4244 = vmatpush1.bf16.msra.mxu0 %v3367
      %4245 = vmatprep.subr.bf16.mxu0 0
      %4246 = vmatpush1.bf16.msra.mxu0 0
      %4247 = vmatprep.subr.bf16.mxu0 0
      %4248 = vmatpush1.bf16.msra.mxu0 0
      %4249 = vmatprep.subr.bf16.mxu0 0
      %4250 = vmatpush1.bf16.msra.mxu0 0
      %4251 = vmatprep.subr.bf16.mxu0 0
      %4252 = vmatpush1.bf16.msra.mxu0 0
      %4253 = vmatprep.subr.bf16.mxu0 0
      %4254 = vmatpush1.bf16.msra.mxu0 0
      %4255 = vmatprep.subr.bf16.mxu0 0
      %4256 = vmatpush1.bf16.msra.mxu0 0
      %4257 = vmatprep.subr.bf16.mxu0 0
      %4258 = vmatpush1.bf16.msra.mxu0 0
      %4259 = vmatprep.subr.bf16.mxu0 0
      %4260 = vmatpush1.bf16.msra.mxu0 0
      %4261 = vmatprep.subr.bf16.mxu0 0
      %4262 = vmatpush1.bf16.msra.mxu0 0
      %4263 = vmatprep.subr.bf16.mxu0 0
      %4264 = vmatpush1.bf16.msra.mxu0 0
      %4265 = vmatprep.subr.bf16.mxu0 0
      %4266 = vmatpush1.bf16.msra.mxu0 0
      %4267 = vmatprep.subr.bf16.mxu0 0
      %4268 = vmatpush1.bf16.msra.mxu0 0
      %4269 = vmatprep.mubr.bf16.mxu0 0
      %4270 = vmatmul.mubr.bf16.gmra.mrb[0].mxu0 %v3491
      %v4271 = vpop.f32.mrb[0].mxu0
      %v4272 = vadd.f32 0.0, %v4271
      %v4273 = vpop.f32.mrb[0].mxu0
      %v4274 = vpop.f32.mrb[0].mxu0
      %v4275 = vadd.f32 0.0, %v4274
      %v4276 = vpop.f32.mrb[0].mxu0
      %4277 = vmatprep.mubr.bf16.mxu0 0
      %4278 = vmatmul.mubr.bf16.gmra.mrb[0].mxu0 %v3494
      %v4279 = vpop.f32.mrb[0].mxu0
      %v4280 = vadd.f32 0.0, %v4279
      %v4281 = vpop.f32.mrb[0].mxu0
      %v4282 = vpop.f32.mrb[0].mxu0
      %v4283 = vadd.f32 0.0, %v4282
      %v4284 = vpop.f32.mrb[0].mxu0
      %4285 = vmatprep.mubr.bf16.mxu0 0
      %4286 = vmatmul.mubr.bf16.gmra.mrb[0].mxu0 %v3497
      %v4287 = vpop.f32.mrb[0].mxu0
      %v4288 = vadd.f32 0.0, %v4287
      %v4289 = vpop.f32.mrb[0].mxu0
      %v4290 = vpop.f32.mrb[0].mxu0
      %v4291 = vadd.f32 0.0, %v4290
      %v4292 = vpop.f32.mrb[0].mxu0
      %4293 = vmatprep.mubr.bf16.mxu0 0
      %4294 = vmatmul.mubr.bf16.gmra.mrb[0].mxu0 %v3500
      %v4295 = vpop.f32.mrb[0].mxu0
      %v4296 = vadd.f32 0.0, %v4295
      %v4297 = vpop.f32.mrb[0].mxu0
      %v4298 = vpop.f32.mrb[0].mxu0
      %v4299 = vadd.f32 0.0, %v4298
      %v4300 = vpop.f32.mrb[0].mxu0
      %4301 = vdwg.mxu0
      %v4302 = vadd.f32 %v4229, %v4272
      %v4303 = vadd.f32 %v4230, %v4275
      %v4304 = vadd.f32 %v4231, %v4280
      %v4305 = vadd.f32 %v4232, %v4283
      %v4306 = vadd.f32 %v4233, %v4288
      %v4307 = vadd.f32 %v4234, %v4291
      %v4308 = vadd.f32 %v4235, %v4296
      %v4309 = vadd.f32 %v4236, %v4299
      %v4311 = vsel %vm2924, %v2871, 0
      %v4314 = vsel %vm2924, %v2872, 0
      %v4317 = vsel %vm2924, %v2873, 0
      %v4320 = vsel %vm2924, %v2874, 0
      %4322 = vmatprep.subr.bf16.mxu0 0
      %4323 = vmatpush1.bf16.msra.mxu0 %v3482
      %4324 = vmatprep.subr.bf16.mxu0 0
      %4325 = vmatpush1.bf16.msra.mxu0 %v3483
      %4326 = vmatprep.subr.bf16.mxu0 0
      %4327 = vmatpush1.bf16.msra.mxu0 %v3484
      %4328 = vmatprep.subr.bf16.mxu0 0
      %4329 = vmatpush1.bf16.msra.mxu0 %v3485
      %4330 = vmatprep.subr.bf16.mxu0 0
      %4331 = vmatpush1.bf16.msra.mxu0 0
      %4332 = vmatprep.subr.bf16.mxu0 0
      %4333 = vmatpush1.bf16.msra.mxu0 0
      %4334 = vmatprep.subr.bf16.mxu0 0
      %4335 = vmatpush1.bf16.msra.mxu0 0
      %4336 = vmatprep.subr.bf16.mxu0 0
      %4337 = vmatpush1.bf16.msra.mxu0 0
      %4338 = vmatprep.subr.bf16.mxu0 0
      %4339 = vmatpush1.bf16.msra.mxu0 0
      %4340 = vmatprep.subr.bf16.mxu0 0
      %4341 = vmatpush1.bf16.msra.mxu0 0
      %4342 = vmatprep.subr.bf16.mxu0 0
      %4343 = vmatpush1.bf16.msra.mxu0 0
      %4344 = vmatprep.subr.bf16.mxu0 0
      %4345 = vmatpush1.bf16.msra.mxu0 0
      %4346 = vmatprep.subr.bf16.mxu0 0
      %4347 = vmatpush1.bf16.msra.mxu0 0
      %4348 = vmatprep.subr.bf16.mxu0 0
      %4349 = vmatpush1.bf16.msra.mxu0 0
      %4350 = vmatprep.subr.bf16.mxu0 0
      %4351 = vmatpush1.bf16.msra.mxu0 0
      %4352 = vmatprep.subr.bf16.mxu0 0
      %4353 = vmatpush1.bf16.msra.mxu0 0
      %4354 = vmatprep.mubr.bf16.mxu0 0
      %4355 = vmatmul.mubr.bf16.gmra.mrb[0].mxu0 %v4311
      %v4356 = vpop.f32.mrb[0].mxu0
      %v4357 = vadd.f32 0.0, %v4356
      %v4358 = vpop.f32.mrb[0].mxu0
      %v4359 = vpop.f32.mrb[0].mxu0
      %v4360 = vadd.f32 0.0, %v4359
      %v4361 = vpop.f32.mrb[0].mxu0
      %4362 = vmatprep.mubr.bf16.mxu0 0
      %4363 = vmatmul.mubr.bf16.gmra.mrb[0].mxu0 %v4314
      %v4364 = vpop.f32.mrb[0].mxu0
      %v4365 = vadd.f32 0.0, %v4364
      %v4366 = vpop.f32.mrb[0].mxu0
      %v4367 = vpop.f32.mrb[0].mxu0
      %v4368 = vadd.f32 0.0, %v4367
      %v4369 = vpop.f32.mrb[0].mxu0
      %4370 = vmatprep.mubr.bf16.mxu0 0
      %4371 = vmatmul.mubr.bf16.gmra.mrb[0].mxu0 %v4317
      %v4372 = vpop.f32.mrb[0].mxu0
      %v4373 = vadd.f32 0.0, %v4372
      %v4374 = vpop.f32.mrb[0].mxu0
      %v4375 = vpop.f32.mrb[0].mxu0
      %v4376 = vadd.f32 0.0, %v4375
      %v4377 = vpop.f32.mrb[0].mxu0
      %4378 = vmatprep.mubr.bf16.mxu0 0
      %4379 = vmatmul.mubr.bf16.gmra.mrb[0].mxu0 %v4320
      %v4380 = vpop.f32.mrb[0].mxu0
      %v4381 = vadd.f32 0.0, %v4380
      %v4382 = vpop.f32.mrb[0].mxu0
      %v4383 = vpop.f32.mrb[0].mxu0
      %v4384 = vadd.f32 0.0, %v4383
      %v4385 = vpop.f32.mrb[0].mxu0
      %4386 = vdwg.mxu0
      %v4387 = vadd.f32 %v4302, %v4357
      %v4388 = vadd.f32 %v4303, %v4360
      %v4389 = vadd.f32 %v4304, %v4365
      %v4390 = vadd.f32 %v4305, %v4368
      %v4391 = vadd.f32 %v4306, %v4373
      %v4392 = vadd.f32 %v4307, %v4376
      %v4393 = vadd.f32 %v4308, %v4381
      %v4394 = vadd.f32 %v4309, %v4384
      %4395 = vmatprep.subr.bf16.mxu0 0
      %4396 = vmatpush1.bf16.msra.mxu0 %v3600
      %4397 = vmatprep.subr.bf16.mxu0 0
      %4398 = vmatpush1.bf16.msra.mxu0 %v3601
      %4399 = vmatprep.subr.bf16.mxu0 0
      %4400 = vmatpush1.bf16.msra.mxu0 %v3602
      %4401 = vmatprep.subr.bf16.mxu0 0
      %4402 = vmatpush1.bf16.msra.mxu0 %v3603
      %4403 = vmatprep.subr.bf16.mxu0 0
      %4404 = vmatpush1.bf16.msra.mxu0 0
      %4405 = vmatprep.subr.bf16.mxu0 0
      %4406 = vmatpush1.bf16.msra.mxu0 0
      %4407 = vmatprep.subr.bf16.mxu0 0
      %4408 = vmatpush1.bf16.msra.mxu0 0
      %4409 = vmatprep.subr.bf16.mxu0 0
      %4410 = vmatpush1.bf16.msra.mxu0 0
      %4411 = vmatprep.subr.bf16.mxu0 0
      %4412 = vmatpush1.bf16.msra.mxu0 0
      %4413 = vmatprep.subr.bf16.mxu0 0
      %4414 = vmatpush1.bf16.msra.mxu0 0
      %4415 = vmatprep.subr.bf16.mxu0 0
      %4416 = vmatpush1.bf16.msra.mxu0 0
      %4417 = vmatprep.subr.bf16.mxu0 0
      %4418 = vmatpush1.bf16.msra.mxu0 0
      %4419 = vmatprep.subr.bf16.mxu0 0
      %4420 = vmatpush1.bf16.msra.mxu0 0
      %4421 = vmatprep.subr.bf16.mxu0 0
      %4422 = vmatpush1.bf16.msra.mxu0 0
      %4423 = vmatprep.subr.bf16.mxu0 0
      %4424 = vmatpush1.bf16.msra.mxu0 0
      %4425 = vmatprep.subr.bf16.mxu0 0
      %4426 = vmatpush1.bf16.msra.mxu0 0
      %4427 = vmatprep.mubr.bf16.mxu0 0
      %4428 = vmatmul.mubr.bf16.gmra.mrb[0].mxu0 %v3727
      %v4429 = vpop.f32.mrb[0].mxu0
      %v4430 = vadd.f32 0.0, %v4429
      %v4431 = vpop.f32.mrb[0].mxu0
      %v4432 = vpop.f32.mrb[0].mxu0
      %v4433 = vadd.f32 0.0, %v4432
      %v4434 = vpop.f32.mrb[0].mxu0
      %4435 = vmatprep.mubr.bf16.mxu0 0
      %4436 = vmatmul.mubr.bf16.gmra.mrb[0].mxu0 %v3730
      %v4437 = vpop.f32.mrb[0].mxu0
      %v4438 = vadd.f32 0.0, %v4437
      %v4439 = vpop.f32.mrb[0].mxu0
      %v4440 = vpop.f32.mrb[0].mxu0
      %v4441 = vadd.f32 0.0, %v4440
      %v4442 = vpop.f32.mrb[0].mxu0
      %4443 = vmatprep.mubr.bf16.mxu0 0
      %4444 = vmatmul.mubr.bf16.gmra.mrb[0].mxu0 %v3733
      %v4445 = vpop.f32.mrb[0].mxu0
      %v4446 = vadd.f32 0.0, %v4445
      %v4447 = vpop.f32.mrb[0].mxu0
      %v4448 = vpop.f32.mrb[0].mxu0
      %v4449 = vadd.f32 0.0, %v4448
      %v4450 = vpop.f32.mrb[0].mxu0
      %4451 = vmatprep.mubr.bf16.mxu0 0
      %4452 = vmatmul.mubr.bf16.gmra.mrb[0].mxu0 %v3736
      %v4453 = vpop.f32.mrb[0].mxu0
      %v4454 = vadd.f32 0.0, %v4453
      %v4455 = vpop.f32.mrb[0].mxu0
      %v4456 = vpop.f32.mrb[0].mxu0
      %v4457 = vadd.f32 0.0, %v4456
      %v4458 = vpop.f32.mrb[0].mxu0
      %4459 = vdwg.mxu0
      %v4460 = vadd.f32 %v4387, %v4430
      %v4461 = vadd.f32 %v4388, %v4433
      %v4462 = vadd.f32 %v4389, %v4438
      %v4463 = vadd.f32 %v4390, %v4441
      %v4464 = vadd.f32 %v4391, %v4446
      %v4465 = vadd.f32 %v4392, %v4449
      %v4466 = vadd.f32 %v4393, %v4454
      %v4467 = vadd.f32 %v4394, %v4457
      %4468 = vmatprep.subr.bf16.mxu0 0
      %4469 = vmatpush1.bf16.msra.mxu0 %v3718
      %4470 = vmatprep.subr.bf16.mxu0 0
      %4471 = vmatpush1.bf16.msra.mxu0 %v3719
      %4472 = vmatprep.subr.bf16.mxu0 0
      %4473 = vmatpush1.bf16.msra.mxu0 %v3720
      %4474 = vmatprep.subr.bf16.mxu0 0
      %4475 = vmatpush1.bf16.msra.mxu0 %v3721
      %4476 = vmatprep.subr.bf16.mxu0 0
      %4477 = vmatpush1.bf16.msra.mxu0 0
      %4478 = vmatprep.subr.bf16.mxu0 0
      %4479 = vmatpush1.bf16.msra.mxu0 0
      %4480 = vmatprep.subr.bf16.mxu0 0
      %4481 = vmatpush1.bf16.msra.mxu0 0
      %4482 = vmatprep.subr.bf16.mxu0 0
      %4483 = vmatpush1.bf16.msra.mxu0 0
      %4484 = vmatprep.subr.bf16.mxu0 0
      %4485 = vmatpush1.bf16.msra.mxu0 0
      %4486 = vmatprep.subr.bf16.mxu0 0
      %4487 = vmatpush1.bf16.msra.mxu0 0
      %4488 = vmatprep.subr.bf16.mxu0 0
      %4489 = vmatpush1.bf16.msra.mxu0 0
      %4490 = vmatprep.subr.bf16.mxu0 0
      %4491 = vmatpush1.bf16.msra.mxu0 0
      %4492 = vmatprep.subr.bf16.mxu0 0
      %4493 = vmatpush1.bf16.msra.mxu0 0
      %4494 = vmatprep.subr.bf16.mxu0 0
      %4495 = vmatpush1.bf16.msra.mxu0 0
      %4496 = vmatprep.subr.bf16.mxu0 0
      %4497 = vmatpush1.bf16.msra.mxu0 0
      %4498 = vmatprep.subr.bf16.mxu0 0
      %4499 = vmatpush1.bf16.msra.mxu0 0
      %4500 = vmatprep.mubr.bf16.mxu0 0
      %4501 = vmatmul.mubr.bf16.gmra.mrb[0].mxu0 %v3845
      %v4502 = vpop.f32.mrb[0].mxu0
      %v4503 = vadd.f32 0.0, %v4502
      %v4504 = vpop.f32.mrb[0].mxu0
      %v4505 = vpop.f32.mrb[0].mxu0
      %v4506 = vadd.f32 0.0, %v4505
      %v4507 = vpop.f32.mrb[0].mxu0
      %4508 = vmatprep.mubr.bf16.mxu0 0
      %4509 = vmatmul.mubr.bf16.gmra.mrb[0].mxu0 %v3848
      %v4510 = vpop.f32.mrb[0].mxu0
      %v4511 = vadd.f32 0.0, %v4510
      %v4512 = vpop.f32.mrb[0].mxu0
      %v4513 = vpop.f32.mrb[0].mxu0
      %v4514 = vadd.f32 0.0, %v4513
      %v4515 = vpop.f32.mrb[0].mxu0
      %4516 = vmatprep.mubr.bf16.mxu0 0
      %4517 = vmatmul.mubr.bf16.gmra.mrb[0].mxu0 %v3851
      %v4518 = vpop.f32.mrb[0].mxu0
      %v4519 = vadd.f32 0.0, %v4518
      %v4520 = vpop.f32.mrb[0].mxu0
      %v4521 = vpop.f32.mrb[0].mxu0
      %v4522 = vadd.f32 0.0, %v4521
      %v4523 = vpop.f32.mrb[0].mxu0
      %4524 = vmatprep.mubr.bf16.mxu0 0
      %4525 = vmatmul.mubr.bf16.gmra.mrb[0].mxu0 %v3854
      %v4526 = vpop.f32.mrb[0].mxu0
      %v4527 = vadd.f32 0.0, %v4526
      %v4528 = vpop.f32.mrb[0].mxu0
      %v4529 = vpop.f32.mrb[0].mxu0
      %v4530 = vadd.f32 0.0, %v4529
      %v4531 = vpop.f32.mrb[0].mxu0
      %4532 = vdwg.mxu0
      %v4533 = vadd.f32 %v4460, %v4503
      %v4534 = vadd.f32 %v4461, %v4506
      %v4535 = vadd.f32 %v4462, %v4511
      %v4536 = vadd.f32 %v4463, %v4514
      %v4537 = vadd.f32 %v4464, %v4519
      %v4538 = vadd.f32 %v4465, %v4522
      %v4539 = vadd.f32 %v4466, %v4527
      %v4540 = vadd.f32 %v4467, %v4530
      %v4542 = vsel %vm2924, %v2847, 0
      %v4545 = vsel %vm2924, %v2848, 0
      %v4548 = vsel %vm2924, %v2849, 0
      %v4551 = vsel %vm2924, %v2850, 0
      %4553 = vmatprep.subr.bf16.mxu0 0
      %4554 = vmatpush1.bf16.msra.mxu0 %v3836
      %4555 = vmatprep.subr.bf16.mxu0 0
      %4556 = vmatpush1.bf16.msra.mxu0 %v3837
      %4557 = vmatprep.subr.bf16.mxu0 0
      %4558 = vmatpush1.bf16.msra.mxu0 %v3838
      %4559 = vmatprep.subr.bf16.mxu0 0
      %4560 = vmatpush1.bf16.msra.mxu0 %v3839
      %4561 = vmatprep.subr.bf16.mxu0 0
      %4562 = vmatpush1.bf16.msra.mxu0 0
      %4563 = vmatprep.subr.bf16.mxu0 0
      %4564 = vmatpush1.bf16.msra.mxu0 0
      %4565 = vmatprep.subr.bf16.mxu0 0
      %4566 = vmatpush1.bf16.msra.mxu0 0
      %4567 = vmatprep.subr.bf16.mxu0 0
      %4568 = vmatpush1.bf16.msra.mxu0 0
      %4569 = vmatprep.subr.bf16.mxu0 0
      %4570 = vmatpush1.bf16.msra.mxu0 0
      %4571 = vmatprep.subr.bf16.mxu0 0
      %4572 = vmatpush1.bf16.msra.mxu0 0
      %4573 = vmatprep.subr.bf16.mxu0 0
      %4574 = vmatpush1.bf16.msra.mxu0 0
      %4575 = vmatprep.subr.bf16.mxu0 0
      %4576 = vmatpush1.bf16.msra.mxu0 0
      %4577 = vmatprep.subr.bf16.mxu0 0
      %4578 = vmatpush1.bf16.msra.mxu0 0
      %4579 = vmatprep.subr.bf16.mxu0 0
      %4580 = vmatpush1.bf16.msra.mxu0 0
      %4581 = vmatprep.subr.bf16.mxu0 0
      %4582 = vmatpush1.bf16.msra.mxu0 0
      %4583 = vmatprep.subr.bf16.mxu0 0
      %4584 = vmatpush1.bf16.msra.mxu0 0
      %4585 = vmatprep.mubr.bf16.mxu0 0
      %4586 = vmatmul.mubr.bf16.gmra.mrb[0].mxu0 %v4542
      %v4587 = vpop.f32.mrb[0].mxu0
      %v4588 = vadd.f32 0.0, %v4587
      %v4589 = vpop.f32.mrb[0].mxu0
      %v4590 = vpop.f32.mrb[0].mxu0
      %v4591 = vadd.f32 0.0, %v4590
      %v4592 = vpop.f32.mrb[0].mxu0
      %4593 = vmatprep.mubr.bf16.mxu0 0
      %4594 = vmatmul.mubr.bf16.gmra.mrb[0].mxu0 %v4545
      %v4595 = vpop.f32.mrb[0].mxu0
      %v4596 = vadd.f32 0.0, %v4595
      %v4597 = vpop.f32.mrb[0].mxu0
      %v4598 = vpop.f32.mrb[0].mxu0
      %v4599 = vadd.f32 0.0, %v4598
      %v4600 = vpop.f32.mrb[0].mxu0
      %4601 = vmatprep.mubr.bf16.mxu0 0
      %4602 = vmatmul.mubr.bf16.gmra.mrb[0].mxu0 %v4548
      %v4603 = vpop.f32.mrb[0].mxu0
      %v4604 = vadd.f32 0.0, %v4603
      %v4605 = vpop.f32.mrb[0].mxu0
      %v4606 = vpop.f32.mrb[0].mxu0
      %v4607 = vadd.f32 0.0, %v4606
      %v4608 = vpop.f32.mrb[0].mxu0
      %4609 = vmatprep.mubr.bf16.mxu0 0
      %4610 = vmatmul.mubr.bf16.gmra.mrb[0].mxu0 %v4551
      %v4611 = vpop.f32.mrb[0].mxu0
      %v4612 = vadd.f32 0.0, %v4611
      %v4613 = vpop.f32.mrb[0].mxu0
      %v4614 = vpop.f32.mrb[0].mxu0
      %v4615 = vadd.f32 0.0, %v4614
      %v4616 = vpop.f32.mrb[0].mxu0
      %4617 = vdwg.mxu0
      %v4618 = vadd.f32 %v4533, %v4588
      %v4619 = vadd.f32 %v4534, %v4591
      %v4620 = vadd.f32 %v4535, %v4596
      %v4621 = vadd.f32 %v4536, %v4599
      %v4622 = vadd.f32 %v4537, %v4604
      %v4623 = vadd.f32 %v4538, %v4607
      %v4624 = vadd.f32 %v4539, %v4612
      %v4625 = vadd.f32 %v4540, %v4615
      %v4626 = vadd.f32 %v4618, %v3932
      %v4627 = vadd.f32 %v4619, %v3932
      %v4628 = vadd.f32 %v4620, %v3932
      %v4629 = vadd.f32 %v4621, %v3932
      %v4630 = vadd.f32 %v4622, %v3932
      %v4631 = vadd.f32 %v4623, %v3932
      %v4632 = vadd.f32 %v4624, %v3932
      %v4633 = vadd.f32 %v4625, %v3932
      %v4634 = vmax.f32 %v4626, 0.0
      %v4635 = vmax.f32 %v4627, 0.0
      %v4636 = vmax.f32 %v4628, 0.0
      %v4637 = vmax.f32 %v4629, 0.0
      %v4638 = vmax.f32 %v4630, 0.0
      %v4639 = vmax.f32 %v4631, 0.0
      %v4640 = vmax.f32 %v4632, 0.0
      %v4641 = vmax.f32 %v4633, 0.0
      %4642 = vmatprep.subr.bf16.mxu0 0
      %4643 = vmatpush1.bf16.msra.mxu0 %v2916
      %4644 = vmatprep.subr.bf16.mxu0 0
      %4645 = vmatpush1.bf16.msra.mxu0 %v2917
      %4646 = vmatprep.subr.bf16.mxu0 0
      %4647 = vmatpush1.bf16.msra.mxu0 %v2918
      %4648 = vmatprep.subr.bf16.mxu0 0
      %4649 = vmatpush1.bf16.msra.mxu0 %v2919
      %4650 = vmatprep.subr.bf16.mxu0 0
      %4651 = vmatpush1.bf16.msra.mxu0 0
      %4652 = vmatprep.subr.bf16.mxu0 0
      %4653 = vmatpush1.bf16.msra.mxu0 0
      %4654 = vmatprep.subr.bf16.mxu0 0
      %4655 = vmatpush1.bf16.msra.mxu0 0
      %4656 = vmatprep.subr.bf16.mxu0 0
      %4657 = vmatpush1.bf16.msra.mxu0 0
      %4658 = vmatprep.subr.bf16.mxu0 0
      %4659 = vmatpush1.bf16.msra.mxu0 0
      %4660 = vmatprep.subr.bf16.mxu0 0
      %4661 = vmatpush1.bf16.msra.mxu0 0
      %4662 = vmatprep.subr.bf16.mxu0 0
      %4663 = vmatpush1.bf16.msra.mxu0 0
      %4664 = vmatprep.subr.bf16.mxu0 0
      %4665 = vmatpush1.bf16.msra.mxu0 0
      %4666 = vmatprep.subr.bf16.mxu0 0
      %4667 = vmatpush1.bf16.msra.mxu0 0
      %4668 = vmatprep.subr.bf16.mxu0 0
      %4669 = vmatpush1.bf16.msra.mxu0 0
      %4670 = vmatprep.subr.bf16.mxu0 0
      %4671 = vmatpush1.bf16.msra.mxu0 0
      %4672 = vmatprep.subr.bf16.mxu0 0
      %4673 = vmatpush1.bf16.msra.mxu0 0
      %4674 = vmatprep.mubr.bf16.mxu0 0
      %4675 = vmatmul.mubr.bf16.gmra.mrb[0].mxu0 %v3373
      %v4676 = vpop.f32.mrb[0].mxu0
      %v4677 = vadd.f32 0.0, %v4676
      %v4678 = vpop.f32.mrb[0].mxu0
      %v4679 = vpop.f32.mrb[0].mxu0
      %v4680 = vadd.f32 0.0, %v4679
      %v4681 = vpop.f32.mrb[0].mxu0
      %4682 = vmatprep.mubr.bf16.mxu0 0
      %4683 = vmatmul.mubr.bf16.gmra.mrb[0].mxu0 %v3376
      %v4684 = vpop.f32.mrb[0].mxu0
      %v4685 = vadd.f32 0.0, %v4684
      %v4686 = vpop.f32.mrb[0].mxu0
      %v4687 = vpop.f32.mrb[0].mxu0
      %v4688 = vadd.f32 0.0, %v4687
      %v4689 = vpop.f32.mrb[0].mxu0
      %4690 = vmatprep.mubr.bf16.mxu0 0
      %4691 = vmatmul.mubr.bf16.gmra.mrb[0].mxu0 %v3379
      %v4692 = vpop.f32.mrb[0].mxu0
      %v4693 = vadd.f32 0.0, %v4692
      %v4694 = vpop.f32.mrb[0].mxu0
      %v4695 = vpop.f32.mrb[0].mxu0
      %v4696 = vadd.f32 0.0, %v4695
      %v4697 = vpop.f32.mrb[0].mxu0
      %4698 = vmatprep.mubr.bf16.mxu0 0
      %4699 = vmatmul.mubr.bf16.gmra.mrb[0].mxu0 %v3382
      %v4700 = vpop.f32.mrb[0].mxu0
      %v4701 = vadd.f32 0.0, %v4700
      %v4702 = vpop.f32.mrb[0].mxu0
      %v4703 = vpop.f32.mrb[0].mxu0
      %v4704 = vpop.f32.mrb[0].mxu0
      %4705 = vdwg.mxu0
      %4706 = vmatprep.subr.bf16.mxu0 0
      %4707 = vmatpush1.bf16.msra.mxu0 %v3018
      %4708 = vmatprep.subr.bf16.mxu0 0
      %4709 = vmatpush1.bf16.msra.mxu0 %v3019
      %4710 = vmatprep.subr.bf16.mxu0 0
      %4711 = vmatpush1.bf16.msra.mxu0 %v3020
      %4712 = vmatprep.subr.bf16.mxu0 0
      %4713 = vmatpush1.bf16.msra.mxu0 %v3021
      %4714 = vmatprep.subr.bf16.mxu0 0
      %4715 = vmatpush1.bf16.msra.mxu0 0
      %4716 = vmatprep.subr.bf16.mxu0 0
      %4717 = vmatpush1.bf16.msra.mxu0 0
      %4718 = vmatprep.subr.bf16.mxu0 0
      %4719 = vmatpush1.bf16.msra.mxu0 0
      %4720 = vmatprep.subr.bf16.mxu0 0
      %4721 = vmatpush1.bf16.msra.mxu0 0
      %4722 = vmatprep.subr.bf16.mxu0 0
      %4723 = vmatpush1.bf16.msra.mxu0 0
      %4724 = vmatprep.subr.bf16.mxu0 0
      %4725 = vmatpush1.bf16.msra.mxu0 0
      %4726 = vmatprep.subr.bf16.mxu0 0
      %4727 = vmatpush1.bf16.msra.mxu0 0
      %4728 = vmatprep.subr.bf16.mxu0 0
      %4729 = vmatpush1.bf16.msra.mxu0 0
      %4730 = vmatprep.subr.bf16.mxu0 0
      %4731 = vmatpush1.bf16.msra.mxu0 0
      %4732 = vmatprep.subr.bf16.mxu0 0
      %4733 = vmatpush1.bf16.msra.mxu0 0
      %4734 = vmatprep.subr.bf16.mxu0 0
      %4735 = vmatpush1.bf16.msra.mxu0 0
      %4736 = vmatprep.subr.bf16.mxu0 0
      %4737 = vmatpush1.bf16.msra.mxu0 0
      %4738 = vmatprep.mubr.bf16.mxu0 0
      %4739 = vmatmul.mubr.bf16.gmra.mrb[0].mxu0 %v3255
      %v4740 = vpop.f32.mrb[0].mxu0
      %v4741 = vadd.f32 %v4677, %v4740
      %v4742 = vpop.f32.mrb[0].mxu0
      %v4743 = vpop.f32.mrb[0].mxu0
      %v4744 = vadd.f32 %v4680, %v4743
      %v4745 = vpop.f32.mrb[0].mxu0
      %4746 = vmatprep.mubr.bf16.mxu0 0
      %4747 = vmatmul.mubr.bf16.gmra.mrb[0].mxu0 %v3258
      %v4748 = vpop.f32.mrb[0].mxu0
      %v4749 = vadd.f32 %v4685, %v4748
      %v4750 = vpop.f32.mrb[0].mxu0
      %v4751 = vpop.f32.mrb[0].mxu0
      %v4752 = vadd.f32 %v4688, %v4751
      %v4753 = vpop.f32.mrb[0].mxu0
      %4754 = vmatprep.mubr.bf16.mxu0 0
      %4755 = vmatmul.mubr.bf16.gmra.mrb[0].mxu0 %v3261
      %v4756 = vpop.f32.mrb[0].mxu0
      %v4757 = vadd.f32 %v4693, %v4756
      %v4758 = vpop.f32.mrb[0].mxu0
      %v4759 = vpop.f32.mrb[0].mxu0
      %v4760 = vadd.f32 %v4696, %v4759
      %v4761 = vpop.f32.mrb[0].mxu0
      %4762 = vmatprep.mubr.bf16.mxu0 0
      %4763 = vmatmul.mubr.bf16.gmra.mrb[0].mxu0 %v3264
      %v4764 = vpop.f32.mrb[0].mxu0
      %v4765 = vadd.f32 %v4701, %v4764
      %v4766 = vpop.f32.mrb[0].mxu0
      %v4767 = vpop.f32.mrb[0].mxu0
      %v4768 = vpop.f32.mrb[0].mxu0
      %4769 = vdwg.mxu0
      %4770 = vmatprep.subr.bf16.mxu0 0
      %4771 = vmatpush1.bf16.msra.mxu0 %v3128
      %4772 = vmatprep.subr.bf16.mxu0 0
      %4773 = vmatpush1.bf16.msra.mxu0 %v3129
      %4774 = vmatprep.subr.bf16.mxu0 0
      %4775 = vmatpush1.bf16.msra.mxu0 %v3130
      %4776 = vmatprep.subr.bf16.mxu0 0
      %4777 = vmatpush1.bf16.msra.mxu0 %v3131
      %4778 = vmatprep.subr.bf16.mxu0 0
      %4779 = vmatpush1.bf16.msra.mxu0 0
      %4780 = vmatprep.subr.bf16.mxu0 0
      %4781 = vmatpush1.bf16.msra.mxu0 0
      %4782 = vmatprep.subr.bf16.mxu0 0
      %4783 = vmatpush1.bf16.msra.mxu0 0
      %4784 = vmatprep.subr.bf16.mxu0 0
      %4785 = vmatpush1.bf16.msra.mxu0 0
      %4786 = vmatprep.subr.bf16.mxu0 0
      %4787 = vmatpush1.bf16.msra.mxu0 0
      %4788 = vmatprep.subr.bf16.mxu0 0
      %4789 = vmatpush1.bf16.msra.mxu0 0
      %4790 = vmatprep.subr.bf16.mxu0 0
      %4791 = vmatpush1.bf16.msra.mxu0 0
      %4792 = vmatprep.subr.bf16.mxu0 0
      %4793 = vmatpush1.bf16.msra.mxu0 0
      %4794 = vmatprep.subr.bf16.mxu0 0
      %4795 = vmatpush1.bf16.msra.mxu0 0
      %4796 = vmatprep.subr.bf16.mxu0 0
      %4797 = vmatpush1.bf16.msra.mxu0 0
      %4798 = vmatprep.subr.bf16.mxu0 0
      %4799 = vmatpush1.bf16.msra.mxu0 0
      %4800 = vmatprep.subr.bf16.mxu0 0
      %4801 = vmatpush1.bf16.msra.mxu0 0
      %4802 = vmatprep.mubr.bf16.mxu0 0
      %4803 = vmatmul.mubr.bf16.gmra.mrb[0].mxu0 %v3491
      %v4804 = vpop.f32.mrb[0].mxu0
      %v4805 = vadd.f32 0.0, %v4804
      %v4806 = vpop.f32.mrb[0].mxu0
      %v4807 = vpop.f32.mrb[0].mxu0
      %v4808 = vadd.f32 0.0, %v4807
      %v4809 = vpop.f32.mrb[0].mxu0
      %4810 = vmatprep.mubr.bf16.mxu0 0
      %4811 = vmatmul.mubr.bf16.gmra.mrb[0].mxu0 %v3494
      %v4812 = vpop.f32.mrb[0].mxu0
      %v4813 = vadd.f32 0.0, %v4812
      %v4814 = vpop.f32.mrb[0].mxu0
      %v4815 = vpop.f32.mrb[0].mxu0
      %v4816 = vadd.f32 0.0, %v4815
      %v4817 = vpop.f32.mrb[0].mxu0
      %4818 = vmatprep.mubr.bf16.mxu0 0
      %4819 = vmatmul.mubr.bf16.gmra.mrb[0].mxu0 %v3497
      %v4820 = vpop.f32.mrb[0].mxu0
      %v4821 = vadd.f32 0.0, %v4820
      %v4822 = vpop.f32.mrb[0].mxu0
      %v4823 = vpop.f32.mrb[0].mxu0
      %v4824 = vadd.f32 0.0, %v4823
      %v4825 = vpop.f32.mrb[0].mxu0
      %4826 = vmatprep.mubr.bf16.mxu0 0
      %4827 = vmatmul.mubr.bf16.gmra.mrb[0].mxu0 %v3500
      %v4828 = vpop.f32.mrb[0].mxu0
      %v4829 = vadd.f32 0.0, %v4828
      %v4830 = vpop.f32.mrb[0].mxu0
      %v4831 = vpop.f32.mrb[0].mxu0
      %v4832 = vpop.f32.mrb[0].mxu0
      %4833 = vdwg.mxu0
      %v4834 = vadd.f32 %v4741, %v4805
      %v4835 = vadd.f32 %v4744, %v4808
      %v4836 = vadd.f32 %v4749, %v4813
      %v4837 = vadd.f32 %v4752, %v4816
      %v4838 = vadd.f32 %v4757, %v4821
      %v4839 = vadd.f32 %v4760, %v4824
      %v4840 = vadd.f32 %v4765, %v4829
      %4841 = vmatprep.subr.bf16.mxu0 0
      %4842 = vmatpush1.bf16.msra.mxu0 %v3246
      %4843 = vmatprep.subr.bf16.mxu0 0
      %4844 = vmatpush1.bf16.msra.mxu0 %v3247
      %4845 = vmatprep.subr.bf16.mxu0 0
      %4846 = vmatpush1.bf16.msra.mxu0 %v3248
      %4847 = vmatprep.subr.bf16.mxu0 0
      %4848 = vmatpush1.bf16.msra.mxu0 %v3249
      %4849 = vmatprep.subr.bf16.mxu0 0
      %4850 = vmatpush1.bf16.msra.mxu0 0
      %4851 = vmatprep.subr.bf16.mxu0 0
      %4852 = vmatpush1.bf16.msra.mxu0 0
      %4853 = vmatprep.subr.bf16.mxu0 0
      %4854 = vmatpush1.bf16.msra.mxu0 0
      %4855 = vmatprep.subr.bf16.mxu0 0
      %4856 = vmatpush1.bf16.msra.mxu0 0
      %4857 = vmatprep.subr.bf16.mxu0 0
      %4858 = vmatpush1.bf16.msra.mxu0 0
      %4859 = vmatprep.subr.bf16.mxu0 0
      %4860 = vmatpush1.bf16.msra.mxu0 0
      %4861 = vmatprep.subr.bf16.mxu0 0
      %4862 = vmatpush1.bf16.msra.mxu0 0
      %4863 = vmatprep.subr.bf16.mxu0 0
      %4864 = vmatpush1.bf16.msra.mxu0 0
      %4865 = vmatprep.subr.bf16.mxu0 0
      %4866 = vmatpush1.bf16.msra.mxu0 0
      %4867 = vmatprep.subr.bf16.mxu0 0
      %4868 = vmatpush1.bf16.msra.mxu0 0
      %4869 = vmatprep.subr.bf16.mxu0 0
      %4870 = vmatpush1.bf16.msra.mxu0 0
      %4871 = vmatprep.subr.bf16.mxu0 0
      %4872 = vmatpush1.bf16.msra.mxu0 0
      %4873 = vmatprep.mubr.bf16.mxu0 0
      %4874 = vmatmul.mubr.bf16.gmra.mrb[0].mxu0 %v3609
      %v4875 = vpop.f32.mrb[0].mxu0
      %v4876 = vadd.f32 0.0, %v4875
      %v4877 = vpop.f32.mrb[0].mxu0
      %v4878 = vpop.f32.mrb[0].mxu0
      %v4879 = vadd.f32 0.0, %v4878
      %v4880 = vpop.f32.mrb[0].mxu0
      %4881 = vmatprep.mubr.bf16.mxu0 0
      %4882 = vmatmul.mubr.bf16.gmra.mrb[0].mxu0 %v3612
      %v4883 = vpop.f32.mrb[0].mxu0
      %v4884 = vadd.f32 0.0, %v4883
      %v4885 = vpop.f32.mrb[0].mxu0
      %v4886 = vpop.f32.mrb[0].mxu0
      %v4887 = vadd.f32 0.0, %v4886
      %v4888 = vpop.f32.mrb[0].mxu0
      %4889 = vmatprep.mubr.bf16.mxu0 0
      %4890 = vmatmul.mubr.bf16.gmra.mrb[0].mxu0 %v3615
      %v4891 = vpop.f32.mrb[0].mxu0
      %v4892 = vadd.f32 0.0, %v4891
      %v4893 = vpop.f32.mrb[0].mxu0
      %v4894 = vpop.f32.mrb[0].mxu0
      %v4895 = vadd.f32 0.0, %v4894
      %v4896 = vpop.f32.mrb[0].mxu0
      %4897 = vmatprep.mubr.bf16.mxu0 0
      %4898 = vmatmul.mubr.bf16.gmra.mrb[0].mxu0 %v3618
      %v4899 = vpop.f32.mrb[0].mxu0
      %v4900 = vadd.f32 0.0, %v4899
      %v4901 = vpop.f32.mrb[0].mxu0
      %v4902 = vpop.f32.mrb[0].mxu0
      %v4903 = vpop.f32.mrb[0].mxu0
      %4904 = vdwg.mxu0
      %v4905 = vadd.f32 %v4834, %v4876
      %v4906 = vadd.f32 %v4835, %v4879
      %v4907 = vadd.f32 %v4836, %v4884
      %v4908 = vadd.f32 %v4837, %v4887
      %v4909 = vadd.f32 %v4838, %v4892
      %v4910 = vadd.f32 %v4839, %v4895
      %v4911 = vadd.f32 %v4840, %v4900
      %4912 = vmatprep.subr.bf16.mxu0 0
      %4913 = vmatpush1.bf16.msra.mxu0 %v3364
      %4914 = vmatprep.subr.bf16.mxu0 0
      %4915 = vmatpush1.bf16.msra.mxu0 %v3365
      %4916 = vmatprep.subr.bf16.mxu0 0
      %4917 = vmatpush1.bf16.msra.mxu0 %v3366
      %4918 = vmatprep.subr.bf16.mxu0 0
      %4919 = vmatpush1.bf16.msra.mxu0 %v3367
      %4920 = vmatprep.subr.bf16.mxu0 0
      %4921 = vmatpush1.bf16.msra.mxu0 0
      %4922 = vmatprep.subr.bf16.mxu0 0
      %4923 = vmatpush1.bf16.msra.mxu0 0
      %4924 = vmatprep.subr.bf16.mxu0 0
      %4925 = vmatpush1.bf16.msra.mxu0 0
      %4926 = vmatprep.subr.bf16.mxu0 0
      %4927 = vmatpush1.bf16.msra.mxu0 0
      %4928 = vmatprep.subr.bf16.mxu0 0
      %4929 = vmatpush1.bf16.msra.mxu0 0
      %4930 = vmatprep.subr.bf16.mxu0 0
      %4931 = vmatpush1.bf16.msra.mxu0 0
      %4932 = vmatprep.subr.bf16.mxu0 0
      %4933 = vmatpush1.bf16.msra.mxu0 0
      %4934 = vmatprep.subr.bf16.mxu0 0
      %4935 = vmatpush1.bf16.msra.mxu0 0
      %4936 = vmatprep.subr.bf16.mxu0 0
      %4937 = vmatpush1.bf16.msra.mxu0 0
      %4938 = vmatprep.subr.bf16.mxu0 0
      %4939 = vmatpush1.bf16.msra.mxu0 0
      %4940 = vmatprep.subr.bf16.mxu0 0
      %4941 = vmatpush1.bf16.msra.mxu0 0
      %4942 = vmatprep.subr.bf16.mxu0 0
      %4943 = vmatpush1.bf16.msra.mxu0 0
      %4944 = vmatprep.mubr.bf16.mxu0 0
      %4945 = vmatmul.mubr.bf16.gmra.mrb[0].mxu0 %v3727
      %v4946 = vpop.f32.mrb[0].mxu0
      %v4947 = vadd.f32 0.0, %v4946
      %v4948 = vpop.f32.mrb[0].mxu0
      %v4949 = vpop.f32.mrb[0].mxu0
      %v4950 = vadd.f32 0.0, %v4949
      %v4951 = vpop.f32.mrb[0].mxu0
      %4952 = vmatprep.mubr.bf16.mxu0 0
      %4953 = vmatmul.mubr.bf16.gmra.mrb[0].mxu0 %v3730
      %v4954 = vpop.f32.mrb[0].mxu0
      %v4955 = vadd.f32 0.0, %v4954
      %v4956 = vpop.f32.mrb[0].mxu0
      %v4957 = vpop.f32.mrb[0].mxu0
      %v4958 = vadd.f32 0.0, %v4957
      %v4959 = vpop.f32.mrb[0].mxu0
      %4960 = vmatprep.mubr.bf16.mxu0 0
      %4961 = vmatmul.mubr.bf16.gmra.mrb[0].mxu0 %v3733
      %v4962 = vpop.f32.mrb[0].mxu0
      %v4963 = vadd.f32 0.0, %v4962
      %v4964 = vpop.f32.mrb[0].mxu0
      %v4965 = vpop.f32.mrb[0].mxu0
      %v4966 = vadd.f32 0.0, %v4965
      %v4967 = vpop.f32.mrb[0].mxu0
      %4968 = vmatprep.mubr.bf16.mxu0 0
      %4969 = vmatmul.mubr.bf16.gmra.mrb[0].mxu0 %v3736
      %v4970 = vpop.f32.mrb[0].mxu0
      %v4971 = vadd.f32 0.0, %v4970
      %v4972 = vpop.f32.mrb[0].mxu0
      %v4973 = vpop.f32.mrb[0].mxu0
      %v4974 = vpop.f32.mrb[0].mxu0
      %4975 = vdwg.mxu0
      %v4976 = vadd.f32 %v4905, %v4947
      %v4977 = vadd.f32 %v4906, %v4950
      %v4978 = vadd.f32 %v4907, %v4955
      %v4979 = vadd.f32 %v4908, %v4958
      %v4980 = vadd.f32 %v4909, %v4963
      %v4981 = vadd.f32 %v4910, %v4966
      %v4982 = vadd.f32 %v4911, %v4971
      %4983 = vmatprep.subr.bf16.mxu0 0
      %4984 = vmatpush1.bf16.msra.mxu0 %v3482
      %4985 = vmatprep.subr.bf16.mxu0 0
      %4986 = vmatpush1.bf16.msra.mxu0 %v3483
      %4987 = vmatprep.subr.bf16.mxu0 0
      %4988 = vmatpush1.bf16.msra.mxu0 %v3484
      %4989 = vmatprep.subr.bf16.mxu0 0
      %4990 = vmatpush1.bf16.msra.mxu0 %v3485
      %4991 = vmatprep.subr.bf16.mxu0 0
      %4992 = vmatpush1.bf16.msra.mxu0 0
      %4993 = vmatprep.subr.bf16.mxu0 0
      %4994 = vmatpush1.bf16.msra.mxu0 0
      %4995 = vmatprep.subr.bf16.mxu0 0
      %4996 = vmatpush1.bf16.msra.mxu0 0
      %4997 = vmatprep.subr.bf16.mxu0 0
      %4998 = vmatpush1.bf16.msra.mxu0 0
      %4999 = vmatprep.subr.bf16.mxu0 0
      %5000 = vmatpush1.bf16.msra.mxu0 0
      %5001 = vmatprep.subr.bf16.mxu0 0
      %5002 = vmatpush1.bf16.msra.mxu0 0
      %5003 = vmatprep.subr.bf16.mxu0 0
      %5004 = vmatpush1.bf16.msra.mxu0 0
      %5005 = vmatprep.subr.bf16.mxu0 0
      %5006 = vmatpush1.bf16.msra.mxu0 0
      %5007 = vmatprep.subr.bf16.mxu0 0
      %5008 = vmatpush1.bf16.msra.mxu0 0
      %5009 = vmatprep.subr.bf16.mxu0 0
      %5010 = vmatpush1.bf16.msra.mxu0 0
      %5011 = vmatprep.subr.bf16.mxu0 0
      %5012 = vmatpush1.bf16.msra.mxu0 0
      %5013 = vmatprep.subr.bf16.mxu0 0
      %5014 = vmatpush1.bf16.msra.mxu0 0
      %5015 = vmatprep.mubr.bf16.mxu0 0
      %5016 = vmatmul.mubr.bf16.gmra.mrb[0].mxu0 %v3845
      %v5017 = vpop.f32.mrb[0].mxu0
      %v5018 = vadd.f32 0.0, %v5017
      %v5019 = vpop.f32.mrb[0].mxu0
      %v5020 = vpop.f32.mrb[0].mxu0
      %v5021 = vadd.f32 0.0, %v5020
      %v5022 = vpop.f32.mrb[0].mxu0
      %5023 = vmatprep.mubr.bf16.mxu0 0
      %5024 = vmatmul.mubr.bf16.gmra.mrb[0].mxu0 %v3848
      %v5025 = vpop.f32.mrb[0].mxu0
      %v5026 = vadd.f32 0.0, %v5025
      %v5027 = vpop.f32.mrb[0].mxu0
      %v5028 = vpop.f32.mrb[0].mxu0
      %v5029 = vadd.f32 0.0, %v5028
      %v5030 = vpop.f32.mrb[0].mxu0
      %5031 = vmatprep.mubr.bf16.mxu0 0
      %5032 = vmatmul.mubr.bf16.gmra.mrb[0].mxu0 %v3851
      %v5033 = vpop.f32.mrb[0].mxu0
      %v5034 = vadd.f32 0.0, %v5033
      %v5035 = vpop.f32.mrb[0].mxu0
      %v5036 = vpop.f32.mrb[0].mxu0
      %v5037 = vadd.f32 0.0, %v5036
      %v5038 = vpop.f32.mrb[0].mxu0
      %5039 = vmatprep.mubr.bf16.mxu0 0
      %5040 = vmatmul.mubr.bf16.gmra.mrb[0].mxu0 %v3854
      %v5041 = vpop.f32.mrb[0].mxu0
      %v5042 = vadd.f32 0.0, %v5041
      %v5043 = vpop.f32.mrb[0].mxu0
      %v5044 = vpop.f32.mrb[0].mxu0
      %v5045 = vpop.f32.mrb[0].mxu0
      %5046 = vdwg.mxu0
      %v5047 = vadd.f32 %v4976, %v5018
      %v5048 = vadd.f32 %v4977, %v5021
      %v5049 = vadd.f32 %v4978, %v5026
      %v5050 = vadd.f32 %v4979, %v5029
      %v5051 = vadd.f32 %v4980, %v5034
      %v5052 = vadd.f32 %v4981, %v5037
      %v5053 = vadd.f32 %v4982, %v5042
      %v5055 = vsel %vm2924, %v2859, 0
      %v5058 = vsel %vm2924, %v2860, 0
      %v5061 = vsel %vm2924, %v2861, 0
      %v5064 = vsel %vm2924, %v2862, 0
      %5066 = vmatprep.subr.bf16.mxu0 0
      %5067 = vmatpush1.bf16.msra.mxu0 %v3600
      %5068 = vmatprep.subr.bf16.mxu0 0
      %5069 = vmatpush1.bf16.msra.mxu0 %v3601
      %5070 = vmatprep.subr.bf16.mxu0 0
      %5071 = vmatpush1.bf16.msra.mxu0 %v3602
      %5072 = vmatprep.subr.bf16.mxu0 0
      %5073 = vmatpush1.bf16.msra.mxu0 %v3603
      %5074 = vmatprep.subr.bf16.mxu0 0
      %5075 = vmatpush1.bf16.msra.mxu0 0
      %5076 = vmatprep.subr.bf16.mxu0 0
      %5077 = vmatpush1.bf16.msra.mxu0 0
      %5078 = vmatprep.subr.bf16.mxu0 0
      %5079 = vmatpush1.bf16.msra.mxu0 0
      %5080 = vmatprep.subr.bf16.mxu0 0
      %5081 = vmatpush1.bf16.msra.mxu0 0
      %5082 = vmatprep.subr.bf16.mxu0 0
      %5083 = vmatpush1.bf16.msra.mxu0 0
      %5084 = vmatprep.subr.bf16.mxu0 0
      %5085 = vmatpush1.bf16.msra.mxu0 0
      %5086 = vmatprep.subr.bf16.mxu0 0
      %5087 = vmatpush1.bf16.msra.mxu0 0
      %5088 = vmatprep.subr.bf16.mxu0 0
      %5089 = vmatpush1.bf16.msra.mxu0 0
      %5090 = vmatprep.subr.bf16.mxu0 0
      %5091 = vmatpush1.bf16.msra.mxu0 0
      %5092 = vmatprep.subr.bf16.mxu0 0
      %5093 = vmatpush1.bf16.msra.mxu0 0
      %5094 = vmatprep.subr.bf16.mxu0 0
      %5095 = vmatpush1.bf16.msra.mxu0 0
      %5096 = vmatprep.subr.bf16.mxu0 0
      %5097 = vmatpush1.bf16.msra.mxu0 0
      %5098 = vmatprep.mubr.bf16.mxu0 0
      %5099 = vmatmul.mubr.bf16.gmra.mrb[0].mxu0 %v5055
      %v5100 = vpop.f32.mrb[0].mxu0
      %v5101 = vadd.f32 0.0, %v5100
      %v5102 = vpop.f32.mrb[0].mxu0
      %v5103 = vpop.f32.mrb[0].mxu0
      %v5104 = vadd.f32 0.0, %v5103
      %v5105 = vpop.f32.mrb[0].mxu0
      %5106 = vmatprep.mubr.bf16.mxu0 0
      %5107 = vmatmul.mubr.bf16.gmra.mrb[0].mxu0 %v5058
      %v5108 = vpop.f32.mrb[0].mxu0
      %v5109 = vadd.f32 0.0, %v5108
      %v5110 = vpop.f32.mrb[0].mxu0
      %v5111 = vpop.f32.mrb[0].mxu0
      %v5112 = vadd.f32 0.0, %v5111
      %v5113 = vpop.f32.mrb[0].mxu0
      %5114 = vmatprep.mubr.bf16.mxu0 0
      %5115 = vmatmul.mubr.bf16.gmra.mrb[0].mxu0 %v5061
      %v5116 = vpop.f32.mrb[0].mxu0
      %v5117 = vadd.f32 0.0, %v5116
      %v5118 = vpop.f32.mrb[0].mxu0
      %v5119 = vpop.f32.mrb[0].mxu0
      %v5120 = vadd.f32 0.0, %v5119
      %v5121 = vpop.f32.mrb[0].mxu0
      %5122 = vmatprep.mubr.bf16.mxu0 0
      %5123 = vmatmul.mubr.bf16.gmra.mrb[0].mxu0 %v5064
      %v5124 = vpop.f32.mrb[0].mxu0
      %v5125 = vadd.f32 0.0, %v5124
      %v5126 = vpop.f32.mrb[0].mxu0
      %v5127 = vpop.f32.mrb[0].mxu0
      %v5128 = vpop.f32.mrb[0].mxu0
      %5129 = vdwg.mxu0
      %v5130 = vadd.f32 %v5047, %v5101
      %v5131 = vadd.f32 %v5048, %v5104
      %v5132 = vadd.f32 %v5049, %v5109
      %v5133 = vadd.f32 %v5050, %v5112
      %v5134 = vadd.f32 %v5051, %v5117
      %v5135 = vadd.f32 %v5052, %v5120
      %v5136 = vadd.f32 %v5053, %v5125
      %v5138 = vsel %vm2924, %v2875, 0
      %v5141 = vsel %vm2924, %v2876, 0
      %v5144 = vsel %vm2924, %v2877, 0
      %v5147 = vsel %vm2924, %v2878, 0
      %5149 = vmatprep.subr.bf16.mxu0 0
      %5150 = vmatpush1.bf16.msra.mxu0 %v3718
      %5151 = vmatprep.subr.bf16.mxu0 0
      %5152 = vmatpush1.bf16.msra.mxu0 %v3719
      %5153 = vmatprep.subr.bf16.mxu0 0
      %5154 = vmatpush1.bf16.msra.mxu0 %v3720
      %5155 = vmatprep.subr.bf16.mxu0 0
      %5156 = vmatpush1.bf16.msra.mxu0 %v3721
      %5157 = vmatprep.subr.bf16.mxu0 0
      %5158 = vmatpush1.bf16.msra.mxu0 0
      %5159 = vmatprep.subr.bf16.mxu0 0
      %5160 = vmatpush1.bf16.msra.mxu0 0
      %5161 = vmatprep.subr.bf16.mxu0 0
      %5162 = vmatpush1.bf16.msra.mxu0 0
      %5163 = vmatprep.subr.bf16.mxu0 0
      %5164 = vmatpush1.bf16.msra.mxu0 0
      %5165 = vmatprep.subr.bf16.mxu0 0
      %5166 = vmatpush1.bf16.msra.mxu0 0
      %5167 = vmatprep.subr.bf16.mxu0 0
      %5168 = vmatpush1.bf16.msra.mxu0 0
      %5169 = vmatprep.subr.bf16.mxu0 0
      %5170 = vmatpush1.bf16.msra.mxu0 0
      %5171 = vmatprep.subr.bf16.mxu0 0
      %5172 = vmatpush1.bf16.msra.mxu0 0
      %5173 = vmatprep.subr.bf16.mxu0 0
      %5174 = vmatpush1.bf16.msra.mxu0 0
      %5175 = vmatprep.subr.bf16.mxu0 0
      %5176 = vmatpush1.bf16.msra.mxu0 0
      %5177 = vmatprep.subr.bf16.mxu0 0
      %5178 = vmatpush1.bf16.msra.mxu0 0
      %5179 = vmatprep.subr.bf16.mxu0 0
      %5180 = vmatpush1.bf16.msra.mxu0 0
      %5181 = vmatprep.mubr.bf16.mxu0 0
      %5182 = vmatmul.mubr.bf16.gmra.mrb[0].mxu0 %v5138
      %v5183 = vpop.f32.mrb[0].mxu0
      %v5184 = vadd.f32 0.0, %v5183
      %v5185 = vpop.f32.mrb[0].mxu0
      %v5186 = vpop.f32.mrb[0].mxu0
      %v5187 = vadd.f32 0.0, %v5186
      %v5188 = vpop.f32.mrb[0].mxu0
      %5189 = vmatprep.mubr.bf16.mxu0 0
      %5190 = vmatmul.mubr.bf16.gmra.mrb[0].mxu0 %v5141
      %v5191 = vpop.f32.mrb[0].mxu0
      %v5192 = vadd.f32 0.0, %v5191
      %v5193 = vpop.f32.mrb[0].mxu0
      %v5194 = vpop.f32.mrb[0].mxu0
      %v5195 = vadd.f32 0.0, %v5194
      %v5196 = vpop.f32.mrb[0].mxu0
      %5197 = vmatprep.mubr.bf16.mxu0 0
      %5198 = vmatmul.mubr.bf16.gmra.mrb[0].mxu0 %v5144
      %v5199 = vpop.f32.mrb[0].mxu0
      %v5200 = vadd.f32 0.0, %v5199
      %v5201 = vpop.f32.mrb[0].mxu0
      %v5202 = vpop.f32.mrb[0].mxu0
      %v5203 = vadd.f32 0.0, %v5202
      %v5204 = vpop.f32.mrb[0].mxu0
      %5205 = vmatprep.mubr.bf16.mxu0 0
      %5206 = vmatmul.mubr.bf16.gmra.mrb[0].mxu0 %v5147
      %v5207 = vpop.f32.mrb[0].mxu0
      %v5208 = vadd.f32 0.0, %v5207
      %v5209 = vpop.f32.mrb[0].mxu0
      %v5210 = vpop.f32.mrb[0].mxu0
      %v5211 = vpop.f32.mrb[0].mxu0
      %5212 = vdwg.mxu0
      %v5213 = vadd.f32 %v5130, %v5184
      %v5214 = vadd.f32 %v5131, %v5187
      %v5215 = vadd.f32 %v5132, %v5192
      %v5216 = vadd.f32 %v5133, %v5195
      %v5217 = vadd.f32 %v5134, %v5200
      %v5218 = vadd.f32 %v5135, %v5203
      %v5219 = vadd.f32 %v5136, %v5208
      %v5221 = vsel %vm2924, %v2863, 0
      %v5224 = vsel %vm2924, %v2864, 0
      %v5227 = vsel %vm2924, %v2865, 0
      %v5230 = vsel %vm2924, %v2866, 0
      %5232 = vmatprep.subr.bf16.mxu0 0
      %5233 = vmatpush1.bf16.msra.mxu0 %v3836
      %5234 = vmatprep.subr.bf16.mxu0 0
      %5235 = vmatpush1.bf16.msra.mxu0 %v3837
      %5236 = vmatprep.subr.bf16.mxu0 0
      %5237 = vmatpush1.bf16.msra.mxu0 %v3838
      %5238 = vmatprep.subr.bf16.mxu0 0
      %5239 = vmatpush1.bf16.msra.mxu0 %v3839
      %5240 = vmatprep.subr.bf16.mxu0 0
      %5241 = vmatpush1.bf16.msra.mxu0 0
      %5242 = vmatprep.subr.bf16.mxu0 0
      %5243 = vmatpush1.bf16.msra.mxu0 0
      %5244 = vmatprep.subr.bf16.mxu0 0
      %5245 = vmatpush1.bf16.msra.mxu0 0
      %5246 = vmatprep.subr.bf16.mxu0 0
      %5247 = vmatpush1.bf16.msra.mxu0 0
      %5248 = vmatprep.subr.bf16.mxu0 0
      %5249 = vmatpush1.bf16.msra.mxu0 0
      %5250 = vmatprep.subr.bf16.mxu0 0
      %5251 = vmatpush1.bf16.msra.mxu0 0
      %5252 = vmatprep.subr.bf16.mxu0 0
      %5253 = vmatpush1.bf16.msra.mxu0 0
      %5254 = vmatprep.subr.bf16.mxu0 0
      %5255 = vmatpush1.bf16.msra.mxu0 0
      %5256 = vmatprep.subr.bf16.mxu0 0
      %5257 = vmatpush1.bf16.msra.mxu0 0
      %5258 = vmatprep.subr.bf16.mxu0 0
      %5259 = vmatpush1.bf16.msra.mxu0 0
      %5260 = vmatprep.subr.bf16.mxu0 0
      %5261 = vmatpush1.bf16.msra.mxu0 0
      %5262 = vmatprep.subr.bf16.mxu0 0
      %5263 = vmatpush1.bf16.msra.mxu0 0
      %5264 = vmatprep.mubr.bf16.mxu0 0
      %5265 = vmatmul.mubr.bf16.gmra.mrb[0].mxu0 %v5221
      %v5266 = vpop.f32.mrb[0].mxu0
      %v5267 = vadd.f32 0.0, %v5266
      %v5268 = vpop.f32.mrb[0].mxu0
      %v5269 = vpop.f32.mrb[0].mxu0
      %v5270 = vadd.f32 0.0, %v5269
      %v5271 = vpop.f32.mrb[0].mxu0
      %5272 = vmatprep.mubr.bf16.mxu0 0
      %5273 = vmatmul.mubr.bf16.gmra.mrb[0].mxu0 %v5224
      %v5274 = vpop.f32.mrb[0].mxu0
      %v5275 = vadd.f32 0.0, %v5274
      %v5276 = vpop.f32.mrb[0].mxu0
      %v5277 = vpop.f32.mrb[0].mxu0
      %v5278 = vadd.f32 0.0, %v5277
      %v5279 = vpop.f32.mrb[0].mxu0
      %5280 = vmatprep.mubr.bf16.mxu0 0
      %5281 = vmatmul.mubr.bf16.gmra.mrb[0].mxu0 %v5227
      %v5282 = vpop.f32.mrb[0].mxu0
      %v5283 = vadd.f32 0.0, %v5282
      %v5284 = vpop.f32.mrb[0].mxu0
      %v5285 = vpop.f32.mrb[0].mxu0
      %v5286 = vadd.f32 0.0, %v5285
      %v5287 = vpop.f32.mrb[0].mxu0
      %5288 = vmatprep.mubr.bf16.mxu0 0
      %5289 = vmatmul.mubr.bf16.gmra.mrb[0].mxu0 %v5230
      %v5290 = vpop.f32.mrb[0].mxu0
      %v5291 = vadd.f32 0.0, %v5290
      %v5292 = vpop.f32.mrb[0].mxu0
      %v5293 = vpop.f32.mrb[0].mxu0
      %v5294 = vpop.f32.mrb[0].mxu0
      %5295 = vdwg.mxu0
      %v5296 = vadd.f32 %v5213, %v5267
      %v5297 = vadd.f32 %v5214, %v5270
      %v5298 = vadd.f32 %v5215, %v5275
      %v5299 = vadd.f32 %v5216, %v5278
      %v5300 = vadd.f32 %v5217, %v5283
      %v5301 = vadd.f32 %v5218, %v5286
      %v5302 = vadd.f32 %v5219, %v5291
      %v5303 = vadd.f32 %v5296, %v3932
      %v5304 = vadd.f32 %v5297, %v3932
      %v5305 = vadd.f32 %v5298, %v3932
      %v5306 = vadd.f32 %v5299, %v3932
      %v5307 = vadd.f32 %v5300, %v3932
      %v5308 = vadd.f32 %v5301, %v3932
      %v5309 = vadd.f32 %v5302, %v3932
      %v5310 = vmax.f32 %v5303, 0.0
      %v5311 = vmax.f32 %v5304, 0.0
      %v5312 = vmax.f32 %v5305, 0.0
      %v5313 = vmax.f32 %v5306, 0.0
      %v5314 = vmax.f32 %v5307, 0.0
      %v5315 = vmax.f32 %v5308, 0.0
      %v5316 = vmax.f32 %v5309, 0.0
      %5317 = vmatprep.subr.bf16.mxu0 0
      %5318 = vmatpush1.bf16.msra.mxu0 %v2916
      %5319 = vmatprep.subr.bf16.mxu0 0
      %5320 = vmatpush1.bf16.msra.mxu0 %v2917
      %5321 = vmatprep.subr.bf16.mxu0 0
      %5322 = vmatpush1.bf16.msra.mxu0 %v2918
      %5323 = vmatprep.subr.bf16.mxu0 0
      %5324 = vmatpush1.bf16.msra.mxu0 %v2919
      %5325 = vmatprep.subr.bf16.mxu0 0
      %5326 = vmatpush1.bf16.msra.mxu0 0
      %5327 = vmatprep.subr.bf16.mxu0 0
      %5328 = vmatpush1.bf16.msra.mxu0 0
      %5329 = vmatprep.subr.bf16.mxu0 0
      %5330 = vmatpush1.bf16.msra.mxu0 0
      %5331 = vmatprep.subr.bf16.mxu0 0
      %5332 = vmatpush1.bf16.msra.mxu0 0
      %5333 = vmatprep.subr.bf16.mxu0 0
      %5334 = vmatpush1.bf16.msra.mxu0 0
      %5335 = vmatprep.subr.bf16.mxu0 0
      %5336 = vmatpush1.bf16.msra.mxu0 0
      %5337 = vmatprep.subr.bf16.mxu0 0
      %5338 = vmatpush1.bf16.msra.mxu0 0
      %5339 = vmatprep.subr.bf16.mxu0 0
      %5340 = vmatpush1.bf16.msra.mxu0 0
      %5341 = vmatprep.subr.bf16.mxu0 0
      %5342 = vmatpush1.bf16.msra.mxu0 0
      %5343 = vmatprep.subr.bf16.mxu0 0
      %5344 = vmatpush1.bf16.msra.mxu0 0
      %5345 = vmatprep.subr.bf16.mxu0 0
      %5346 = vmatpush1.bf16.msra.mxu0 0
      %5347 = vmatprep.subr.bf16.mxu0 0
      %5348 = vmatpush1.bf16.msra.mxu0 0
      %5349 = vmatprep.mubr.bf16.mxu0 0
      %5350 = vmatmul.mubr.bf16.gmra.mrb[0].mxu0 %v3491
      %v5351 = vpop.f32.mrb[0].mxu0
      %v5352 = vadd.f32 0.0, %v5351
      %v5353 = vpop.f32.mrb[0].mxu0
      %v5354 = vpop.f32.mrb[0].mxu0
      %v5355 = vadd.f32 0.0, %v5354
      %v5356 = vpop.f32.mrb[0].mxu0
      %5357 = vmatprep.mubr.bf16.mxu0 0
      %5358 = vmatmul.mubr.bf16.gmra.mrb[0].mxu0 %v3494
      %v5359 = vpop.f32.mrb[0].mxu0
      %v5360 = vadd.f32 0.0, %v5359
      %v5361 = vpop.f32.mrb[0].mxu0
      %v5362 = vpop.f32.mrb[0].mxu0
      %v5363 = vadd.f32 0.0, %v5362
      %v5364 = vpop.f32.mrb[0].mxu0
      %5365 = vmatprep.mubr.bf16.mxu0 0
      %5366 = vmatmul.mubr.bf16.gmra.mrb[0].mxu0 %v3497
      %v5367 = vpop.f32.mrb[0].mxu0
      %v5368 = vadd.f32 0.0, %v5367
      %v5369 = vpop.f32.mrb[0].mxu0
      %v5370 = vpop.f32.mrb[0].mxu0
      %v5371 = vadd.f32 0.0, %v5370
      %v5372 = vpop.f32.mrb[0].mxu0
      %5373 = vmatprep.mubr.bf16.mxu0 0
      %5374 = vmatmul.mubr.bf16.gmra.mrb[0].mxu0 %v3500
      %v5375 = vpop.f32.mrb[0].mxu0
      %v5376 = vadd.f32 0.0, %v5375
      %v5377 = vpop.f32.mrb[0].mxu0
      %v5378 = vpop.f32.mrb[0].mxu0
      %v5379 = vpop.f32.mrb[0].mxu0
      %5380 = vdwg.mxu0
      %5381 = vmatprep.subr.bf16.mxu0 0
      %5382 = vmatpush1.bf16.msra.mxu0 %v3018
      %5383 = vmatprep.subr.bf16.mxu0 0
      %5384 = vmatpush1.bf16.msra.mxu0 %v3019
      %5385 = vmatprep.subr.bf16.mxu0 0
      %5386 = vmatpush1.bf16.msra.mxu0 %v3020
      %5387 = vmatprep.subr.bf16.mxu0 0
      %5388 = vmatpush1.bf16.msra.mxu0 %v3021
      %5389 = vmatprep.subr.bf16.mxu0 0
      %5390 = vmatpush1.bf16.msra.mxu0 0
      %5391 = vmatprep.subr.bf16.mxu0 0
      %5392 = vmatpush1.bf16.msra.mxu0 0
      %5393 = vmatprep.subr.bf16.mxu0 0
      %5394 = vmatpush1.bf16.msra.mxu0 0
      %5395 = vmatprep.subr.bf16.mxu0 0
      %5396 = vmatpush1.bf16.msra.mxu0 0
      %5397 = vmatprep.subr.bf16.mxu0 0
      %5398 = vmatpush1.bf16.msra.mxu0 0
      %5399 = vmatprep.subr.bf16.mxu0 0
      %5400 = vmatpush1.bf16.msra.mxu0 0
      %5401 = vmatprep.subr.bf16.mxu0 0
      %5402 = vmatpush1.bf16.msra.mxu0 0
      %5403 = vmatprep.subr.bf16.mxu0 0
      %5404 = vmatpush1.bf16.msra.mxu0 0
      %5405 = vmatprep.subr.bf16.mxu0 0
      %5406 = vmatpush1.bf16.msra.mxu0 0
      %5407 = vmatprep.subr.bf16.mxu0 0
      %5408 = vmatpush1.bf16.msra.mxu0 0
      %5409 = vmatprep.subr.bf16.mxu0 0
      %5410 = vmatpush1.bf16.msra.mxu0 0
      %5411 = vmatprep.subr.bf16.mxu0 0
      %5412 = vmatpush1.bf16.msra.mxu0 0
      %5413 = vmatprep.mubr.bf16.mxu0 0
      %5414 = vmatmul.mubr.bf16.gmra.mrb[0].mxu0 %v3373
      %v5415 = vpop.f32.mrb[0].mxu0
      %v5416 = vadd.f32 %v5352, %v5415
      %v5417 = vpop.f32.mrb[0].mxu0
      %v5418 = vpop.f32.mrb[0].mxu0
      %v5419 = vadd.f32 %v5355, %v5418
      %v5420 = vpop.f32.mrb[0].mxu0
      %5421 = vmatprep.mubr.bf16.mxu0 0
      %5422 = vmatmul.mubr.bf16.gmra.mrb[0].mxu0 %v3376
      %v5423 = vpop.f32.mrb[0].mxu0
      %v5424 = vadd.f32 %v5360, %v5423
      %v5425 = vpop.f32.mrb[0].mxu0
      %v5426 = vpop.f32.mrb[0].mxu0
      %v5427 = vadd.f32 %v5363, %v5426
      %v5428 = vpop.f32.mrb[0].mxu0
      %5429 = vmatprep.mubr.bf16.mxu0 0
      %5430 = vmatmul.mubr.bf16.gmra.mrb[0].mxu0 %v3379
      %v5431 = vpop.f32.mrb[0].mxu0
      %v5432 = vadd.f32 %v5368, %v5431
      %v5433 = vpop.f32.mrb[0].mxu0
      %v5434 = vpop.f32.mrb[0].mxu0
      %v5435 = vadd.f32 %v5371, %v5434
      %v5436 = vpop.f32.mrb[0].mxu0
      %5437 = vmatprep.mubr.bf16.mxu0 0
      %5438 = vmatmul.mubr.bf16.gmra.mrb[0].mxu0 %v3382
      %v5439 = vpop.f32.mrb[0].mxu0
      %v5440 = vadd.f32 %v5376, %v5439
      %v5441 = vpop.f32.mrb[0].mxu0
      %v5442 = vpop.f32.mrb[0].mxu0
      %v5443 = vpop.f32.mrb[0].mxu0
      %5444 = vdwg.mxu0
      %5445 = vmatprep.subr.bf16.mxu0 0
      %5446 = vmatpush1.bf16.msra.mxu0 %v3128
      %5447 = vmatprep.subr.bf16.mxu0 0
      %5448 = vmatpush1.bf16.msra.mxu0 %v3129
      %5449 = vmatprep.subr.bf16.mxu0 0
      %5450 = vmatpush1.bf16.msra.mxu0 %v3130
      %5451 = vmatprep.subr.bf16.mxu0 0
      %5452 = vmatpush1.bf16.msra.mxu0 %v3131
      %5453 = vmatprep.subr.bf16.mxu0 0
      %5454 = vmatpush1.bf16.msra.mxu0 0
      %5455 = vmatprep.subr.bf16.mxu0 0
      %5456 = vmatpush1.bf16.msra.mxu0 0
      %5457 = vmatprep.subr.bf16.mxu0 0
      %5458 = vmatpush1.bf16.msra.mxu0 0
      %5459 = vmatprep.subr.bf16.mxu0 0
      %5460 = vmatpush1.bf16.msra.mxu0 0
      %5461 = vmatprep.subr.bf16.mxu0 0
      %5462 = vmatpush1.bf16.msra.mxu0 0
      %5463 = vmatprep.subr.bf16.mxu0 0
      %5464 = vmatpush1.bf16.msra.mxu0 0
      %5465 = vmatprep.subr.bf16.mxu0 0
      %5466 = vmatpush1.bf16.msra.mxu0 0
      %5467 = vmatprep.subr.bf16.mxu0 0
      %5468 = vmatpush1.bf16.msra.mxu0 0
      %5469 = vmatprep.subr.bf16.mxu0 0
      %5470 = vmatpush1.bf16.msra.mxu0 0
      %5471 = vmatprep.subr.bf16.mxu0 0
      %5472 = vmatpush1.bf16.msra.mxu0 0
      %5473 = vmatprep.subr.bf16.mxu0 0
      %5474 = vmatpush1.bf16.msra.mxu0 0
      %5475 = vmatprep.subr.bf16.mxu0 0
      %5476 = vmatpush1.bf16.msra.mxu0 0
      %5477 = vmatprep.mubr.bf16.mxu0 0
      %5478 = vmatmul.mubr.bf16.gmra.mrb[0].mxu0 %v4311
      %v5479 = vpop.f32.mrb[0].mxu0
      %v5480 = vadd.f32 0.0, %v5479
      %v5481 = vpop.f32.mrb[0].mxu0
      %v5482 = vpop.f32.mrb[0].mxu0
      %v5483 = vadd.f32 0.0, %v5482
      %v5484 = vpop.f32.mrb[0].mxu0
      %5485 = vmatprep.mubr.bf16.mxu0 0
      %5486 = vmatmul.mubr.bf16.gmra.mrb[0].mxu0 %v4314
      %v5487 = vpop.f32.mrb[0].mxu0
      %v5488 = vadd.f32 0.0, %v5487
      %v5489 = vpop.f32.mrb[0].mxu0
      %v5490 = vpop.f32.mrb[0].mxu0
      %v5491 = vadd.f32 0.0, %v5490
      %v5492 = vpop.f32.mrb[0].mxu0
      %5493 = vmatprep.mubr.bf16.mxu0 0
      %5494 = vmatmul.mubr.bf16.gmra.mrb[0].mxu0 %v4317
      %v5495 = vpop.f32.mrb[0].mxu0
      %v5496 = vadd.f32 0.0, %v5495
      %v5497 = vpop.f32.mrb[0].mxu0
      %v5498 = vpop.f32.mrb[0].mxu0
      %v5499 = vadd.f32 0.0, %v5498
      %v5500 = vpop.f32.mrb[0].mxu0
      %5501 = vmatprep.mubr.bf16.mxu0 0
      %5502 = vmatmul.mubr.bf16.gmra.mrb[0].mxu0 %v4320
      %v5503 = vpop.f32.mrb[0].mxu0
      %v5504 = vadd.f32 0.0, %v5503
      %v5505 = vpop.f32.mrb[0].mxu0
      %v5506 = vpop.f32.mrb[0].mxu0
      %v5507 = vpop.f32.mrb[0].mxu0
      %5508 = vdwg.mxu0
      %v5509 = vadd.f32 %v5416, %v5480
      %v5510 = vadd.f32 %v5419, %v5483
      %v5511 = vadd.f32 %v5424, %v5488
      %v5512 = vadd.f32 %v5427, %v5491
      %v5513 = vadd.f32 %v5432, %v5496
      %v5514 = vadd.f32 %v5435, %v5499
      %v5515 = vadd.f32 %v5440, %v5504
      %5516 = vmatprep.subr.bf16.mxu0 0
      %5517 = vmatpush1.bf16.msra.mxu0 %v3246
      %5518 = vmatprep.subr.bf16.mxu0 0
      %5519 = vmatpush1.bf16.msra.mxu0 %v3247
      %5520 = vmatprep.subr.bf16.mxu0 0
      %5521 = vmatpush1.bf16.msra.mxu0 %v3248
      %5522 = vmatprep.subr.bf16.mxu0 0
      %5523 = vmatpush1.bf16.msra.mxu0 %v3249
      %5524 = vmatprep.subr.bf16.mxu0 0
      %5525 = vmatpush1.bf16.msra.mxu0 0
      %5526 = vmatprep.subr.bf16.mxu0 0
      %5527 = vmatpush1.bf16.msra.mxu0 0
      %5528 = vmatprep.subr.bf16.mxu0 0
      %5529 = vmatpush1.bf16.msra.mxu0 0
      %5530 = vmatprep.subr.bf16.mxu0 0
      %5531 = vmatpush1.bf16.msra.mxu0 0
      %5532 = vmatprep.subr.bf16.mxu0 0
      %5533 = vmatpush1.bf16.msra.mxu0 0
      %5534 = vmatprep.subr.bf16.mxu0 0
      %5535 = vmatpush1.bf16.msra.mxu0 0
      %5536 = vmatprep.subr.bf16.mxu0 0
      %5537 = vmatpush1.bf16.msra.mxu0 0
      %5538 = vmatprep.subr.bf16.mxu0 0
      %5539 = vmatpush1.bf16.msra.mxu0 0
      %5540 = vmatprep.subr.bf16.mxu0 0
      %5541 = vmatpush1.bf16.msra.mxu0 0
      %5542 = vmatprep.subr.bf16.mxu0 0
      %5543 = vmatpush1.bf16.msra.mxu0 0
      %5544 = vmatprep.subr.bf16.mxu0 0
      %5545 = vmatpush1.bf16.msra.mxu0 0
      %5546 = vmatprep.subr.bf16.mxu0 0
      %5547 = vmatpush1.bf16.msra.mxu0 0
      %5548 = vmatprep.mubr.bf16.mxu0 0
      %5549 = vmatmul.mubr.bf16.gmra.mrb[0].mxu0 %v3727
      %v5550 = vpop.f32.mrb[0].mxu0
      %v5551 = vadd.f32 0.0, %v5550
      %v5552 = vpop.f32.mrb[0].mxu0
      %v5553 = vpop.f32.mrb[0].mxu0
      %v5554 = vadd.f32 0.0, %v5553
      %v5555 = vpop.f32.mrb[0].mxu0
      %5556 = vmatprep.mubr.bf16.mxu0 0
      %5557 = vmatmul.mubr.bf16.gmra.mrb[0].mxu0 %v3730
      %v5558 = vpop.f32.mrb[0].mxu0
      %v5559 = vadd.f32 0.0, %v5558
      %v5560 = vpop.f32.mrb[0].mxu0
      %v5561 = vpop.f32.mrb[0].mxu0
      %v5562 = vadd.f32 0.0, %v5561
      %v5563 = vpop.f32.mrb[0].mxu0
      %5564 = vmatprep.mubr.bf16.mxu0 0
      %5565 = vmatmul.mubr.bf16.gmra.mrb[0].mxu0 %v3733
      %v5566 = vpop.f32.mrb[0].mxu0
      %v5567 = vadd.f32 0.0, %v5566
      %v5568 = vpop.f32.mrb[0].mxu0
      %v5569 = vpop.f32.mrb[0].mxu0
      %v5570 = vadd.f32 0.0, %v5569
      %v5571 = vpop.f32.mrb[0].mxu0
      %5572 = vmatprep.mubr.bf16.mxu0 0
      %5573 = vmatmul.mubr.bf16.gmra.mrb[0].mxu0 %v3736
      %v5574 = vpop.f32.mrb[0].mxu0
      %v5575 = vadd.f32 0.0, %v5574
      %v5576 = vpop.f32.mrb[0].mxu0
      %v5577 = vpop.f32.mrb[0].mxu0
      %v5578 = vpop.f32.mrb[0].mxu0
      %5579 = vdwg.mxu0
      %v5580 = vadd.f32 %v5509, %v5551
      %v5581 = vadd.f32 %v5510, %v5554
      %v5582 = vadd.f32 %v5511, %v5559
      %v5583 = vadd.f32 %v5512, %v5562
      %v5584 = vadd.f32 %v5513, %v5567
      %v5585 = vadd.f32 %v5514, %v5570
      %v5586 = vadd.f32 %v5515, %v5575
      %5587 = vmatprep.subr.bf16.mxu0 0
      %5588 = vmatpush1.bf16.msra.mxu0 %v3364
      %5589 = vmatprep.subr.bf16.mxu0 0
      %5590 = vmatpush1.bf16.msra.mxu0 %v3365
      %5591 = vmatprep.subr.bf16.mxu0 0
      %5592 = vmatpush1.bf16.msra.mxu0 %v3366
      %5593 = vmatprep.subr.bf16.mxu0 0
      %5594 = vmatpush1.bf16.msra.mxu0 %v3367
      %5595 = vmatprep.subr.bf16.mxu0 0
      %5596 = vmatpush1.bf16.msra.mxu0 0
      %5597 = vmatprep.subr.bf16.mxu0 0
      %5598 = vmatpush1.bf16.msra.mxu0 0
      %5599 = vmatprep.subr.bf16.mxu0 0
      %5600 = vmatpush1.bf16.msra.mxu0 0
      %5601 = vmatprep.subr.bf16.mxu0 0
      %5602 = vmatpush1.bf16.msra.mxu0 0
      %5603 = vmatprep.subr.bf16.mxu0 0
      %5604 = vmatpush1.bf16.msra.mxu0 0
      %5605 = vmatprep.subr.bf16.mxu0 0
      %5606 = vmatpush1.bf16.msra.mxu0 0
      %5607 = vmatprep.subr.bf16.mxu0 0
      %5608 = vmatpush1.bf16.msra.mxu0 0
      %5609 = vmatprep.subr.bf16.mxu0 0
      %5610 = vmatpush1.bf16.msra.mxu0 0
      %5611 = vmatprep.subr.bf16.mxu0 0
      %5612 = vmatpush1.bf16.msra.mxu0 0
      %5613 = vmatprep.subr.bf16.mxu0 0
      %5614 = vmatpush1.bf16.msra.mxu0 0
      %5615 = vmatprep.subr.bf16.mxu0 0
      %5616 = vmatpush1.bf16.msra.mxu0 0
      %5617 = vmatprep.subr.bf16.mxu0 0
      %5618 = vmatpush1.bf16.msra.mxu0 0
      %5619 = vmatprep.mubr.bf16.mxu0 0
      %5620 = vmatmul.mubr.bf16.gmra.mrb[0].mxu0 %v3845
      %v5621 = vpop.f32.mrb[0].mxu0
      %v5622 = vadd.f32 0.0, %v5621
      %v5623 = vpop.f32.mrb[0].mxu0
      %v5624 = vpop.f32.mrb[0].mxu0
      %v5625 = vadd.f32 0.0, %v5624
      %v5626 = vpop.f32.mrb[0].mxu0
      %5627 = vmatprep.mubr.bf16.mxu0 0
      %5628 = vmatmul.mubr.bf16.gmra.mrb[0].mxu0 %v3848
      %v5629 = vpop.f32.mrb[0].mxu0
      %v5630 = vadd.f32 0.0, %v5629
      %v5631 = vpop.f32.mrb[0].mxu0
      %v5632 = vpop.f32.mrb[0].mxu0
      %v5633 = vadd.f32 0.0, %v5632
      %v5634 = vpop.f32.mrb[0].mxu0
      %5635 = vmatprep.mubr.bf16.mxu0 0
      %5636 = vmatmul.mubr.bf16.gmra.mrb[0].mxu0 %v3851
      %v5637 = vpop.f32.mrb[0].mxu0
      %v5638 = vadd.f32 0.0, %v5637
      %v5639 = vpop.f32.mrb[0].mxu0
      %v5640 = vpop.f32.mrb[0].mxu0
      %v5641 = vadd.f32 0.0, %v5640
      %v5642 = vpop.f32.mrb[0].mxu0
      %5643 = vmatprep.mubr.bf16.mxu0 0
      %5644 = vmatmul.mubr.bf16.gmra.mrb[0].mxu0 %v3854
      %v5645 = vpop.f32.mrb[0].mxu0
      %v5646 = vadd.f32 0.0, %v5645
      %v5647 = vpop.f32.mrb[0].mxu0
      %v5648 = vpop.f32.mrb[0].mxu0
      %v5649 = vpop.f32.mrb[0].mxu0
      %5650 = vdwg.mxu0
      %v5651 = vadd.f32 %v5580, %v5622
      %v5652 = vadd.f32 %v5581, %v5625
      %v5653 = vadd.f32 %v5582, %v5630
      %v5654 = vadd.f32 %v5583, %v5633
      %v5655 = vadd.f32 %v5584, %v5638
      %v5656 = vadd.f32 %v5585, %v5641
      %v5657 = vadd.f32 %v5586, %v5646
      %5658 = vmatprep.subr.bf16.mxu0 0
      %5659 = vmatpush1.bf16.msra.mxu0 %v3482
      %5660 = vmatprep.subr.bf16.mxu0 0
      %5661 = vmatpush1.bf16.msra.mxu0 %v3483
      %5662 = vmatprep.subr.bf16.mxu0 0
      %5663 = vmatpush1.bf16.msra.mxu0 %v3484
      %5664 = vmatprep.subr.bf16.mxu0 0
      %5665 = vmatpush1.bf16.msra.mxu0 %v3485
      %5666 = vmatprep.subr.bf16.mxu0 0
      %5667 = vmatpush1.bf16.msra.mxu0 0
      %5668 = vmatprep.subr.bf16.mxu0 0
      %5669 = vmatpush1.bf16.msra.mxu0 0
      %5670 = vmatprep.subr.bf16.mxu0 0
      %5671 = vmatpush1.bf16.msra.mxu0 0
      %5672 = vmatprep.subr.bf16.mxu0 0
      %5673 = vmatpush1.bf16.msra.mxu0 0
      %5674 = vmatprep.subr.bf16.mxu0 0
      %5675 = vmatpush1.bf16.msra.mxu0 0
      %5676 = vmatprep.subr.bf16.mxu0 0
      %5677 = vmatpush1.bf16.msra.mxu0 0
      %5678 = vmatprep.subr.bf16.mxu0 0
      %5679 = vmatpush1.bf16.msra.mxu0 0
      %5680 = vmatprep.subr.bf16.mxu0 0
      %5681 = vmatpush1.bf16.msra.mxu0 0
      %5682 = vmatprep.subr.bf16.mxu0 0
      %5683 = vmatpush1.bf16.msra.mxu0 0
      %5684 = vmatprep.subr.bf16.mxu0 0
      %5685 = vmatpush1.bf16.msra.mxu0 0
      %5686 = vmatprep.subr.bf16.mxu0 0
      %5687 = vmatpush1.bf16.msra.mxu0 0
      %5688 = vmatprep.subr.bf16.mxu0 0
      %5689 = vmatpush1.bf16.msra.mxu0 0
      %5690 = vmatprep.mubr.bf16.mxu0 0
      %5691 = vmatmul.mubr.bf16.gmra.mrb[0].mxu0 %v4542
      %v5692 = vpop.f32.mrb[0].mxu0
      %v5693 = vadd.f32 0.0, %v5692
      %v5694 = vpop.f32.mrb[0].mxu0
      %v5695 = vpop.f32.mrb[0].mxu0
      %v5696 = vadd.f32 0.0, %v5695
      %v5697 = vpop.f32.mrb[0].mxu0
      %5698 = vmatprep.mubr.bf16.mxu0 0
      %5699 = vmatmul.mubr.bf16.gmra.mrb[0].mxu0 %v4545
      %v5700 = vpop.f32.mrb[0].mxu0
      %v5701 = vadd.f32 0.0, %v5700
      %v5702 = vpop.f32.mrb[0].mxu0
      %v5703 = vpop.f32.mrb[0].mxu0
      %v5704 = vadd.f32 0.0, %v5703
      %v5705 = vpop.f32.mrb[0].mxu0
      %5706 = vmatprep.mubr.bf16.mxu0 0
      %5707 = vmatmul.mubr.bf16.gmra.mrb[0].mxu0 %v4548
      %v5708 = vpop.f32.mrb[0].mxu0
      %v5709 = vadd.f32 0.0, %v5708
      %v5710 = vpop.f32.mrb[0].mxu0
      %v5711 = vpop.f32.mrb[0].mxu0
      %v5712 = vadd.f32 0.0, %v5711
      %v5713 = vpop.f32.mrb[0].mxu0
      %5714 = vmatprep.mubr.bf16.mxu0 0
      %5715 = vmatmul.mubr.bf16.gmra.mrb[0].mxu0 %v4551
      %v5716 = vpop.f32.mrb[0].mxu0
      %v5717 = vadd.f32 0.0, %v5716
      %v5718 = vpop.f32.mrb[0].mxu0
      %v5719 = vpop.f32.mrb[0].mxu0
      %v5720 = vpop.f32.mrb[0].mxu0
      %5721 = vdwg.mxu0
      %v5722 = vadd.f32 %v5651, %v5693
      %v5723 = vadd.f32 %v5652, %v5696
      %v5724 = vadd.f32 %v5653, %v5701
      %v5725 = vadd.f32 %v5654, %v5704
      %v5726 = vadd.f32 %v5655, %v5709
      %v5727 = vadd.f32 %v5656, %v5712
      %v5728 = vadd.f32 %v5657, %v5717
      %5729 = vmatprep.subr.bf16.mxu0 0
      %5730 = vmatpush1.bf16.msra.mxu0 %v3600
      %5731 = vmatprep.subr.bf16.mxu0 0
      %5732 = vmatpush1.bf16.msra.mxu0 %v3601
      %5733 = vmatprep.subr.bf16.mxu0 0
      %5734 = vmatpush1.bf16.msra.mxu0 %v3602
      %5735 = vmatprep.subr.bf16.mxu0 0
      %5736 = vmatpush1.bf16.msra.mxu0 %v3603
      %5737 = vmatprep.subr.bf16.mxu0 0
      %5738 = vmatpush1.bf16.msra.mxu0 0
      %5739 = vmatprep.subr.bf16.mxu0 0
      %5740 = vmatpush1.bf16.msra.mxu0 0
      %5741 = vmatprep.subr.bf16.mxu0 0
      %5742 = vmatpush1.bf16.msra.mxu0 0
      %5743 = vmatprep.subr.bf16.mxu0 0
      %5744 = vmatpush1.bf16.msra.mxu0 0
      %5745 = vmatprep.subr.bf16.mxu0 0
      %5746 = vmatpush1.bf16.msra.mxu0 0
      %5747 = vmatprep.subr.bf16.mxu0 0
      %5748 = vmatpush1.bf16.msra.mxu0 0
      %5749 = vmatprep.subr.bf16.mxu0 0
      %5750 = vmatpush1.bf16.msra.mxu0 0
      %5751 = vmatprep.subr.bf16.mxu0 0
      %5752 = vmatpush1.bf16.msra.mxu0 0
      %5753 = vmatprep.subr.bf16.mxu0 0
      %5754 = vmatpush1.bf16.msra.mxu0 0
      %5755 = vmatprep.subr.bf16.mxu0 0
      %5756 = vmatpush1.bf16.msra.mxu0 0
      %5757 = vmatprep.subr.bf16.mxu0 0
      %5758 = vmatpush1.bf16.msra.mxu0 0
      %5759 = vmatprep.subr.bf16.mxu0 0
      %5760 = vmatpush1.bf16.msra.mxu0 0
      %5761 = vmatprep.mubr.bf16.mxu0 0
      %5762 = vmatmul.mubr.bf16.gmra.mrb[0].mxu0 %v5138
      %v5763 = vpop.f32.mrb[0].mxu0
      %v5764 = vadd.f32 0.0, %v5763
      %v5765 = vpop.f32.mrb[0].mxu0
      %v5766 = vpop.f32.mrb[0].mxu0
      %v5767 = vadd.f32 0.0, %v5766
      %v5768 = vpop.f32.mrb[0].mxu0
      %5769 = vmatprep.mubr.bf16.mxu0 0
      %5770 = vmatmul.mubr.bf16.gmra.mrb[0].mxu0 %v5141
      %v5771 = vpop.f32.mrb[0].mxu0
      %v5772 = vadd.f32 0.0, %v5771
      %v5773 = vpop.f32.mrb[0].mxu0
      %v5774 = vpop.f32.mrb[0].mxu0
      %v5775 = vadd.f32 0.0, %v5774
      %v5776 = vpop.f32.mrb[0].mxu0
      %5777 = vmatprep.mubr.bf16.mxu0 0
      %5778 = vmatmul.mubr.bf16.gmra.mrb[0].mxu0 %v5144
      %v5779 = vpop.f32.mrb[0].mxu0
      %v5780 = vadd.f32 0.0, %v5779
      %v5781 = vpop.f32.mrb[0].mxu0
      %v5782 = vpop.f32.mrb[0].mxu0
      %v5783 = vadd.f32 0.0, %v5782
      %v5784 = vpop.f32.mrb[0].mxu0
      %5785 = vmatprep.mubr.bf16.mxu0 0
      %5786 = vmatmul.mubr.bf16.gmra.mrb[0].mxu0 %v5147
      %v5787 = vpop.f32.mrb[0].mxu0
      %v5788 = vadd.f32 0.0, %v5787
      %v5789 = vpop.f32.mrb[0].mxu0
      %v5790 = vpop.f32.mrb[0].mxu0
      %v5791 = vpop.f32.mrb[0].mxu0
      %5792 = vdwg.mxu0
      %v5793 = vadd.f32 %v5722, %v5764
      %v5794 = vadd.f32 %v5723, %v5767
      %v5795 = vadd.f32 %v5724, %v5772
      %v5796 = vadd.f32 %v5725, %v5775
      %v5797 = vadd.f32 %v5726, %v5780
      %v5798 = vadd.f32 %v5727, %v5783
      %v5799 = vadd.f32 %v5728, %v5788
      %5800 = vmatprep.subr.bf16.mxu0 0
      %5801 = vmatpush1.bf16.msra.mxu0 %v3718
      %5802 = vmatprep.subr.bf16.mxu0 0
      %5803 = vmatpush1.bf16.msra.mxu0 %v3719
      %5804 = vmatprep.subr.bf16.mxu0 0
      %5805 = vmatpush1.bf16.msra.mxu0 %v3720
      %5806 = vmatprep.subr.bf16.mxu0 0
      %5807 = vmatpush1.bf16.msra.mxu0 %v3721
      %5808 = vmatprep.subr.bf16.mxu0 0
      %5809 = vmatpush1.bf16.msra.mxu0 0
      %5810 = vmatprep.subr.bf16.mxu0 0
      %5811 = vmatpush1.bf16.msra.mxu0 0
      %5812 = vmatprep.subr.bf16.mxu0 0
      %5813 = vmatpush1.bf16.msra.mxu0 0
      %5814 = vmatprep.subr.bf16.mxu0 0
      %5815 = vmatpush1.bf16.msra.mxu0 0
      %5816 = vmatprep.subr.bf16.mxu0 0
      %5817 = vmatpush1.bf16.msra.mxu0 0
      %5818 = vmatprep.subr.bf16.mxu0 0
      %5819 = vmatpush1.bf16.msra.mxu0 0
      %5820 = vmatprep.subr.bf16.mxu0 0
      %5821 = vmatpush1.bf16.msra.mxu0 0
      %5822 = vmatprep.subr.bf16.mxu0 0
      %5823 = vmatpush1.bf16.msra.mxu0 0
      %5824 = vmatprep.subr.bf16.mxu0 0
      %5825 = vmatpush1.bf16.msra.mxu0 0
      %5826 = vmatprep.subr.bf16.mxu0 0
      %5827 = vmatpush1.bf16.msra.mxu0 0
      %5828 = vmatprep.subr.bf16.mxu0 0
      %5829 = vmatpush1.bf16.msra.mxu0 0
      %5830 = vmatprep.subr.bf16.mxu0 0
      %5831 = vmatpush1.bf16.msra.mxu0 0
      %5832 = vmatprep.mubr.bf16.mxu0 0
      %5833 = vmatmul.mubr.bf16.gmra.mrb[0].mxu0 %v5221
      %v5834 = vpop.f32.mrb[0].mxu0
      %v5835 = vadd.f32 0.0, %v5834
      %v5836 = vpop.f32.mrb[0].mxu0
      %v5837 = vpop.f32.mrb[0].mxu0
      %v5838 = vadd.f32 0.0, %v5837
      %v5839 = vpop.f32.mrb[0].mxu0
      %5840 = vmatprep.mubr.bf16.mxu0 0
      %5841 = vmatmul.mubr.bf16.gmra.mrb[0].mxu0 %v5224
      %v5842 = vpop.f32.mrb[0].mxu0
      %v5843 = vadd.f32 0.0, %v5842
      %v5844 = vpop.f32.mrb[0].mxu0
      %v5845 = vpop.f32.mrb[0].mxu0
      %v5846 = vadd.f32 0.0, %v5845
      %v5847 = vpop.f32.mrb[0].mxu0
      %5848 = vmatprep.mubr.bf16.mxu0 0
      %5849 = vmatmul.mubr.bf16.gmra.mrb[0].mxu0 %v5227
      %v5850 = vpop.f32.mrb[0].mxu0
      %v5851 = vadd.f32 0.0, %v5850
      %v5852 = vpop.f32.mrb[0].mxu0
      %v5853 = vpop.f32.mrb[0].mxu0
      %v5854 = vadd.f32 0.0, %v5853
      %v5855 = vpop.f32.mrb[0].mxu0
      %5856 = vmatprep.mubr.bf16.mxu0 0
      %5857 = vmatmul.mubr.bf16.gmra.mrb[0].mxu0 %v5230
      %v5858 = vpop.f32.mrb[0].mxu0
      %v5859 = vadd.f32 0.0, %v5858
      %v5860 = vpop.f32.mrb[0].mxu0
      %v5861 = vpop.f32.mrb[0].mxu0
      %v5862 = vpop.f32.mrb[0].mxu0
      %5863 = vdwg.mxu0
      %v5864 = vadd.f32 %v5793, %v5835
      %v5865 = vadd.f32 %v5794, %v5838
      %v5866 = vadd.f32 %v5795, %v5843
      %v5867 = vadd.f32 %v5796, %v5846
      %v5868 = vadd.f32 %v5797, %v5851
      %v5869 = vadd.f32 %v5798, %v5854
      %v5870 = vadd.f32 %v5799, %v5859
      %v5872 = vsel %vm2924, %v2879, 0
      %v5875 = vsel %vm2924, %v2880, 0
      %v5878 = vsel %vm2924, %v2881, 0
      %v5881 = vsel %vm2924, %v2882, 0
      %5883 = vmatprep.subr.bf16.mxu0 0
      %5884 = vmatpush1.bf16.msra.mxu0 %v3836
      %5885 = vmatprep.subr.bf16.mxu0 0
      %5886 = vmatpush1.bf16.msra.mxu0 %v3837
      %5887 = vmatprep.subr.bf16.mxu0 0
      %5888 = vmatpush1.bf16.msra.mxu0 %v3838
      %5889 = vmatprep.subr.bf16.mxu0 0
      %5890 = vmatpush1.bf16.msra.mxu0 %v3839
      %5891 = vmatprep.subr.bf16.mxu0 0
      %5892 = vmatpush1.bf16.msra.mxu0 0
      %5893 = vmatprep.subr.bf16.mxu0 0
      %5894 = vmatpush1.bf16.msra.mxu0 0
      %5895 = vmatprep.subr.bf16.mxu0 0
      %5896 = vmatpush1.bf16.msra.mxu0 0
      %5897 = vmatprep.subr.bf16.mxu0 0
      %5898 = vmatpush1.bf16.msra.mxu0 0
      %5899 = vmatprep.subr.bf16.mxu0 0
      %5900 = vmatpush1.bf16.msra.mxu0 0
      %5901 = vmatprep.subr.bf16.mxu0 0
      %5902 = vmatpush1.bf16.msra.mxu0 0
      %5903 = vmatprep.subr.bf16.mxu0 0
      %5904 = vmatpush1.bf16.msra.mxu0 0
      %5905 = vmatprep.subr.bf16.mxu0 0
      %5906 = vmatpush1.bf16.msra.mxu0 0
      %5907 = vmatprep.subr.bf16.mxu0 0
      %5908 = vmatpush1.bf16.msra.mxu0 0
      %5909 = vmatprep.subr.bf16.mxu0 0
      %5910 = vmatpush1.bf16.msra.mxu0 0
      %5911 = vmatprep.subr.bf16.mxu0 0
      %5912 = vmatpush1.bf16.msra.mxu0 0
      %5913 = vmatprep.subr.bf16.mxu0 0
      %5914 = vmatpush1.bf16.msra.mxu0 0
      %5915 = vmatprep.mubr.bf16.mxu0 0
      %5916 = vmatmul.mubr.bf16.gmra.mrb[0].mxu0 %v5872
      %v5917 = vpop.f32.mrb[0].mxu0
      %v5918 = vadd.f32 0.0, %v5917
      %v5919 = vpop.f32.mrb[0].mxu0
      %v5920 = vpop.f32.mrb[0].mxu0
      %v5921 = vadd.f32 0.0, %v5920
      %v5922 = vpop.f32.mrb[0].mxu0
      %5923 = vmatprep.mubr.bf16.mxu0 0
      %5924 = vmatmul.mubr.bf16.gmra.mrb[0].mxu0 %v5875
      %v5925 = vpop.f32.mrb[0].mxu0
      %v5926 = vadd.f32 0.0, %v5925
      %v5927 = vpop.f32.mrb[0].mxu0
      %v5928 = vpop.f32.mrb[0].mxu0
      %v5929 = vadd.f32 0.0, %v5928
      %v5930 = vpop.f32.mrb[0].mxu0
      %5931 = vmatprep.mubr.bf16.mxu0 0
      %5932 = vmatmul.mubr.bf16.gmra.mrb[0].mxu0 %v5878
      %v5933 = vpop.f32.mrb[0].mxu0
      %v5934 = vadd.f32 0.0, %v5933
      %v5935 = vpop.f32.mrb[0].mxu0
      %v5936 = vpop.f32.mrb[0].mxu0
      %v5937 = vadd.f32 0.0, %v5936
      %v5938 = vpop.f32.mrb[0].mxu0
      %5939 = vmatprep.mubr.bf16.mxu0 0
      %5940 = vmatmul.mubr.bf16.gmra.mrb[0].mxu0 %v5881
      %v5941 = vpop.f32.mrb[0].mxu0
      %v5942 = vadd.f32 0.0, %v5941
      %v5943 = vpop.f32.mrb[0].mxu0
      %v5944 = vpop.f32.mrb[0].mxu0
      %v5945 = vpop.f32.mrb[0].mxu0
      %5946 = vdwg.mxu0
      %v5947 = vadd.f32 %v5864, %v5918
      %v5948 = vadd.f32 %v5865, %v5921
      %v5949 = vadd.f32 %v5866, %v5926
      %v5950 = vadd.f32 %v5867, %v5929
      %v5951 = vadd.f32 %v5868, %v5934
      %v5952 = vadd.f32 %v5869, %v5937
      %v5953 = vadd.f32 %v5870, %v5942
      %v5954 = vadd.f32 %v5947, %v3932
      %v5955 = vadd.f32 %v5948, %v3932
      %v5956 = vadd.f32 %v5949, %v3932
      %v5957 = vadd.f32 %v5950, %v3932
      %v5958 = vadd.f32 %v5951, %v3932
      %v5959 = vadd.f32 %v5952, %v3932
      %v5960 = vadd.f32 %v5953, %v3932
      %v5961 = vmax.f32 %v5954, 0.0
      %v5962 = vmax.f32 %v5955, 0.0
      %v5963 = vmax.f32 %v5956, 0.0
      %v5964 = vmax.f32 %v5957, 0.0
      %v5965 = vmax.f32 %v5958, 0.0
      %v5966 = vmax.f32 %v5959, 0.0
      %v5967 = vmax.f32 %v5960, 0.0
      %v5975 = vcombine.high %v3941, %v3941
      %v5977 = vunpack.c.l.s4 1966171168
      %v5978 = vunpack.c.0.s8 %v5977
      %v5979 = vlaneseq
      %v5980 = vshrl.u32 %v5979, 7
      %v5981 = vsub.s32 %v5978, %v5980
      %v5982 = vrot.slane %v3941, %v5981
      %v5984 = vunpack.c.l.s4 1966171168
      %v5985 = vunpack.c.0.s8 %v5984
      %v5986 = vlaneseq
      %v5987 = vshrl.u32 %v5986, 7
      %v5988 = vsub.s32 %v5985, %v5987
      %v5989 = vrot.slane %v5975, %v5988
      %v5990 = vcombine.high %v5982, %v5982
      %v5991 = vcombine.high %v5989, %v5989
      %v5993 = vunpack.c.l.s4 1966171168
      %v5994 = vunpack.c.0.s8 %v5993
      %v5995 = vlaneseq
      %v5996 = vshrl.u32 %v5995, 7
      %v5997 = vsub.s32 %v5994, %v5996
      %v5998 = vrot.slane %v5982, %v5997
      %v6000 = vunpack.c.l.s4 1966171168
      %v6001 = vunpack.c.0.s8 %v6000
      %v6002 = vlaneseq
      %v6003 = vshrl.u32 %v6002, 7
      %v6004 = vsub.s32 %v6001, %v6003
      %v6005 = vrot.slane %v5989, %v6004
      %v6007 = vunpack.c.l.s4 1966171168
      %v6008 = vunpack.c.0.s8 %v6007
      %v6009 = vlaneseq
      %v6010 = vshrl.u32 %v6009, 7
      %v6011 = vsub.s32 %v6008, %v6010
      %v6012 = vrot.slane %v5990, %v6011
      %v6014 = vunpack.c.l.s4 1966171168
      %v6015 = vunpack.c.0.s8 %v6014
      %v6016 = vlaneseq
      %v6017 = vshrl.u32 %v6016, 7
      %v6018 = vsub.s32 %v6015, %v6017
      %v6019 = vrot.slane %v5991, %v6018
      %v6020 = vcombine.high %v5998, %v5998
      %v6021 = vcombine.high %v6005, %v6005
      %v6022 = vcombine.high %v6012, %v6012
      %v6023 = vcombine.high %v3942, %v3942
      %v6025 = vunpack.c.l.s4 1966171168
      %v6026 = vunpack.c.0.s8 %v6025
      %v6027 = vlaneseq
      %v6028 = vshrl.u32 %v6027, 7
      %v6029 = vsub.s32 %v6026, %v6028
      %v6030 = vrot.slane %v3942, %v6029
      %v6032 = vunpack.c.l.s4 1966171168
      %v6033 = vunpack.c.0.s8 %v6032
      %v6034 = vlaneseq
      %v6035 = vshrl.u32 %v6034, 7
      %v6036 = vsub.s32 %v6033, %v6035
      %v6037 = vrot.slane %v6023, %v6036
      %v6038 = vcombine.high %v6030, %v6030
      %v6039 = vcombine.high %v6037, %v6037
      %v6041 = vunpack.c.l.s4 1966171168
      %v6042 = vunpack.c.0.s8 %v6041
      %v6043 = vlaneseq
      %v6044 = vshrl.u32 %v6043, 7
      %v6045 = vsub.s32 %v6042, %v6044
      %v6046 = vrot.slane %v6030, %v6045
      %v6048 = vunpack.c.l.s4 1966171168
      %v6049 = vunpack.c.0.s8 %v6048
      %v6050 = vlaneseq
      %v6051 = vshrl.u32 %v6050, 7
      %v6052 = vsub.s32 %v6049, %v6051
      %v6053 = vrot.slane %v6037, %v6052
      %v6055 = vunpack.c.l.s4 1966171168
      %v6056 = vunpack.c.0.s8 %v6055
      %v6057 = vlaneseq
      %v6058 = vshrl.u32 %v6057, 7
      %v6059 = vsub.s32 %v6056, %v6058
      %v6060 = vrot.slane %v6038, %v6059
      %v6062 = vunpack.c.l.s4 1966171168
      %v6063 = vunpack.c.0.s8 %v6062
      %v6064 = vlaneseq
      %v6065 = vshrl.u32 %v6064, 7
      %v6066 = vsub.s32 %v6063, %v6065
      %v6067 = vrot.slane %v6039, %v6066
      %v6068 = vcombine.high %v6046, %v6046
      %v6069 = vcombine.high %v6053, %v6053
      %v6070 = vcombine.high %v6060, %v6060
      %v6071 = vcombine.high %v3943, %v3943
      %v6073 = vunpack.c.l.s4 1966171168
      %v6074 = vunpack.c.0.s8 %v6073
      %v6075 = vlaneseq
      %v6076 = vshrl.u32 %v6075, 7
      %v6077 = vsub.s32 %v6074, %v6076
      %v6078 = vrot.slane %v3943, %v6077
      %v6080 = vunpack.c.l.s4 1966171168
      %v6081 = vunpack.c.0.s8 %v6080
      %v6082 = vlaneseq
      %v6083 = vshrl.u32 %v6082, 7
      %v6084 = vsub.s32 %v6081, %v6083
      %v6085 = vrot.slane %v6071, %v6084
      %v6086 = vcombine.high %v6078, %v6078
      %v6087 = vcombine.high %v6085, %v6085
      %v6089 = vunpack.c.l.s4 1966171168
      %v6090 = vunpack.c.0.s8 %v6089
      %v6091 = vlaneseq
      %v6092 = vshrl.u32 %v6091, 7
      %v6093 = vsub.s32 %v6090, %v6092
      %v6094 = vrot.slane %v6078, %v6093
      %v6096 = vunpack.c.l.s4 1966171168
      %v6097 = vunpack.c.0.s8 %v6096
      %v6098 = vlaneseq
      %v6099 = vshrl.u32 %v6098, 7
      %v6100 = vsub.s32 %v6097, %v6099
      %v6101 = vrot.slane %v6085, %v6100
      %v6103 = vunpack.c.l.s4 1966171168
      %v6104 = vunpack.c.0.s8 %v6103
      %v6105 = vlaneseq
      %v6106 = vshrl.u32 %v6105, 7
      %v6107 = vsub.s32 %v6104, %v6106
      %v6108 = vrot.slane %v6086, %v6107
      %v6110 = vunpack.c.l.s4 1966171168
      %v6111 = vunpack.c.0.s8 %v6110
      %v6112 = vlaneseq
      %v6113 = vshrl.u32 %v6112, 7
      %v6114 = vsub.s32 %v6111, %v6113
      %v6115 = vrot.slane %v6087, %v6114
      %v6116 = vcombine.high %v6094, %v6094
      %v6117 = vcombine.high %v6101, %v6101
      %v6118 = vcombine.high %v6108, %v6108
      %v6119 = vcombine.high %v3944, %v3944
      %v6121 = vunpack.c.l.s4 1966171168
      %v6122 = vunpack.c.0.s8 %v6121
      %v6123 = vlaneseq
      %v6124 = vshrl.u32 %v6123, 7
      %v6125 = vsub.s32 %v6122, %v6124
      %v6126 = vrot.slane %v3944, %v6125
      %v6128 = vunpack.c.l.s4 1966171168
      %v6129 = vunpack.c.0.s8 %v6128
      %v6130 = vlaneseq
      %v6131 = vshrl.u32 %v6130, 7
      %v6132 = vsub.s32 %v6129, %v6131
      %v6133 = vrot.slane %v6119, %v6132
      %v6134 = vcombine.high %v6126, %v6126
      %v6135 = vcombine.high %v6133, %v6133
      %v6137 = vunpack.c.l.s4 1966171168
      %v6138 = vunpack.c.0.s8 %v6137
      %v6139 = vlaneseq
      %v6140 = vshrl.u32 %v6139, 7
      %v6141 = vsub.s32 %v6138, %v6140
      %v6142 = vrot.slane %v6126, %v6141
      %v6144 = vunpack.c.l.s4 1966171168
      %v6145 = vunpack.c.0.s8 %v6144
      %v6146 = vlaneseq
      %v6147 = vshrl.u32 %v6146, 7
      %v6148 = vsub.s32 %v6145, %v6147
      %v6149 = vrot.slane %v6133, %v6148
      %v6151 = vunpack.c.l.s4 1966171168
      %v6152 = vunpack.c.0.s8 %v6151
      %v6153 = vlaneseq
      %v6154 = vshrl.u32 %v6153, 7
      %v6155 = vsub.s32 %v6152, %v6154
      %v6156 = vrot.slane %v6134, %v6155
      %v6158 = vunpack.c.l.s4 1966171168
      %v6159 = vunpack.c.0.s8 %v6158
      %v6160 = vlaneseq
      %v6161 = vshrl.u32 %v6160, 7
      %v6162 = vsub.s32 %v6159, %v6161
      %v6163 = vrot.slane %v6135, %v6162
      %v6164 = vcombine.high %v6142, %v6142
      %v6165 = vcombine.high %v6149, %v6149
      %v6166 = vcombine.high %v6156, %v6156
      %v6167 = vcombine.high %v3945, %v3945
      %v6169 = vunpack.c.l.s4 1966171168
      %v6170 = vunpack.c.0.s8 %v6169
      %v6171 = vlaneseq
      %v6172 = vshrl.u32 %v6171, 7
      %v6173 = vsub.s32 %v6170, %v6172
      %v6174 = vrot.slane %v3945, %v6173
      %v6176 = vunpack.c.l.s4 1966171168
      %v6177 = vunpack.c.0.s8 %v6176
      %v6178 = vlaneseq
      %v6179 = vshrl.u32 %v6178, 7
      %v6180 = vsub.s32 %v6177, %v6179
      %v6181 = vrot.slane %v6167, %v6180
      %v6182 = vcombine.high %v6174, %v6174
      %v6183 = vcombine.high %v6181, %v6181
      %v6185 = vunpack.c.l.s4 1966171168
      %v6186 = vunpack.c.0.s8 %v6185
      %v6187 = vlaneseq
      %v6188 = vshrl.u32 %v6187, 7
      %v6189 = vsub.s32 %v6186, %v6188
      %v6190 = vrot.slane %v6174, %v6189
      %v6192 = vunpack.c.l.s4 1966171168
      %v6193 = vunpack.c.0.s8 %v6192
      %v6194 = vlaneseq
      %v6195 = vshrl.u32 %v6194, 7
      %v6196 = vsub.s32 %v6193, %v6195
      %v6197 = vrot.slane %v6181, %v6196
      %v6199 = vunpack.c.l.s4 1966171168
      %v6200 = vunpack.c.0.s8 %v6199
      %v6201 = vlaneseq
      %v6202 = vshrl.u32 %v6201, 7
      %v6203 = vsub.s32 %v6200, %v6202
      %v6204 = vrot.slane %v6182, %v6203
      %v6206 = vunpack.c.l.s4 1966171168
      %v6207 = vunpack.c.0.s8 %v6206
      %v6208 = vlaneseq
      %v6209 = vshrl.u32 %v6208, 7
      %v6210 = vsub.s32 %v6207, %v6209
      %v6211 = vrot.slane %v6183, %v6210
      %v6212 = vcombine.high %v6190, %v6190
      %v6213 = vcombine.high %v6197, %v6197
      %v6214 = vcombine.high %v6204, %v6204
      %v6215 = vcombine.high %v3946, %v3946
      %v6217 = vunpack.c.l.s4 1966171168
      %v6218 = vunpack.c.0.s8 %v6217
      %v6219 = vlaneseq
      %v6220 = vshrl.u32 %v6219, 7
      %v6221 = vsub.s32 %v6218, %v6220
      %v6222 = vrot.slane %v3946, %v6221
      %v6224 = vunpack.c.l.s4 1966171168
      %v6225 = vunpack.c.0.s8 %v6224
      %v6226 = vlaneseq
      %v6227 = vshrl.u32 %v6226, 7
      %v6228 = vsub.s32 %v6225, %v6227
      %v6229 = vrot.slane %v6215, %v6228
      %v6230 = vcombine.high %v6222, %v6222
      %v6231 = vcombine.high %v6229, %v6229
      %v6233 = vunpack.c.l.s4 1966171168
      %v6234 = vunpack.c.0.s8 %v6233
      %v6235 = vlaneseq
      %v6236 = vshrl.u32 %v6235, 7
      %v6237 = vsub.s32 %v6234, %v6236
      %v6238 = vrot.slane %v6222, %v6237
      %v6240 = vunpack.c.l.s4 1966171168
      %v6241 = vunpack.c.0.s8 %v6240
      %v6242 = vlaneseq
      %v6243 = vshrl.u32 %v6242, 7
      %v6244 = vsub.s32 %v6241, %v6243
      %v6245 = vrot.slane %v6229, %v6244
      %v6247 = vunpack.c.l.s4 1966171168
      %v6248 = vunpack.c.0.s8 %v6247
      %v6249 = vlaneseq
      %v6250 = vshrl.u32 %v6249, 7
      %v6251 = vsub.s32 %v6248, %v6250
      %v6252 = vrot.slane %v6230, %v6251
      %v6254 = vunpack.c.l.s4 1966171168
      %v6255 = vunpack.c.0.s8 %v6254
      %v6256 = vlaneseq
      %v6257 = vshrl.u32 %v6256, 7
      %v6258 = vsub.s32 %v6255, %v6257
      %v6259 = vrot.slane %v6231, %v6258
      %v6260 = vcombine.high %v6238, %v6238
      %v6261 = vcombine.high %v6245, %v6245
      %v6262 = vcombine.high %v6252, %v6252
      %v6263 = vcombine.high %v3947, %v3947
      %v6265 = vunpack.c.l.s4 1966171168
      %v6266 = vunpack.c.0.s8 %v6265
      %v6267 = vlaneseq
      %v6268 = vshrl.u32 %v6267, 7
      %v6269 = vsub.s32 %v6266, %v6268
      %v6270 = vrot.slane %v3947, %v6269
      %v6272 = vunpack.c.l.s4 1966171168
      %v6273 = vunpack.c.0.s8 %v6272
      %v6274 = vlaneseq
      %v6275 = vshrl.u32 %v6274, 7
      %v6276 = vsub.s32 %v6273, %v6275
      %v6277 = vrot.slane %v6263, %v6276
      %v6278 = vcombine.high %v6270, %v6270
      %v6279 = vcombine.high %v6277, %v6277
      %v6281 = vunpack.c.l.s4 1966171168
      %v6282 = vunpack.c.0.s8 %v6281
      %v6283 = vlaneseq
      %v6284 = vshrl.u32 %v6283, 7
      %v6285 = vsub.s32 %v6282, %v6284
      %v6286 = vrot.slane %v6270, %v6285
      %v6288 = vunpack.c.l.s4 1966171168
      %v6289 = vunpack.c.0.s8 %v6288
      %v6290 = vlaneseq
      %v6291 = vshrl.u32 %v6290, 7
      %v6292 = vsub.s32 %v6289, %v6291
      %v6293 = vrot.slane %v6277, %v6292
      %v6295 = vunpack.c.l.s4 1966171168
      %v6296 = vunpack.c.0.s8 %v6295
      %v6297 = vlaneseq
      %v6298 = vshrl.u32 %v6297, 7
      %v6299 = vsub.s32 %v6296, %v6298
      %v6300 = vrot.slane %v6278, %v6299
      %v6302 = vunpack.c.l.s4 1966171168
      %v6303 = vunpack.c.0.s8 %v6302
      %v6304 = vlaneseq
      %v6305 = vshrl.u32 %v6304, 7
      %v6306 = vsub.s32 %v6303, %v6305
      %v6307 = vrot.slane %v6279, %v6306
      %v6308 = vcombine.high %v6286, %v6286
      %v6309 = vcombine.high %v6293, %v6293
      %v6310 = vcombine.high %v6300, %v6300
      %v6311 = vcombine.low %v5998, %v6012
      %v6312 = vcombine.low %v6020, %v6022
      %v6313 = vcombine.low %v6005, %v6019
      %v6314 = vcombine.low %v6021, %v6046
      %v6316 = vunpack.c.l.s4 1966171168
      %v6317 = vunpack.c.0.s8 %v6316
      %v6318 = vlaneseq
      %v6319 = vshrl.u32 %v6318, 7
      %v6320 = vsub.s32 %v6317, %v6319
      %v6321 = vrot.slane %v6311, %v6320
      %v6323 = vunpack.c.l.s4 1966171168
      %v6324 = vunpack.c.0.s8 %v6323
      %v6325 = vlaneseq
      %v6326 = vshrl.u32 %v6325, 7
      %v6327 = vsub.s32 %v6324, %v6326
      %v6328 = vrot.slane %v6312, %v6327
      %v6330 = vunpack.c.l.s4 1966171168
      %v6331 = vunpack.c.0.s8 %v6330
      %v6332 = vlaneseq
      %v6333 = vshrl.u32 %v6332, 7
      %v6334 = vsub.s32 %v6331, %v6333
      %v6335 = vrot.slane %v6313, %v6334
      %v6337 = vunpack.c.l.s4 1966171168
      %v6338 = vunpack.c.0.s8 %v6337
      %v6339 = vlaneseq
      %v6340 = vshrl.u32 %v6339, 7
      %v6341 = vsub.s32 %v6338, %v6340
      %v6342 = vrot.slane %v6314, %v6341
      %v6343 = vcombine.low %v6321, %v6328
      %v6344 = vcombine.low %v6335, %v6342
      %v6346 = vunpack.c.l.s4 1966171168
      %v6347 = vunpack.c.0.s8 %v6346
      %v6348 = vlaneseq
      %v6349 = vshrl.u32 %v6348, 7
      %v6350 = vsub.s32 %v6347, %v6349
      %v6351 = vrot.slane %v6343, %v6350
      %v6353 = vunpack.c.l.s4 1966171168
      %v6354 = vunpack.c.0.s8 %v6353
      %v6355 = vlaneseq
      %v6356 = vshrl.u32 %v6355, 7
      %v6357 = vsub.s32 %v6354, %v6356
      %v6358 = vrot.slane %v6344, %v6357
      %v6359 = vcombine.low %v6351, %v6358
      %v6360 = vcombine.low %v6060, %v6068
      %v6361 = vcombine.low %v6070, %v6053
      %v6362 = vcombine.low %v6067, %v6069
      %v6363 = vcombine.low %v6094, %v6108
      %v6365 = vunpack.c.l.s4 1966171168
      %v6366 = vunpack.c.0.s8 %v6365
      %v6367 = vlaneseq
      %v6368 = vshrl.u32 %v6367, 7
      %v6369 = vsub.s32 %v6366, %v6368
      %v6370 = vrot.slane %v6360, %v6369
      %v6372 = vunpack.c.l.s4 1966171168
      %v6373 = vunpack.c.0.s8 %v6372
      %v6374 = vlaneseq
      %v6375 = vshrl.u32 %v6374, 7
      %v6376 = vsub.s32 %v6373, %v6375
      %v6377 = vrot.slane %v6361, %v6376
      %v6379 = vunpack.c.l.s4 1966171168
      %v6380 = vunpack.c.0.s8 %v6379
      %v6381 = vlaneseq
      %v6382 = vshrl.u32 %v6381, 7
      %v6383 = vsub.s32 %v6380, %v6382
      %v6384 = vrot.slane %v6362, %v6383
      %v6386 = vunpack.c.l.s4 1966171168
      %v6387 = vunpack.c.0.s8 %v6386
      %v6388 = vlaneseq
      %v6389 = vshrl.u32 %v6388, 7
      %v6390 = vsub.s32 %v6387, %v6389
      %v6391 = vrot.slane %v6363, %v6390
      %v6392 = vcombine.low %v6370, %v6377
      %v6393 = vcombine.low %v6384, %v6391
      %v6395 = vunpack.c.l.s4 1966171168
      %v6396 = vunpack.c.0.s8 %v6395
      %v6397 = vlaneseq
      %v6398 = vshrl.u32 %v6397, 7
      %v6399 = vsub.s32 %v6396, %v6398
      %v6400 = vrot.slane %v6392, %v6399
      %v6402 = vunpack.c.l.s4 1966171168
      %v6403 = vunpack.c.0.s8 %v6402
      %v6404 = vlaneseq
      %v6405 = vshrl.u32 %v6404, 7
      %v6406 = vsub.s32 %v6403, %v6405
      %v6407 = vrot.slane %v6393, %v6406
      %v6408 = vcombine.low %v6400, %v6407
      %v6409 = vcombine.low %v6116, %v6118
      %v6410 = vcombine.low %v6101, %v6115
      %v6411 = vcombine.low %v6117, %v6142
      %v6412 = vcombine.low %v6156, %v6164
      %v6414 = vunpack.c.l.s4 1966171168
      %v6415 = vunpack.c.0.s8 %v6414
      %v6416 = vlaneseq
      %v6417 = vshrl.u32 %v6416, 7
      %v6418 = vsub.s32 %v6415, %v6417
      %v6419 = vrot.slane %v6409, %v6418
      %v6421 = vunpack.c.l.s4 1966171168
      %v6422 = vunpack.c.0.s8 %v6421
      %v6423 = vlaneseq
      %v6424 = vshrl.u32 %v6423, 7
      %v6425 = vsub.s32 %v6422, %v6424
      %v6426 = vrot.slane %v6410, %v6425
      %v6428 = vunpack.c.l.s4 1966171168
      %v6429 = vunpack.c.0.s8 %v6428
      %v6430 = vlaneseq
      %v6431 = vshrl.u32 %v6430, 7
      %v6432 = vsub.s32 %v6429, %v6431
      %v6433 = vrot.slane %v6411, %v6432
      %v6435 = vunpack.c.l.s4 1966171168
      %v6436 = vunpack.c.0.s8 %v6435
      %v6437 = vlaneseq
      %v6438 = vshrl.u32 %v6437, 7
      %v6439 = vsub.s32 %v6436, %v6438
      %v6440 = vrot.slane %v6412, %v6439
      %v6441 = vcombine.low %v6419, %v6426
      %v6442 = vcombine.low %v6433, %v6440
      %v6444 = vunpack.c.l.s4 1966171168
      %v6445 = vunpack.c.0.s8 %v6444
      %v6446 = vlaneseq
      %v6447 = vshrl.u32 %v6446, 7
      %v6448 = vsub.s32 %v6445, %v6447
      %v6449 = vrot.slane %v6441, %v6448
      %v6451 = vunpack.c.l.s4 1966171168
      %v6452 = vunpack.c.0.s8 %v6451
      %v6453 = vlaneseq
      %v6454 = vshrl.u32 %v6453, 7
      %v6455 = vsub.s32 %v6452, %v6454
      %v6456 = vrot.slane %v6442, %v6455
      %v6457 = vcombine.low %v6449, %v6456
      %v6458 = vcombine.low %v6166, %v6149
      %v6459 = vcombine.low %v6163, %v6165
      %v6460 = vcombine.low %v6190, %v6204
      %v6461 = vcombine.low %v6212, %v6214
      %v6463 = vunpack.c.l.s4 1966171168
      %v6464 = vunpack.c.0.s8 %v6463
      %v6465 = vlaneseq
      %v6466 = vshrl.u32 %v6465, 7
      %v6467 = vsub.s32 %v6464, %v6466
      %v6468 = vrot.slane %v6458, %v6467
      %v6470 = vunpack.c.l.s4 1966171168
      %v6471 = vunpack.c.0.s8 %v6470
      %v6472 = vlaneseq
      %v6473 = vshrl.u32 %v6472, 7
      %v6474 = vsub.s32 %v6471, %v6473
      %v6475 = vrot.slane %v6459, %v6474
      %v6477 = vunpack.c.l.s4 1966171168
      %v6478 = vunpack.c.0.s8 %v6477
      %v6479 = vlaneseq
      %v6480 = vshrl.u32 %v6479, 7
      %v6481 = vsub.s32 %v6478, %v6480
      %v6482 = vrot.slane %v6460, %v6481
      %v6484 = vunpack.c.l.s4 1966171168
      %v6485 = vunpack.c.0.s8 %v6484
      %v6486 = vlaneseq
      %v6487 = vshrl.u32 %v6486, 7
      %v6488 = vsub.s32 %v6485, %v6487
      %v6489 = vrot.slane %v6461, %v6488
      %v6490 = vcombine.low %v6468, %v6475
      %v6491 = vcombine.low %v6482, %v6489
      %v6493 = vunpack.c.l.s4 1966171168
      %v6494 = vunpack.c.0.s8 %v6493
      %v6495 = vlaneseq
      %v6496 = vshrl.u32 %v6495, 7
      %v6497 = vsub.s32 %v6494, %v6496
      %v6498 = vrot.slane %v6490, %v6497
      %v6500 = vunpack.c.l.s4 1966171168
      %v6501 = vunpack.c.0.s8 %v6500
      %v6502 = vlaneseq
      %v6503 = vshrl.u32 %v6502, 7
      %v6504 = vsub.s32 %v6501, %v6503
      %v6505 = vrot.slane %v6491, %v6504
      %v6506 = vcombine.low %v6498, %v6505
      %v6507 = vcombine.low %v6197, %v6211
      %v6508 = vcombine.low %v6213, %v6238
      %v6509 = vcombine.low %v6252, %v6260
      %v6510 = vcombine.low %v6262, %v6245
      %v6512 = vunpack.c.l.s4 1966171168
      %v6513 = vunpack.c.0.s8 %v6512
      %v6514 = vlaneseq
      %v6515 = vshrl.u32 %v6514, 7
      %v6516 = vsub.s32 %v6513, %v6515
      %v6517 = vrot.slane %v6507, %v6516
      %v6519 = vunpack.c.l.s4 1966171168
      %v6520 = vunpack.c.0.s8 %v6519
      %v6521 = vlaneseq
      %v6522 = vshrl.u32 %v6521, 7
      %v6523 = vsub.s32 %v6520, %v6522
      %v6524 = vrot.slane %v6508, %v6523
      %v6526 = vunpack.c.l.s4 1966171168
      %v6527 = vunpack.c.0.s8 %v6526
      %v6528 = vlaneseq
      %v6529 = vshrl.u32 %v6528, 7
      %v6530 = vsub.s32 %v6527, %v6529
      %v6531 = vrot.slane %v6509, %v6530
      %v6533 = vunpack.c.l.s4 1966171168
      %v6534 = vunpack.c.0.s8 %v6533
      %v6535 = vlaneseq
      %v6536 = vshrl.u32 %v6535, 7
      %v6537 = vsub.s32 %v6534, %v6536
      %v6538 = vrot.slane %v6510, %v6537
      %v6539 = vcombine.low %v6517, %v6524
      %v6540 = vcombine.low %v6531, %v6538
      %v6542 = vunpack.c.l.s4 1966171168
      %v6543 = vunpack.c.0.s8 %v6542
      %v6544 = vlaneseq
      %v6545 = vshrl.u32 %v6544, 7
      %v6546 = vsub.s32 %v6543, %v6545
      %v6547 = vrot.slane %v6539, %v6546
      %v6549 = vunpack.c.l.s4 1966171168
      %v6550 = vunpack.c.0.s8 %v6549
      %v6551 = vlaneseq
      %v6552 = vshrl.u32 %v6551, 7
      %v6553 = vsub.s32 %v6550, %v6552
      %v6554 = vrot.slane %v6540, %v6553
      %v6555 = vcombine.low %v6547, %v6554
      %v6556 = vcombine.low %v6259, %v6261
      %v6557 = vcombine.low %v6286, %v6300
      %v6558 = vcombine.low %v6308, %v6310
      %v6559 = vcombine.low %v6293, %v6307
      %v6561 = vunpack.c.l.s4 1966171168
      %v6562 = vunpack.c.0.s8 %v6561
      %v6563 = vlaneseq
      %v6564 = vshrl.u32 %v6563, 7
      %v6565 = vsub.s32 %v6562, %v6564
      %v6566 = vrot.slane %v6556, %v6565
      %v6568 = vunpack.c.l.s4 1966171168
      %v6569 = vunpack.c.0.s8 %v6568
      %v6570 = vlaneseq
      %v6571 = vshrl.u32 %v6570, 7
      %v6572 = vsub.s32 %v6569, %v6571
      %v6573 = vrot.slane %v6557, %v6572
      %v6575 = vunpack.c.l.s4 1966171168
      %v6576 = vunpack.c.0.s8 %v6575
      %v6577 = vlaneseq
      %v6578 = vshrl.u32 %v6577, 7
      %v6579 = vsub.s32 %v6576, %v6578
      %v6580 = vrot.slane %v6558, %v6579
      %v6582 = vunpack.c.l.s4 1966171168
      %v6583 = vunpack.c.0.s8 %v6582
      %v6584 = vlaneseq
      %v6585 = vshrl.u32 %v6584, 7
      %v6586 = vsub.s32 %v6583, %v6585
      %v6587 = vrot.slane %v6559, %v6586
      %v6588 = vcombine.low %v6566, %v6573
      %v6589 = vcombine.low %v6580, %v6587
      %v6591 = vunpack.c.l.s4 1966171168
      %v6592 = vunpack.c.0.s8 %v6591
      %v6593 = vlaneseq
      %v6594 = vshrl.u32 %v6593, 7
      %v6595 = vsub.s32 %v6592, %v6594
      %v6596 = vrot.slane %v6588, %v6595
      %v6598 = vunpack.c.l.s4 1966171168
      %v6599 = vunpack.c.0.s8 %v6598
      %v6600 = vlaneseq
      %v6601 = vshrl.u32 %v6600, 7
      %v6602 = vsub.s32 %v6599, %v6601
      %v6603 = vrot.slane %v6589, %v6602
      %v6604 = vcombine.low %v6596, %v6603
      %v6606 = vunpack.c.l.s4 1966171168
      %v6607 = vunpack.c.0.s8 %v6606
      %v6608 = vlaneseq
      %v6609 = vshrl.u32 %v6608, 7
      %v6610 = vsub.s32 %v6607, %v6609
      %v6611 = vrot.slane %v6309, %v6610
      %v6613 = vunpack.c.l.s4 1966171168
      %v6614 = vunpack.c.0.s8 %v6613
      %v6615 = vlaneseq
      %v6616 = vshrl.u32 %v6615, 7
      %v6617 = vsub.s32 %v6614, %v6616
      %v6618 = vrot.slane %v6611, %v6617
      %v6626 = vpack.c.bf16 %v6408, %v6359
      %v6627 = vpack.c.bf16 %v6506, %v6457
      %v6628 = vpack.c.bf16 %v6604, %v6555
      %v6629 = vpack.c.bf16 %v6618, %v6618
      %v6630 = vld [vmem:[%s6] sm:$0xf]
      %v6631 = vld [vmem:[%s6 + $0x4] sm:$0xf]
      %v6632 = vld [vmem:[%s6 + $0x8] sm:$0xf]
      %v6633 = vld [vmem:[%s6 + $0xc] sm:$0xf]
      %v6634 = vld [vmem:[%s6 + $0x10] sm:$0xf]
      %v6635 = vld [vmem:[%s6 + $0x14] sm:$0xf]
      %v6636 = vld [vmem:[%s6 + $0x18] sm:$0xf]
      %v6637 = vld [vmem:[%s6 + $0x1c] sm:$0xf]
      %v6638 = vld [vmem:[%s6 + $0x20] sm:$0xf]
      %v6639 = vld [vmem:[%s6 + $0x24] sm:$0xf]
      %v6640 = vld [vmem:[%s6 + $0x28] sm:$0xf]
      %v6641 = vld [vmem:[%s6 + $0x2c] sm:$0xf]
      %v6649 = vcombine.high %v4634, %v4634
      %v6651 = vunpack.c.l.s4 1966171168
      %v6652 = vunpack.c.0.s8 %v6651
      %v6653 = vlaneseq
      %v6654 = vshrl.u32 %v6653, 7
      %v6655 = vsub.s32 %v6652, %v6654
      %v6656 = vrot.slane %v4634, %v6655
      %v6658 = vunpack.c.l.s4 1966171168
      %v6659 = vunpack.c.0.s8 %v6658
      %v6660 = vlaneseq
      %v6661 = vshrl.u32 %v6660, 7
      %v6662 = vsub.s32 %v6659, %v6661
      %v6663 = vrot.slane %v6649, %v6662
      %v6664 = vcombine.high %v6656, %v6656
      %v6665 = vcombine.high %v6663, %v6663
      %v6667 = vunpack.c.l.s4 1966171168
      %v6668 = vunpack.c.0.s8 %v6667
      %v6669 = vlaneseq
      %v6670 = vshrl.u32 %v6669, 7
      %v6671 = vsub.s32 %v6668, %v6670
      %v6672 = vrot.slane %v6656, %v6671
      %v6674 = vunpack.c.l.s4 1966171168
      %v6675 = vunpack.c.0.s8 %v6674
      %v6676 = vlaneseq
      %v6677 = vshrl.u32 %v6676, 7
      %v6678 = vsub.s32 %v6675, %v6677
      %v6679 = vrot.slane %v6663, %v6678
      %v6681 = vunpack.c.l.s4 1966171168
      %v6682 = vunpack.c.0.s8 %v6681
      %v6683 = vlaneseq
      %v6684 = vshrl.u32 %v6683, 7
      %v6685 = vsub.s32 %v6682, %v6684
      %v6686 = vrot.slane %v6664, %v6685
      %v6688 = vunpack.c.l.s4 1966171168
      %v6689 = vunpack.c.0.s8 %v6688
      %v6690 = vlaneseq
      %v6691 = vshrl.u32 %v6690, 7
      %v6692 = vsub.s32 %v6689, %v6691
      %v6693 = vrot.slane %v6665, %v6692
      %v6694 = vcombine.high %v6672, %v6672
      %v6695 = vcombine.high %v6679, %v6679
      %v6696 = vcombine.high %v6686, %v6686
      %v6697 = vcombine.high %v4635, %v4635
      %v6699 = vunpack.c.l.s4 1966171168
      %v6700 = vunpack.c.0.s8 %v6699
      %v6701 = vlaneseq
      %v6702 = vshrl.u32 %v6701, 7
      %v6703 = vsub.s32 %v6700, %v6702
      %v6704 = vrot.slane %v4635, %v6703
      %v6706 = vunpack.c.l.s4 1966171168
      %v6707 = vunpack.c.0.s8 %v6706
      %v6708 = vlaneseq
      %v6709 = vshrl.u32 %v6708, 7
      %v6710 = vsub.s32 %v6707, %v6709
      %v6711 = vrot.slane %v6697, %v6710
      %v6712 = vcombine.high %v6704, %v6704
      %v6713 = vcombine.high %v6711, %v6711
      %v6715 = vunpack.c.l.s4 1966171168
      %v6716 = vunpack.c.0.s8 %v6715
      %v6717 = vlaneseq
      %v6718 = vshrl.u32 %v6717, 7
      %v6719 = vsub.s32 %v6716, %v6718
      %v6720 = vrot.slane %v6704, %v6719
      %v6722 = vunpack.c.l.s4 1966171168
      %v6723 = vunpack.c.0.s8 %v6722
      %v6724 = vlaneseq
      %v6725 = vshrl.u32 %v6724, 7
      %v6726 = vsub.s32 %v6723, %v6725
      %v6727 = vrot.slane %v6711, %v6726
      %v6729 = vunpack.c.l.s4 1966171168
      %v6730 = vunpack.c.0.s8 %v6729
      %v6731 = vlaneseq
      %v6732 = vshrl.u32 %v6731, 7
      %v6733 = vsub.s32 %v6730, %v6732
      %v6734 = vrot.slane %v6712, %v6733
      %v6736 = vunpack.c.l.s4 1966171168
      %v6737 = vunpack.c.0.s8 %v6736
      %v6738 = vlaneseq
      %v6739 = vshrl.u32 %v6738, 7
      %v6740 = vsub.s32 %v6737, %v6739
      %v6741 = vrot.slane %v6713, %v6740
      %v6742 = vcombine.high %v6720, %v6720
      %v6743 = vcombine.high %v6727, %v6727
      %v6744 = vcombine.high %v6734, %v6734
      %v6745 = vcombine.high %v4636, %v4636
      %v6747 = vunpack.c.l.s4 1966171168
      %v6748 = vunpack.c.0.s8 %v6747
      %v6749 = vlaneseq
      %v6750 = vshrl.u32 %v6749, 7
      %v6751 = vsub.s32 %v6748, %v6750
      %v6752 = vrot.slane %v4636, %v6751
      %v6754 = vunpack.c.l.s4 1966171168
      %v6755 = vunpack.c.0.s8 %v6754
      %v6756 = vlaneseq
      %v6757 = vshrl.u32 %v6756, 7
      %v6758 = vsub.s32 %v6755, %v6757
      %v6759 = vrot.slane %v6745, %v6758
      %v6760 = vcombine.high %v6752, %v6752
      %v6761 = vcombine.high %v6759, %v6759
      %v6763 = vunpack.c.l.s4 1966171168
      %v6764 = vunpack.c.0.s8 %v6763
      %v6765 = vlaneseq
      %v6766 = vshrl.u32 %v6765, 7
      %v6767 = vsub.s32 %v6764, %v6766
      %v6768 = vrot.slane %v6752, %v6767
      %v6770 = vunpack.c.l.s4 1966171168
      %v6771 = vunpack.c.0.s8 %v6770
      %v6772 = vlaneseq
      %v6773 = vshrl.u32 %v6772, 7
      %v6774 = vsub.s32 %v6771, %v6773
      %v6775 = vrot.slane %v6759, %v6774
      %v6777 = vunpack.c.l.s4 1966171168
      %v6778 = vunpack.c.0.s8 %v6777
      %v6779 = vlaneseq
      %v6780 = vshrl.u32 %v6779, 7
      %v6781 = vsub.s32 %v6778, %v6780
      %v6782 = vrot.slane %v6760, %v6781
      %v6784 = vunpack.c.l.s4 1966171168
      %v6785 = vunpack.c.0.s8 %v6784
      %v6786 = vlaneseq
      %v6787 = vshrl.u32 %v6786, 7
      %v6788 = vsub.s32 %v6785, %v6787
      %v6789 = vrot.slane %v6761, %v6788
      %v6790 = vcombine.high %v6768, %v6768
      %v6791 = vcombine.high %v6775, %v6775
      %v6792 = vcombine.high %v6782, %v6782
      %v6793 = vcombine.high %v4637, %v4637
      %v6795 = vunpack.c.l.s4 1966171168
      %v6796 = vunpack.c.0.s8 %v6795
      %v6797 = vlaneseq
      %v6798 = vshrl.u32 %v6797, 7
      %v6799 = vsub.s32 %v6796, %v6798
      %v6800 = vrot.slane %v4637, %v6799
      %v6802 = vunpack.c.l.s4 1966171168
      %v6803 = vunpack.c.0.s8 %v6802
      %v6804 = vlaneseq
      %v6805 = vshrl.u32 %v6804, 7
      %v6806 = vsub.s32 %v6803, %v6805
      %v6807 = vrot.slane %v6793, %v6806
      %v6808 = vcombine.high %v6800, %v6800
      %v6809 = vcombine.high %v6807, %v6807
      %v6811 = vunpack.c.l.s4 1966171168
      %v6812 = vunpack.c.0.s8 %v6811
      %v6813 = vlaneseq
      %v6814 = vshrl.u32 %v6813, 7
      %v6815 = vsub.s32 %v6812, %v6814
      %v6816 = vrot.slane %v6800, %v6815
      %v6818 = vunpack.c.l.s4 1966171168
      %v6819 = vunpack.c.0.s8 %v6818
      %v6820 = vlaneseq
      %v6821 = vshrl.u32 %v6820, 7
      %v6822 = vsub.s32 %v6819, %v6821
      %v6823 = vrot.slane %v6807, %v6822
      %v6825 = vunpack.c.l.s4 1966171168
      %v6826 = vunpack.c.0.s8 %v6825
      %v6827 = vlaneseq
      %v6828 = vshrl.u32 %v6827, 7
      %v6829 = vsub.s32 %v6826, %v6828
      %v6830 = vrot.slane %v6808, %v6829
      %v6832 = vunpack.c.l.s4 1966171168
      %v6833 = vunpack.c.0.s8 %v6832
      %v6834 = vlaneseq
      %v6835 = vshrl.u32 %v6834, 7
      %v6836 = vsub.s32 %v6833, %v6835
      %v6837 = vrot.slane %v6809, %v6836
      %v6838 = vcombine.high %v6816, %v6816
      %v6839 = vcombine.high %v6823, %v6823
      %v6840 = vcombine.high %v6830, %v6830
      %v6841 = vcombine.high %v4638, %v4638
      %v6843 = vunpack.c.l.s4 1966171168
      %v6844 = vunpack.c.0.s8 %v6843
      %v6845 = vlaneseq
      %v6846 = vshrl.u32 %v6845, 7
      %v6847 = vsub.s32 %v6844, %v6846
      %v6848 = vrot.slane %v4638, %v6847
      %v6850 = vunpack.c.l.s4 1966171168
      %v6851 = vunpack.c.0.s8 %v6850
      %v6852 = vlaneseq
      %v6853 = vshrl.u32 %v6852, 7
      %v6854 = vsub.s32 %v6851, %v6853
      %v6855 = vrot.slane %v6841, %v6854
      %v6856 = vcombine.high %v6848, %v6848
      %v6857 = vcombine.high %v6855, %v6855
      %v6859 = vunpack.c.l.s4 1966171168
      %v6860 = vunpack.c.0.s8 %v6859
      %v6861 = vlaneseq
      %v6862 = vshrl.u32 %v6861, 7
      %v6863 = vsub.s32 %v6860, %v6862
      %v6864 = vrot.slane %v6848, %v6863
      %v6866 = vunpack.c.l.s4 1966171168
      %v6867 = vunpack.c.0.s8 %v6866
      %v6868 = vlaneseq
      %v6869 = vshrl.u32 %v6868, 7
      %v6870 = vsub.s32 %v6867, %v6869
      %v6871 = vrot.slane %v6855, %v6870
      %v6873 = vunpack.c.l.s4 1966171168
      %v6874 = vunpack.c.0.s8 %v6873
      %v6875 = vlaneseq
      %v6876 = vshrl.u32 %v6875, 7
      %v6877 = vsub.s32 %v6874, %v6876
      %v6878 = vrot.slane %v6856, %v6877
      %v6880 = vunpack.c.l.s4 1966171168
      %v6881 = vunpack.c.0.s8 %v6880
      %v6882 = vlaneseq
      %v6883 = vshrl.u32 %v6882, 7
      %v6884 = vsub.s32 %v6881, %v6883
      %v6885 = vrot.slane %v6857, %v6884
      %v6886 = vcombine.high %v6864, %v6864
      %v6887 = vcombine.high %v6871, %v6871
      %v6888 = vcombine.high %v6878, %v6878
      %v6889 = vcombine.high %v4639, %v4639
      %v6891 = vunpack.c.l.s4 1966171168
      %v6892 = vunpack.c.0.s8 %v6891
      %v6893 = vlaneseq
      %v6894 = vshrl.u32 %v6893, 7
      %v6895 = vsub.s32 %v6892, %v6894
      %v6896 = vrot.slane %v4639, %v6895
      %v6898 = vunpack.c.l.s4 1966171168
      %v6899 = vunpack.c.0.s8 %v6898
      %v6900 = vlaneseq
      %v6901 = vshrl.u32 %v6900, 7
      %v6902 = vsub.s32 %v6899, %v6901
      %v6903 = vrot.slane %v6889, %v6902
      %v6904 = vcombine.high %v6896, %v6896
      %v6905 = vcombine.high %v6903, %v6903
      %v6907 = vunpack.c.l.s4 1966171168
      %v6908 = vunpack.c.0.s8 %v6907
      %v6909 = vlaneseq
      %v6910 = vshrl.u32 %v6909, 7
      %v6911 = vsub.s32 %v6908, %v6910
      %v6912 = vrot.slane %v6896, %v6911
      %v6914 = vunpack.c.l.s4 1966171168
      %v6915 = vunpack.c.0.s8 %v6914
      %v6916 = vlaneseq
      %v6917 = vshrl.u32 %v6916, 7
      %v6918 = vsub.s32 %v6915, %v6917
      %v6919 = vrot.slane %v6903, %v6918
      %v6921 = vunpack.c.l.s4 1966171168
      %v6922 = vunpack.c.0.s8 %v6921
      %v6923 = vlaneseq
      %v6924 = vshrl.u32 %v6923, 7
      %v6925 = vsub.s32 %v6922, %v6924
      %v6926 = vrot.slane %v6904, %v6925
      %v6928 = vunpack.c.l.s4 1966171168
      %v6929 = vunpack.c.0.s8 %v6928
      %v6930 = vlaneseq
      %v6931 = vshrl.u32 %v6930, 7
      %v6932 = vsub.s32 %v6929, %v6931
      %v6933 = vrot.slane %v6905, %v6932
      %v6934 = vcombine.high %v6912, %v6912
      %v6935 = vcombine.high %v6919, %v6919
      %v6936 = vcombine.high %v6926, %v6926
      %v6937 = vcombine.high %v4640, %v4640
      %v6939 = vunpack.c.l.s4 1966171168
      %v6940 = vunpack.c.0.s8 %v6939
      %v6941 = vlaneseq
      %v6942 = vshrl.u32 %v6941, 7
      %v6943 = vsub.s32 %v6940, %v6942
      %v6944 = vrot.slane %v4640, %v6943
      %v6946 = vunpack.c.l.s4 1966171168
      %v6947 = vunpack.c.0.s8 %v6946
      %v6948 = vlaneseq
      %v6949 = vshrl.u32 %v6948, 7
      %v6950 = vsub.s32 %v6947, %v6949
      %v6951 = vrot.slane %v6937, %v6950
      %v6952 = vcombine.high %v6944, %v6944
      %v6953 = vcombine.high %v6951, %v6951
      %v6955 = vunpack.c.l.s4 1966171168
      %v6956 = vunpack.c.0.s8 %v6955
      %v6957 = vlaneseq
      %v6958 = vshrl.u32 %v6957, 7
      %v6959 = vsub.s32 %v6956, %v6958
      %v6960 = vrot.slane %v6944, %v6959
      %v6962 = vunpack.c.l.s4 1966171168
      %v6963 = vunpack.c.0.s8 %v6962
      %v6964 = vlaneseq
      %v6965 = vshrl.u32 %v6964, 7
      %v6966 = vsub.s32 %v6963, %v6965
      %v6967 = vrot.slane %v6951, %v6966
      %v6969 = vunpack.c.l.s4 1966171168
      %v6970 = vunpack.c.0.s8 %v6969
      %v6971 = vlaneseq
      %v6972 = vshrl.u32 %v6971, 7
      %v6973 = vsub.s32 %v6970, %v6972
      %v6974 = vrot.slane %v6952, %v6973
      %v6976 = vunpack.c.l.s4 1966171168
      %v6977 = vunpack.c.0.s8 %v6976
      %v6978 = vlaneseq
      %v6979 = vshrl.u32 %v6978, 7
      %v6980 = vsub.s32 %v6977, %v6979
      %v6981 = vrot.slane %v6953, %v6980
      %v6982 = vcombine.high %v6960, %v6960
      %v6983 = vcombine.high %v6967, %v6967
      %v6984 = vcombine.high %v6974, %v6974
      %v6985 = vcombine.low %v6672, %v6686
      %v6986 = vcombine.low %v6694, %v6696
      %v6987 = vcombine.low %v6679, %v6693
      %v6988 = vcombine.low %v6695, %v6720
      %v6990 = vunpack.c.l.s4 1966171168
      %v6991 = vunpack.c.0.s8 %v6990
      %v6992 = vlaneseq
      %v6993 = vshrl.u32 %v6992, 7
      %v6994 = vsub.s32 %v6991, %v6993
      %v6995 = vrot.slane %v6985, %v6994
      %v6997 = vunpack.c.l.s4 1966171168
      %v6998 = vunpack.c.0.s8 %v6997
      %v6999 = vlaneseq
      %v7000 = vshrl.u32 %v6999, 7
      %v7001 = vsub.s32 %v6998, %v7000
      %v7002 = vrot.slane %v6986, %v7001
      %v7004 = vunpack.c.l.s4 1966171168
      %v7005 = vunpack.c.0.s8 %v7004
      %v7006 = vlaneseq
      %v7007 = vshrl.u32 %v7006, 7
      %v7008 = vsub.s32 %v7005, %v7007
      %v7009 = vrot.slane %v6987, %v7008
      %v7011 = vunpack.c.l.s4 1966171168
      %v7012 = vunpack.c.0.s8 %v7011
      %v7013 = vlaneseq
      %v7014 = vshrl.u32 %v7013, 7
      %v7015 = vsub.s32 %v7012, %v7014
      %v7016 = vrot.slane %v6988, %v7015
      %v7017 = vcombine.low %v6995, %v7002
      %v7018 = vcombine.low %v7009, %v7016
      %v7020 = vunpack.c.l.s4 1966171168
      %v7021 = vunpack.c.0.s8 %v7020
      %v7022 = vlaneseq
      %v7023 = vshrl.u32 %v7022, 7
      %v7024 = vsub.s32 %v7021, %v7023
      %v7025 = vrot.slane %v7017, %v7024
      %v7027 = vunpack.c.l.s4 1966171168
      %v7028 = vunpack.c.0.s8 %v7027
      %v7029 = vlaneseq
      %v7030 = vshrl.u32 %v7029, 7
      %v7031 = vsub.s32 %v7028, %v7030
      %v7032 = vrot.slane %v7018, %v7031
      %v7033 = vcombine.low %v7025, %v7032
      %v7034 = vcombine.low %v6734, %v6742
      %v7035 = vcombine.low %v6744, %v6727
      %v7036 = vcombine.low %v6741, %v6743
      %v7037 = vcombine.low %v6768, %v6782
      %v7039 = vunpack.c.l.s4 1966171168
      %v7040 = vunpack.c.0.s8 %v7039
      %v7041 = vlaneseq
      %v7042 = vshrl.u32 %v7041, 7
      %v7043 = vsub.s32 %v7040, %v7042
      %v7044 = vrot.slane %v7034, %v7043
      %v7046 = vunpack.c.l.s4 1966171168
      %v7047 = vunpack.c.0.s8 %v7046
      %v7048 = vlaneseq
      %v7049 = vshrl.u32 %v7048, 7
      %v7050 = vsub.s32 %v7047, %v7049
      %v7051 = vrot.slane %v7035, %v7050
      %v7053 = vunpack.c.l.s4 1966171168
      %v7054 = vunpack.c.0.s8 %v7053
      %v7055 = vlaneseq
      %v7056 = vshrl.u32 %v7055, 7
      %v7057 = vsub.s32 %v7054, %v7056
      %v7058 = vrot.slane %v7036, %v7057
      %v7060 = vunpack.c.l.s4 1966171168
      %v7061 = vunpack.c.0.s8 %v7060
      %v7062 = vlaneseq
      %v7063 = vshrl.u32 %v7062, 7
      %v7064 = vsub.s32 %v7061, %v7063
      %v7065 = vrot.slane %v7037, %v7064
      %v7066 = vcombine.low %v7044, %v7051
      %v7067 = vcombine.low %v7058, %v7065
      %v7069 = vunpack.c.l.s4 1966171168
      %v7070 = vunpack.c.0.s8 %v7069
      %v7071 = vlaneseq
      %v7072 = vshrl.u32 %v7071, 7
      %v7073 = vsub.s32 %v7070, %v7072
      %v7074 = vrot.slane %v7066, %v7073
      %v7076 = vunpack.c.l.s4 1966171168
      %v7077 = vunpack.c.0.s8 %v7076
      %v7078 = vlaneseq
      %v7079 = vshrl.u32 %v7078, 7
      %v7080 = vsub.s32 %v7077, %v7079
      %v7081 = vrot.slane %v7067, %v7080
      %v7082 = vcombine.low %v7074, %v7081
      %v7083 = vcombine.low %v6790, %v6792
      %v7084 = vcombine.low %v6775, %v6789
      %v7085 = vcombine.low %v6791, %v6816
      %v7086 = vcombine.low %v6830, %v6838
      %v7088 = vunpack.c.l.s4 1966171168
      %v7089 = vunpack.c.0.s8 %v7088
      %v7090 = vlaneseq
      %v7091 = vshrl.u32 %v7090, 7
      %v7092 = vsub.s32 %v7089, %v7091
      %v7093 = vrot.slane %v7083, %v7092
      %v7095 = vunpack.c.l.s4 1966171168
      %v7096 = vunpack.c.0.s8 %v7095
      %v7097 = vlaneseq
      %v7098 = vshrl.u32 %v7097, 7
      %v7099 = vsub.s32 %v7096, %v7098
      %v7100 = vrot.slane %v7084, %v7099
      %v7102 = vunpack.c.l.s4 1966171168
      %v7103 = vunpack.c.0.s8 %v7102
      %v7104 = vlaneseq
      %v7105 = vshrl.u32 %v7104, 7
      %v7106 = vsub.s32 %v7103, %v7105
      %v7107 = vrot.slane %v7085, %v7106
      %v7109 = vunpack.c.l.s4 1966171168
      %v7110 = vunpack.c.0.s8 %v7109
      %v7111 = vlaneseq
      %v7112 = vshrl.u32 %v7111, 7
      %v7113 = vsub.s32 %v7110, %v7112
      %v7114 = vrot.slane %v7086, %v7113
      %v7115 = vcombine.low %v7093, %v7100
      %v7116 = vcombine.low %v7107, %v7114
      %v7118 = vunpack.c.l.s4 1966171168
      %v7119 = vunpack.c.0.s8 %v7118
      %v7120 = vlaneseq
      %v7121 = vshrl.u32 %v7120, 7
      %v7122 = vsub.s32 %v7119, %v7121
      %v7123 = vrot.slane %v7115, %v7122
      %v7125 = vunpack.c.l.s4 1966171168
      %v7126 = vunpack.c.0.s8 %v7125
      %v7127 = vlaneseq
      %v7128 = vshrl.u32 %v7127, 7
      %v7129 = vsub.s32 %v7126, %v7128
      %v7130 = vrot.slane %v7116, %v7129
      %v7131 = vcombine.low %v7123, %v7130
      %v7132 = vcombine.low %v6840, %v6823
      %v7133 = vcombine.low %v6837, %v6839
      %v7134 = vcombine.low %v6864, %v6878
      %v7135 = vcombine.low %v6886, %v6888
      %v7137 = vunpack.c.l.s4 1966171168
      %v7138 = vunpack.c.0.s8 %v7137
      %v7139 = vlaneseq
      %v7140 = vshrl.u32 %v7139, 7
      %v7141 = vsub.s32 %v7138, %v7140
      %v7142 = vrot.slane %v7132, %v7141
      %v7144 = vunpack.c.l.s4 1966171168
      %v7145 = vunpack.c.0.s8 %v7144
      %v7146 = vlaneseq
      %v7147 = vshrl.u32 %v7146, 7
      %v7148 = vsub.s32 %v7145, %v7147
      %v7149 = vrot.slane %v7133, %v7148
      %v7151 = vunpack.c.l.s4 1966171168
      %v7152 = vunpack.c.0.s8 %v7151
      %v7153 = vlaneseq
      %v7154 = vshrl.u32 %v7153, 7
      %v7155 = vsub.s32 %v7152, %v7154
      %v7156 = vrot.slane %v7134, %v7155
      %v7158 = vunpack.c.l.s4 1966171168
      %v7159 = vunpack.c.0.s8 %v7158
      %v7160 = vlaneseq
      %v7161 = vshrl.u32 %v7160, 7
      %v7162 = vsub.s32 %v7159, %v7161
      %v7163 = vrot.slane %v7135, %v7162
      %v7164 = vcombine.low %v7142, %v7149
      %v7165 = vcombine.low %v7156, %v7163
      %v7167 = vunpack.c.l.s4 1966171168
      %v7168 = vunpack.c.0.s8 %v7167
      %v7169 = vlaneseq
      %v7170 = vshrl.u32 %v7169, 7
      %v7171 = vsub.s32 %v7168, %v7170
      %v7172 = vrot.slane %v7164, %v7171
      %v7174 = vunpack.c.l.s4 1966171168
      %v7175 = vunpack.c.0.s8 %v7174
      %v7176 = vlaneseq
      %v7177 = vshrl.u32 %v7176, 7
      %v7178 = vsub.s32 %v7175, %v7177
      %v7179 = vrot.slane %v7165, %v7178
      %v7180 = vcombine.low %v7172, %v7179
      %v7181 = vcombine.low %v6871, %v6885
      %v7182 = vcombine.low %v6887, %v6912
      %v7183 = vcombine.low %v6926, %v6934
      %v7184 = vcombine.low %v6936, %v6919
      %v7186 = vunpack.c.l.s4 1966171168
      %v7187 = vunpack.c.0.s8 %v7186
      %v7188 = vlaneseq
      %v7189 = vshrl.u32 %v7188, 7
      %v7190 = vsub.s32 %v7187, %v7189
      %v7191 = vrot.slane %v7181, %v7190
      %v7193 = vunpack.c.l.s4 1966171168
      %v7194 = vunpack.c.0.s8 %v7193
      %v7195 = vlaneseq
      %v7196 = vshrl.u32 %v7195, 7
      %v7197 = vsub.s32 %v7194, %v7196
      %v7198 = vrot.slane %v7182, %v7197
      %v7200 = vunpack.c.l.s4 1966171168
      %v7201 = vunpack.c.0.s8 %v7200
      %v7202 = vlaneseq
      %v7203 = vshrl.u32 %v7202, 7
      %v7204 = vsub.s32 %v7201, %v7203
      %v7205 = vrot.slane %v7183, %v7204
      %v7207 = vunpack.c.l.s4 1966171168
      %v7208 = vunpack.c.0.s8 %v7207
      %v7209 = vlaneseq
      %v7210 = vshrl.u32 %v7209, 7
      %v7211 = vsub.s32 %v7208, %v7210
      %v7212 = vrot.slane %v7184, %v7211
      %v7213 = vcombine.low %v7191, %v7198
      %v7214 = vcombine.low %v7205, %v7212
      %v7216 = vunpack.c.l.s4 1966171168
      %v7217 = vunpack.c.0.s8 %v7216
      %v7218 = vlaneseq
      %v7219 = vshrl.u32 %v7218, 7
      %v7220 = vsub.s32 %v7217, %v7219
      %v7221 = vrot.slane %v7213, %v7220
      %v7223 = vunpack.c.l.s4 1966171168
      %v7224 = vunpack.c.0.s8 %v7223
      %v7225 = vlaneseq
      %v7226 = vshrl.u32 %v7225, 7
      %v7227 = vsub.s32 %v7224, %v7226
      %v7228 = vrot.slane %v7214, %v7227
      %v7229 = vcombine.low %v7221, %v7228
      %v7230 = vcombine.low %v6933, %v6935
      %v7231 = vcombine.low %v6960, %v6974
      %v7232 = vcombine.low %v6982, %v6984
      %v7233 = vcombine.low %v6967, %v6981
      %v7235 = vunpack.c.l.s4 1966171168
      %v7236 = vunpack.c.0.s8 %v7235
      %v7237 = vlaneseq
      %v7238 = vshrl.u32 %v7237, 7
      %v7239 = vsub.s32 %v7236, %v7238
      %v7240 = vrot.slane %v7230, %v7239
      %v7242 = vunpack.c.l.s4 1966171168
      %v7243 = vunpack.c.0.s8 %v7242
      %v7244 = vlaneseq
      %v7245 = vshrl.u32 %v7244, 7
      %v7246 = vsub.s32 %v7243, %v7245
      %v7247 = vrot.slane %v7231, %v7246
      %v7249 = vunpack.c.l.s4 1966171168
      %v7250 = vunpack.c.0.s8 %v7249
      %v7251 = vlaneseq
      %v7252 = vshrl.u32 %v7251, 7
      %v7253 = vsub.s32 %v7250, %v7252
      %v7254 = vrot.slane %v7232, %v7253
      %v7256 = vunpack.c.l.s4 1966171168
      %v7257 = vunpack.c.0.s8 %v7256
      %v7258 = vlaneseq
      %v7259 = vshrl.u32 %v7258, 7
      %v7260 = vsub.s32 %v7257, %v7259
      %v7261 = vrot.slane %v7233, %v7260
      %v7262 = vcombine.low %v7240, %v7247
      %v7263 = vcombine.low %v7254, %v7261
      %v7265 = vunpack.c.l.s4 1966171168
      %v7266 = vunpack.c.0.s8 %v7265
      %v7267 = vlaneseq
      %v7268 = vshrl.u32 %v7267, 7
      %v7269 = vsub.s32 %v7266, %v7268
      %v7270 = vrot.slane %v7262, %v7269
      %v7272 = vunpack.c.l.s4 1966171168
      %v7273 = vunpack.c.0.s8 %v7272
      %v7274 = vlaneseq
      %v7275 = vshrl.u32 %v7274, 7
      %v7276 = vsub.s32 %v7273, %v7275
      %v7277 = vrot.slane %v7263, %v7276
      %v7278 = vcombine.low %v7270, %v7277
      %v7280 = vunpack.c.l.s4 1966171168
      %v7281 = vunpack.c.0.s8 %v7280
      %v7282 = vlaneseq
      %v7283 = vshrl.u32 %v7282, 7
      %v7284 = vsub.s32 %v7281, %v7283
      %v7285 = vrot.slane %v6983, %v7284
      %v7287 = vunpack.c.l.s4 1966171168
      %v7288 = vunpack.c.0.s8 %v7287
      %v7289 = vlaneseq
      %v7290 = vshrl.u32 %v7289, 7
      %v7291 = vsub.s32 %v7288, %v7290
      %v7292 = vrot.slane %v7285, %v7291
      %v7300 = vpack.c.bf16 %v7082, %v7033
      %v7301 = vpack.c.bf16 %v7180, %v7131
      %v7302 = vpack.c.bf16 %v7278, %v7229
      %v7303 = vpack.c.bf16 %v7292, %v7292
      %s7304 = scalar_lea.vmem %s6, 48
      %v7305 = vld [vmem:[%s7304] sm:$0xf]
      %v7306 = vld [vmem:[%s7304 + $0x4] sm:$0xf]
      %v7307 = vld [vmem:[%s7304 + $0x8] sm:$0xf]
      %v7308 = vld [vmem:[%s7304 + $0xc] sm:$0xf]
      %v7309 = vld [vmem:[%s7304 + $0x10] sm:$0xf]
      %v7310 = vld [vmem:[%s7304 + $0x14] sm:$0xf]
      %v7311 = vld [vmem:[%s7304 + $0x18] sm:$0xf]
      %v7312 = vld [vmem:[%s7304 + $0x1c] sm:$0xf]
      %v7313 = vld [vmem:[%s7304 + $0x20] sm:$0xf]
      %v7314 = vld [vmem:[%s7304 + $0x24] sm:$0xf]
      %v7315 = vld [vmem:[%s7304 + $0x28] sm:$0xf]
      %v7316 = vld [vmem:[%s7304 + $0x2c] sm:$0xf]
      %v7329 = vunpack.c.l.b16 %v7305
      %v7330 = vunpack.c.l.b16 %v7306
      %v7331 = vunpack.c.l.b16 %v7307
      %v7332 = vunpack.c.l.b16 %v7308
      %v7333 = vunpack.c.l.b16 %v7309
      %v7334 = vunpack.c.l.b16 %v7310
      %v7335 = vunpack.c.l.b16 %v7311
      %v7336 = vunpack.c.l.b16 %v7312
      %v7337 = vunpack.c.l.b16 %v7313
      %v7338 = vunpack.c.l.b16 %v7314
      %v7339 = vunpack.c.l.b16 %v7315
      %v7340 = vunpack.c.l.b16 %v7316
      %v7341 = vpack.c.b16 %v7330, %v7329
      %v7342 = vpack.c.b16 %v7332, %v7331
      %v7343 = vpack.c.b16 %v7334, %v7333
      %v7344 = vpack.c.b16 %v7336, %v7335
      %v7345 = vpack.c.b16 %v7338, %v7337
      %v7346 = vpack.c.b16 %v7340, %v7339
      %vm7353 = vcmask 785408
      %v7355 = vsel %vm7353, %v7300, 0
      %v7358 = vsel %vm7353, %v7301, 0
      %v7361 = vsel %vm7353, %v7302, 0
      %v7364 = vsel %vm7353, %v7303, 0
      %7366 = vmatprep.subr.bf16.mxu0 0
      %7367 = vmatpush1.bf16.msra.mxu0 %v7341
      %7368 = vmatprep.subr.bf16.mxu0 0
      %7369 = vmatpush1.bf16.msra.mxu0 %v7342
      %7370 = vmatprep.subr.bf16.mxu0 0
      %7371 = vmatpush1.bf16.msra.mxu0 %v7343
      %7372 = vmatprep.subr.bf16.mxu0 0
      %7373 = vmatpush1.bf16.msra.mxu0 %v7344
      %7374 = vmatprep.subr.bf16.mxu0 0
      %7375 = vmatpush1.bf16.msra.mxu0 %v7345
      %7376 = vmatprep.subr.bf16.mxu0 0
      %7377 = vmatpush1.bf16.msra.mxu0 %v7346
      %7378 = vmatprep.subr.bf16.mxu0 0
      %7379 = vmatpush1.bf16.msra.mxu0 0
      %7380 = vmatprep.subr.bf16.mxu0 0
      %7381 = vmatpush1.bf16.msra.mxu0 0
      %7382 = vmatprep.subr.bf16.mxu0 0
      %7383 = vmatpush1.bf16.msra.mxu0 0
      %7384 = vmatprep.subr.bf16.mxu0 0
      %7385 = vmatpush1.bf16.msra.mxu0 0
      %7386 = vmatprep.subr.bf16.mxu0 0
      %7387 = vmatpush1.bf16.msra.mxu0 0
      %7388 = vmatprep.subr.bf16.mxu0 0
      %7389 = vmatpush1.bf16.msra.mxu0 0
      %7390 = vmatprep.subr.bf16.mxu0 0
      %7391 = vmatpush1.bf16.msra.mxu0 0
      %7392 = vmatprep.subr.bf16.mxu0 0
      %7393 = vmatpush1.bf16.msra.mxu0 0
      %7394 = vmatprep.subr.bf16.mxu0 0
      %7395 = vmatpush1.bf16.msra.mxu0 0
      %7396 = vmatprep.subr.bf16.mxu0 0
      %7397 = vmatpush1.bf16.msra.mxu0 0
      %7398 = vmatprep.mubr.bf16.mxu0 0
      %7399 = vmatmul.mubr.bf16.gmra.mrb[0].mxu0 %v7355
      %v7400 = vpop.f32.mrb[0].mxu0
      %v7401 = vadd.f32 0.0, %v7400
      %v7402 = vpop.f32.mrb[0].mxu0
      %v7403 = vpop.f32.mrb[0].mxu0
      %v7404 = vadd.f32 0.0, %v7403
      %v7405 = vpop.f32.mrb[0].mxu0
      %7406 = vmatprep.mubr.bf16.mxu0 0
      %7407 = vmatmul.mubr.bf16.gmra.mrb[0].mxu0 %v7358
      %v7408 = vpop.f32.mrb[0].mxu0
      %v7409 = vadd.f32 0.0, %v7408
      %v7410 = vpop.f32.mrb[0].mxu0
      %v7411 = vpop.f32.mrb[0].mxu0
      %v7412 = vadd.f32 0.0, %v7411
      %v7413 = vpop.f32.mrb[0].mxu0
      %7414 = vmatprep.mubr.bf16.mxu0 0
      %7415 = vmatmul.mubr.bf16.gmra.mrb[0].mxu0 %v7361
      %v7416 = vpop.f32.mrb[0].mxu0
      %v7417 = vadd.f32 0.0, %v7416
      %v7418 = vpop.f32.mrb[0].mxu0
      %v7419 = vpop.f32.mrb[0].mxu0
      %v7420 = vadd.f32 0.0, %v7419
      %v7421 = vpop.f32.mrb[0].mxu0
      %7422 = vmatprep.mubr.bf16.mxu0 0
      %7423 = vmatmul.mubr.bf16.gmra.mrb[0].mxu0 %v7364
      %v7424 = vpop.f32.mrb[0].mxu0
      %v7425 = vadd.f32 0.0, %v7424
      %v7426 = vpop.f32.mrb[0].mxu0
      %v7427 = vpop.f32.mrb[0].mxu0
      %v7428 = vpop.f32.mrb[0].mxu0
      %7429 = vdwg.mxu0
      %v7442 = vunpack.c.l.b16 %v6630
      %v7443 = vunpack.c.l.b16 %v6631
      %v7444 = vunpack.c.l.b16 %v6632
      %v7445 = vunpack.c.l.b16 %v6633
      %v7446 = vunpack.c.l.b16 %v6634
      %v7447 = vunpack.c.l.b16 %v6635
      %v7448 = vunpack.c.l.b16 %v6636
      %v7449 = vunpack.c.l.b16 %v6637
      %v7450 = vunpack.c.l.b16 %v6638
      %v7451 = vunpack.c.l.b16 %v6639
      %v7452 = vunpack.c.l.b16 %v6640
      %v7453 = vunpack.c.l.b16 %v6641
      %v7454 = vpack.c.b16 %v7443, %v7442
      %v7455 = vpack.c.b16 %v7445, %v7444
      %v7456 = vpack.c.b16 %v7447, %v7446
      %v7457 = vpack.c.b16 %v7449, %v7448
      %v7458 = vpack.c.b16 %v7451, %v7450
      %v7459 = vpack.c.b16 %v7453, %v7452
      %v7467 = vsel %vm7353, %v6626, 0
      %v7470 = vsel %vm7353, %v6627, 0
      %v7473 = vsel %vm7353, %v6628, 0
      %v7476 = vsel %vm7353, %v6629, 0
      %7478 = vmatprep.subr.bf16.mxu0 0
      %7479 = vmatpush1.bf16.msra.mxu0 %v7454
      %7480 = vmatprep.subr.bf16.mxu0 0
      %7481 = vmatpush1.bf16.msra.mxu0 %v7455
      %7482 = vmatprep.subr.bf16.mxu0 0
      %7483 = vmatpush1.bf16.msra.mxu0 %v7456
      %7484 = vmatprep.subr.bf16.mxu0 0
      %7485 = vmatpush1.bf16.msra.mxu0 %v7457
      %7486 = vmatprep.subr.bf16.mxu0 0
      %7487 = vmatpush1.bf16.msra.mxu0 %v7458
      %7488 = vmatprep.subr.bf16.mxu0 0
      %7489 = vmatpush1.bf16.msra.mxu0 %v7459
      %7490 = vmatprep.subr.bf16.mxu0 0
      %7491 = vmatpush1.bf16.msra.mxu0 0
      %7492 = vmatprep.subr.bf16.mxu0 0
      %7493 = vmatpush1.bf16.msra.mxu0 0
      %7494 = vmatprep.subr.bf16.mxu0 0
      %7495 = vmatpush1.bf16.msra.mxu0 0
      %7496 = vmatprep.subr.bf16.mxu0 0
      %7497 = vmatpush1.bf16.msra.mxu0 0
      %7498 = vmatprep.subr.bf16.mxu0 0
      %7499 = vmatpush1.bf16.msra.mxu0 0
      %7500 = vmatprep.subr.bf16.mxu0 0
      %7501 = vmatpush1.bf16.msra.mxu0 0
      %7502 = vmatprep.subr.bf16.mxu0 0
      %7503 = vmatpush1.bf16.msra.mxu0 0
      %7504 = vmatprep.subr.bf16.mxu0 0
      %7505 = vmatpush1.bf16.msra.mxu0 0
      %7506 = vmatprep.subr.bf16.mxu0 0
      %7507 = vmatpush1.bf16.msra.mxu0 0
      %7508 = vmatprep.subr.bf16.mxu0 0
      %7509 = vmatpush1.bf16.msra.mxu0 0
      %7510 = vmatprep.mubr.bf16.mxu0 0
      %7511 = vmatmul.mubr.bf16.gmra.mrb[0].mxu0 %v7467
      %v7512 = vpop.f32.mrb[0].mxu0
      %v7513 = vadd.f32 %v7401, %v7512
      %v7514 = vpop.f32.mrb[0].mxu0
      %v7515 = vpop.f32.mrb[0].mxu0
      %v7516 = vadd.f32 %v7404, %v7515
      %v7517 = vpop.f32.mrb[0].mxu0
      %7518 = vmatprep.mubr.bf16.mxu0 0
      %7519 = vmatmul.mubr.bf16.gmra.mrb[0].mxu0 %v7470
      %v7520 = vpop.f32.mrb[0].mxu0
      %v7521 = vadd.f32 %v7409, %v7520
      %v7522 = vpop.f32.mrb[0].mxu0
      %v7523 = vpop.f32.mrb[0].mxu0
      %v7524 = vadd.f32 %v7412, %v7523
      %v7525 = vpop.f32.mrb[0].mxu0
      %7526 = vmatprep.mubr.bf16.mxu0 0
      %7527 = vmatmul.mubr.bf16.gmra.mrb[0].mxu0 %v7473
      %v7528 = vpop.f32.mrb[0].mxu0
      %v7529 = vadd.f32 %v7417, %v7528
      %v7530 = vpop.f32.mrb[0].mxu0
      %v7531 = vpop.f32.mrb[0].mxu0
      %v7532 = vadd.f32 %v7420, %v7531
      %v7533 = vpop.f32.mrb[0].mxu0
      %7534 = vmatprep.mubr.bf16.mxu0 0
      %7535 = vmatmul.mubr.bf16.gmra.mrb[0].mxu0 %v7476
      %v7536 = vpop.f32.mrb[0].mxu0
      %v7537 = vadd.f32 %v7425, %v7536
      %v7538 = vpop.f32.mrb[0].mxu0
      %v7539 = vpop.f32.mrb[0].mxu0
      %v7540 = vpop.f32.mrb[0].mxu0
      %7541 = vdwg.mxu0
      %v7542 = vcombine.high %v6019, %v6019
      %v7543 = vcombine.high %v6067, %v6067
      %v7544 = vcombine.high %v6115, %v6115
      %v7545 = vcombine.high %v6163, %v6163
      %v7546 = vcombine.high %v6211, %v6211
      %v7547 = vcombine.high %v6259, %v6259
      %v7548 = vcombine.high %v6307, %v6307
      %v7549 = vcombine.low %v6012, %v6020
      %v7550 = vcombine.low %v6022, %v6005
      %v7551 = vcombine.low %v6019, %v6021
      %v7552 = vcombine.low %v7542, %v6060
      %v7554 = vunpack.c.l.s4 1966171168
      %v7555 = vunpack.c.0.s8 %v7554
      %v7556 = vlaneseq
      %v7557 = vshrl.u32 %v7556, 7
      %v7558 = vsub.s32 %v7555, %v7557
      %v7559 = vrot.slane %v7549, %v7558
      %v7561 = vunpack.c.l.s4 1966171168
      %v7562 = vunpack.c.0.s8 %v7561
      %v7563 = vlaneseq
      %v7564 = vshrl.u32 %v7563, 7
      %v7565 = vsub.s32 %v7562, %v7564
      %v7566 = vrot.slane %v7550, %v7565
      %v7568 = vunpack.c.l.s4 1966171168
      %v7569 = vunpack.c.0.s8 %v7568
      %v7570 = vlaneseq
      %v7571 = vshrl.u32 %v7570, 7
      %v7572 = vsub.s32 %v7569, %v7571
      %v7573 = vrot.slane %v7551, %v7572
      %v7575 = vunpack.c.l.s4 1966171168
      %v7576 = vunpack.c.0.s8 %v7575
      %v7577 = vlaneseq
      %v7578 = vshrl.u32 %v7577, 7
      %v7579 = vsub.s32 %v7576, %v7578
      %v7580 = vrot.slane %v7552, %v7579
      %v7581 = vcombine.low %v7559, %v7566
      %v7582 = vcombine.low %v7573, %v7580
      %v7584 = vunpack.c.l.s4 1966171168
      %v7585 = vunpack.c.0.s8 %v7584
      %v7586 = vlaneseq
      %v7587 = vshrl.u32 %v7586, 7
      %v7588 = vsub.s32 %v7585, %v7587
      %v7589 = vrot.slane %v7581, %v7588
      %v7591 = vunpack.c.l.s4 1966171168
      %v7592 = vunpack.c.0.s8 %v7591
      %v7593 = vlaneseq
      %v7594 = vshrl.u32 %v7593, 7
      %v7595 = vsub.s32 %v7592, %v7594
      %v7596 = vrot.slane %v7582, %v7595
      %v7597 = vcombine.low %v7589, %v7596
      %v7598 = vcombine.low %v6068, %v6070
      %v7599 = vcombine.low %v6053, %v6067
      %v7600 = vcombine.low %v6069, %v7543
      %v7601 = vcombine.low %v6108, %v6116
      %v7603 = vunpack.c.l.s4 1966171168
      %v7604 = vunpack.c.0.s8 %v7603
      %v7605 = vlaneseq
      %v7606 = vshrl.u32 %v7605, 7
      %v7607 = vsub.s32 %v7604, %v7606
      %v7608 = vrot.slane %v7598, %v7607
      %v7610 = vunpack.c.l.s4 1966171168
      %v7611 = vunpack.c.0.s8 %v7610
      %v7612 = vlaneseq
      %v7613 = vshrl.u32 %v7612, 7
      %v7614 = vsub.s32 %v7611, %v7613
      %v7615 = vrot.slane %v7599, %v7614
      %v7617 = vunpack.c.l.s4 1966171168
      %v7618 = vunpack.c.0.s8 %v7617
      %v7619 = vlaneseq
      %v7620 = vshrl.u32 %v7619, 7
      %v7621 = vsub.s32 %v7618, %v7620
      %v7622 = vrot.slane %v7600, %v7621
      %v7624 = vunpack.c.l.s4 1966171168
      %v7625 = vunpack.c.0.s8 %v7624
      %v7626 = vlaneseq
      %v7627 = vshrl.u32 %v7626, 7
      %v7628 = vsub.s32 %v7625, %v7627
      %v7629 = vrot.slane %v7601, %v7628
      %v7630 = vcombine.low %v7608, %v7615
      %v7631 = vcombine.low %v7622, %v7629
      %v7633 = vunpack.c.l.s4 1966171168
      %v7634 = vunpack.c.0.s8 %v7633
      %v7635 = vlaneseq
      %v7636 = vshrl.u32 %v7635, 7
      %v7637 = vsub.s32 %v7634, %v7636
      %v7638 = vrot.slane %v7630, %v7637
      %v7640 = vunpack.c.l.s4 1966171168
      %v7641 = vunpack.c.0.s8 %v7640
      %v7642 = vlaneseq
      %v7643 = vshrl.u32 %v7642, 7
      %v7644 = vsub.s32 %v7641, %v7643
      %v7645 = vrot.slane %v7631, %v7644
      %v7646 = vcombine.low %v7638, %v7645
      %v7647 = vcombine.low %v6118, %v6101
      %v7648 = vcombine.low %v6115, %v6117
      %v7649 = vcombine.low %v7544, %v6156
      %v7650 = vcombine.low %v6164, %v6166
      %v7652 = vunpack.c.l.s4 1966171168
      %v7653 = vunpack.c.0.s8 %v7652
      %v7654 = vlaneseq
      %v7655 = vshrl.u32 %v7654, 7
      %v7656 = vsub.s32 %v7653, %v7655
      %v7657 = vrot.slane %v7647, %v7656
      %v7659 = vunpack.c.l.s4 1966171168
      %v7660 = vunpack.c.0.s8 %v7659
      %v7661 = vlaneseq
      %v7662 = vshrl.u32 %v7661, 7
      %v7663 = vsub.s32 %v7660, %v7662
      %v7664 = vrot.slane %v7648, %v7663
      %v7666 = vunpack.c.l.s4 1966171168
      %v7667 = vunpack.c.0.s8 %v7666
      %v7668 = vlaneseq
      %v7669 = vshrl.u32 %v7668, 7
      %v7670 = vsub.s32 %v7667, %v7669
      %v7671 = vrot.slane %v7649, %v7670
      %v7673 = vunpack.c.l.s4 1966171168
      %v7674 = vunpack.c.0.s8 %v7673
      %v7675 = vlaneseq
      %v7676 = vshrl.u32 %v7675, 7
      %v7677 = vsub.s32 %v7674, %v7676
      %v7678 = vrot.slane %v7650, %v7677
      %v7679 = vcombine.low %v7657, %v7664
      %v7680 = vcombine.low %v7671, %v7678
      %v7682 = vunpack.c.l.s4 1966171168
      %v7683 = vunpack.c.0.s8 %v7682
      %v7684 = vlaneseq
      %v7685 = vshrl.u32 %v7684, 7
      %v7686 = vsub.s32 %v7683, %v7685
      %v7687 = vrot.slane %v7679, %v7686
      %v7689 = vunpack.c.l.s4 1966171168
      %v7690 = vunpack.c.0.s8 %v7689
      %v7691 = vlaneseq
      %v7692 = vshrl.u32 %v7691, 7
      %v7693 = vsub.s32 %v7690, %v7692
      %v7694 = vrot.slane %v7680, %v7693
      %v7695 = vcombine.low %v7687, %v7694
      %v7696 = vcombine.low %v6149, %v6163
      %v7697 = vcombine.low %v6165, %v7545
      %v7698 = vcombine.low %v6204, %v6212
      %v7699 = vcombine.low %v6214, %v6197
      %v7701 = vunpack.c.l.s4 1966171168
      %v7702 = vunpack.c.0.s8 %v7701
      %v7703 = vlaneseq
      %v7704 = vshrl.u32 %v7703, 7
      %v7705 = vsub.s32 %v7702, %v7704
      %v7706 = vrot.slane %v7696, %v7705
      %v7708 = vunpack.c.l.s4 1966171168
      %v7709 = vunpack.c.0.s8 %v7708
      %v7710 = vlaneseq
      %v7711 = vshrl.u32 %v7710, 7
      %v7712 = vsub.s32 %v7709, %v7711
      %v7713 = vrot.slane %v7697, %v7712
      %v7715 = vunpack.c.l.s4 1966171168
      %v7716 = vunpack.c.0.s8 %v7715
      %v7717 = vlaneseq
      %v7718 = vshrl.u32 %v7717, 7
      %v7719 = vsub.s32 %v7716, %v7718
      %v7720 = vrot.slane %v7698, %v7719
      %v7722 = vunpack.c.l.s4 1966171168
      %v7723 = vunpack.c.0.s8 %v7722
      %v7724 = vlaneseq
      %v7725 = vshrl.u32 %v7724, 7
      %v7726 = vsub.s32 %v7723, %v7725
      %v7727 = vrot.slane %v7699, %v7726
      %v7728 = vcombine.low %v7706, %v7713
      %v7729 = vcombine.low %v7720, %v7727
      %v7731 = vunpack.c.l.s4 1966171168
      %v7732 = vunpack.c.0.s8 %v7731
      %v7733 = vlaneseq
      %v7734 = vshrl.u32 %v7733, 7
      %v7735 = vsub.s32 %v7732, %v7734
      %v7736 = vrot.slane %v7728, %v7735
      %v7738 = vunpack.c.l.s4 1966171168
      %v7739 = vunpack.c.0.s8 %v7738
      %v7740 = vlaneseq
      %v7741 = vshrl.u32 %v7740, 7
      %v7742 = vsub.s32 %v7739, %v7741
      %v7743 = vrot.slane %v7729, %v7742
      %v7744 = vcombine.low %v7736, %v7743
      %v7745 = vcombine.low %v6211, %v6213
      %v7746 = vcombine.low %v7546, %v6252
      %v7747 = vcombine.low %v6260, %v6262
      %v7748 = vcombine.low %v6245, %v6259
      %v7750 = vunpack.c.l.s4 1966171168
      %v7751 = vunpack.c.0.s8 %v7750
      %v7752 = vlaneseq
      %v7753 = vshrl.u32 %v7752, 7
      %v7754 = vsub.s32 %v7751, %v7753
      %v7755 = vrot.slane %v7745, %v7754
      %v7757 = vunpack.c.l.s4 1966171168
      %v7758 = vunpack.c.0.s8 %v7757
      %v7759 = vlaneseq
      %v7760 = vshrl.u32 %v7759, 7
      %v7761 = vsub.s32 %v7758, %v7760
      %v7762 = vrot.slane %v7746, %v7761
      %v7764 = vunpack.c.l.s4 1966171168
      %v7765 = vunpack.c.0.s8 %v7764
      %v7766 = vlaneseq
      %v7767 = vshrl.u32 %v7766, 7
      %v7768 = vsub.s32 %v7765, %v7767
      %v7769 = vrot.slane %v7747, %v7768
      %v7771 = vunpack.c.l.s4 1966171168
      %v7772 = vunpack.c.0.s8 %v7771
      %v7773 = vlaneseq
      %v7774 = vshrl.u32 %v7773, 7
      %v7775 = vsub.s32 %v7772, %v7774
      %v7776 = vrot.slane %v7748, %v7775
      %v7777 = vcombine.low %v7755, %v7762
      %v7778 = vcombine.low %v7769, %v7776
      %v7780 = vunpack.c.l.s4 1966171168
      %v7781 = vunpack.c.0.s8 %v7780
      %v7782 = vlaneseq
      %v7783 = vshrl.u32 %v7782, 7
      %v7784 = vsub.s32 %v7781, %v7783
      %v7785 = vrot.slane %v7777, %v7784
      %v7787 = vunpack.c.l.s4 1966171168
      %v7788 = vunpack.c.0.s8 %v7787
      %v7789 = vlaneseq
      %v7790 = vshrl.u32 %v7789, 7
      %v7791 = vsub.s32 %v7788, %v7790
      %v7792 = vrot.slane %v7778, %v7791
      %v7793 = vcombine.low %v7785, %v7792
      %v7794 = vcombine.low %v6261, %v7547
      %v7795 = vcombine.low %v6300, %v6308
      %v7796 = vcombine.low %v6310, %v6293
      %v7797 = vcombine.low %v6307, %v6309
      %v7799 = vunpack.c.l.s4 1966171168
      %v7800 = vunpack.c.0.s8 %v7799
      %v7801 = vlaneseq
      %v7802 = vshrl.u32 %v7801, 7
      %v7803 = vsub.s32 %v7800, %v7802
      %v7804 = vrot.slane %v7794, %v7803
      %v7806 = vunpack.c.l.s4 1966171168
      %v7807 = vunpack.c.0.s8 %v7806
      %v7808 = vlaneseq
      %v7809 = vshrl.u32 %v7808, 7
      %v7810 = vsub.s32 %v7807, %v7809
      %v7811 = vrot.slane %v7795, %v7810
      %v7813 = vunpack.c.l.s4 1966171168
      %v7814 = vunpack.c.0.s8 %v7813
      %v7815 = vlaneseq
      %v7816 = vshrl.u32 %v7815, 7
      %v7817 = vsub.s32 %v7814, %v7816
      %v7818 = vrot.slane %v7796, %v7817
      %v7820 = vunpack.c.l.s4 1966171168
      %v7821 = vunpack.c.0.s8 %v7820
      %v7822 = vlaneseq
      %v7823 = vshrl.u32 %v7822, 7
      %v7824 = vsub.s32 %v7821, %v7823
      %v7825 = vrot.slane %v7797, %v7824
      %v7826 = vcombine.low %v7804, %v7811
      %v7827 = vcombine.low %v7818, %v7825
      %v7829 = vunpack.c.l.s4 1966171168
      %v7830 = vunpack.c.0.s8 %v7829
      %v7831 = vlaneseq
      %v7832 = vshrl.u32 %v7831, 7
      %v7833 = vsub.s32 %v7830, %v7832
      %v7834 = vrot.slane %v7826, %v7833
      %v7836 = vunpack.c.l.s4 1966171168
      %v7837 = vunpack.c.0.s8 %v7836
      %v7838 = vlaneseq
      %v7839 = vshrl.u32 %v7838, 7
      %v7840 = vsub.s32 %v7837, %v7839
      %v7841 = vrot.slane %v7827, %v7840
      %v7842 = vcombine.low %v7834, %v7841
      %v7844 = vunpack.c.l.s4 1966171168
      %v7845 = vunpack.c.0.s8 %v7844
      %v7846 = vlaneseq
      %v7847 = vshrl.u32 %v7846, 7
      %v7848 = vsub.s32 %v7845, %v7847
      %v7849 = vrot.slane %v7548, %v7848
      %v7851 = vunpack.c.l.s4 1966171168
      %v7852 = vunpack.c.0.s8 %v7851
      %v7853 = vlaneseq
      %v7854 = vshrl.u32 %v7853, 7
      %v7855 = vsub.s32 %v7852, %v7854
      %v7856 = vrot.slane %v7849, %v7855
      %v7864 = vpack.c.bf16 %v7646, %v7597
      %v7865 = vpack.c.bf16 %v7744, %v7695
      %v7866 = vpack.c.bf16 %v7842, %v7793
      %v7867 = vpack.c.bf16 %v7856, %v7856
      %s7868 = scalar_lea.vmem %s6, 96
      %v7869 = vld [vmem:[%s7868] sm:$0xf]
      %v7870 = vld [vmem:[%s7868 + $0x4] sm:$0xf]
      %v7871 = vld [vmem:[%s7868 + $0x8] sm:$0xf]
      %v7872 = vld [vmem:[%s7868 + $0xc] sm:$0xf]
      %v7873 = vld [vmem:[%s7868 + $0x10] sm:$0xf]
      %v7874 = vld [vmem:[%s7868 + $0x14] sm:$0xf]
      %v7875 = vld [vmem:[%s7868 + $0x18] sm:$0xf]
      %v7876 = vld [vmem:[%s7868 + $0x1c] sm:$0xf]
      %v7877 = vld [vmem:[%s7868 + $0x20] sm:$0xf]
      %v7878 = vld [vmem:[%s7868 + $0x24] sm:$0xf]
      %v7879 = vld [vmem:[%s7868 + $0x28] sm:$0xf]
      %v7880 = vld [vmem:[%s7868 + $0x2c] sm:$0xf]
      %v7893 = vunpack.c.l.b16 %v7869
      %v7894 = vunpack.c.l.b16 %v7870
      %v7895 = vunpack.c.l.b16 %v7871
      %v7896 = vunpack.c.l.b16 %v7872
      %v7897 = vunpack.c.l.b16 %v7873
      %v7898 = vunpack.c.l.b16 %v7874
      %v7899 = vunpack.c.l.b16 %v7875
      %v7900 = vunpack.c.l.b16 %v7876
      %v7901 = vunpack.c.l.b16 %v7877
      %v7902 = vunpack.c.l.b16 %v7878
      %v7903 = vunpack.c.l.b16 %v7879
      %v7904 = vunpack.c.l.b16 %v7880
      %v7905 = vpack.c.b16 %v7894, %v7893
      %v7906 = vpack.c.b16 %v7896, %v7895
      %v7907 = vpack.c.b16 %v7898, %v7897
      %v7908 = vpack.c.b16 %v7900, %v7899
      %v7909 = vpack.c.b16 %v7902, %v7901
      %v7910 = vpack.c.b16 %v7904, %v7903
      %v7918 = vsel %vm7353, %v7864, 0
      %v7921 = vsel %vm7353, %v7865, 0
      %v7924 = vsel %vm7353, %v7866, 0
      %v7927 = vsel %vm7353, %v7867, 0
      %7929 = vmatprep.subr.bf16.mxu0 0
      %7930 = vmatpush1.bf16.msra.mxu0 %v7905
      %7931 = vmatprep.subr.bf16.mxu0 0
      %7932 = vmatpush1.bf16.msra.mxu0 %v7906
      %7933 = vmatprep.subr.bf16.mxu0 0
      %7934 = vmatpush1.bf16.msra.mxu0 %v7907
      %7935 = vmatprep.subr.bf16.mxu0 0
      %7936 = vmatpush1.bf16.msra.mxu0 %v7908
      %7937 = vmatprep.subr.bf16.mxu0 0
      %7938 = vmatpush1.bf16.msra.mxu0 %v7909
      %7939 = vmatprep.subr.bf16.mxu0 0
      %7940 = vmatpush1.bf16.msra.mxu0 %v7910
      %7941 = vmatprep.subr.bf16.mxu0 0
      %7942 = vmatpush1.bf16.msra.mxu0 0
      %7943 = vmatprep.subr.bf16.mxu0 0
      %7944 = vmatpush1.bf16.msra.mxu0 0
      %7945 = vmatprep.subr.bf16.mxu0 0
      %7946 = vmatpush1.bf16.msra.mxu0 0
      %7947 = vmatprep.subr.bf16.mxu0 0
      %7948 = vmatpush1.bf16.msra.mxu0 0
      %7949 = vmatprep.subr.bf16.mxu0 0
      %7950 = vmatpush1.bf16.msra.mxu0 0
      %7951 = vmatprep.subr.bf16.mxu0 0
      %7952 = vmatpush1.bf16.msra.mxu0 0
      %7953 = vmatprep.subr.bf16.mxu0 0
      %7954 = vmatpush1.bf16.msra.mxu0 0
      %7955 = vmatprep.subr.bf16.mxu0 0
      %7956 = vmatpush1.bf16.msra.mxu0 0
      %7957 = vmatprep.subr.bf16.mxu0 0
      %7958 = vmatpush1.bf16.msra.mxu0 0
      %7959 = vmatprep.subr.bf16.mxu0 0
      %7960 = vmatpush1.bf16.msra.mxu0 0
      %7961 = vmatprep.mubr.bf16.mxu0 0
      %7962 = vmatmul.mubr.bf16.gmra.mrb[0].mxu0 %v7918
      %v7963 = vpop.f32.mrb[0].mxu0
      %v7964 = vadd.f32 0.0, %v7963
      %v7965 = vpop.f32.mrb[0].mxu0
      %v7966 = vpop.f32.mrb[0].mxu0
      %v7967 = vadd.f32 0.0, %v7966
      %v7968 = vpop.f32.mrb[0].mxu0
      %7969 = vmatprep.mubr.bf16.mxu0 0
      %7970 = vmatmul.mubr.bf16.gmra.mrb[0].mxu0 %v7921
      %v7971 = vpop.f32.mrb[0].mxu0
      %v7972 = vadd.f32 0.0, %v7971
      %v7973 = vpop.f32.mrb[0].mxu0
      %v7974 = vpop.f32.mrb[0].mxu0
      %v7975 = vadd.f32 0.0, %v7974
      %v7976 = vpop.f32.mrb[0].mxu0
      %7977 = vmatprep.mubr.bf16.mxu0 0
      %7978 = vmatmul.mubr.bf16.gmra.mrb[0].mxu0 %v7924
      %v7979 = vpop.f32.mrb[0].mxu0
      %v7980 = vadd.f32 0.0, %v7979
      %v7981 = vpop.f32.mrb[0].mxu0
      %v7982 = vpop.f32.mrb[0].mxu0
      %v7983 = vadd.f32 0.0, %v7982
      %v7984 = vpop.f32.mrb[0].mxu0
      %7985 = vmatprep.mubr.bf16.mxu0 0
      %7986 = vmatmul.mubr.bf16.gmra.mrb[0].mxu0 %v7927
      %v7987 = vpop.f32.mrb[0].mxu0
      %v7988 = vadd.f32 0.0, %v7987
      %v7989 = vpop.f32.mrb[0].mxu0
      %v7990 = vpop.f32.mrb[0].mxu0
      %v7991 = vpop.f32.mrb[0].mxu0
      %7992 = vdwg.mxu0
      %v7993 = vadd.f32 %v7513, %v7964
      %v7994 = vadd.f32 %v7516, %v7967
      %v7995 = vadd.f32 %v7521, %v7972
      %v7996 = vadd.f32 %v7524, %v7975
      %v7997 = vadd.f32 %v7529, %v7980
      %v7998 = vadd.f32 %v7532, %v7983
      %v7999 = vadd.f32 %v7537, %v7988
      %v8007 = vcombine.high %v5310, %v5310
      %v8009 = vunpack.c.l.s4 1966171168
      %v8010 = vunpack.c.0.s8 %v8009
      %v8011 = vlaneseq
      %v8012 = vshrl.u32 %v8011, 7
      %v8013 = vsub.s32 %v8010, %v8012
      %v8014 = vrot.slane %v5310, %v8013
      %v8016 = vunpack.c.l.s4 1966171168
      %v8017 = vunpack.c.0.s8 %v8016
      %v8018 = vlaneseq
      %v8019 = vshrl.u32 %v8018, 7
      %v8020 = vsub.s32 %v8017, %v8019
      %v8021 = vrot.slane %v8007, %v8020
      %v8022 = vcombine.high %v8014, %v8014
      %v8023 = vcombine.high %v8021, %v8021
      %v8025 = vunpack.c.l.s4 1966171168
      %v8026 = vunpack.c.0.s8 %v8025
      %v8027 = vlaneseq
      %v8028 = vshrl.u32 %v8027, 7
      %v8029 = vsub.s32 %v8026, %v8028
      %v8030 = vrot.slane %v8014, %v8029
      %v8032 = vunpack.c.l.s4 1966171168
      %v8033 = vunpack.c.0.s8 %v8032
      %v8034 = vlaneseq
      %v8035 = vshrl.u32 %v8034, 7
      %v8036 = vsub.s32 %v8033, %v8035
      %v8037 = vrot.slane %v8021, %v8036
      %v8039 = vunpack.c.l.s4 1966171168
      %v8040 = vunpack.c.0.s8 %v8039
      %v8041 = vlaneseq
      %v8042 = vshrl.u32 %v8041, 7
      %v8043 = vsub.s32 %v8040, %v8042
      %v8044 = vrot.slane %v8022, %v8043
      %v8046 = vunpack.c.l.s4 1966171168
      %v8047 = vunpack.c.0.s8 %v8046
      %v8048 = vlaneseq
      %v8049 = vshrl.u32 %v8048, 7
      %v8050 = vsub.s32 %v8047, %v8049
      %v8051 = vrot.slane %v8023, %v8050
      %v8052 = vcombine.high %v8030, %v8030
      %v8053 = vcombine.high %v8037, %v8037
      %v8054 = vcombine.high %v8044, %v8044
      %v8055 = vcombine.high %v5311, %v5311
      %v8057 = vunpack.c.l.s4 1966171168
      %v8058 = vunpack.c.0.s8 %v8057
      %v8059 = vlaneseq
      %v8060 = vshrl.u32 %v8059, 7
      %v8061 = vsub.s32 %v8058, %v8060
      %v8062 = vrot.slane %v5311, %v8061
      %v8064 = vunpack.c.l.s4 1966171168
      %v8065 = vunpack.c.0.s8 %v8064
      %v8066 = vlaneseq
      %v8067 = vshrl.u32 %v8066, 7
      %v8068 = vsub.s32 %v8065, %v8067
      %v8069 = vrot.slane %v8055, %v8068
      %v8070 = vcombine.high %v8062, %v8062
      %v8071 = vcombine.high %v8069, %v8069
      %v8073 = vunpack.c.l.s4 1966171168
      %v8074 = vunpack.c.0.s8 %v8073
      %v8075 = vlaneseq
      %v8076 = vshrl.u32 %v8075, 7
      %v8077 = vsub.s32 %v8074, %v8076
      %v8078 = vrot.slane %v8062, %v8077
      %v8080 = vunpack.c.l.s4 1966171168
      %v8081 = vunpack.c.0.s8 %v8080
      %v8082 = vlaneseq
      %v8083 = vshrl.u32 %v8082, 7
      %v8084 = vsub.s32 %v8081, %v8083
      %v8085 = vrot.slane %v8069, %v8084
      %v8087 = vunpack.c.l.s4 1966171168
      %v8088 = vunpack.c.0.s8 %v8087
      %v8089 = vlaneseq
      %v8090 = vshrl.u32 %v8089, 7
      %v8091 = vsub.s32 %v8088, %v8090
      %v8092 = vrot.slane %v8070, %v8091
      %v8094 = vunpack.c.l.s4 1966171168
      %v8095 = vunpack.c.0.s8 %v8094
      %v8096 = vlaneseq
      %v8097 = vshrl.u32 %v8096, 7
      %v8098 = vsub.s32 %v8095, %v8097
      %v8099 = vrot.slane %v8071, %v8098
      %v8100 = vcombine.high %v8078, %v8078
      %v8101 = vcombine.high %v8085, %v8085
      %v8102 = vcombine.high %v8092, %v8092
      %v8103 = vcombine.high %v5312, %v5312
      %v8105 = vunpack.c.l.s4 1966171168
      %v8106 = vunpack.c.0.s8 %v8105
      %v8107 = vlaneseq
      %v8108 = vshrl.u32 %v8107, 7
      %v8109 = vsub.s32 %v8106, %v8108
      %v8110 = vrot.slane %v5312, %v8109
      %v8112 = vunpack.c.l.s4 1966171168
      %v8113 = vunpack.c.0.s8 %v8112
      %v8114 = vlaneseq
      %v8115 = vshrl.u32 %v8114, 7
      %v8116 = vsub.s32 %v8113, %v8115
      %v8117 = vrot.slane %v8103, %v8116
      %v8118 = vcombine.high %v8110, %v8110
      %v8119 = vcombine.high %v8117, %v8117
      %v8121 = vunpack.c.l.s4 1966171168
      %v8122 = vunpack.c.0.s8 %v8121
      %v8123 = vlaneseq
      %v8124 = vshrl.u32 %v8123, 7
      %v8125 = vsub.s32 %v8122, %v8124
      %v8126 = vrot.slane %v8110, %v8125
      %v8128 = vunpack.c.l.s4 1966171168
      %v8129 = vunpack.c.0.s8 %v8128
      %v8130 = vlaneseq
      %v8131 = vshrl.u32 %v8130, 7
      %v8132 = vsub.s32 %v8129, %v8131
      %v8133 = vrot.slane %v8117, %v8132
      %v8135 = vunpack.c.l.s4 1966171168
      %v8136 = vunpack.c.0.s8 %v8135
      %v8137 = vlaneseq
      %v8138 = vshrl.u32 %v8137, 7
      %v8139 = vsub.s32 %v8136, %v8138
      %v8140 = vrot.slane %v8118, %v8139
      %v8142 = vunpack.c.l.s4 1966171168
      %v8143 = vunpack.c.0.s8 %v8142
      %v8144 = vlaneseq
      %v8145 = vshrl.u32 %v8144, 7
      %v8146 = vsub.s32 %v8143, %v8145
      %v8147 = vrot.slane %v8119, %v8146
      %v8148 = vcombine.high %v8126, %v8126
      %v8149 = vcombine.high %v8133, %v8133
      %v8150 = vcombine.high %v8140, %v8140
      %v8151 = vcombine.high %v5313, %v5313
      %v8153 = vunpack.c.l.s4 1966171168
      %v8154 = vunpack.c.0.s8 %v8153
      %v8155 = vlaneseq
      %v8156 = vshrl.u32 %v8155, 7
      %v8157 = vsub.s32 %v8154, %v8156
      %v8158 = vrot.slane %v5313, %v8157
      %v8160 = vunpack.c.l.s4 1966171168
      %v8161 = vunpack.c.0.s8 %v8160
      %v8162 = vlaneseq
      %v8163 = vshrl.u32 %v8162, 7
      %v8164 = vsub.s32 %v8161, %v8163
      %v8165 = vrot.slane %v8151, %v8164
      %v8166 = vcombine.high %v8158, %v8158
      %v8167 = vcombine.high %v8165, %v8165
      %v8169 = vunpack.c.l.s4 1966171168
      %v8170 = vunpack.c.0.s8 %v8169
      %v8171 = vlaneseq
      %v8172 = vshrl.u32 %v8171, 7
      %v8173 = vsub.s32 %v8170, %v8172
      %v8174 = vrot.slane %v8158, %v8173
      %v8176 = vunpack.c.l.s4 1966171168
      %v8177 = vunpack.c.0.s8 %v8176
      %v8178 = vlaneseq
      %v8179 = vshrl.u32 %v8178, 7
      %v8180 = vsub.s32 %v8177, %v8179
      %v8181 = vrot.slane %v8165, %v8180
      %v8183 = vunpack.c.l.s4 1966171168
      %v8184 = vunpack.c.0.s8 %v8183
      %v8185 = vlaneseq
      %v8186 = vshrl.u32 %v8185, 7
      %v8187 = vsub.s32 %v8184, %v8186
      %v8188 = vrot.slane %v8166, %v8187
      %v8190 = vunpack.c.l.s4 1966171168
      %v8191 = vunpack.c.0.s8 %v8190
      %v8192 = vlaneseq
      %v8193 = vshrl.u32 %v8192, 7
      %v8194 = vsub.s32 %v8191, %v8193
      %v8195 = vrot.slane %v8167, %v8194
      %v8196 = vcombine.high %v8174, %v8174
      %v8197 = vcombine.high %v8181, %v8181
      %v8198 = vcombine.high %v8188, %v8188
      %v8199 = vcombine.high %v5314, %v5314
      %v8201 = vunpack.c.l.s4 1966171168
      %v8202 = vunpack.c.0.s8 %v8201
      %v8203 = vlaneseq
      %v8204 = vshrl.u32 %v8203, 7
      %v8205 = vsub.s32 %v8202, %v8204
      %v8206 = vrot.slane %v5314, %v8205
      %v8208 = vunpack.c.l.s4 1966171168
      %v8209 = vunpack.c.0.s8 %v8208
      %v8210 = vlaneseq
      %v8211 = vshrl.u32 %v8210, 7
      %v8212 = vsub.s32 %v8209, %v8211
      %v8213 = vrot.slane %v8199, %v8212
      %v8214 = vcombine.high %v8206, %v8206
      %v8215 = vcombine.high %v8213, %v8213
      %v8217 = vunpack.c.l.s4 1966171168
      %v8218 = vunpack.c.0.s8 %v8217
      %v8219 = vlaneseq
      %v8220 = vshrl.u32 %v8219, 7
      %v8221 = vsub.s32 %v8218, %v8220
      %v8222 = vrot.slane %v8206, %v8221
      %v8224 = vunpack.c.l.s4 1966171168
      %v8225 = vunpack.c.0.s8 %v8224
      %v8226 = vlaneseq
      %v8227 = vshrl.u32 %v8226, 7
      %v8228 = vsub.s32 %v8225, %v8227
      %v8229 = vrot.slane %v8213, %v8228
      %v8231 = vunpack.c.l.s4 1966171168
      %v8232 = vunpack.c.0.s8 %v8231
      %v8233 = vlaneseq
      %v8234 = vshrl.u32 %v8233, 7
      %v8235 = vsub.s32 %v8232, %v8234
      %v8236 = vrot.slane %v8214, %v8235
      %v8238 = vunpack.c.l.s4 1966171168
      %v8239 = vunpack.c.0.s8 %v8238
      %v8240 = vlaneseq
      %v8241 = vshrl.u32 %v8240, 7
      %v8242 = vsub.s32 %v8239, %v8241
      %v8243 = vrot.slane %v8215, %v8242
      %v8244 = vcombine.high %v8222, %v8222
      %v8245 = vcombine.high %v8229, %v8229
      %v8246 = vcombine.high %v8236, %v8236
      %v8247 = vcombine.high %v5315, %v5315
      %v8249 = vunpack.c.l.s4 1966171168
      %v8250 = vunpack.c.0.s8 %v8249
      %v8251 = vlaneseq
      %v8252 = vshrl.u32 %v8251, 7
      %v8253 = vsub.s32 %v8250, %v8252
      %v8254 = vrot.slane %v5315, %v8253
      %v8256 = vunpack.c.l.s4 1966171168
      %v8257 = vunpack.c.0.s8 %v8256
      %v8258 = vlaneseq
      %v8259 = vshrl.u32 %v8258, 7
      %v8260 = vsub.s32 %v8257, %v8259
      %v8261 = vrot.slane %v8247, %v8260
      %v8262 = vcombine.high %v8254, %v8254
      %v8263 = vcombine.high %v8261, %v8261
      %v8265 = vunpack.c.l.s4 1966171168
      %v8266 = vunpack.c.0.s8 %v8265
      %v8267 = vlaneseq
      %v8268 = vshrl.u32 %v8267, 7
      %v8269 = vsub.s32 %v8266, %v8268
      %v8270 = vrot.slane %v8254, %v8269
      %v8272 = vunpack.c.l.s4 1966171168
      %v8273 = vunpack.c.0.s8 %v8272
      %v8274 = vlaneseq
      %v8275 = vshrl.u32 %v8274, 7
      %v8276 = vsub.s32 %v8273, %v8275
      %v8277 = vrot.slane %v8261, %v8276
      %v8279 = vunpack.c.l.s4 1966171168
      %v8280 = vunpack.c.0.s8 %v8279
      %v8281 = vlaneseq
      %v8282 = vshrl.u32 %v8281, 7
      %v8283 = vsub.s32 %v8280, %v8282
      %v8284 = vrot.slane %v8262, %v8283
      %v8286 = vunpack.c.l.s4 1966171168
      %v8287 = vunpack.c.0.s8 %v8286
      %v8288 = vlaneseq
      %v8289 = vshrl.u32 %v8288, 7
      %v8290 = vsub.s32 %v8287, %v8289
      %v8291 = vrot.slane %v8263, %v8290
      %v8292 = vcombine.high %v8270, %v8270
      %v8293 = vcombine.high %v8277, %v8277
      %v8294 = vcombine.high %v8284, %v8284
      %v8295 = vcombine.high %v5316, %v5316
      %v8297 = vunpack.c.l.s4 1966171168
      %v8298 = vunpack.c.0.s8 %v8297
      %v8299 = vlaneseq
      %v8300 = vshrl.u32 %v8299, 7
      %v8301 = vsub.s32 %v8298, %v8300
      %v8302 = vrot.slane %v5316, %v8301
      %v8304 = vunpack.c.l.s4 1966171168
      %v8305 = vunpack.c.0.s8 %v8304
      %v8306 = vlaneseq
      %v8307 = vshrl.u32 %v8306, 7
      %v8308 = vsub.s32 %v8305, %v8307
      %v8309 = vrot.slane %v8295, %v8308
      %v8310 = vcombine.high %v8302, %v8302
      %v8311 = vcombine.high %v8309, %v8309
      %v8313 = vunpack.c.l.s4 1966171168
      %v8314 = vunpack.c.0.s8 %v8313
      %v8315 = vlaneseq
      %v8316 = vshrl.u32 %v8315, 7
      %v8317 = vsub.s32 %v8314, %v8316
      %v8318 = vrot.slane %v8302, %v8317
      %v8320 = vunpack.c.l.s4 1966171168
      %v8321 = vunpack.c.0.s8 %v8320
      %v8322 = vlaneseq
      %v8323 = vshrl.u32 %v8322, 7
      %v8324 = vsub.s32 %v8321, %v8323
      %v8325 = vrot.slane %v8309, %v8324
      %v8327 = vunpack.c.l.s4 1966171168
      %v8328 = vunpack.c.0.s8 %v8327
      %v8329 = vlaneseq
      %v8330 = vshrl.u32 %v8329, 7
      %v8331 = vsub.s32 %v8328, %v8330
      %v8332 = vrot.slane %v8310, %v8331
      %v8334 = vunpack.c.l.s4 1966171168
      %v8335 = vunpack.c.0.s8 %v8334
      %v8336 = vlaneseq
      %v8337 = vshrl.u32 %v8336, 7
      %v8338 = vsub.s32 %v8335, %v8337
      %v8339 = vrot.slane %v8311, %v8338
      %v8340 = vcombine.high %v8318, %v8318
      %v8341 = vcombine.high %v8325, %v8325
      %v8342 = vcombine.high %v8332, %v8332
      %v8343 = vcombine.low %v8030, %v8044
      %v8344 = vcombine.low %v8052, %v8054
      %v8345 = vcombine.low %v8037, %v8051
      %v8346 = vcombine.low %v8053, %v8078
      %v8348 = vunpack.c.l.s4 1966171168
      %v8349 = vunpack.c.0.s8 %v8348
      %v8350 = vlaneseq
      %v8351 = vshrl.u32 %v8350, 7
      %v8352 = vsub.s32 %v8349, %v8351
      %v8353 = vrot.slane %v8343, %v8352
      %v8355 = vunpack.c.l.s4 1966171168
      %v8356 = vunpack.c.0.s8 %v8355
      %v8357 = vlaneseq
      %v8358 = vshrl.u32 %v8357, 7
      %v8359 = vsub.s32 %v8356, %v8358
      %v8360 = vrot.slane %v8344, %v8359
      %v8362 = vunpack.c.l.s4 1966171168
      %v8363 = vunpack.c.0.s8 %v8362
      %v8364 = vlaneseq
      %v8365 = vshrl.u32 %v8364, 7
      %v8366 = vsub.s32 %v8363, %v8365
      %v8367 = vrot.slane %v8345, %v8366
      %v8369 = vunpack.c.l.s4 1966171168
      %v8370 = vunpack.c.0.s8 %v8369
      %v8371 = vlaneseq
      %v8372 = vshrl.u32 %v8371, 7
      %v8373 = vsub.s32 %v8370, %v8372
      %v8374 = vrot.slane %v8346, %v8373
      %v8375 = vcombine.low %v8353, %v8360
      %v8376 = vcombine.low %v8367, %v8374
      %v8378 = vunpack.c.l.s4 1966171168
      %v8379 = vunpack.c.0.s8 %v8378
      %v8380 = vlaneseq
      %v8381 = vshrl.u32 %v8380, 7
      %v8382 = vsub.s32 %v8379, %v8381
      %v8383 = vrot.slane %v8375, %v8382
      %v8385 = vunpack.c.l.s4 1966171168
      %v8386 = vunpack.c.0.s8 %v8385
      %v8387 = vlaneseq
      %v8388 = vshrl.u32 %v8387, 7
      %v8389 = vsub.s32 %v8386, %v8388
      %v8390 = vrot.slane %v8376, %v8389
      %v8391 = vcombine.low %v8383, %v8390
      %v8392 = vcombine.low %v8092, %v8100
      %v8393 = vcombine.low %v8102, %v8085
      %v8394 = vcombine.low %v8099, %v8101
      %v8395 = vcombine.low %v8126, %v8140
      %v8397 = vunpack.c.l.s4 1966171168
      %v8398 = vunpack.c.0.s8 %v8397
      %v8399 = vlaneseq
      %v8400 = vshrl.u32 %v8399, 7
      %v8401 = vsub.s32 %v8398, %v8400
      %v8402 = vrot.slane %v8392, %v8401
      %v8404 = vunpack.c.l.s4 1966171168
      %v8405 = vunpack.c.0.s8 %v8404
      %v8406 = vlaneseq
      %v8407 = vshrl.u32 %v8406, 7
      %v8408 = vsub.s32 %v8405, %v8407
      %v8409 = vrot.slane %v8393, %v8408
      %v8411 = vunpack.c.l.s4 1966171168
      %v8412 = vunpack.c.0.s8 %v8411
      %v8413 = vlaneseq
      %v8414 = vshrl.u32 %v8413, 7
      %v8415 = vsub.s32 %v8412, %v8414
      %v8416 = vrot.slane %v8394, %v8415
      %v8418 = vunpack.c.l.s4 1966171168
      %v8419 = vunpack.c.0.s8 %v8418
      %v8420 = vlaneseq
      %v8421 = vshrl.u32 %v8420, 7
      %v8422 = vsub.s32 %v8419, %v8421
      %v8423 = vrot.slane %v8395, %v8422
      %v8424 = vcombine.low %v8402, %v8409
      %v8425 = vcombine.low %v8416, %v8423
      %v8427 = vunpack.c.l.s4 1966171168
      %v8428 = vunpack.c.0.s8 %v8427
      %v8429 = vlaneseq
      %v8430 = vshrl.u32 %v8429, 7
      %v8431 = vsub.s32 %v8428, %v8430
      %v8432 = vrot.slane %v8424, %v8431
      %v8434 = vunpack.c.l.s4 1966171168
      %v8435 = vunpack.c.0.s8 %v8434
      %v8436 = vlaneseq
      %v8437 = vshrl.u32 %v8436, 7
      %v8438 = vsub.s32 %v8435, %v8437
      %v8439 = vrot.slane %v8425, %v8438
      %v8440 = vcombine.low %v8432, %v8439
      %v8441 = vcombine.low %v8148, %v8150
      %v8442 = vcombine.low %v8133, %v8147
      %v8443 = vcombine.low %v8149, %v8174
      %v8444 = vcombine.low %v8188, %v8196
      %v8446 = vunpack.c.l.s4 1966171168
      %v8447 = vunpack.c.0.s8 %v8446
      %v8448 = vlaneseq
      %v8449 = vshrl.u32 %v8448, 7
      %v8450 = vsub.s32 %v8447, %v8449
      %v8451 = vrot.slane %v8441, %v8450
      %v8453 = vunpack.c.l.s4 1966171168
      %v8454 = vunpack.c.0.s8 %v8453
      %v8455 = vlaneseq
      %v8456 = vshrl.u32 %v8455, 7
      %v8457 = vsub.s32 %v8454, %v8456
      %v8458 = vrot.slane %v8442, %v8457
      %v8460 = vunpack.c.l.s4 1966171168
      %v8461 = vunpack.c.0.s8 %v8460
      %v8462 = vlaneseq
      %v8463 = vshrl.u32 %v8462, 7
      %v8464 = vsub.s32 %v8461, %v8463
      %v8465 = vrot.slane %v8443, %v8464
      %v8467 = vunpack.c.l.s4 1966171168
      %v8468 = vunpack.c.0.s8 %v8467
      %v8469 = vlaneseq
      %v8470 = vshrl.u32 %v8469, 7
      %v8471 = vsub.s32 %v8468, %v8470
      %v8472 = vrot.slane %v8444, %v8471
      %v8473 = vcombine.low %v8451, %v8458
      %v8474 = vcombine.low %v8465, %v8472
      %v8476 = vunpack.c.l.s4 1966171168
      %v8477 = vunpack.c.0.s8 %v8476
      %v8478 = vlaneseq
      %v8479 = vshrl.u32 %v8478, 7
      %v8480 = vsub.s32 %v8477, %v8479
      %v8481 = vrot.slane %v8473, %v8480
      %v8483 = vunpack.c.l.s4 1966171168
      %v8484 = vunpack.c.0.s8 %v8483
      %v8485 = vlaneseq
      %v8486 = vshrl.u32 %v8485, 7
      %v8487 = vsub.s32 %v8484, %v8486
      %v8488 = vrot.slane %v8474, %v8487
      %v8489 = vcombine.low %v8481, %v8488
      %v8490 = vcombine.low %v8198, %v8181
      %v8491 = vcombine.low %v8195, %v8197
      %v8492 = vcombine.low %v8222, %v8236
      %v8493 = vcombine.low %v8244, %v8246
      %v8495 = vunpack.c.l.s4 1966171168
      %v8496 = vunpack.c.0.s8 %v8495
      %v8497 = vlaneseq
      %v8498 = vshrl.u32 %v8497, 7
      %v8499 = vsub.s32 %v8496, %v8498
      %v8500 = vrot.slane %v8490, %v8499
      %v8502 = vunpack.c.l.s4 1966171168
      %v8503 = vunpack.c.0.s8 %v8502
      %v8504 = vlaneseq
      %v8505 = vshrl.u32 %v8504, 7
      %v8506 = vsub.s32 %v8503, %v8505
      %v8507 = vrot.slane %v8491, %v8506
      %v8509 = vunpack.c.l.s4 1966171168
      %v8510 = vunpack.c.0.s8 %v8509
      %v8511 = vlaneseq
      %v8512 = vshrl.u32 %v8511, 7
      %v8513 = vsub.s32 %v8510, %v8512
      %v8514 = vrot.slane %v8492, %v8513
      %v8516 = vunpack.c.l.s4 1966171168
      %v8517 = vunpack.c.0.s8 %v8516
      %v8518 = vlaneseq
      %v8519 = vshrl.u32 %v8518, 7
      %v8520 = vsub.s32 %v8517, %v8519
      %v8521 = vrot.slane %v8493, %v8520
      %v8522 = vcombine.low %v8500, %v8507
      %v8523 = vcombine.low %v8514, %v8521
      %v8525 = vunpack.c.l.s4 1966171168
      %v8526 = vunpack.c.0.s8 %v8525
      %v8527 = vlaneseq
      %v8528 = vshrl.u32 %v8527, 7
      %v8529 = vsub.s32 %v8526, %v8528
      %v8530 = vrot.slane %v8522, %v8529
      %v8532 = vunpack.c.l.s4 1966171168
      %v8533 = vunpack.c.0.s8 %v8532
      %v8534 = vlaneseq
      %v8535 = vshrl.u32 %v8534, 7
      %v8536 = vsub.s32 %v8533, %v8535
      %v8537 = vrot.slane %v8523, %v8536
      %v8538 = vcombine.low %v8530, %v8537
      %v8539 = vcombine.low %v8229, %v8243
      %v8540 = vcombine.low %v8245, %v8270
      %v8541 = vcombine.low %v8284, %v8292
      %v8542 = vcombine.low %v8294, %v8277
      %v8544 = vunpack.c.l.s4 1966171168
      %v8545 = vunpack.c.0.s8 %v8544
      %v8546 = vlaneseq
      %v8547 = vshrl.u32 %v8546, 7
      %v8548 = vsub.s32 %v8545, %v8547
      %v8549 = vrot.slane %v8539, %v8548
      %v8551 = vunpack.c.l.s4 1966171168
      %v8552 = vunpack.c.0.s8 %v8551
      %v8553 = vlaneseq
      %v8554 = vshrl.u32 %v8553, 7
      %v8555 = vsub.s32 %v8552, %v8554
      %v8556 = vrot.slane %v8540, %v8555
      %v8558 = vunpack.c.l.s4 1966171168
      %v8559 = vunpack.c.0.s8 %v8558
      %v8560 = vlaneseq
      %v8561 = vshrl.u32 %v8560, 7
      %v8562 = vsub.s32 %v8559, %v8561
      %v8563 = vrot.slane %v8541, %v8562
      %v8565 = vunpack.c.l.s4 1966171168
      %v8566 = vunpack.c.0.s8 %v8565
      %v8567 = vlaneseq
      %v8568 = vshrl.u32 %v8567, 7
      %v8569 = vsub.s32 %v8566, %v8568
      %v8570 = vrot.slane %v8542, %v8569
      %v8571 = vcombine.low %v8549, %v8556
      %v8572 = vcombine.low %v8563, %v8570
      %v8574 = vunpack.c.l.s4 1966171168
      %v8575 = vunpack.c.0.s8 %v8574
      %v8576 = vlaneseq
      %v8577 = vshrl.u32 %v8576, 7
      %v8578 = vsub.s32 %v8575, %v8577
      %v8579 = vrot.slane %v8571, %v8578
      %v8581 = vunpack.c.l.s4 1966171168
      %v8582 = vunpack.c.0.s8 %v8581
      %v8583 = vlaneseq
      %v8584 = vshrl.u32 %v8583, 7
      %v8585 = vsub.s32 %v8582, %v8584
      %v8586 = vrot.slane %v8572, %v8585
      %v8587 = vcombine.low %v8579, %v8586
      %v8588 = vcombine.low %v8291, %v8293
      %v8589 = vcombine.low %v8318, %v8332
      %v8590 = vcombine.low %v8340, %v8342
      %v8591 = vcombine.low %v8325, %v8339
      %v8593 = vunpack.c.l.s4 1966171168
      %v8594 = vunpack.c.0.s8 %v8593
      %v8595 = vlaneseq
      %v8596 = vshrl.u32 %v8595, 7
      %v8597 = vsub.s32 %v8594, %v8596
      %v8598 = vrot.slane %v8588, %v8597
      %v8600 = vunpack.c.l.s4 1966171168
      %v8601 = vunpack.c.0.s8 %v8600
      %v8602 = vlaneseq
      %v8603 = vshrl.u32 %v8602, 7
      %v8604 = vsub.s32 %v8601, %v8603
      %v8605 = vrot.slane %v8589, %v8604
      %v8607 = vunpack.c.l.s4 1966171168
      %v8608 = vunpack.c.0.s8 %v8607
      %v8609 = vlaneseq
      %v8610 = vshrl.u32 %v8609, 7
      %v8611 = vsub.s32 %v8608, %v8610
      %v8612 = vrot.slane %v8590, %v8611
      %v8614 = vunpack.c.l.s4 1966171168
      %v8615 = vunpack.c.0.s8 %v8614
      %v8616 = vlaneseq
      %v8617 = vshrl.u32 %v8616, 7
      %v8618 = vsub.s32 %v8615, %v8617
      %v8619 = vrot.slane %v8591, %v8618
      %v8620 = vcombine.low %v8598, %v8605
      %v8621 = vcombine.low %v8612, %v8619
      %v8623 = vunpack.c.l.s4 1966171168
      %v8624 = vunpack.c.0.s8 %v8623
      %v8625 = vlaneseq
      %v8626 = vshrl.u32 %v8625, 7
      %v8627 = vsub.s32 %v8624, %v8626
      %v8628 = vrot.slane %v8620, %v8627
      %v8630 = vunpack.c.l.s4 1966171168
      %v8631 = vunpack.c.0.s8 %v8630
      %v8632 = vlaneseq
      %v8633 = vshrl.u32 %v8632, 7
      %v8634 = vsub.s32 %v8631, %v8633
      %v8635 = vrot.slane %v8621, %v8634
      %v8636 = vcombine.low %v8628, %v8635
      %v8638 = vunpack.c.l.s4 1966171168
      %v8639 = vunpack.c.0.s8 %v8638
      %v8640 = vlaneseq
      %v8641 = vshrl.u32 %v8640, 7
      %v8642 = vsub.s32 %v8639, %v8641
      %v8643 = vrot.slane %v8341, %v8642
      %v8645 = vunpack.c.l.s4 1966171168
      %v8646 = vunpack.c.0.s8 %v8645
      %v8647 = vlaneseq
      %v8648 = vshrl.u32 %v8647, 7
      %v8649 = vsub.s32 %v8646, %v8648
      %v8650 = vrot.slane %v8643, %v8649
      %v8658 = vpack.c.bf16 %v8440, %v8391
      %v8659 = vpack.c.bf16 %v8538, %v8489
      %v8660 = vpack.c.bf16 %v8636, %v8587
      %v8661 = vpack.c.bf16 %v8650, %v8650
      %s8662 = scalar_lea.vmem %s6, 144
      %v8663 = vld [vmem:[%s8662] sm:$0xf]
      %v8664 = vld [vmem:[%s8662 + $0x4] sm:$0xf]
      %v8665 = vld [vmem:[%s8662 + $0x8] sm:$0xf]
      %v8666 = vld [vmem:[%s8662 + $0xc] sm:$0xf]
      %v8667 = vld [vmem:[%s8662 + $0x10] sm:$0xf]
      %v8668 = vld [vmem:[%s8662 + $0x14] sm:$0xf]
      %v8669 = vld [vmem:[%s8662 + $0x18] sm:$0xf]
      %v8670 = vld [vmem:[%s8662 + $0x1c] sm:$0xf]
      %v8671 = vld [vmem:[%s8662 + $0x20] sm:$0xf]
      %v8672 = vld [vmem:[%s8662 + $0x24] sm:$0xf]
      %v8673 = vld [vmem:[%s8662 + $0x28] sm:$0xf]
      %v8674 = vld [vmem:[%s8662 + $0x2c] sm:$0xf]
      %v8687 = vunpack.c.l.b16 %v8663
      %v8688 = vunpack.c.l.b16 %v8664
      %v8689 = vunpack.c.l.b16 %v8665
      %v8690 = vunpack.c.l.b16 %v8666
      %v8691 = vunpack.c.l.b16 %v8667
      %v8692 = vunpack.c.l.b16 %v8668
      %v8693 = vunpack.c.l.b16 %v8669
      %v8694 = vunpack.c.l.b16 %v8670
      %v8695 = vunpack.c.l.b16 %v8671
      %v8696 = vunpack.c.l.b16 %v8672
      %v8697 = vunpack.c.l.b16 %v8673
      %v8698 = vunpack.c.l.b16 %v8674
      %v8699 = vpack.c.b16 %v8688, %v8687
      %v8700 = vpack.c.b16 %v8690, %v8689
      %v8701 = vpack.c.b16 %v8692, %v8691
      %v8702 = vpack.c.b16 %v8694, %v8693
      %v8703 = vpack.c.b16 %v8696, %v8695
      %v8704 = vpack.c.b16 %v8698, %v8697
      %v8712 = vsel %vm7353, %v8658, 0
      %v8715 = vsel %vm7353, %v8659, 0
      %v8718 = vsel %vm7353, %v8660, 0
      %v8721 = vsel %vm7353, %v8661, 0
      %8723 = vmatprep.subr.bf16.mxu0 0
      %8724 = vmatpush1.bf16.msra.mxu0 %v8699
      %8725 = vmatprep.subr.bf16.mxu0 0
      %8726 = vmatpush1.bf16.msra.mxu0 %v8700
      %8727 = vmatprep.subr.bf16.mxu0 0
      %8728 = vmatpush1.bf16.msra.mxu0 %v8701
      %8729 = vmatprep.subr.bf16.mxu0 0
      %8730 = vmatpush1.bf16.msra.mxu0 %v8702
      %8731 = vmatprep.subr.bf16.mxu0 0
      %8732 = vmatpush1.bf16.msra.mxu0 %v8703
      %8733 = vmatprep.subr.bf16.mxu0 0
      %8734 = vmatpush1.bf16.msra.mxu0 %v8704
      %8735 = vmatprep.subr.bf16.mxu0 0
      %8736 = vmatpush1.bf16.msra.mxu0 0
      %8737 = vmatprep.subr.bf16.mxu0 0
      %8738 = vmatpush1.bf16.msra.mxu0 0
      %8739 = vmatprep.subr.bf16.mxu0 0
      %8740 = vmatpush1.bf16.msra.mxu0 0
      %8741 = vmatprep.subr.bf16.mxu0 0
      %8742 = vmatpush1.bf16.msra.mxu0 0
      %8743 = vmatprep.subr.bf16.mxu0 0
      %8744 = vmatpush1.bf16.msra.mxu0 0
      %8745 = vmatprep.subr.bf16.mxu0 0
      %8746 = vmatpush1.bf16.msra.mxu0 0
      %8747 = vmatprep.subr.bf16.mxu0 0
      %8748 = vmatpush1.bf16.msra.mxu0 0
      %8749 = vmatprep.subr.bf16.mxu0 0
      %8750 = vmatpush1.bf16.msra.mxu0 0
      %8751 = vmatprep.subr.bf16.mxu0 0
      %8752 = vmatpush1.bf16.msra.mxu0 0
      %8753 = vmatprep.subr.bf16.mxu0 0
      %8754 = vmatpush1.bf16.msra.mxu0 0
      %8755 = vmatprep.mubr.bf16.mxu0 0
      %8756 = vmatmul.mubr.bf16.gmra.mrb[0].mxu0 %v8712
      %v8757 = vpop.f32.mrb[0].mxu0
      %v8758 = vadd.f32 0.0, %v8757
      %v8759 = vpop.f32.mrb[0].mxu0
      %v8760 = vpop.f32.mrb[0].mxu0
      %v8761 = vadd.f32 0.0, %v8760
      %v8762 = vpop.f32.mrb[0].mxu0
      %8763 = vmatprep.mubr.bf16.mxu0 0
      %8764 = vmatmul.mubr.bf16.gmra.mrb[0].mxu0 %v8715
      %v8765 = vpop.f32.mrb[0].mxu0
      %v8766 = vadd.f32 0.0, %v8765
      %v8767 = vpop.f32.mrb[0].mxu0
      %v8768 = vpop.f32.mrb[0].mxu0
      %v8769 = vadd.f32 0.0, %v8768
      %v8770 = vpop.f32.mrb[0].mxu0
      %8771 = vmatprep.mubr.bf16.mxu0 0
      %8772 = vmatmul.mubr.bf16.gmra.mrb[0].mxu0 %v8718
      %v8773 = vpop.f32.mrb[0].mxu0
      %v8774 = vadd.f32 0.0, %v8773
      %v8775 = vpop.f32.mrb[0].mxu0
      %v8776 = vpop.f32.mrb[0].mxu0
      %v8777 = vadd.f32 0.0, %v8776
      %v8778 = vpop.f32.mrb[0].mxu0
      %8779 = vmatprep.mubr.bf16.mxu0 0
      %8780 = vmatmul.mubr.bf16.gmra.mrb[0].mxu0 %v8721
      %v8781 = vpop.f32.mrb[0].mxu0
      %v8782 = vadd.f32 0.0, %v8781
      %v8783 = vpop.f32.mrb[0].mxu0
      %v8784 = vpop.f32.mrb[0].mxu0
      %v8785 = vpop.f32.mrb[0].mxu0
      %8786 = vdwg.mxu0
      %v8787 = vadd.f32 %v7993, %v8758
      %v8788 = vadd.f32 %v7994, %v8761
      %v8789 = vadd.f32 %v7995, %v8766
      %v8790 = vadd.f32 %v7996, %v8769
      %v8791 = vadd.f32 %v7997, %v8774
      %v8792 = vadd.f32 %v7998, %v8777
      %v8793 = vadd.f32 %v7999, %v8782
      %v8801 = vcombine.high %v5961, %v5961
      %v8803 = vunpack.c.l.s4 1966171168
      %v8804 = vunpack.c.0.s8 %v8803
      %v8805 = vlaneseq
      %v8806 = vshrl.u32 %v8805, 7
      %v8807 = vsub.s32 %v8804, %v8806
      %v8808 = vrot.slane %v5961, %v8807
      %v8810 = vunpack.c.l.s4 1966171168
      %v8811 = vunpack.c.0.s8 %v8810
      %v8812 = vlaneseq
      %v8813 = vshrl.u32 %v8812, 7
      %v8814 = vsub.s32 %v8811, %v8813
      %v8815 = vrot.slane %v8801, %v8814
      %v8816 = vcombine.high %v8808, %v8808
      %v8817 = vcombine.high %v8815, %v8815
      %v8819 = vunpack.c.l.s4 1966171168
      %v8820 = vunpack.c.0.s8 %v8819
      %v8821 = vlaneseq
      %v8822 = vshrl.u32 %v8821, 7
      %v8823 = vsub.s32 %v8820, %v8822
      %v8824 = vrot.slane %v8808, %v8823
      %v8826 = vunpack.c.l.s4 1966171168
      %v8827 = vunpack.c.0.s8 %v8826
      %v8828 = vlaneseq
      %v8829 = vshrl.u32 %v8828, 7
      %v8830 = vsub.s32 %v8827, %v8829
      %v8831 = vrot.slane %v8815, %v8830
      %v8833 = vunpack.c.l.s4 1966171168
      %v8834 = vunpack.c.0.s8 %v8833
      %v8835 = vlaneseq
      %v8836 = vshrl.u32 %v8835, 7
      %v8837 = vsub.s32 %v8834, %v8836
      %v8838 = vrot.slane %v8816, %v8837
      %v8840 = vunpack.c.l.s4 1966171168
      %v8841 = vunpack.c.0.s8 %v8840
      %v8842 = vlaneseq
      %v8843 = vshrl.u32 %v8842, 7
      %v8844 = vsub.s32 %v8841, %v8843
      %v8845 = vrot.slane %v8817, %v8844
      %v8846 = vcombine.high %v8824, %v8824
      %v8847 = vcombine.high %v8831, %v8831
      %v8848 = vcombine.high %v8838, %v8838
      %v8849 = vcombine.high %v5962, %v5962
      %v8851 = vunpack.c.l.s4 1966171168
      %v8852 = vunpack.c.0.s8 %v8851
      %v8853 = vlaneseq
      %v8854 = vshrl.u32 %v8853, 7
      %v8855 = vsub.s32 %v8852, %v8854
      %v8856 = vrot.slane %v5962, %v8855
      %v8858 = vunpack.c.l.s4 1966171168
      %v8859 = vunpack.c.0.s8 %v8858
      %v8860 = vlaneseq
      %v8861 = vshrl.u32 %v8860, 7
      %v8862 = vsub.s32 %v8859, %v8861
      %v8863 = vrot.slane %v8849, %v8862
      %v8864 = vcombine.high %v8856, %v8856
      %v8865 = vcombine.high %v8863, %v8863
      %v8867 = vunpack.c.l.s4 1966171168
      %v8868 = vunpack.c.0.s8 %v8867
      %v8869 = vlaneseq
      %v8870 = vshrl.u32 %v8869, 7
      %v8871 = vsub.s32 %v8868, %v8870
      %v8872 = vrot.slane %v8856, %v8871
      %v8874 = vunpack.c.l.s4 1966171168
      %v8875 = vunpack.c.0.s8 %v8874
      %v8876 = vlaneseq
      %v8877 = vshrl.u32 %v8876, 7
      %v8878 = vsub.s32 %v8875, %v8877
      %v8879 = vrot.slane %v8863, %v8878
      %v8881 = vunpack.c.l.s4 1966171168
      %v8882 = vunpack.c.0.s8 %v8881
      %v8883 = vlaneseq
      %v8884 = vshrl.u32 %v8883, 7
      %v8885 = vsub.s32 %v8882, %v8884
      %v8886 = vrot.slane %v8864, %v8885
      %v8888 = vunpack.c.l.s4 1966171168
      %v8889 = vunpack.c.0.s8 %v8888
      %v8890 = vlaneseq
      %v8891 = vshrl.u32 %v8890, 7
      %v8892 = vsub.s32 %v8889, %v8891
      %v8893 = vrot.slane %v8865, %v8892
      %v8894 = vcombine.high %v8872, %v8872
      %v8895 = vcombine.high %v8879, %v8879
      %v8896 = vcombine.high %v8886, %v8886
      %v8897 = vcombine.high %v5963, %v5963
      %v8899 = vunpack.c.l.s4 1966171168
      %v8900 = vunpack.c.0.s8 %v8899
      %v8901 = vlaneseq
      %v8902 = vshrl.u32 %v8901, 7
      %v8903 = vsub.s32 %v8900, %v8902
      %v8904 = vrot.slane %v5963, %v8903
      %v8906 = vunpack.c.l.s4 1966171168
      %v8907 = vunpack.c.0.s8 %v8906
      %v8908 = vlaneseq
      %v8909 = vshrl.u32 %v8908, 7
      %v8910 = vsub.s32 %v8907, %v8909
      %v8911 = vrot.slane %v8897, %v8910
      %v8912 = vcombine.high %v8904, %v8904
      %v8913 = vcombine.high %v8911, %v8911
      %v8915 = vunpack.c.l.s4 1966171168
      %v8916 = vunpack.c.0.s8 %v8915
      %v8917 = vlaneseq
      %v8918 = vshrl.u32 %v8917, 7
      %v8919 = vsub.s32 %v8916, %v8918
      %v8920 = vrot.slane %v8904, %v8919
      %v8922 = vunpack.c.l.s4 1966171168
      %v8923 = vunpack.c.0.s8 %v8922
      %v8924 = vlaneseq
      %v8925 = vshrl.u32 %v8924, 7
      %v8926 = vsub.s32 %v8923, %v8925
      %v8927 = vrot.slane %v8911, %v8926
      %v8929 = vunpack.c.l.s4 1966171168
      %v8930 = vunpack.c.0.s8 %v8929
      %v8931 = vlaneseq
      %v8932 = vshrl.u32 %v8931, 7
      %v8933 = vsub.s32 %v8930, %v8932
      %v8934 = vrot.slane %v8912, %v8933
      %v8936 = vunpack.c.l.s4 1966171168
      %v8937 = vunpack.c.0.s8 %v8936
      %v8938 = vlaneseq
      %v8939 = vshrl.u32 %v8938, 7
      %v8940 = vsub.s32 %v8937, %v8939
      %v8941 = vrot.slane %v8913, %v8940
      %v8942 = vcombine.high %v8920, %v8920
      %v8943 = vcombine.high %v8927, %v8927
      %v8944 = vcombine.high %v8934, %v8934
      %v8945 = vcombine.high %v5964, %v5964
      %v8947 = vunpack.c.l.s4 1966171168
      %v8948 = vunpack.c.0.s8 %v8947
      %v8949 = vlaneseq
      %v8950 = vshrl.u32 %v8949, 7
      %v8951 = vsub.s32 %v8948, %v8950
      %v8952 = vrot.slane %v5964, %v8951
      %v8954 = vunpack.c.l.s4 1966171168
      %v8955 = vunpack.c.0.s8 %v8954
      %v8956 = vlaneseq
      %v8957 = vshrl.u32 %v8956, 7
      %v8958 = vsub.s32 %v8955, %v8957
      %v8959 = vrot.slane %v8945, %v8958
      %v8960 = vcombine.high %v8952, %v8952
      %v8961 = vcombine.high %v8959, %v8959
      %v8963 = vunpack.c.l.s4 1966171168
      %v8964 = vunpack.c.0.s8 %v8963
      %v8965 = vlaneseq
      %v8966 = vshrl.u32 %v8965, 7
      %v8967 = vsub.s32 %v8964, %v8966
      %v8968 = vrot.slane %v8952, %v8967
      %v8970 = vunpack.c.l.s4 1966171168
      %v8971 = vunpack.c.0.s8 %v8970
      %v8972 = vlaneseq
      %v8973 = vshrl.u32 %v8972, 7
      %v8974 = vsub.s32 %v8971, %v8973
      %v8975 = vrot.slane %v8959, %v8974
      %v8977 = vunpack.c.l.s4 1966171168
      %v8978 = vunpack.c.0.s8 %v8977
      %v8979 = vlaneseq
      %v8980 = vshrl.u32 %v8979, 7
      %v8981 = vsub.s32 %v8978, %v8980
      %v8982 = vrot.slane %v8960, %v8981
      %v8984 = vunpack.c.l.s4 1966171168
      %v8985 = vunpack.c.0.s8 %v8984
      %v8986 = vlaneseq
      %v8987 = vshrl.u32 %v8986, 7
      %v8988 = vsub.s32 %v8985, %v8987
      %v8989 = vrot.slane %v8961, %v8988
      %v8990 = vcombine.high %v8968, %v8968
      %v8991 = vcombine.high %v8975, %v8975
      %v8992 = vcombine.high %v8982, %v8982
      %v8993 = vcombine.high %v5965, %v5965
      %v8995 = vunpack.c.l.s4 1966171168
      %v8996 = vunpack.c.0.s8 %v8995
      %v8997 = vlaneseq
      %v8998 = vshrl.u32 %v8997, 7
      %v8999 = vsub.s32 %v8996, %v8998
      %v9000 = vrot.slane %v5965, %v8999
      %v9002 = vunpack.c.l.s4 1966171168
      %v9003 = vunpack.c.0.s8 %v9002
      %v9004 = vlaneseq
      %v9005 = vshrl.u32 %v9004, 7
      %v9006 = vsub.s32 %v9003, %v9005
      %v9007 = vrot.slane %v8993, %v9006
      %v9008 = vcombine.high %v9000, %v9000
      %v9009 = vcombine.high %v9007, %v9007
      %v9011 = vunpack.c.l.s4 1966171168
      %v9012 = vunpack.c.0.s8 %v9011
      %v9013 = vlaneseq
      %v9014 = vshrl.u32 %v9013, 7
      %v9015 = vsub.s32 %v9012, %v9014
      %v9016 = vrot.slane %v9000, %v9015
      %v9018 = vunpack.c.l.s4 1966171168
      %v9019 = vunpack.c.0.s8 %v9018
      %v9020 = vlaneseq
      %v9021 = vshrl.u32 %v9020, 7
      %v9022 = vsub.s32 %v9019, %v9021
      %v9023 = vrot.slane %v9007, %v9022
      %v9025 = vunpack.c.l.s4 1966171168
      %v9026 = vunpack.c.0.s8 %v9025
      %v9027 = vlaneseq
      %v9028 = vshrl.u32 %v9027, 7
      %v9029 = vsub.s32 %v9026, %v9028
      %v9030 = vrot.slane %v9008, %v9029
      %v9032 = vunpack.c.l.s4 1966171168
      %v9033 = vunpack.c.0.s8 %v9032
      %v9034 = vlaneseq
      %v9035 = vshrl.u32 %v9034, 7
      %v9036 = vsub.s32 %v9033, %v9035
      %v9037 = vrot.slane %v9009, %v9036
      %v9038 = vcombine.high %v9016, %v9016
      %v9039 = vcombine.high %v9023, %v9023
      %v9040 = vcombine.high %v9030, %v9030
      %v9041 = vcombine.high %v5966, %v5966
      %v9043 = vunpack.c.l.s4 1966171168
      %v9044 = vunpack.c.0.s8 %v9043
      %v9045 = vlaneseq
      %v9046 = vshrl.u32 %v9045, 7
      %v9047 = vsub.s32 %v9044, %v9046
      %v9048 = vrot.slane %v5966, %v9047
      %v9050 = vunpack.c.l.s4 1966171168
      %v9051 = vunpack.c.0.s8 %v9050
      %v9052 = vlaneseq
      %v9053 = vshrl.u32 %v9052, 7
      %v9054 = vsub.s32 %v9051, %v9053
      %v9055 = vrot.slane %v9041, %v9054
      %v9056 = vcombine.high %v9048, %v9048
      %v9057 = vcombine.high %v9055, %v9055
      %v9059 = vunpack.c.l.s4 1966171168
      %v9060 = vunpack.c.0.s8 %v9059
      %v9061 = vlaneseq
      %v9062 = vshrl.u32 %v9061, 7
      %v9063 = vsub.s32 %v9060, %v9062
      %v9064 = vrot.slane %v9048, %v9063
      %v9066 = vunpack.c.l.s4 1966171168
      %v9067 = vunpack.c.0.s8 %v9066
      %v9068 = vlaneseq
      %v9069 = vshrl.u32 %v9068, 7
      %v9070 = vsub.s32 %v9067, %v9069
      %v9071 = vrot.slane %v9055, %v9070
      %v9073 = vunpack.c.l.s4 1966171168
      %v9074 = vunpack.c.0.s8 %v9073
      %v9075 = vlaneseq
      %v9076 = vshrl.u32 %v9075, 7
      %v9077 = vsub.s32 %v9074, %v9076
      %v9078 = vrot.slane %v9056, %v9077
      %v9080 = vunpack.c.l.s4 1966171168
      %v9081 = vunpack.c.0.s8 %v9080
      %v9082 = vlaneseq
      %v9083 = vshrl.u32 %v9082, 7
      %v9084 = vsub.s32 %v9081, %v9083
      %v9085 = vrot.slane %v9057, %v9084
      %v9086 = vcombine.high %v9064, %v9064
      %v9087 = vcombine.high %v9071, %v9071
      %v9088 = vcombine.high %v9078, %v9078
      %v9089 = vcombine.high %v5967, %v5967
      %v9091 = vunpack.c.l.s4 1966171168
      %v9092 = vunpack.c.0.s8 %v9091
      %v9093 = vlaneseq
      %v9094 = vshrl.u32 %v9093, 7
      %v9095 = vsub.s32 %v9092, %v9094
      %v9096 = vrot.slane %v5967, %v9095
      %v9098 = vunpack.c.l.s4 1966171168
      %v9099 = vunpack.c.0.s8 %v9098
      %v9100 = vlaneseq
      %v9101 = vshrl.u32 %v9100, 7
      %v9102 = vsub.s32 %v9099, %v9101
      %v9103 = vrot.slane %v9089, %v9102
      %v9104 = vcombine.high %v9096, %v9096
      %v9105 = vcombine.high %v9103, %v9103
      %v9107 = vunpack.c.l.s4 1966171168
      %v9108 = vunpack.c.0.s8 %v9107
      %v9109 = vlaneseq
      %v9110 = vshrl.u32 %v9109, 7
      %v9111 = vsub.s32 %v9108, %v9110
      %v9112 = vrot.slane %v9096, %v9111
      %v9114 = vunpack.c.l.s4 1966171168
      %v9115 = vunpack.c.0.s8 %v9114
      %v9116 = vlaneseq
      %v9117 = vshrl.u32 %v9116, 7
      %v9118 = vsub.s32 %v9115, %v9117
      %v9119 = vrot.slane %v9103, %v9118
      %v9121 = vunpack.c.l.s4 1966171168
      %v9122 = vunpack.c.0.s8 %v9121
      %v9123 = vlaneseq
      %v9124 = vshrl.u32 %v9123, 7
      %v9125 = vsub.s32 %v9122, %v9124
      %v9126 = vrot.slane %v9104, %v9125
      %v9128 = vunpack.c.l.s4 1966171168
      %v9129 = vunpack.c.0.s8 %v9128
      %v9130 = vlaneseq
      %v9131 = vshrl.u32 %v9130, 7
      %v9132 = vsub.s32 %v9129, %v9131
      %v9133 = vrot.slane %v9105, %v9132
      %v9134 = vcombine.high %v9112, %v9112
      %v9135 = vcombine.high %v9119, %v9119
      %v9136 = vcombine.high %v9126, %v9126
      %v9137 = vcombine.low %v8824, %v8838
      %v9138 = vcombine.low %v8846, %v8848
      %v9139 = vcombine.low %v8831, %v8845
      %v9140 = vcombine.low %v8847, %v8872
      %v9142 = vunpack.c.l.s4 1966171168
      %v9143 = vunpack.c.0.s8 %v9142
      %v9144 = vlaneseq
      %v9145 = vshrl.u32 %v9144, 7
      %v9146 = vsub.s32 %v9143, %v9145
      %v9147 = vrot.slane %v9137, %v9146
      %v9149 = vunpack.c.l.s4 1966171168
      %v9150 = vunpack.c.0.s8 %v9149
      %v9151 = vlaneseq
      %v9152 = vshrl.u32 %v9151, 7
      %v9153 = vsub.s32 %v9150, %v9152
      %v9154 = vrot.slane %v9138, %v9153
      %v9156 = vunpack.c.l.s4 1966171168
      %v9157 = vunpack.c.0.s8 %v9156
      %v9158 = vlaneseq
      %v9159 = vshrl.u32 %v9158, 7
      %v9160 = vsub.s32 %v9157, %v9159
      %v9161 = vrot.slane %v9139, %v9160
      %v9163 = vunpack.c.l.s4 1966171168
      %v9164 = vunpack.c.0.s8 %v9163
      %v9165 = vlaneseq
      %v9166 = vshrl.u32 %v9165, 7
      %v9167 = vsub.s32 %v9164, %v9166
      %v9168 = vrot.slane %v9140, %v9167
      %v9169 = vcombine.low %v9147, %v9154
      %v9170 = vcombine.low %v9161, %v9168
      %v9172 = vunpack.c.l.s4 1966171168
      %v9173 = vunpack.c.0.s8 %v9172
      %v9174 = vlaneseq
      %v9175 = vshrl.u32 %v9174, 7
      %v9176 = vsub.s32 %v9173, %v9175
      %v9177 = vrot.slane %v9169, %v9176
      %v9179 = vunpack.c.l.s4 1966171168
      %v9180 = vunpack.c.0.s8 %v9179
      %v9181 = vlaneseq
      %v9182 = vshrl.u32 %v9181, 7
      %v9183 = vsub.s32 %v9180, %v9182
      %v9184 = vrot.slane %v9170, %v9183
      %v9185 = vcombine.low %v9177, %v9184
      %v9186 = vcombine.low %v8886, %v8894
      %v9187 = vcombine.low %v8896, %v8879
      %v9188 = vcombine.low %v8893, %v8895
      %v9189 = vcombine.low %v8920, %v8934
      %v9191 = vunpack.c.l.s4 1966171168
      %v9192 = vunpack.c.0.s8 %v9191
      %v9193 = vlaneseq
      %v9194 = vshrl.u32 %v9193, 7
      %v9195 = vsub.s32 %v9192, %v9194
      %v9196 = vrot.slane %v9186, %v9195
      %v9198 = vunpack.c.l.s4 1966171168
      %v9199 = vunpack.c.0.s8 %v9198
      %v9200 = vlaneseq
      %v9201 = vshrl.u32 %v9200, 7
      %v9202 = vsub.s32 %v9199, %v9201
      %v9203 = vrot.slane %v9187, %v9202
      %v9205 = vunpack.c.l.s4 1966171168
      %v9206 = vunpack.c.0.s8 %v9205
      %v9207 = vlaneseq
      %v9208 = vshrl.u32 %v9207, 7
      %v9209 = vsub.s32 %v9206, %v9208
      %v9210 = vrot.slane %v9188, %v9209
      %v9212 = vunpack.c.l.s4 1966171168
      %v9213 = vunpack.c.0.s8 %v9212
      %v9214 = vlaneseq
      %v9215 = vshrl.u32 %v9214, 7
      %v9216 = vsub.s32 %v9213, %v9215
      %v9217 = vrot.slane %v9189, %v9216
      %v9218 = vcombine.low %v9196, %v9203
      %v9219 = vcombine.low %v9210, %v9217
      %v9221 = vunpack.c.l.s4 1966171168
      %v9222 = vunpack.c.0.s8 %v9221
      %v9223 = vlaneseq
      %v9224 = vshrl.u32 %v9223, 7
      %v9225 = vsub.s32 %v9222, %v9224
      %v9226 = vrot.slane %v9218, %v9225
      %v9228 = vunpack.c.l.s4 1966171168
      %v9229 = vunpack.c.0.s8 %v9228
      %v9230 = vlaneseq
      %v9231 = vshrl.u32 %v9230, 7
      %v9232 = vsub.s32 %v9229, %v9231
      %v9233 = vrot.slane %v9219, %v9232
      %v9234 = vcombine.low %v9226, %v9233
      %v9235 = vcombine.low %v8942, %v8944
      %v9236 = vcombine.low %v8927, %v8941
      %v9237 = vcombine.low %v8943, %v8968
      %v9238 = vcombine.low %v8982, %v8990
      %v9240 = vunpack.c.l.s4 1966171168
      %v9241 = vunpack.c.0.s8 %v9240
      %v9242 = vlaneseq
      %v9243 = vshrl.u32 %v9242, 7
      %v9244 = vsub.s32 %v9241, %v9243
      %v9245 = vrot.slane %v9235, %v9244
      %v9247 = vunpack.c.l.s4 1966171168
      %v9248 = vunpack.c.0.s8 %v9247
      %v9249 = vlaneseq
      %v9250 = vshrl.u32 %v9249, 7
      %v9251 = vsub.s32 %v9248, %v9250
      %v9252 = vrot.slane %v9236, %v9251
      %v9254 = vunpack.c.l.s4 1966171168
      %v9255 = vunpack.c.0.s8 %v9254
      %v9256 = vlaneseq
      %v9257 = vshrl.u32 %v9256, 7
      %v9258 = vsub.s32 %v9255, %v9257
      %v9259 = vrot.slane %v9237, %v9258
      %v9261 = vunpack.c.l.s4 1966171168
      %v9262 = vunpack.c.0.s8 %v9261
      %v9263 = vlaneseq
      %v9264 = vshrl.u32 %v9263, 7
      %v9265 = vsub.s32 %v9262, %v9264
      %v9266 = vrot.slane %v9238, %v9265
      %v9267 = vcombine.low %v9245, %v9252
      %v9268 = vcombine.low %v9259, %v9266
      %v9270 = vunpack.c.l.s4 1966171168
      %v9271 = vunpack.c.0.s8 %v9270
      %v9272 = vlaneseq
      %v9273 = vshrl.u32 %v9272, 7
      %v9274 = vsub.s32 %v9271, %v9273
      %v9275 = vrot.slane %v9267, %v9274
      %v9277 = vunpack.c.l.s4 1966171168
      %v9278 = vunpack.c.0.s8 %v9277
      %v9279 = vlaneseq
      %v9280 = vshrl.u32 %v9279, 7
      %v9281 = vsub.s32 %v9278, %v9280
      %v9282 = vrot.slane %v9268, %v9281
      %v9283 = vcombine.low %v9275, %v9282
      %v9284 = vcombine.low %v8992, %v8975
      %v9285 = vcombine.low %v8989, %v8991
      %v9286 = vcombine.low %v9016, %v9030
      %v9287 = vcombine.low %v9038, %v9040
      %v9289 = vunpack.c.l.s4 1966171168
      %v9290 = vunpack.c.0.s8 %v9289
      %v9291 = vlaneseq
      %v9292 = vshrl.u32 %v9291, 7
      %v9293 = vsub.s32 %v9290, %v9292
      %v9294 = vrot.slane %v9284, %v9293
      %v9296 = vunpack.c.l.s4 1966171168
      %v9297 = vunpack.c.0.s8 %v9296
      %v9298 = vlaneseq
      %v9299 = vshrl.u32 %v9298, 7
      %v9300 = vsub.s32 %v9297, %v9299
      %v9301 = vrot.slane %v9285, %v9300
      %v9303 = vunpack.c.l.s4 1966171168
      %v9304 = vunpack.c.0.s8 %v9303
      %v9305 = vlaneseq
      %v9306 = vshrl.u32 %v9305, 7
      %v9307 = vsub.s32 %v9304, %v9306
      %v9308 = vrot.slane %v9286, %v9307
      %v9310 = vunpack.c.l.s4 1966171168
      %v9311 = vunpack.c.0.s8 %v9310
      %v9312 = vlaneseq
      %v9313 = vshrl.u32 %v9312, 7
      %v9314 = vsub.s32 %v9311, %v9313
      %v9315 = vrot.slane %v9287, %v9314
      %v9316 = vcombine.low %v9294, %v9301
      %v9317 = vcombine.low %v9308, %v9315
      %v9319 = vunpack.c.l.s4 1966171168
      %v9320 = vunpack.c.0.s8 %v9319
      %v9321 = vlaneseq
      %v9322 = vshrl.u32 %v9321, 7
      %v9323 = vsub.s32 %v9320, %v9322
      %v9324 = vrot.slane %v9316, %v9323
      %v9326 = vunpack.c.l.s4 1966171168
      %v9327 = vunpack.c.0.s8 %v9326
      %v9328 = vlaneseq
      %v9329 = vshrl.u32 %v9328, 7
      %v9330 = vsub.s32 %v9327, %v9329
      %v9331 = vrot.slane %v9317, %v9330
      %v9332 = vcombine.low %v9324, %v9331
      %v9333 = vcombine.low %v9023, %v9037
      %v9334 = vcombine.low %v9039, %v9064
      %v9335 = vcombine.low %v9078, %v9086
      %v9336 = vcombine.low %v9088, %v9071
      %v9338 = vunpack.c.l.s4 1966171168
      %v9339 = vunpack.c.0.s8 %v9338
      %v9340 = vlaneseq
      %v9341 = vshrl.u32 %v9340, 7
      %v9342 = vsub.s32 %v9339, %v9341
      %v9343 = vrot.slane %v9333, %v9342
      %v9345 = vunpack.c.l.s4 1966171168
      %v9346 = vunpack.c.0.s8 %v9345
      %v9347 = vlaneseq
      %v9348 = vshrl.u32 %v9347, 7
      %v9349 = vsub.s32 %v9346, %v9348
      %v9350 = vrot.slane %v9334, %v9349
      %v9352 = vunpack.c.l.s4 1966171168
      %v9353 = vunpack.c.0.s8 %v9352
      %v9354 = vlaneseq
      %v9355 = vshrl.u32 %v9354, 7
      %v9356 = vsub.s32 %v9353, %v9355
      %v9357 = vrot.slane %v9335, %v9356
      %v9359 = vunpack.c.l.s4 1966171168
      %v9360 = vunpack.c.0.s8 %v9359
      %v9361 = vlaneseq
      %v9362 = vshrl.u32 %v9361, 7
      %v9363 = vsub.s32 %v9360, %v9362
      %v9364 = vrot.slane %v9336, %v9363
      %v9365 = vcombine.low %v9343, %v9350
      %v9366 = vcombine.low %v9357, %v9364
      %v9368 = vunpack.c.l.s4 1966171168
      %v9369 = vunpack.c.0.s8 %v9368
      %v9370 = vlaneseq
      %v9371 = vshrl.u32 %v9370, 7
      %v9372 = vsub.s32 %v9369, %v9371
      %v9373 = vrot.slane %v9365, %v9372
      %v9375 = vunpack.c.l.s4 1966171168
      %v9376 = vunpack.c.0.s8 %v9375
      %v9377 = vlaneseq
      %v9378 = vshrl.u32 %v9377, 7
      %v9379 = vsub.s32 %v9376, %v9378
      %v9380 = vrot.slane %v9366, %v9379
      %v9381 = vcombine.low %v9373, %v9380
      %v9382 = vcombine.low %v9085, %v9087
      %v9383 = vcombine.low %v9112, %v9126
      %v9384 = vcombine.low %v9134, %v9136
      %v9385 = vcombine.low %v9119, %v9133
      %v9387 = vunpack.c.l.s4 1966171168
      %v9388 = vunpack.c.0.s8 %v9387
      %v9389 = vlaneseq
      %v9390 = vshrl.u32 %v9389, 7
      %v9391 = vsub.s32 %v9388, %v9390
      %v9392 = vrot.slane %v9382, %v9391
      %v9394 = vunpack.c.l.s4 1966171168
      %v9395 = vunpack.c.0.s8 %v9394
      %v9396 = vlaneseq
      %v9397 = vshrl.u32 %v9396, 7
      %v9398 = vsub.s32 %v9395, %v9397
      %v9399 = vrot.slane %v9383, %v9398
      %v9401 = vunpack.c.l.s4 1966171168
      %v9402 = vunpack.c.0.s8 %v9401
      %v9403 = vlaneseq
      %v9404 = vshrl.u32 %v9403, 7
      %v9405 = vsub.s32 %v9402, %v9404
      %v9406 = vrot.slane %v9384, %v9405
      %v9408 = vunpack.c.l.s4 1966171168
      %v9409 = vunpack.c.0.s8 %v9408
      %v9410 = vlaneseq
      %v9411 = vshrl.u32 %v9410, 7
      %v9412 = vsub.s32 %v9409, %v9411
      %v9413 = vrot.slane %v9385, %v9412
      %v9414 = vcombine.low %v9392, %v9399
      %v9415 = vcombine.low %v9406, %v9413
      %v9417 = vunpack.c.l.s4 1966171168
      %v9418 = vunpack.c.0.s8 %v9417
      %v9419 = vlaneseq
      %v9420 = vshrl.u32 %v9419, 7
      %v9421 = vsub.s32 %v9418, %v9420
      %v9422 = vrot.slane %v9414, %v9421
      %v9424 = vunpack.c.l.s4 1966171168
      %v9425 = vunpack.c.0.s8 %v9424
      %v9426 = vlaneseq
      %v9427 = vshrl.u32 %v9426, 7
      %v9428 = vsub.s32 %v9425, %v9427
      %v9429 = vrot.slane %v9415, %v9428
      %v9430 = vcombine.low %v9422, %v9429
      %v9432 = vunpack.c.l.s4 1966171168
      %v9433 = vunpack.c.0.s8 %v9432
      %v9434 = vlaneseq
      %v9435 = vshrl.u32 %v9434, 7
      %v9436 = vsub.s32 %v9433, %v9435
      %v9437 = vrot.slane %v9135, %v9436
      %v9439 = vunpack.c.l.s4 1966171168
      %v9440 = vunpack.c.0.s8 %v9439
      %v9441 = vlaneseq
      %v9442 = vshrl.u32 %v9441, 7
      %v9443 = vsub.s32 %v9440, %v9442
      %v9444 = vrot.slane %v9437, %v9443
      %v9452 = vpack.c.bf16 %v9234, %v9185
      %v9453 = vpack.c.bf16 %v9332, %v9283
      %v9454 = vpack.c.bf16 %v9430, %v9381
      %v9455 = vpack.c.bf16 %v9444, %v9444
      %s9456 = scalar_lea.vmem %s6, 192
      %v9457 = vld [vmem:[%s9456] sm:$0xf]
      %v9458 = vld [vmem:[%s9456 + $0x4] sm:$0xf]
      %v9459 = vld [vmem:[%s9456 + $0x8] sm:$0xf]
      %v9460 = vld [vmem:[%s9456 + $0xc] sm:$0xf]
      %v9461 = vld [vmem:[%s9456 + $0x10] sm:$0xf]
      %v9462 = vld [vmem:[%s9456 + $0x14] sm:$0xf]
      %v9463 = vld [vmem:[%s9456 + $0x18] sm:$0xf]
      %v9464 = vld [vmem:[%s9456 + $0x1c] sm:$0xf]
      %v9465 = vld [vmem:[%s9456 + $0x20] sm:$0xf]
      %v9466 = vld [vmem:[%s9456 + $0x24] sm:$0xf]
      %v9467 = vld [vmem:[%s9456 + $0x28] sm:$0xf]
      %v9468 = vld [vmem:[%s9456 + $0x2c] sm:$0xf]
      %v9481 = vunpack.c.l.b16 %v9457
      %v9482 = vunpack.c.l.b16 %v9458
      %v9483 = vunpack.c.l.b16 %v9459
      %v9484 = vunpack.c.l.b16 %v9460
      %v9485 = vunpack.c.l.b16 %v9461
      %v9486 = vunpack.c.l.b16 %v9462
      %v9487 = vunpack.c.l.b16 %v9463
      %v9488 = vunpack.c.l.b16 %v9464
      %v9489 = vunpack.c.l.b16 %v9465
      %v9490 = vunpack.c.l.b16 %v9466
      %v9491 = vunpack.c.l.b16 %v9467
      %v9492 = vunpack.c.l.b16 %v9468
      %v9493 = vpack.c.b16 %v9482, %v9481
      %v9494 = vpack.c.b16 %v9484, %v9483
      %v9495 = vpack.c.b16 %v9486, %v9485
      %v9496 = vpack.c.b16 %v9488, %v9487
      %v9497 = vpack.c.b16 %v9490, %v9489
      %v9498 = vpack.c.b16 %v9492, %v9491
      %v9506 = vsel %vm7353, %v9452, 0
      %v9509 = vsel %vm7353, %v9453, 0
      %v9512 = vsel %vm7353, %v9454, 0
      %v9515 = vsel %vm7353, %v9455, 0
      %9517 = vmatprep.subr.bf16.mxu0 0
      %9518 = vmatpush1.bf16.msra.mxu0 %v9493
      %9519 = vmatprep.subr.bf16.mxu0 0
      %9520 = vmatpush1.bf16.msra.mxu0 %v9494
      %9521 = vmatprep.subr.bf16.mxu0 0
      %9522 = vmatpush1.bf16.msra.mxu0 %v9495
      %9523 = vmatprep.subr.bf16.mxu0 0
      %9524 = vmatpush1.bf16.msra.mxu0 %v9496
      %9525 = vmatprep.subr.bf16.mxu0 0
      %9526 = vmatpush1.bf16.msra.mxu0 %v9497
      %9527 = vmatprep.subr.bf16.mxu0 0
      %9528 = vmatpush1.bf16.msra.mxu0 %v9498
      %9529 = vmatprep.subr.bf16.mxu0 0
      %9530 = vmatpush1.bf16.msra.mxu0 0
      %9531 = vmatprep.subr.bf16.mxu0 0
      %9532 = vmatpush1.bf16.msra.mxu0 0
      %9533 = vmatprep.subr.bf16.mxu0 0
      %9534 = vmatpush1.bf16.msra.mxu0 0
      %9535 = vmatprep.subr.bf16.mxu0 0
      %9536 = vmatpush1.bf16.msra.mxu0 0
      %9537 = vmatprep.subr.bf16.mxu0 0
      %9538 = vmatpush1.bf16.msra.mxu0 0
      %9539 = vmatprep.subr.bf16.mxu0 0
      %9540 = vmatpush1.bf16.msra.mxu0 0
      %9541 = vmatprep.subr.bf16.mxu0 0
      %9542 = vmatpush1.bf16.msra.mxu0 0
      %9543 = vmatprep.subr.bf16.mxu0 0
      %9544 = vmatpush1.bf16.msra.mxu0 0
      %9545 = vmatprep.subr.bf16.mxu0 0
      %9546 = vmatpush1.bf16.msra.mxu0 0
      %9547 = vmatprep.subr.bf16.mxu0 0
      %9548 = vmatpush1.bf16.msra.mxu0 0
      %9549 = vmatprep.mubr.bf16.mxu0 0
      %9550 = vmatmul.mubr.bf16.gmra.mrb[0].mxu0 %v9506
      %v9551 = vpop.f32.mrb[0].mxu0
      %v9552 = vadd.f32 0.0, %v9551
      %v9553 = vpop.f32.mrb[0].mxu0
      %v9554 = vpop.f32.mrb[0].mxu0
      %v9555 = vadd.f32 0.0, %v9554
      %v9556 = vpop.f32.mrb[0].mxu0
      %9557 = vmatprep.mubr.bf16.mxu0 0
      %9558 = vmatmul.mubr.bf16.gmra.mrb[0].mxu0 %v9509
      %v9559 = vpop.f32.mrb[0].mxu0
      %v9560 = vadd.f32 0.0, %v9559
      %v9561 = vpop.f32.mrb[0].mxu0
      %v9562 = vpop.f32.mrb[0].mxu0
      %v9563 = vadd.f32 0.0, %v9562
      %v9564 = vpop.f32.mrb[0].mxu0
      %9565 = vmatprep.mubr.bf16.mxu0 0
      %9566 = vmatmul.mubr.bf16.gmra.mrb[0].mxu0 %v9512
      %v9567 = vpop.f32.mrb[0].mxu0
      %v9568 = vadd.f32 0.0, %v9567
      %v9569 = vpop.f32.mrb[0].mxu0
      %v9570 = vpop.f32.mrb[0].mxu0
      %v9571 = vadd.f32 0.0, %v9570
      %v9572 = vpop.f32.mrb[0].mxu0
      %9573 = vmatprep.mubr.bf16.mxu0 0
      %9574 = vmatmul.mubr.bf16.gmra.mrb[0].mxu0 %v9515
      %v9575 = vpop.f32.mrb[0].mxu0
      %v9576 = vadd.f32 0.0, %v9575
      %v9577 = vpop.f32.mrb[0].mxu0
      %v9578 = vpop.f32.mrb[0].mxu0
      %v9579 = vpop.f32.mrb[0].mxu0
      %9580 = vdwg.mxu0
      %v9581 = vadd.f32 %v8787, %v9552
      %v9582 = vadd.f32 %v8788, %v9555
      %v9583 = vadd.f32 %v8789, %v9560
      %v9584 = vadd.f32 %v8790, %v9563
      %v9585 = vadd.f32 %v8791, %v9568
      %v9586 = vadd.f32 %v8792, %v9571
      %v9587 = vadd.f32 %v8793, %v9576
      %v9588 = vcombine.high %v8051, %v8051
      %v9589 = vcombine.high %v8099, %v8099
      %v9590 = vcombine.high %v8147, %v8147
      %v9591 = vcombine.high %v8195, %v8195
      %v9592 = vcombine.high %v8243, %v8243
      %v9593 = vcombine.high %v8291, %v8291
      %v9594 = vcombine.high %v8339, %v8339
      %v9595 = vcombine.low %v8044, %v8052
      %v9596 = vcombine.low %v8054, %v8037
      %v9597 = vcombine.low %v8051, %v8053
      %v9598 = vcombine.low %v9588, %v8092
      %v9600 = vunpack.c.l.s4 1966171168
      %v9601 = vunpack.c.0.s8 %v9600
      %v9602 = vlaneseq
      %v9603 = vshrl.u32 %v9602, 7
      %v9604 = vsub.s32 %v9601, %v9603
      %v9605 = vrot.slane %v9595, %v9604
      %v9607 = vunpack.c.l.s4 1966171168
      %v9608 = vunpack.c.0.s8 %v9607
      %v9609 = vlaneseq
      %v9610 = vshrl.u32 %v9609, 7
      %v9611 = vsub.s32 %v9608, %v9610
      %v9612 = vrot.slane %v9596, %v9611
      %v9614 = vunpack.c.l.s4 1966171168
      %v9615 = vunpack.c.0.s8 %v9614
      %v9616 = vlaneseq
      %v9617 = vshrl.u32 %v9616, 7
      %v9618 = vsub.s32 %v9615, %v9617
      %v9619 = vrot.slane %v9597, %v9618
      %v9621 = vunpack.c.l.s4 1966171168
      %v9622 = vunpack.c.0.s8 %v9621
      %v9623 = vlaneseq
      %v9624 = vshrl.u32 %v9623, 7
      %v9625 = vsub.s32 %v9622, %v9624
      %v9626 = vrot.slane %v9598, %v9625
      %v9627 = vcombine.low %v9605, %v9612
      %v9628 = vcombine.low %v9619, %v9626
      %v9630 = vunpack.c.l.s4 1966171168
      %v9631 = vunpack.c.0.s8 %v9630
      %v9632 = vlaneseq
      %v9633 = vshrl.u32 %v9632, 7
      %v9634 = vsub.s32 %v9631, %v9633
      %v9635 = vrot.slane %v9627, %v9634
      %v9637 = vunpack.c.l.s4 1966171168
      %v9638 = vunpack.c.0.s8 %v9637
      %v9639 = vlaneseq
      %v9640 = vshrl.u32 %v9639, 7
      %v9641 = vsub.s32 %v9638, %v9640
      %v9642 = vrot.slane %v9628, %v9641
      %v9643 = vcombine.low %v9635, %v9642
      %v9644 = vcombine.low %v8100, %v8102
      %v9645 = vcombine.low %v8085, %v8099
      %v9646 = vcombine.low %v8101, %v9589
      %v9647 = vcombine.low %v8140, %v8148
      %v9649 = vunpack.c.l.s4 1966171168
      %v9650 = vunpack.c.0.s8 %v9649
      %v9651 = vlaneseq
      %v9652 = vshrl.u32 %v9651, 7
      %v9653 = vsub.s32 %v9650, %v9652
      %v9654 = vrot.slane %v9644, %v9653
      %v9656 = vunpack.c.l.s4 1966171168
      %v9657 = vunpack.c.0.s8 %v9656
      %v9658 = vlaneseq
      %v9659 = vshrl.u32 %v9658, 7
      %v9660 = vsub.s32 %v9657, %v9659
      %v9661 = vrot.slane %v9645, %v9660
      %v9663 = vunpack.c.l.s4 1966171168
      %v9664 = vunpack.c.0.s8 %v9663
      %v9665 = vlaneseq
      %v9666 = vshrl.u32 %v9665, 7
      %v9667 = vsub.s32 %v9664, %v9666
      %v9668 = vrot.slane %v9646, %v9667
      %v9670 = vunpack.c.l.s4 1966171168
      %v9671 = vunpack.c.0.s8 %v9670
      %v9672 = vlaneseq
      %v9673 = vshrl.u32 %v9672, 7
      %v9674 = vsub.s32 %v9671, %v9673
      %v9675 = vrot.slane %v9647, %v9674
      %v9676 = vcombine.low %v9654, %v9661
      %v9677 = vcombine.low %v9668, %v9675
      %v9679 = vunpack.c.l.s4 1966171168
      %v9680 = vunpack.c.0.s8 %v9679
      %v9681 = vlaneseq
      %v9682 = vshrl.u32 %v9681, 7
      %v9683 = vsub.s32 %v9680, %v9682
      %v9684 = vrot.slane %v9676, %v9683
      %v9686 = vunpack.c.l.s4 1966171168
      %v9687 = vunpack.c.0.s8 %v9686
      %v9688 = vlaneseq
      %v9689 = vshrl.u32 %v9688, 7
      %v9690 = vsub.s32 %v9687, %v9689
      %v9691 = vrot.slane %v9677, %v9690
      %v9692 = vcombine.low %v9684, %v9691
      %v9693 = vcombine.low %v8150, %v8133
      %v9694 = vcombine.low %v8147, %v8149
      %v9695 = vcombine.low %v9590, %v8188
      %v9696 = vcombine.low %v8196, %v8198
      %v9698 = vunpack.c.l.s4 1966171168
      %v9699 = vunpack.c.0.s8 %v9698
      %v9700 = vlaneseq
      %v9701 = vshrl.u32 %v9700, 7
      %v9702 = vsub.s32 %v9699, %v9701
      %v9703 = vrot.slane %v9693, %v9702
      %v9705 = vunpack.c.l.s4 1966171168
      %v9706 = vunpack.c.0.s8 %v9705
      %v9707 = vlaneseq
      %v9708 = vshrl.u32 %v9707, 7
      %v9709 = vsub.s32 %v9706, %v9708
      %v9710 = vrot.slane %v9694, %v9709
      %v9712 = vunpack.c.l.s4 1966171168
      %v9713 = vunpack.c.0.s8 %v9712
      %v9714 = vlaneseq
      %v9715 = vshrl.u32 %v9714, 7
      %v9716 = vsub.s32 %v9713, %v9715
      %v9717 = vrot.slane %v9695, %v9716
      %v9719 = vunpack.c.l.s4 1966171168
      %v9720 = vunpack.c.0.s8 %v9719
      %v9721 = vlaneseq
      %v9722 = vshrl.u32 %v9721, 7
      %v9723 = vsub.s32 %v9720, %v9722
      %v9724 = vrot.slane %v9696, %v9723
      %v9725 = vcombine.low %v9703, %v9710
      %v9726 = vcombine.low %v9717, %v9724
      %v9728 = vunpack.c.l.s4 1966171168
      %v9729 = vunpack.c.0.s8 %v9728
      %v9730 = vlaneseq
      %v9731 = vshrl.u32 %v9730, 7
      %v9732 = vsub.s32 %v9729, %v9731
      %v9733 = vrot.slane %v9725, %v9732
      %v9735 = vunpack.c.l.s4 1966171168
      %v9736 = vunpack.c.0.s8 %v9735
      %v9737 = vlaneseq
      %v9738 = vshrl.u32 %v9737, 7
      %v9739 = vsub.s32 %v9736, %v9738
      %v9740 = vrot.slane %v9726, %v9739
      %v9741 = vcombine.low %v9733, %v9740
      %v9742 = vcombine.low %v8181, %v8195
      %v9743 = vcombine.low %v8197, %v9591
      %v9744 = vcombine.low %v8236, %v8244
      %v9745 = vcombine.low %v8246, %v8229
      %v9747 = vunpack.c.l.s4 1966171168
      %v9748 = vunpack.c.0.s8 %v9747
      %v9749 = vlaneseq
      %v9750 = vshrl.u32 %v9749, 7
      %v9751 = vsub.s32 %v9748, %v9750
      %v9752 = vrot.slane %v9742, %v9751
      %v9754 = vunpack.c.l.s4 1966171168
      %v9755 = vunpack.c.0.s8 %v9754
      %v9756 = vlaneseq
      %v9757 = vshrl.u32 %v9756, 7
      %v9758 = vsub.s32 %v9755, %v9757
      %v9759 = vrot.slane %v9743, %v9758
      %v9761 = vunpack.c.l.s4 1966171168
      %v9762 = vunpack.c.0.s8 %v9761
      %v9763 = vlaneseq
      %v9764 = vshrl.u32 %v9763, 7
      %v9765 = vsub.s32 %v9762, %v9764
      %v9766 = vrot.slane %v9744, %v9765
      %v9768 = vunpack.c.l.s4 1966171168
      %v9769 = vunpack.c.0.s8 %v9768
      %v9770 = vlaneseq
      %v9771 = vshrl.u32 %v9770, 7
      %v9772 = vsub.s32 %v9769, %v9771
      %v9773 = vrot.slane %v9745, %v9772
      %v9774 = vcombine.low %v9752, %v9759
      %v9775 = vcombine.low %v9766, %v9773
      %v9777 = vunpack.c.l.s4 1966171168
      %v9778 = vunpack.c.0.s8 %v9777
      %v9779 = vlaneseq
      %v9780 = vshrl.u32 %v9779, 7
      %v9781 = vsub.s32 %v9778, %v9780
      %v9782 = vrot.slane %v9774, %v9781
      %v9784 = vunpack.c.l.s4 1966171168
      %v9785 = vunpack.c.0.s8 %v9784
      %v9786 = vlaneseq
      %v9787 = vshrl.u32 %v9786, 7
      %v9788 = vsub.s32 %v9785, %v9787
      %v9789 = vrot.slane %v9775, %v9788
      %v9790 = vcombine.low %v9782, %v9789
      %v9791 = vcombine.low %v8243, %v8245
      %v9792 = vcombine.low %v9592, %v8284
      %v9793 = vcombine.low %v8292, %v8294
      %v9794 = vcombine.low %v8277, %v8291
      %v9796 = vunpack.c.l.s4 1966171168
      %v9797 = vunpack.c.0.s8 %v9796
      %v9798 = vlaneseq
      %v9799 = vshrl.u32 %v9798, 7
      %v9800 = vsub.s32 %v9797, %v9799
      %v9801 = vrot.slane %v9791, %v9800
      %v9803 = vunpack.c.l.s4 1966171168
      %v9804 = vunpack.c.0.s8 %v9803
      %v9805 = vlaneseq
      %v9806 = vshrl.u32 %v9805, 7
      %v9807 = vsub.s32 %v9804, %v9806
      %v9808 = vrot.slane %v9792, %v9807
      %v9810 = vunpack.c.l.s4 1966171168
      %v9811 = vunpack.c.0.s8 %v9810
      %v9812 = vlaneseq
      %v9813 = vshrl.u32 %v9812, 7
      %v9814 = vsub.s32 %v9811, %v9813
      %v9815 = vrot.slane %v9793, %v9814
      %v9817 = vunpack.c.l.s4 1966171168
      %v9818 = vunpack.c.0.s8 %v9817
      %v9819 = vlaneseq
      %v9820 = vshrl.u32 %v9819, 7
      %v9821 = vsub.s32 %v9818, %v9820
      %v9822 = vrot.slane %v9794, %v9821
      %v9823 = vcombine.low %v9801, %v9808
      %v9824 = vcombine.low %v9815, %v9822
      %v9826 = vunpack.c.l.s4 1966171168
      %v9827 = vunpack.c.0.s8 %v9826
      %v9828 = vlaneseq
      %v9829 = vshrl.u32 %v9828, 7
      %v9830 = vsub.s32 %v9827, %v9829
      %v9831 = vrot.slane %v9823, %v9830
      %v9833 = vunpack.c.l.s4 1966171168
      %v9834 = vunpack.c.0.s8 %v9833
      %v9835 = vlaneseq
      %v9836 = vshrl.u32 %v9835, 7
      %v9837 = vsub.s32 %v9834, %v9836
      %v9838 = vrot.slane %v9824, %v9837
      %v9839 = vcombine.low %v9831, %v9838
      %v9840 = vcombine.low %v8293, %v9593
      %v9841 = vcombine.low %v8332, %v8340
      %v9842 = vcombine.low %v8342, %v8325
      %v9843 = vcombine.low %v8339, %v8341
      %v9845 = vunpack.c.l.s4 1966171168
      %v9846 = vunpack.c.0.s8 %v9845
      %v9847 = vlaneseq
      %v9848 = vshrl.u32 %v9847, 7
      %v9849 = vsub.s32 %v9846, %v9848
      %v9850 = vrot.slane %v9840, %v9849
      %v9852 = vunpack.c.l.s4 1966171168
      %v9853 = vunpack.c.0.s8 %v9852
      %v9854 = vlaneseq
      %v9855 = vshrl.u32 %v9854, 7
      %v9856 = vsub.s32 %v9853, %v9855
      %v9857 = vrot.slane %v9841, %v9856
      %v9859 = vunpack.c.l.s4 1966171168
      %v9860 = vunpack.c.0.s8 %v9859
      %v9861 = vlaneseq
      %v9862 = vshrl.u32 %v9861, 7
      %v9863 = vsub.s32 %v9860, %v9862
      %v9864 = vrot.slane %v9842, %v9863
      %v9866 = vunpack.c.l.s4 1966171168
      %v9867 = vunpack.c.0.s8 %v9866
      %v9868 = vlaneseq
      %v9869 = vshrl.u32 %v9868, 7
      %v9870 = vsub.s32 %v9867, %v9869
      %v9871 = vrot.slane %v9843, %v9870
      %v9872 = vcombine.low %v9850, %v9857
      %v9873 = vcombine.low %v9864, %v9871
      %v9875 = vunpack.c.l.s4 1966171168
      %v9876 = vunpack.c.0.s8 %v9875
      %v9877 = vlaneseq
      %v9878 = vshrl.u32 %v9877, 7
      %v9879 = vsub.s32 %v9876, %v9878
      %v9880 = vrot.slane %v9872, %v9879
      %v9882 = vunpack.c.l.s4 1966171168
      %v9883 = vunpack.c.0.s8 %v9882
      %v9884 = vlaneseq
      %v9885 = vshrl.u32 %v9884, 7
      %v9886 = vsub.s32 %v9883, %v9885
      %v9887 = vrot.slane %v9873, %v9886
      %v9888 = vcombine.low %v9880, %v9887
      %v9890 = vunpack.c.l.s4 1966171168
      %v9891 = vunpack.c.0.s8 %v9890
      %v9892 = vlaneseq
      %v9893 = vshrl.u32 %v9892, 7
      %v9894 = vsub.s32 %v9891, %v9893
      %v9895 = vrot.slane %v9594, %v9894
      %v9897 = vunpack.c.l.s4 1966171168
      %v9898 = vunpack.c.0.s8 %v9897
      %v9899 = vlaneseq
      %v9900 = vshrl.u32 %v9899, 7
      %v9901 = vsub.s32 %v9898, %v9900
      %v9902 = vrot.slane %v9895, %v9901
      %v9910 = vpack.c.bf16 %v9692, %v9643
      %v9911 = vpack.c.bf16 %v9790, %v9741
      %v9912 = vpack.c.bf16 %v9888, %v9839
      %v9913 = vpack.c.bf16 %v9902, %v9902
      %s9914 = scalar_lea.vmem %s6, 240
      %v9915 = vld [vmem:[%s9914] sm:$0xf]
      %v9916 = vld [vmem:[%s9914 + $0x4] sm:$0xf]
      %v9917 = vld [vmem:[%s9914 + $0x8] sm:$0xf]
      %v9918 = vld [vmem:[%s9914 + $0xc] sm:$0xf]
      %v9919 = vld [vmem:[%s9914 + $0x10] sm:$0xf]
      %v9920 = vld [vmem:[%s9914 + $0x14] sm:$0xf]
      %v9921 = vld [vmem:[%s9914 + $0x18] sm:$0xf]
      %v9922 = vld [vmem:[%s9914 + $0x1c] sm:$0xf]
      %v9923 = vld [vmem:[%s9914 + $0x20] sm:$0xf]
      %v9924 = vld [vmem:[%s9914 + $0x24] sm:$0xf]
      %v9925 = vld [vmem:[%s9914 + $0x28] sm:$0xf]
      %v9926 = vld [vmem:[%s9914 + $0x2c] sm:$0xf]
      %v9939 = vunpack.c.l.b16 %v9915
      %v9940 = vunpack.c.l.b16 %v9916
      %v9941 = vunpack.c.l.b16 %v9917
      %v9942 = vunpack.c.l.b16 %v9918
      %v9943 = vunpack.c.l.b16 %v9919
      %v9944 = vunpack.c.l.b16 %v9920
      %v9945 = vunpack.c.l.b16 %v9921
      %v9946 = vunpack.c.l.b16 %v9922
      %v9947 = vunpack.c.l.b16 %v9923
      %v9948 = vunpack.c.l.b16 %v9924
      %v9949 = vunpack.c.l.b16 %v9925
      %v9950 = vunpack.c.l.b16 %v9926
      %v9951 = vpack.c.b16 %v9940, %v9939
      %v9952 = vpack.c.b16 %v9942, %v9941
      %v9953 = vpack.c.b16 %v9944, %v9943
      %v9954 = vpack.c.b16 %v9946, %v9945
      %v9955 = vpack.c.b16 %v9948, %v9947
      %v9956 = vpack.c.b16 %v9950, %v9949
      %v9964 = vsel %vm7353, %v9910, 0
      %v9967 = vsel %vm7353, %v9911, 0
      %v9970 = vsel %vm7353, %v9912, 0
      %v9973 = vsel %vm7353, %v9913, 0
      %9975 = vmatprep.subr.bf16.mxu0 0
      %9976 = vmatpush1.bf16.msra.mxu0 %v9951
      %9977 = vmatprep.subr.bf16.mxu0 0
      %9978 = vmatpush1.bf16.msra.mxu0 %v9952
      %9979 = vmatprep.subr.bf16.mxu0 0
      %9980 = vmatpush1.bf16.msra.mxu0 %v9953
      %9981 = vmatprep.subr.bf16.mxu0 0
      %9982 = vmatpush1.bf16.msra.mxu0 %v9954
      %9983 = vmatprep.subr.bf16.mxu0 0
      %9984 = vmatpush1.bf16.msra.mxu0 %v9955
      %9985 = vmatprep.subr.bf16.mxu0 0
      %9986 = vmatpush1.bf16.msra.mxu0 %v9956
      %9987 = vmatprep.subr.bf16.mxu0 0
      %9988 = vmatpush1.bf16.msra.mxu0 0
      %9989 = vmatprep.subr.bf16.mxu0 0
      %9990 = vmatpush1.bf16.msra.mxu0 0
      %9991 = vmatprep.subr.bf16.mxu0 0
      %9992 = vmatpush1.bf16.msra.mxu0 0
      %9993 = vmatprep.subr.bf16.mxu0 0
      %9994 = vmatpush1.bf16.msra.mxu0 0
      %9995 = vmatprep.subr.bf16.mxu0 0
      %9996 = vmatpush1.bf16.msra.mxu0 0
      %9997 = vmatprep.subr.bf16.mxu0 0
      %9998 = vmatpush1.bf16.msra.mxu0 0
      %9999 = vmatprep.subr.bf16.mxu0 0
      %10000 = vmatpush1.bf16.msra.mxu0 0
      %10001 = vmatprep.subr.bf16.mxu0 0
      %10002 = vmatpush1.bf16.msra.mxu0 0
      %10003 = vmatprep.subr.bf16.mxu0 0
      %10004 = vmatpush1.bf16.msra.mxu0 0
      %10005 = vmatprep.subr.bf16.mxu0 0
      %10006 = vmatpush1.bf16.msra.mxu0 0
      %10007 = vmatprep.mubr.bf16.mxu0 0
      %10008 = vmatmul.mubr.bf16.gmra.mrb[0].mxu0 %v9964
      %v10009 = vpop.f32.mrb[0].mxu0
      %v10010 = vadd.f32 0.0, %v10009
      %v10011 = vpop.f32.mrb[0].mxu0
      %v10012 = vpop.f32.mrb[0].mxu0
      %v10013 = vadd.f32 0.0, %v10012
      %v10014 = vpop.f32.mrb[0].mxu0
      %10015 = vmatprep.mubr.bf16.mxu0 0
      %10016 = vmatmul.mubr.bf16.gmra.mrb[0].mxu0 %v9967
      %v10017 = vpop.f32.mrb[0].mxu0
      %v10018 = vadd.f32 0.0, %v10017
      %v10019 = vpop.f32.mrb[0].mxu0
      %v10020 = vpop.f32.mrb[0].mxu0
      %v10021 = vadd.f32 0.0, %v10020
      %v10022 = vpop.f32.mrb[0].mxu0
      %10023 = vmatprep.mubr.bf16.mxu0 0
      %10024 = vmatmul.mubr.bf16.gmra.mrb[0].mxu0 %v9970
      %v10025 = vpop.f32.mrb[0].mxu0
      %v10026 = vadd.f32 0.0, %v10025
      %v10027 = vpop.f32.mrb[0].mxu0
      %v10028 = vpop.f32.mrb[0].mxu0
      %v10029 = vadd.f32 0.0, %v10028
      %v10030 = vpop.f32.mrb[0].mxu0
      %10031 = vmatprep.mubr.bf16.mxu0 0
      %10032 = vmatmul.mubr.bf16.gmra.mrb[0].mxu0 %v9973
      %v10033 = vpop.f32.mrb[0].mxu0
      %v10034 = vadd.f32 0.0, %v10033
      %v10035 = vpop.f32.mrb[0].mxu0
      %v10036 = vpop.f32.mrb[0].mxu0
      %v10037 = vpop.f32.mrb[0].mxu0
      %10038 = vdwg.mxu0
      %v10039 = vadd.f32 %v9581, %v10010
      %v10040 = vadd.f32 %v9582, %v10013
      %v10041 = vadd.f32 %v9583, %v10018
      %v10042 = vadd.f32 %v9584, %v10021
      %v10043 = vadd.f32 %v9585, %v10026
      %v10044 = vadd.f32 %v9586, %v10029
      %v10045 = vadd.f32 %v9587, %v10034
      %v10047 = vcombine.high %v3948, %v3948
      %v10049 = vunpack.c.l.s4 1966171168
      %v10050 = vunpack.c.0.s8 %v10049
      %v10051 = vlaneseq
      %v10052 = vshrl.u32 %v10051, 7
      %v10053 = vsub.s32 %v10050, %v10052
      %v10054 = vrot.slane %v3948, %v10053
      %v10056 = vunpack.c.l.s4 1966171168
      %v10057 = vunpack.c.0.s8 %v10056
      %v10058 = vlaneseq
      %v10059 = vshrl.u32 %v10058, 7
      %v10060 = vsub.s32 %v10057, %v10059
      %v10061 = vrot.slane %v10047, %v10060
      %v10062 = vcombine.high %v10054, %v10054
      %v10063 = vcombine.high %v10061, %v10061
      %v10065 = vunpack.c.l.s4 1966171168
      %v10066 = vunpack.c.0.s8 %v10065
      %v10067 = vlaneseq
      %v10068 = vshrl.u32 %v10067, 7
      %v10069 = vsub.s32 %v10066, %v10068
      %v10070 = vrot.slane %v10054, %v10069
      %v10072 = vunpack.c.l.s4 1966171168
      %v10073 = vunpack.c.0.s8 %v10072
      %v10074 = vlaneseq
      %v10075 = vshrl.u32 %v10074, 7
      %v10076 = vsub.s32 %v10073, %v10075
      %v10077 = vrot.slane %v10061, %v10076
      %v10079 = vunpack.c.l.s4 1966171168
      %v10080 = vunpack.c.0.s8 %v10079
      %v10081 = vlaneseq
      %v10082 = vshrl.u32 %v10081, 7
      %v10083 = vsub.s32 %v10080, %v10082
      %v10084 = vrot.slane %v10062, %v10083
      %v10086 = vunpack.c.l.s4 1966171168
      %v10087 = vunpack.c.0.s8 %v10086
      %v10088 = vlaneseq
      %v10089 = vshrl.u32 %v10088, 7
      %v10090 = vsub.s32 %v10087, %v10089
      %v10091 = vrot.slane %v10063, %v10090
      %v10092 = vcombine.high %v10070, %v10070
      %v10093 = vcombine.high %v10077, %v10077
      %v10094 = vcombine.high %v10084, %v10084
      %v10095 = vcombine.low %v6046, %v6060
      %v10096 = vcombine.low %v6069, %v6094
      %v10098 = vunpack.c.l.s4 1966171168
      %v10099 = vunpack.c.0.s8 %v10098
      %v10100 = vlaneseq
      %v10101 = vshrl.u32 %v10100, 7
      %v10102 = vsub.s32 %v10099, %v10101
      %v10103 = vrot.slane %v10095, %v10102
      %v10105 = vunpack.c.l.s4 1966171168
      %v10106 = vunpack.c.0.s8 %v10105
      %v10107 = vlaneseq
      %v10108 = vshrl.u32 %v10107, 7
      %v10109 = vsub.s32 %v10106, %v10108
      %v10110 = vrot.slane %v10096, %v10109
      %v10111 = vcombine.low %v10103, %v7608
      %v10112 = vcombine.low %v7615, %v10110
      %v10114 = vunpack.c.l.s4 1966171168
      %v10115 = vunpack.c.0.s8 %v10114
      %v10116 = vlaneseq
      %v10117 = vshrl.u32 %v10116, 7
      %v10118 = vsub.s32 %v10115, %v10117
      %v10119 = vrot.slane %v10111, %v10118
      %v10121 = vunpack.c.l.s4 1966171168
      %v10122 = vunpack.c.0.s8 %v10121
      %v10123 = vlaneseq
      %v10124 = vshrl.u32 %v10123, 7
      %v10125 = vsub.s32 %v10122, %v10124
      %v10126 = vrot.slane %v10112, %v10125
      %v10127 = vcombine.low %v10119, %v10126
      %v10128 = vcombine.low %v6142, %v6156
      %v10130 = vunpack.c.l.s4 1966171168
      %v10131 = vunpack.c.0.s8 %v10130
      %v10132 = vlaneseq
      %v10133 = vshrl.u32 %v10132, 7
      %v10134 = vsub.s32 %v10131, %v10133
      %v10135 = vrot.slane %v10128, %v10134
      %v10136 = vcombine.low %v7629, %v7657
      %v10137 = vcombine.low %v7664, %v10135
      %v10139 = vunpack.c.l.s4 1966171168
      %v10140 = vunpack.c.0.s8 %v10139
      %v10141 = vlaneseq
      %v10142 = vshrl.u32 %v10141, 7
      %v10143 = vsub.s32 %v10140, %v10142
      %v10144 = vrot.slane %v10136, %v10143
      %v10146 = vunpack.c.l.s4 1966171168
      %v10147 = vunpack.c.0.s8 %v10146
      %v10148 = vlaneseq
      %v10149 = vshrl.u32 %v10148, 7
      %v10150 = vsub.s32 %v10147, %v10149
      %v10151 = vrot.slane %v10137, %v10150
      %v10152 = vcombine.low %v10144, %v10151
      %v10153 = vcombine.low %v6165, %v6190
      %v10155 = vunpack.c.l.s4 1966171168
      %v10156 = vunpack.c.0.s8 %v10155
      %v10157 = vlaneseq
      %v10158 = vshrl.u32 %v10157, 7
      %v10159 = vsub.s32 %v10156, %v10158
      %v10160 = vrot.slane %v10153, %v10159
      %v10161 = vcombine.low %v7678, %v7706
      %v10162 = vcombine.low %v10160, %v7720
      %v10164 = vunpack.c.l.s4 1966171168
      %v10165 = vunpack.c.0.s8 %v10164
      %v10166 = vlaneseq
      %v10167 = vshrl.u32 %v10166, 7
      %v10168 = vsub.s32 %v10165, %v10167
      %v10169 = vrot.slane %v10161, %v10168
      %v10171 = vunpack.c.l.s4 1966171168
      %v10172 = vunpack.c.0.s8 %v10171
      %v10173 = vlaneseq
      %v10174 = vshrl.u32 %v10173, 7
      %v10175 = vsub.s32 %v10172, %v10174
      %v10176 = vrot.slane %v10162, %v10175
      %v10177 = vcombine.low %v10169, %v10176
      %v10178 = vcombine.low %v6238, %v6252
      %v10180 = vunpack.c.l.s4 1966171168
      %v10181 = vunpack.c.0.s8 %v10180
      %v10182 = vlaneseq
      %v10183 = vshrl.u32 %v10182, 7
      %v10184 = vsub.s32 %v10181, %v10183
      %v10185 = vrot.slane %v10178, %v10184
      %v10186 = vcombine.low %v7727, %v7755
      %v10187 = vcombine.low %v10185, %v7769
      %v10189 = vunpack.c.l.s4 1966171168
      %v10190 = vunpack.c.0.s8 %v10189
      %v10191 = vlaneseq
      %v10192 = vshrl.u32 %v10191, 7
      %v10193 = vsub.s32 %v10190, %v10192
      %v10194 = vrot.slane %v10186, %v10193
      %v10196 = vunpack.c.l.s4 1966171168
      %v10197 = vunpack.c.0.s8 %v10196
      %v10198 = vlaneseq
      %v10199 = vshrl.u32 %v10198, 7
      %v10200 = vsub.s32 %v10197, %v10199
      %v10201 = vrot.slane %v10187, %v10200
      %v10202 = vcombine.low %v10194, %v10201
      %v10203 = vcombine.low %v6261, %v6286
      %v10205 = vunpack.c.l.s4 1966171168
      %v10206 = vunpack.c.0.s8 %v10205
      %v10207 = vlaneseq
      %v10208 = vshrl.u32 %v10207, 7
      %v10209 = vsub.s32 %v10206, %v10208
      %v10210 = vrot.slane %v10203, %v10209
      %v10211 = vcombine.low %v7776, %v10210
      %v10212 = vcombine.low %v7811, %v7818
      %v10214 = vunpack.c.l.s4 1966171168
      %v10215 = vunpack.c.0.s8 %v10214
      %v10216 = vlaneseq
      %v10217 = vshrl.u32 %v10216, 7
      %v10218 = vsub.s32 %v10215, %v10217
      %v10219 = vrot.slane %v10211, %v10218
      %v10221 = vunpack.c.l.s4 1966171168
      %v10222 = vunpack.c.0.s8 %v10221
      %v10223 = vlaneseq
      %v10224 = vshrl.u32 %v10223, 7
      %v10225 = vsub.s32 %v10222, %v10224
      %v10226 = vrot.slane %v10212, %v10225
      %v10227 = vcombine.low %v10219, %v10226
      %v10228 = vcombine.low %v10070, %v10084
      %v10229 = vcombine.low %v10092, %v10094
      %v10230 = vcombine.low %v10077, %v10091
      %v10232 = vunpack.c.l.s4 1966171168
      %v10233 = vunpack.c.0.s8 %v10232
      %v10234 = vlaneseq
      %v10235 = vshrl.u32 %v10234, 7
      %v10236 = vsub.s32 %v10233, %v10235
      %v10237 = vrot.slane %v10228, %v10236
      %v10239 = vunpack.c.l.s4 1966171168
      %v10240 = vunpack.c.0.s8 %v10239
      %v10241 = vlaneseq
      %v10242 = vshrl.u32 %v10241, 7
      %v10243 = vsub.s32 %v10240, %v10242
      %v10244 = vrot.slane %v10229, %v10243
      %v10246 = vunpack.c.l.s4 1966171168
      %v10247 = vunpack.c.0.s8 %v10246
      %v10248 = vlaneseq
      %v10249 = vshrl.u32 %v10248, 7
      %v10250 = vsub.s32 %v10247, %v10249
      %v10251 = vrot.slane %v10230, %v10250
      %v10252 = vcombine.low %v7825, %v10237
      %v10253 = vcombine.low %v10244, %v10251
      %v10255 = vunpack.c.l.s4 1966171168
      %v10256 = vunpack.c.0.s8 %v10255
      %v10257 = vlaneseq
      %v10258 = vshrl.u32 %v10257, 7
      %v10259 = vsub.s32 %v10256, %v10258
      %v10260 = vrot.slane %v10252, %v10259
      %v10262 = vunpack.c.l.s4 1966171168
      %v10263 = vunpack.c.0.s8 %v10262
      %v10264 = vlaneseq
      %v10265 = vshrl.u32 %v10264, 7
      %v10266 = vsub.s32 %v10263, %v10265
      %v10267 = vrot.slane %v10253, %v10266
      %v10268 = vcombine.low %v10260, %v10267
      %v10270 = vunpack.c.l.s4 1966171168
      %v10271 = vunpack.c.0.s8 %v10270
      %v10272 = vlaneseq
      %v10273 = vshrl.u32 %v10272, 7
      %v10274 = vsub.s32 %v10271, %v10273
      %v10275 = vrot.slane %v10093, %v10274
      %v10277 = vunpack.c.l.s4 1966171168
      %v10278 = vunpack.c.0.s8 %v10277
      %v10279 = vlaneseq
      %v10280 = vshrl.u32 %v10279, 7
      %v10281 = vsub.s32 %v10278, %v10280
      %v10282 = vrot.slane %v10275, %v10281
      %v10290 = vpack.c.bf16 %v10152, %v10127
      %v10291 = vpack.c.bf16 %v10202, %v10177
      %v10292 = vpack.c.bf16 %v10268, %v10227
      %v10293 = vpack.c.bf16 %v10282, %v10282
      %s10294 = scalar_lea.vmem %s6, 288
      %v10295 = vld [vmem:[%s10294] sm:$0xf]
      %v10296 = vld [vmem:[%s10294 + $0x4] sm:$0xf]
      %v10297 = vld [vmem:[%s10294 + $0x8] sm:$0xf]
      %v10298 = vld [vmem:[%s10294 + $0xc] sm:$0xf]
      %v10299 = vld [vmem:[%s10294 + $0x10] sm:$0xf]
      %v10300 = vld [vmem:[%s10294 + $0x14] sm:$0xf]
      %v10301 = vld [vmem:[%s10294 + $0x18] sm:$0xf]
      %v10302 = vld [vmem:[%s10294 + $0x1c] sm:$0xf]
      %v10303 = vld [vmem:[%s10294 + $0x20] sm:$0xf]
      %v10304 = vld [vmem:[%s10294 + $0x24] sm:$0xf]
      %v10305 = vld [vmem:[%s10294 + $0x28] sm:$0xf]
      %v10306 = vld [vmem:[%s10294 + $0x2c] sm:$0xf]
      %v10319 = vunpack.c.l.b16 %v10295
      %v10320 = vunpack.c.l.b16 %v10296
      %v10321 = vunpack.c.l.b16 %v10297
      %v10322 = vunpack.c.l.b16 %v10298
      %v10323 = vunpack.c.l.b16 %v10299
      %v10324 = vunpack.c.l.b16 %v10300
      %v10325 = vunpack.c.l.b16 %v10301
      %v10326 = vunpack.c.l.b16 %v10302
      %v10327 = vunpack.c.l.b16 %v10303
      %v10328 = vunpack.c.l.b16 %v10304
      %v10329 = vunpack.c.l.b16 %v10305
      %v10330 = vunpack.c.l.b16 %v10306
      %v10331 = vpack.c.b16 %v10320, %v10319
      %v10332 = vpack.c.b16 %v10322, %v10321
      %v10333 = vpack.c.b16 %v10324, %v10323
      %v10334 = vpack.c.b16 %v10326, %v10325
      %v10335 = vpack.c.b16 %v10328, %v10327
      %v10336 = vpack.c.b16 %v10330, %v10329
      %v10344 = vsel %vm7353, %v10290, 0
      %v10347 = vsel %vm7353, %v10291, 0
      %v10350 = vsel %vm7353, %v10292, 0
      %v10353 = vsel %vm7353, %v10293, 0
      %10355 = vmatprep.subr.bf16.mxu0 0
      %10356 = vmatpush1.bf16.msra.mxu0 %v10331
      %10357 = vmatprep.subr.bf16.mxu0 0
      %10358 = vmatpush1.bf16.msra.mxu0 %v10332
      %10359 = vmatprep.subr.bf16.mxu0 0
      %10360 = vmatpush1.bf16.msra.mxu0 %v10333
      %10361 = vmatprep.subr.bf16.mxu0 0
      %10362 = vmatpush1.bf16.msra.mxu0 %v10334
      %10363 = vmatprep.subr.bf16.mxu0 0
      %10364 = vmatpush1.bf16.msra.mxu0 %v10335
      %10365 = vmatprep.subr.bf16.mxu0 0
      %10366 = vmatpush1.bf16.msra.mxu0 %v10336
      %10367 = vmatprep.subr.bf16.mxu0 0
      %10368 = vmatpush1.bf16.msra.mxu0 0
      %10369 = vmatprep.subr.bf16.mxu0 0
      %10370 = vmatpush1.bf16.msra.mxu0 0
      %10371 = vmatprep.subr.bf16.mxu0 0
      %10372 = vmatpush1.bf16.msra.mxu0 0
      %10373 = vmatprep.subr.bf16.mxu0 0
      %10374 = vmatpush1.bf16.msra.mxu0 0
      %10375 = vmatprep.subr.bf16.mxu0 0
      %10376 = vmatpush1.bf16.msra.mxu0 0
      %10377 = vmatprep.subr.bf16.mxu0 0
      %10378 = vmatpush1.bf16.msra.mxu0 0
      %10379 = vmatprep.subr.bf16.mxu0 0
      %10380 = vmatpush1.bf16.msra.mxu0 0
      %10381 = vmatprep.subr.bf16.mxu0 0
      %10382 = vmatpush1.bf16.msra.mxu0 0
      %10383 = vmatprep.subr.bf16.mxu0 0
      %10384 = vmatpush1.bf16.msra.mxu0 0
      %10385 = vmatprep.subr.bf16.mxu0 0
      %10386 = vmatpush1.bf16.msra.mxu0 0
      %10387 = vmatprep.mubr.bf16.mxu0 0
      %10388 = vmatmul.mubr.bf16.gmra.mrb[0].mxu0 %v10344
      %v10389 = vpop.f32.mrb[0].mxu0
      %v10390 = vadd.f32 0.0, %v10389
      %v10391 = vpop.f32.mrb[0].mxu0
      %v10392 = vpop.f32.mrb[0].mxu0
      %v10393 = vadd.f32 0.0, %v10392
      %v10394 = vpop.f32.mrb[0].mxu0
      %10395 = vmatprep.mubr.bf16.mxu0 0
      %10396 = vmatmul.mubr.bf16.gmra.mrb[0].mxu0 %v10347
      %v10397 = vpop.f32.mrb[0].mxu0
      %v10398 = vadd.f32 0.0, %v10397
      %v10399 = vpop.f32.mrb[0].mxu0
      %v10400 = vpop.f32.mrb[0].mxu0
      %v10401 = vadd.f32 0.0, %v10400
      %v10402 = vpop.f32.mrb[0].mxu0
      %10403 = vmatprep.mubr.bf16.mxu0 0
      %10404 = vmatmul.mubr.bf16.gmra.mrb[0].mxu0 %v10350
      %v10405 = vpop.f32.mrb[0].mxu0
      %v10406 = vadd.f32 0.0, %v10405
      %v10407 = vpop.f32.mrb[0].mxu0
      %v10408 = vpop.f32.mrb[0].mxu0
      %v10409 = vadd.f32 0.0, %v10408
      %v10410 = vpop.f32.mrb[0].mxu0
      %10411 = vmatprep.mubr.bf16.mxu0 0
      %10412 = vmatmul.mubr.bf16.gmra.mrb[0].mxu0 %v10353
      %v10413 = vpop.f32.mrb[0].mxu0
      %v10414 = vadd.f32 0.0, %v10413
      %v10415 = vpop.f32.mrb[0].mxu0
      %v10416 = vpop.f32.mrb[0].mxu0
      %v10417 = vpop.f32.mrb[0].mxu0
      %10418 = vdwg.mxu0
      %v10419 = vadd.f32 %v10039, %v10390
      %v10420 = vadd.f32 %v10040, %v10393
      %v10421 = vadd.f32 %v10041, %v10398
      %v10422 = vadd.f32 %v10042, %v10401
      %v10423 = vadd.f32 %v10043, %v10406
      %v10424 = vadd.f32 %v10044, %v10409
      %v10425 = vadd.f32 %v10045, %v10414
      %v10427 = vcombine.high %v4641, %v4641
      %v10429 = vunpack.c.l.s4 1966171168
      %v10430 = vunpack.c.0.s8 %v10429
      %v10431 = vlaneseq
      %v10432 = vshrl.u32 %v10431, 7
      %v10433 = vsub.s32 %v10430, %v10432
      %v10434 = vrot.slane %v4641, %v10433
      %v10436 = vunpack.c.l.s4 1966171168
      %v10437 = vunpack.c.0.s8 %v10436
      %v10438 = vlaneseq
      %v10439 = vshrl.u32 %v10438, 7
      %v10440 = vsub.s32 %v10437, %v10439
      %v10441 = vrot.slane %v10427, %v10440
      %v10442 = vcombine.high %v10434, %v10434
      %v10443 = vcombine.high %v10441, %v10441
      %v10445 = vunpack.c.l.s4 1966171168
      %v10446 = vunpack.c.0.s8 %v10445
      %v10447 = vlaneseq
      %v10448 = vshrl.u32 %v10447, 7
      %v10449 = vsub.s32 %v10446, %v10448
      %v10450 = vrot.slane %v10434, %v10449
      %v10452 = vunpack.c.l.s4 1966171168
      %v10453 = vunpack.c.0.s8 %v10452
      %v10454 = vlaneseq
      %v10455 = vshrl.u32 %v10454, 7
      %v10456 = vsub.s32 %v10453, %v10455
      %v10457 = vrot.slane %v10441, %v10456
      %v10459 = vunpack.c.l.s4 1966171168
      %v10460 = vunpack.c.0.s8 %v10459
      %v10461 = vlaneseq
      %v10462 = vshrl.u32 %v10461, 7
      %v10463 = vsub.s32 %v10460, %v10462
      %v10464 = vrot.slane %v10442, %v10463
      %v10466 = vunpack.c.l.s4 1966171168
      %v10467 = vunpack.c.0.s8 %v10466
      %v10468 = vlaneseq
      %v10469 = vshrl.u32 %v10468, 7
      %v10470 = vsub.s32 %v10467, %v10469
      %v10471 = vrot.slane %v10443, %v10470
      %v10472 = vcombine.high %v10450, %v10450
      %v10473 = vcombine.high %v10457, %v10457
      %v10474 = vcombine.high %v10464, %v10464
      %v10475 = vcombine.low %v6720, %v6734
      %v10476 = vcombine.low %v6742, %v6744
      %v10477 = vcombine.low %v6727, %v6741
      %v10478 = vcombine.low %v6743, %v6768
      %v10480 = vunpack.c.l.s4 1966171168
      %v10481 = vunpack.c.0.s8 %v10480
      %v10482 = vlaneseq
      %v10483 = vshrl.u32 %v10482, 7
      %v10484 = vsub.s32 %v10481, %v10483
      %v10485 = vrot.slane %v10475, %v10484
      %v10487 = vunpack.c.l.s4 1966171168
      %v10488 = vunpack.c.0.s8 %v10487
      %v10489 = vlaneseq
      %v10490 = vshrl.u32 %v10489, 7
      %v10491 = vsub.s32 %v10488, %v10490
      %v10492 = vrot.slane %v10476, %v10491
      %v10494 = vunpack.c.l.s4 1966171168
      %v10495 = vunpack.c.0.s8 %v10494
      %v10496 = vlaneseq
      %v10497 = vshrl.u32 %v10496, 7
      %v10498 = vsub.s32 %v10495, %v10497
      %v10499 = vrot.slane %v10477, %v10498
      %v10501 = vunpack.c.l.s4 1966171168
      %v10502 = vunpack.c.0.s8 %v10501
      %v10503 = vlaneseq
      %v10504 = vshrl.u32 %v10503, 7
      %v10505 = vsub.s32 %v10502, %v10504
      %v10506 = vrot.slane %v10478, %v10505
      %v10507 = vcombine.low %v10485, %v10492
      %v10508 = vcombine.low %v10499, %v10506
      %v10510 = vunpack.c.l.s4 1966171168
      %v10511 = vunpack.c.0.s8 %v10510
      %v10512 = vlaneseq
      %v10513 = vshrl.u32 %v10512, 7
      %v10514 = vsub.s32 %v10511, %v10513
      %v10515 = vrot.slane %v10507, %v10514
      %v10517 = vunpack.c.l.s4 1966171168
      %v10518 = vunpack.c.0.s8 %v10517
      %v10519 = vlaneseq
      %v10520 = vshrl.u32 %v10519, 7
      %v10521 = vsub.s32 %v10518, %v10520
      %v10522 = vrot.slane %v10508, %v10521
      %v10523 = vcombine.low %v10515, %v10522
      %v10524 = vcombine.low %v6782, %v6790
      %v10525 = vcombine.low %v6792, %v6775
      %v10526 = vcombine.low %v6789, %v6791
      %v10527 = vcombine.low %v6816, %v6830
      %v10529 = vunpack.c.l.s4 1966171168
      %v10530 = vunpack.c.0.s8 %v10529
      %v10531 = vlaneseq
      %v10532 = vshrl.u32 %v10531, 7
      %v10533 = vsub.s32 %v10530, %v10532
      %v10534 = vrot.slane %v10524, %v10533
      %v10536 = vunpack.c.l.s4 1966171168
      %v10537 = vunpack.c.0.s8 %v10536
      %v10538 = vlaneseq
      %v10539 = vshrl.u32 %v10538, 7
      %v10540 = vsub.s32 %v10537, %v10539
      %v10541 = vrot.slane %v10525, %v10540
      %v10543 = vunpack.c.l.s4 1966171168
      %v10544 = vunpack.c.0.s8 %v10543
      %v10545 = vlaneseq
      %v10546 = vshrl.u32 %v10545, 7
      %v10547 = vsub.s32 %v10544, %v10546
      %v10548 = vrot.slane %v10526, %v10547
      %v10550 = vunpack.c.l.s4 1966171168
      %v10551 = vunpack.c.0.s8 %v10550
      %v10552 = vlaneseq
      %v10553 = vshrl.u32 %v10552, 7
      %v10554 = vsub.s32 %v10551, %v10553
      %v10555 = vrot.slane %v10527, %v10554
      %v10556 = vcombine.low %v10534, %v10541
      %v10557 = vcombine.low %v10548, %v10555
      %v10559 = vunpack.c.l.s4 1966171168
      %v10560 = vunpack.c.0.s8 %v10559
      %v10561 = vlaneseq
      %v10562 = vshrl.u32 %v10561, 7
      %v10563 = vsub.s32 %v10560, %v10562
      %v10564 = vrot.slane %v10556, %v10563
      %v10566 = vunpack.c.l.s4 1966171168
      %v10567 = vunpack.c.0.s8 %v10566
      %v10568 = vlaneseq
      %v10569 = vshrl.u32 %v10568, 7
      %v10570 = vsub.s32 %v10567, %v10569
      %v10571 = vrot.slane %v10557, %v10570
      %v10572 = vcombine.low %v10564, %v10571
      %v10573 = vcombine.low %v6838, %v6840
      %v10574 = vcombine.low %v6823, %v6837
      %v10575 = vcombine.low %v6839, %v6864
      %v10576 = vcombine.low %v6878, %v6886
      %v10578 = vunpack.c.l.s4 1966171168
      %v10579 = vunpack.c.0.s8 %v10578
      %v10580 = vlaneseq
      %v10581 = vshrl.u32 %v10580, 7
      %v10582 = vsub.s32 %v10579, %v10581
      %v10583 = vrot.slane %v10573, %v10582
      %v10585 = vunpack.c.l.s4 1966171168
      %v10586 = vunpack.c.0.s8 %v10585
      %v10587 = vlaneseq
      %v10588 = vshrl.u32 %v10587, 7
      %v10589 = vsub.s32 %v10586, %v10588
      %v10590 = vrot.slane %v10574, %v10589
      %v10592 = vunpack.c.l.s4 1966171168
      %v10593 = vunpack.c.0.s8 %v10592
      %v10594 = vlaneseq
      %v10595 = vshrl.u32 %v10594, 7
      %v10596 = vsub.s32 %v10593, %v10595
      %v10597 = vrot.slane %v10575, %v10596
      %v10599 = vunpack.c.l.s4 1966171168
      %v10600 = vunpack.c.0.s8 %v10599
      %v10601 = vlaneseq
      %v10602 = vshrl.u32 %v10601, 7
      %v10603 = vsub.s32 %v10600, %v10602
      %v10604 = vrot.slane %v10576, %v10603
      %v10605 = vcombine.low %v10583, %v10590
      %v10606 = vcombine.low %v10597, %v10604
      %v10608 = vunpack.c.l.s4 1966171168
      %v10609 = vunpack.c.0.s8 %v10608
      %v10610 = vlaneseq
      %v10611 = vshrl.u32 %v10610, 7
      %v10612 = vsub.s32 %v10609, %v10611
      %v10613 = vrot.slane %v10605, %v10612
      %v10615 = vunpack.c.l.s4 1966171168
      %v10616 = vunpack.c.0.s8 %v10615
      %v10617 = vlaneseq
      %v10618 = vshrl.u32 %v10617, 7
      %v10619 = vsub.s32 %v10616, %v10618
      %v10620 = vrot.slane %v10606, %v10619
      %v10621 = vcombine.low %v10613, %v10620
      %v10622 = vcombine.low %v6888, %v6871
      %v10623 = vcombine.low %v6885, %v6887
      %v10624 = vcombine.low %v6912, %v6926
      %v10625 = vcombine.low %v6934, %v6936
      %v10627 = vunpack.c.l.s4 1966171168
      %v10628 = vunpack.c.0.s8 %v10627
      %v10629 = vlaneseq
      %v10630 = vshrl.u32 %v10629, 7
      %v10631 = vsub.s32 %v10628, %v10630
      %v10632 = vrot.slane %v10622, %v10631
      %v10634 = vunpack.c.l.s4 1966171168
      %v10635 = vunpack.c.0.s8 %v10634
      %v10636 = vlaneseq
      %v10637 = vshrl.u32 %v10636, 7
      %v10638 = vsub.s32 %v10635, %v10637
      %v10639 = vrot.slane %v10623, %v10638
      %v10641 = vunpack.c.l.s4 1966171168
      %v10642 = vunpack.c.0.s8 %v10641
      %v10643 = vlaneseq
      %v10644 = vshrl.u32 %v10643, 7
      %v10645 = vsub.s32 %v10642, %v10644
      %v10646 = vrot.slane %v10624, %v10645
      %v10648 = vunpack.c.l.s4 1966171168
      %v10649 = vunpack.c.0.s8 %v10648
      %v10650 = vlaneseq
      %v10651 = vshrl.u32 %v10650, 7
      %v10652 = vsub.s32 %v10649, %v10651
      %v10653 = vrot.slane %v10625, %v10652
      %v10654 = vcombine.low %v10632, %v10639
      %v10655 = vcombine.low %v10646, %v10653
      %v10657 = vunpack.c.l.s4 1966171168
      %v10658 = vunpack.c.0.s8 %v10657
      %v10659 = vlaneseq
      %v10660 = vshrl.u32 %v10659, 7
      %v10661 = vsub.s32 %v10658, %v10660
      %v10662 = vrot.slane %v10654, %v10661
      %v10664 = vunpack.c.l.s4 1966171168
      %v10665 = vunpack.c.0.s8 %v10664
      %v10666 = vlaneseq
      %v10667 = vshrl.u32 %v10666, 7
      %v10668 = vsub.s32 %v10665, %v10667
      %v10669 = vrot.slane %v10655, %v10668
      %v10670 = vcombine.low %v10662, %v10669
      %v10671 = vcombine.low %v6919, %v6933
      %v10672 = vcombine.low %v6935, %v6960
      %v10673 = vcombine.low %v6974, %v6982
      %v10674 = vcombine.low %v6984, %v6967
      %v10676 = vunpack.c.l.s4 1966171168
      %v10677 = vunpack.c.0.s8 %v10676
      %v10678 = vlaneseq
      %v10679 = vshrl.u32 %v10678, 7
      %v10680 = vsub.s32 %v10677, %v10679
      %v10681 = vrot.slane %v10671, %v10680
      %v10683 = vunpack.c.l.s4 1966171168
      %v10684 = vunpack.c.0.s8 %v10683
      %v10685 = vlaneseq
      %v10686 = vshrl.u32 %v10685, 7
      %v10687 = vsub.s32 %v10684, %v10686
      %v10688 = vrot.slane %v10672, %v10687
      %v10690 = vunpack.c.l.s4 1966171168
      %v10691 = vunpack.c.0.s8 %v10690
      %v10692 = vlaneseq
      %v10693 = vshrl.u32 %v10692, 7
      %v10694 = vsub.s32 %v10691, %v10693
      %v10695 = vrot.slane %v10673, %v10694
      %v10697 = vunpack.c.l.s4 1966171168
      %v10698 = vunpack.c.0.s8 %v10697
      %v10699 = vlaneseq
      %v10700 = vshrl.u32 %v10699, 7
      %v10701 = vsub.s32 %v10698, %v10700
      %v10702 = vrot.slane %v10674, %v10701
      %v10703 = vcombine.low %v10681, %v10688
      %v10704 = vcombine.low %v10695, %v10702
      %v10706 = vunpack.c.l.s4 1966171168
      %v10707 = vunpack.c.0.s8 %v10706
      %v10708 = vlaneseq
      %v10709 = vshrl.u32 %v10708, 7
      %v10710 = vsub.s32 %v10707, %v10709
      %v10711 = vrot.slane %v10703, %v10710
      %v10713 = vunpack.c.l.s4 1966171168
      %v10714 = vunpack.c.0.s8 %v10713
      %v10715 = vlaneseq
      %v10716 = vshrl.u32 %v10715, 7
      %v10717 = vsub.s32 %v10714, %v10716
      %v10718 = vrot.slane %v10704, %v10717
      %v10719 = vcombine.low %v10711, %v10718
      %v10720 = vcombine.low %v6981, %v6983
      %v10721 = vcombine.low %v10450, %v10464
      %v10722 = vcombine.low %v10472, %v10474
      %v10723 = vcombine.low %v10457, %v10471
      %v10725 = vunpack.c.l.s4 1966171168
      %v10726 = vunpack.c.0.s8 %v10725
      %v10727 = vlaneseq
      %v10728 = vshrl.u32 %v10727, 7
      %v10729 = vsub.s32 %v10726, %v10728
      %v10730 = vrot.slane %v10720, %v10729
      %v10732 = vunpack.c.l.s4 1966171168
      %v10733 = vunpack.c.0.s8 %v10732
      %v10734 = vlaneseq
      %v10735 = vshrl.u32 %v10734, 7
      %v10736 = vsub.s32 %v10733, %v10735
      %v10737 = vrot.slane %v10721, %v10736
      %v10739 = vunpack.c.l.s4 1966171168
      %v10740 = vunpack.c.0.s8 %v10739
      %v10741 = vlaneseq
      %v10742 = vshrl.u32 %v10741, 7
      %v10743 = vsub.s32 %v10740, %v10742
      %v10744 = vrot.slane %v10722, %v10743
      %v10746 = vunpack.c.l.s4 1966171168
      %v10747 = vunpack.c.0.s8 %v10746
      %v10748 = vlaneseq
      %v10749 = vshrl.u32 %v10748, 7
      %v10750 = vsub.s32 %v10747, %v10749
      %v10751 = vrot.slane %v10723, %v10750
      %v10752 = vcombine.low %v10730, %v10737
      %v10753 = vcombine.low %v10744, %v10751
      %v10755 = vunpack.c.l.s4 1966171168
      %v10756 = vunpack.c.0.s8 %v10755
      %v10757 = vlaneseq
      %v10758 = vshrl.u32 %v10757, 7
      %v10759 = vsub.s32 %v10756, %v10758
      %v10760 = vrot.slane %v10752, %v10759
      %v10762 = vunpack.c.l.s4 1966171168
      %v10763 = vunpack.c.0.s8 %v10762
      %v10764 = vlaneseq
      %v10765 = vshrl.u32 %v10764, 7
      %v10766 = vsub.s32 %v10763, %v10765
      %v10767 = vrot.slane %v10753, %v10766
      %v10768 = vcombine.low %v10760, %v10767
      %v10770 = vunpack.c.l.s4 1966171168
      %v10771 = vunpack.c.0.s8 %v10770
      %v10772 = vlaneseq
      %v10773 = vshrl.u32 %v10772, 7
      %v10774 = vsub.s32 %v10771, %v10773
      %v10775 = vrot.slane %v10473, %v10774
      %v10777 = vunpack.c.l.s4 1966171168
      %v10778 = vunpack.c.0.s8 %v10777
      %v10779 = vlaneseq
      %v10780 = vshrl.u32 %v10779, 7
      %v10781 = vsub.s32 %v10778, %v10780
      %v10782 = vrot.slane %v10775, %v10781
      %v10790 = vpack.c.bf16 %v10572, %v10523
      %v10791 = vpack.c.bf16 %v10670, %v10621
      %v10792 = vpack.c.bf16 %v10768, %v10719
      %v10793 = vpack.c.bf16 %v10782, %v10782
      %s10794 = scalar_lea.vmem %s6, 336
      %v10795 = vld [vmem:[%s10794] sm:$0xf]
      %v10796 = vld [vmem:[%s10794 + $0x4] sm:$0xf]
      %v10797 = vld [vmem:[%s10794 + $0x8] sm:$0xf]
      %v10798 = vld [vmem:[%s10794 + $0xc] sm:$0xf]
      %v10799 = vld [vmem:[%s10794 + $0x10] sm:$0xf]
      %v10800 = vld [vmem:[%s10794 + $0x14] sm:$0xf]
      %v10801 = vld [vmem:[%s10794 + $0x18] sm:$0xf]
      %v10802 = vld [vmem:[%s10794 + $0x1c] sm:$0xf]
      %v10803 = vld [vmem:[%s10794 + $0x20] sm:$0xf]
      %v10804 = vld [vmem:[%s10794 + $0x24] sm:$0xf]
      %v10805 = vld [vmem:[%s10794 + $0x28] sm:$0xf]
      %v10806 = vld [vmem:[%s10794 + $0x2c] sm:$0xf]
      %v10819 = vunpack.c.l.b16 %v10795
      %v10820 = vunpack.c.l.b16 %v10796
      %v10821 = vunpack.c.l.b16 %v10797
      %v10822 = vunpack.c.l.b16 %v10798
      %v10823 = vunpack.c.l.b16 %v10799
      %v10824 = vunpack.c.l.b16 %v10800
      %v10825 = vunpack.c.l.b16 %v10801
      %v10826 = vunpack.c.l.b16 %v10802
      %v10827 = vunpack.c.l.b16 %v10803
      %v10828 = vunpack.c.l.b16 %v10804
      %v10829 = vunpack.c.l.b16 %v10805
      %v10830 = vunpack.c.l.b16 %v10806
      %v10831 = vpack.c.b16 %v10820, %v10819
      %v10832 = vpack.c.b16 %v10822, %v10821
      %v10833 = vpack.c.b16 %v10824, %v10823
      %v10834 = vpack.c.b16 %v10826, %v10825
      %v10835 = vpack.c.b16 %v10828, %v10827
      %v10836 = vpack.c.b16 %v10830, %v10829
      %v10844 = vsel %vm7353, %v10790, 0
      %v10847 = vsel %vm7353, %v10791, 0
      %v10850 = vsel %vm7353, %v10792, 0
      %v10853 = vsel %vm7353, %v10793, 0
      %10855 = vmatprep.subr.bf16.mxu0 0
      %10856 = vmatpush1.bf16.msra.mxu0 %v10831
      %10857 = vmatprep.subr.bf16.mxu0 0
      %10858 = vmatpush1.bf16.msra.mxu0 %v10832
      %10859 = vmatprep.subr.bf16.mxu0 0
      %10860 = vmatpush1.bf16.msra.mxu0 %v10833
      %10861 = vmatprep.subr.bf16.mxu0 0
      %10862 = vmatpush1.bf16.msra.mxu0 %v10834
      %10863 = vmatprep.subr.bf16.mxu0 0
      %10864 = vmatpush1.bf16.msra.mxu0 %v10835
      %10865 = vmatprep.subr.bf16.mxu0 0
      %10866 = vmatpush1.bf16.msra.mxu0 %v10836
      %10867 = vmatprep.subr.bf16.mxu0 0
      %10868 = vmatpush1.bf16.msra.mxu0 0
      %10869 = vmatprep.subr.bf16.mxu0 0
      %10870 = vmatpush1.bf16.msra.mxu0 0
      %10871 = vmatprep.subr.bf16.mxu0 0
      %10872 = vmatpush1.bf16.msra.mxu0 0
      %10873 = vmatprep.subr.bf16.mxu0 0
      %10874 = vmatpush1.bf16.msra.mxu0 0
      %10875 = vmatprep.subr.bf16.mxu0 0
      %10876 = vmatpush1.bf16.msra.mxu0 0
      %10877 = vmatprep.subr.bf16.mxu0 0
      %10878 = vmatpush1.bf16.msra.mxu0 0
      %10879 = vmatprep.subr.bf16.mxu0 0
      %10880 = vmatpush1.bf16.msra.mxu0 0
      %10881 = vmatprep.subr.bf16.mxu0 0
      %10882 = vmatpush1.bf16.msra.mxu0 0
      %10883 = vmatprep.subr.bf16.mxu0 0
      %10884 = vmatpush1.bf16.msra.mxu0 0
      %10885 = vmatprep.subr.bf16.mxu0 0
      %10886 = vmatpush1.bf16.msra.mxu0 0
      %10887 = vmatprep.mubr.bf16.mxu0 0
      %10888 = vmatmul.mubr.bf16.gmra.mrb[0].mxu0 %v10844
      %v10889 = vpop.f32.mrb[0].mxu0
      %v10890 = vadd.f32 0.0, %v10889
      %v10891 = vpop.f32.mrb[0].mxu0
      %v10892 = vpop.f32.mrb[0].mxu0
      %v10893 = vadd.f32 0.0, %v10892
      %v10894 = vpop.f32.mrb[0].mxu0
      %10895 = vmatprep.mubr.bf16.mxu0 0
      %10896 = vmatmul.mubr.bf16.gmra.mrb[0].mxu0 %v10847
      %v10897 = vpop.f32.mrb[0].mxu0
      %v10898 = vadd.f32 0.0, %v10897
      %v10899 = vpop.f32.mrb[0].mxu0
      %v10900 = vpop.f32.mrb[0].mxu0
      %v10901 = vadd.f32 0.0, %v10900
      %v10902 = vpop.f32.mrb[0].mxu0
      %10903 = vmatprep.mubr.bf16.mxu0 0
      %10904 = vmatmul.mubr.bf16.gmra.mrb[0].mxu0 %v10850
      %v10905 = vpop.f32.mrb[0].mxu0
      %v10906 = vadd.f32 0.0, %v10905
      %v10907 = vpop.f32.mrb[0].mxu0
      %v10908 = vpop.f32.mrb[0].mxu0
      %v10909 = vadd.f32 0.0, %v10908
      %v10910 = vpop.f32.mrb[0].mxu0
      %10911 = vmatprep.mubr.bf16.mxu0 0
      %10912 = vmatmul.mubr.bf16.gmra.mrb[0].mxu0 %v10853
      %v10913 = vpop.f32.mrb[0].mxu0
      %v10914 = vadd.f32 0.0, %v10913
      %v10915 = vpop.f32.mrb[0].mxu0
      %v10916 = vpop.f32.mrb[0].mxu0
      %v10917 = vpop.f32.mrb[0].mxu0
      %10918 = vdwg.mxu0
      %v10919 = vadd.f32 %v10419, %v10890
      %v10920 = vadd.f32 %v10420, %v10893
      %v10921 = vadd.f32 %v10421, %v10898
      %v10922 = vadd.f32 %v10422, %v10901
      %v10923 = vadd.f32 %v10423, %v10906
      %v10924 = vadd.f32 %v10424, %v10909
      %v10925 = vadd.f32 %v10425, %v10914
      %v10926 = vcombine.high %v10091, %v10091
      %v10927 = vcombine.low %v7543, %v6108
      %v10929 = vunpack.c.l.s4 1966171168
      %v10930 = vunpack.c.0.s8 %v10929
      %v10931 = vlaneseq
      %v10932 = vshrl.u32 %v10931, 7
      %v10933 = vsub.s32 %v10930, %v10932
      %v10934 = vrot.slane %v10927, %v10933
      %v10935 = vcombine.low %v6384, %v10934
      %v10937 = vunpack.c.l.s4 1966171168
      %v10938 = vunpack.c.0.s8 %v10937
      %v10939 = vlaneseq
      %v10940 = vshrl.u32 %v10939, 7
      %v10941 = vsub.s32 %v10938, %v10940
      %v10942 = vrot.slane %v10935, %v10941
      %v10943 = vcombine.low %v6400, %v10942
      %v10944 = vcombine.low %v6117, %v7544
      %v10946 = vunpack.c.l.s4 1966171168
      %v10947 = vunpack.c.0.s8 %v10946
      %v10948 = vlaneseq
      %v10949 = vshrl.u32 %v10948, 7
      %v10950 = vsub.s32 %v10947, %v10949
      %v10951 = vrot.slane %v10944, %v10950
      %v10952 = vcombine.low %v10951, %v6440
      %v10954 = vunpack.c.l.s4 1966171168
      %v10955 = vunpack.c.0.s8 %v10954
      %v10956 = vlaneseq
      %v10957 = vshrl.u32 %v10956, 7
      %v10958 = vsub.s32 %v10955, %v10957
      %v10959 = vrot.slane %v10952, %v10958
      %v10960 = vcombine.low %v6449, %v10959
      %v10961 = vcombine.low %v7545, %v6204
      %v10963 = vunpack.c.l.s4 1966171168
      %v10964 = vunpack.c.0.s8 %v10963
      %v10965 = vlaneseq
      %v10966 = vshrl.u32 %v10965, 7
      %v10967 = vsub.s32 %v10964, %v10966
      %v10968 = vrot.slane %v10961, %v10967
      %v10969 = vcombine.low %v10968, %v6489
      %v10971 = vunpack.c.l.s4 1966171168
      %v10972 = vunpack.c.0.s8 %v10971
      %v10973 = vlaneseq
      %v10974 = vshrl.u32 %v10973, 7
      %v10975 = vsub.s32 %v10972, %v10974
      %v10976 = vrot.slane %v10969, %v10975
      %v10977 = vcombine.low %v6498, %v10976
      %v10978 = vcombine.low %v6213, %v7546
      %v10980 = vunpack.c.l.s4 1966171168
      %v10981 = vunpack.c.0.s8 %v10980
      %v10982 = vlaneseq
      %v10983 = vshrl.u32 %v10982, 7
      %v10984 = vsub.s32 %v10981, %v10983
      %v10985 = vrot.slane %v10978, %v10984
      %v10986 = vcombine.low %v6517, %v10985
      %v10988 = vunpack.c.l.s4 1966171168
      %v10989 = vunpack.c.0.s8 %v10988
      %v10990 = vlaneseq
      %v10991 = vshrl.u32 %v10990, 7
      %v10992 = vsub.s32 %v10989, %v10991
      %v10993 = vrot.slane %v10986, %v10992
      %v10994 = vcombine.low %v10993, %v6554
      %v10995 = vcombine.low %v7547, %v6300
      %v10997 = vunpack.c.l.s4 1966171168
      %v10998 = vunpack.c.0.s8 %v10997
      %v10999 = vlaneseq
      %v11000 = vshrl.u32 %v10999, 7
      %v11001 = vsub.s32 %v10998, %v11000
      %v11002 = vrot.slane %v10995, %v11001
      %v11003 = vcombine.low %v6566, %v11002
      %v11005 = vunpack.c.l.s4 1966171168
      %v11006 = vunpack.c.0.s8 %v11005
      %v11007 = vlaneseq
      %v11008 = vshrl.u32 %v11007, 7
      %v11009 = vsub.s32 %v11006, %v11008
      %v11010 = vrot.slane %v11003, %v11009
      %v11011 = vcombine.low %v11010, %v6603
      %v11012 = vcombine.low %v6309, %v7548
      %v11013 = vcombine.low %v10084, %v10092
      %v11014 = vcombine.low %v10094, %v10077
      %v11015 = vcombine.low %v10091, %v10093
      %v11017 = vunpack.c.l.s4 1966171168
      %v11018 = vunpack.c.0.s8 %v11017
      %v11019 = vlaneseq
      %v11020 = vshrl.u32 %v11019, 7
      %v11021 = vsub.s32 %v11018, %v11020
      %v11022 = vrot.slane %v11012, %v11021
      %v11024 = vunpack.c.l.s4 1966171168
      %v11025 = vunpack.c.0.s8 %v11024
      %v11026 = vlaneseq
      %v11027 = vshrl.u32 %v11026, 7
      %v11028 = vsub.s32 %v11025, %v11027
      %v11029 = vrot.slane %v11013, %v11028
      %v11031 = vunpack.c.l.s4 1966171168
      %v11032 = vunpack.c.0.s8 %v11031
      %v11033 = vlaneseq
      %v11034 = vshrl.u32 %v11033, 7
      %v11035 = vsub.s32 %v11032, %v11034
      %v11036 = vrot.slane %v11014, %v11035
      %v11038 = vunpack.c.l.s4 1966171168
      %v11039 = vunpack.c.0.s8 %v11038
      %v11040 = vlaneseq
      %v11041 = vshrl.u32 %v11040, 7
      %v11042 = vsub.s32 %v11039, %v11041
      %v11043 = vrot.slane %v11015, %v11042
      %v11044 = vcombine.low %v11022, %v11029
      %v11045 = vcombine.low %v11036, %v11043
      %v11047 = vunpack.c.l.s4 1966171168
      %v11048 = vunpack.c.0.s8 %v11047
      %v11049 = vlaneseq
      %v11050 = vshrl.u32 %v11049, 7
      %v11051 = vsub.s32 %v11048, %v11050
      %v11052 = vrot.slane %v11044, %v11051
      %v11054 = vunpack.c.l.s4 1966171168
      %v11055 = vunpack.c.0.s8 %v11054
      %v11056 = vlaneseq
      %v11057 = vshrl.u32 %v11056, 7
      %v11058 = vsub.s32 %v11055, %v11057
      %v11059 = vrot.slane %v11045, %v11058
      %v11060 = vcombine.low %v11052, %v11059
      %v11062 = vunpack.c.l.s4 1966171168
      %v11063 = vunpack.c.0.s8 %v11062
      %v11064 = vlaneseq
      %v11065 = vshrl.u32 %v11064, 7
      %v11066 = vsub.s32 %v11063, %v11065
      %v11067 = vrot.slane %v10926, %v11066
      %v11069 = vunpack.c.l.s4 1966171168
      %v11070 = vunpack.c.0.s8 %v11069
      %v11071 = vlaneseq
      %v11072 = vshrl.u32 %v11071, 7
      %v11073 = vsub.s32 %v11070, %v11072
      %v11074 = vrot.slane %v11067, %v11073
      %v11082 = vpack.c.bf16 %v10960, %v10943
      %v11083 = vpack.c.bf16 %v10994, %v10977
      %v11084 = vpack.c.bf16 %v11060, %v11011
      %v11085 = vpack.c.bf16 %v11074, %v11074
      %s11086 = scalar_lea.vmem %s6, 384
      %v11087 = vld [vmem:[%s11086] sm:$0xf]
      %v11088 = vld [vmem:[%s11086 + $0x4] sm:$0xf]
      %v11089 = vld [vmem:[%s11086 + $0x8] sm:$0xf]
      %v11090 = vld [vmem:[%s11086 + $0xc] sm:$0xf]
      %v11091 = vld [vmem:[%s11086 + $0x10] sm:$0xf]
      %v11092 = vld [vmem:[%s11086 + $0x14] sm:$0xf]
      %v11093 = vld [vmem:[%s11086 + $0x18] sm:$0xf]
      %v11094 = vld [vmem:[%s11086 + $0x1c] sm:$0xf]
      %v11095 = vld [vmem:[%s11086 + $0x20] sm:$0xf]
      %v11096 = vld [vmem:[%s11086 + $0x24] sm:$0xf]
      %v11097 = vld [vmem:[%s11086 + $0x28] sm:$0xf]
      %v11098 = vld [vmem:[%s11086 + $0x2c] sm:$0xf]
      %v11111 = vunpack.c.l.b16 %v11087
      %v11112 = vunpack.c.l.b16 %v11088
      %v11113 = vunpack.c.l.b16 %v11089
      %v11114 = vunpack.c.l.b16 %v11090
      %v11115 = vunpack.c.l.b16 %v11091
      %v11116 = vunpack.c.l.b16 %v11092
      %v11117 = vunpack.c.l.b16 %v11093
      %v11118 = vunpack.c.l.b16 %v11094
      %v11119 = vunpack.c.l.b16 %v11095
      %v11120 = vunpack.c.l.b16 %v11096
      %v11121 = vunpack.c.l.b16 %v11097
      %v11122 = vunpack.c.l.b16 %v11098
      %v11123 = vpack.c.b16 %v11112, %v11111
      %v11124 = vpack.c.b16 %v11114, %v11113
      %v11125 = vpack.c.b16 %v11116, %v11115
      %v11126 = vpack.c.b16 %v11118, %v11117
      %v11127 = vpack.c.b16 %v11120, %v11119
      %v11128 = vpack.c.b16 %v11122, %v11121
      %v11136 = vsel %vm7353, %v11082, 0
      %v11139 = vsel %vm7353, %v11083, 0
      %v11142 = vsel %vm7353, %v11084, 0
      %v11145 = vsel %vm7353, %v11085, 0
      %11147 = vmatprep.subr.bf16.mxu0 0
      %11148 = vmatpush1.bf16.msra.mxu0 %v11123
      %11149 = vmatprep.subr.bf16.mxu0 0
      %11150 = vmatpush1.bf16.msra.mxu0 %v11124
      %11151 = vmatprep.subr.bf16.mxu0 0
      %11152 = vmatpush1.bf16.msra.mxu0 %v11125
      %11153 = vmatprep.subr.bf16.mxu0 0
      %11154 = vmatpush1.bf16.msra.mxu0 %v11126
      %11155 = vmatprep.subr.bf16.mxu0 0
      %11156 = vmatpush1.bf16.msra.mxu0 %v11127
      %11157 = vmatprep.subr.bf16.mxu0 0
      %11158 = vmatpush1.bf16.msra.mxu0 %v11128
      %11159 = vmatprep.subr.bf16.mxu0 0
      %11160 = vmatpush1.bf16.msra.mxu0 0
      %11161 = vmatprep.subr.bf16.mxu0 0
      %11162 = vmatpush1.bf16.msra.mxu0 0
      %11163 = vmatprep.subr.bf16.mxu0 0
      %11164 = vmatpush1.bf16.msra.mxu0 0
      %11165 = vmatprep.subr.bf16.mxu0 0
      %11166 = vmatpush1.bf16.msra.mxu0 0
      %11167 = vmatprep.subr.bf16.mxu0 0
      %11168 = vmatpush1.bf16.msra.mxu0 0
      %11169 = vmatprep.subr.bf16.mxu0 0
      %11170 = vmatpush1.bf16.msra.mxu0 0
      %11171 = vmatprep.subr.bf16.mxu0 0
      %11172 = vmatpush1.bf16.msra.mxu0 0
      %11173 = vmatprep.subr.bf16.mxu0 0
      %11174 = vmatpush1.bf16.msra.mxu0 0
      %11175 = vmatprep.subr.bf16.mxu0 0
      %11176 = vmatpush1.bf16.msra.mxu0 0
      %11177 = vmatprep.subr.bf16.mxu0 0
      %11178 = vmatpush1.bf16.msra.mxu0 0
      %11179 = vmatprep.mubr.bf16.mxu0 0
      %11180 = vmatmul.mubr.bf16.gmra.mrb[0].mxu0 %v11136
      %v11181 = vpop.f32.mrb[0].mxu0
      %v11182 = vadd.f32 0.0, %v11181
      %v11183 = vpop.f32.mrb[0].mxu0
      %v11184 = vpop.f32.mrb[0].mxu0
      %v11185 = vadd.f32 0.0, %v11184
      %v11186 = vpop.f32.mrb[0].mxu0
      %11187 = vmatprep.mubr.bf16.mxu0 0
      %11188 = vmatmul.mubr.bf16.gmra.mrb[0].mxu0 %v11139
      %v11189 = vpop.f32.mrb[0].mxu0
      %v11190 = vadd.f32 0.0, %v11189
      %v11191 = vpop.f32.mrb[0].mxu0
      %v11192 = vpop.f32.mrb[0].mxu0
      %v11193 = vadd.f32 0.0, %v11192
      %v11194 = vpop.f32.mrb[0].mxu0
      %11195 = vmatprep.mubr.bf16.mxu0 0
      %11196 = vmatmul.mubr.bf16.gmra.mrb[0].mxu0 %v11142
      %v11197 = vpop.f32.mrb[0].mxu0
      %v11198 = vadd.f32 0.0, %v11197
      %v11199 = vpop.f32.mrb[0].mxu0
      %v11200 = vpop.f32.mrb[0].mxu0
      %v11201 = vadd.f32 0.0, %v11200
      %v11202 = vpop.f32.mrb[0].mxu0
      %11203 = vmatprep.mubr.bf16.mxu0 0
      %11204 = vmatmul.mubr.bf16.gmra.mrb[0].mxu0 %v11145
      %v11205 = vpop.f32.mrb[0].mxu0
      %v11206 = vadd.f32 0.0, %v11205
      %v11207 = vpop.f32.mrb[0].mxu0
      %v11208 = vpop.f32.mrb[0].mxu0
      %v11209 = vpop.f32.mrb[0].mxu0
      %11210 = vdwg.mxu0
      %v11211 = vadd.f32 %v10919, %v11182
      %v11212 = vadd.f32 %v10920, %v11185
      %v11213 = vadd.f32 %v10921, %v11190
      %v11214 = vadd.f32 %v10922, %v11193
      %v11215 = vadd.f32 %v10923, %v11198
      %v11216 = vadd.f32 %v10924, %v11201
      %v11217 = vadd.f32 %v10925, %v11206
      %v11218 = vlaneseq
      %v11219 = vshrl.u32 %v11218, 7
      %v11220 = vsub.s32 0, %v11219
      %v11221 = vrot.slane %v330, %v11220
      %v11222 = vadd.f32 %v11211, %v11221
      %v11223 = vadd.f32 %v11212, %v11221
      %v11224 = vadd.f32 %v11213, %v11221
      %v11225 = vadd.f32 %v11214, %v11221
      %v11226 = vadd.f32 %v11215, %v11221
      %v11227 = vadd.f32 %v11216, %v11221
      %v11228 = vadd.f32 %v11217, %v11221
      %v11229 = vmax.f32 %v11222, 0.0
      %v11230 = vmax.f32 %v11223, 0.0
      %v11231 = vmax.f32 %v11224, 0.0
      %v11232 = vmax.f32 %v11225, 0.0
      %v11233 = vmax.f32 %v11226, 0.0
      %v11234 = vmax.f32 %v11227, 0.0
      %v11235 = vmax.f32 %v11228, 0.0
      %11236 = vst [vmem:[%s325] sm:$0xff] %v580
      %11237 = vst [vmem:[%s325 + $0x8] sm:$0xff] %v581
      %11238 = vst [vmem:[%s325 + $0x10] sm:$0xff] %v582
      %11239 = vst [vmem:[%s325 + $0x20] sm:$0xff] %v583
      %11240 = vst [vmem:[%s325 + $0x28] sm:$0xff] %v584
      %11241 = vst [vmem:[%s325 + $0x30] sm:$0xff] %v585
      %11242 = vst [vmem:[%s325 + $0x40] sm:$0xff] %v586
      %11243 = vst [vmem:[%s325 + $0x48] sm:$0xff] %v587
      %11244 = vst [vmem:[%s325 + $0x50] sm:$0xff] %v588
      %11245 = vst [vmem:[%s325 + $0x60] sm:$0xff] %v589
      %11246 = vst [vmem:[%s325 + $0x68] sm:$0xff] %v590
      %11247 = vst [vmem:[%s325 + $0x70] sm:$0xff] %v591
      %11248 = vst [vmem:[%s325 + $0x80] sm:$0xff] %v592
      %11249 = vst [vmem:[%s325 + $0x88] sm:$0xff] %v593
      %11250 = vst [vmem:[%s325 + $0x90] sm:$0xff] %v594
      %11251 = vst [vmem:[%s325 + $0xa0] sm:$0xff] %v595
      %11252 = vst [vmem:[%s325 + $0xa8] sm:$0xff] %v596
      %11253 = vst [vmem:[%s325 + $0xb0] sm:$0xff] %v597
      %11254 = vst [vmem:[%s325 + $0xc0] sm:$0x1] %v598
      %11255 = vst [vmem:[%s325 + $0xc8] sm:$0x1] %v599
      %11256 = vst [vmem:[%s325 + $0xd0] sm:$0x1] %v600
      %11257 = vst.msk [vmem:[%s325 + $0x18] sm:$0xff] %vm7353, %v11229
      %11258 = vst.msk [vmem:[%s325 + $0x38] sm:$0xff] %vm7353, %v11230
      %11259 = vst.msk [vmem:[%s325 + $0x58] sm:$0xff] %vm7353, %v11231
      %11260 = vst.msk [vmem:[%s325 + $0x78] sm:$0xff] %vm7353, %v11232
      %11261 = vst.msk [vmem:[%s325 + $0x98] sm:$0xff] %vm7353, %v11233
      %11262 = vst.msk [vmem:[%s325 + $0xb8] sm:$0xff] %vm7353, %v11234
      %vm11263 = vcmask 778240
      %11264 = vst.msk [vmem:[%s325 + $0xd8] sm:$0x1] %vm11263, %v11235
      %vm11265 = vcmask 1048320
      %11266 = vst.msk [vmem:[%s325 + $0x18] sm:$0xff] %vm11265, 0.0
      %11267 = vst.msk [vmem:[%s325 + $0x38] sm:$0xff] %vm11265, 0.0
      %11268 = vst.msk [vmem:[%s325 + $0x58] sm:$0xff] %vm11265, 0.0
      %11269 = vst.msk [vmem:[%s325 + $0x78] sm:$0xff] %vm11265, 0.0
      %11270 = vst.msk [vmem:[%s325 + $0x98] sm:$0xff] %vm11265, 0.0
      %11271 = vst.msk [vmem:[%s325 + $0xb8] sm:$0xff] %vm11265, 0.0
      %vm11272 = vcmask 1041152
      %11273 = vst.msk [vmem:[%s325 + $0xd8] sm:$0x1] %vm11272, 0.0
      %p11274 = scmp.lt.s32.totalorder %s19, 1
      %s11275 = scalar_select %p11274, %s19, 1
      %s11276 = smul.addr %s11275, 28
      %s11277 = smul.addr %s11276, 8
      %s11278 = scalar_lea.vmem %s8, %s11277
      // Predicated region
      $region53: #{inception_b.1} parent=51 // pred_check
        %p11279 = pneg %p215
      $region54: #{inception_b.1} parent=51 // pred_check_branch
        %11281 = sbr.rel (%p11279) target = $region56
      $region55: #{inception_b.1} parent=51 // pred_region
        _
      $region56: #{inception_b.1} parent=51 // pred_fallthru
        _
    $region52: #{inception_b.1} parent=5 // pred_fallthru
      _
    %p11282 = scmp.le.s32.totalorder 2, %s14
    // Predicated region
    $region57: #{inception_b.1} parent=5 // pred_check
      %p11283 = pneg %p11282
    $region58: #{inception_b.1} parent=5 // pred_check_branch
      %11285 = sbr.rel (%p11283) target = $region60
    $region59: #{inception_b.1} parent=5 // pred_region
      %s11286 = ssub.s32 %s14, 2
      // Predicated region
      $region61: #{inception_b.1} parent=59 // pred_check
        %p11287 = pneg %p221
      $region62: #{inception_b.1} parent=59 // pred_check_branch
        %11289 = sbr.rel (%p11287) target = $region64
      $region63: #{inception_b.1} parent=59 // pred_region
        %p11290 = scmp.lt.s32.totalorder %s20, 1
        %s11291 = scalar_select %p11290, %s20, 1
        %s11292 = smul.addr %s11291, 28
        %s11293 = smul.addr %s11292, 8
        %s11294 = scalar_lea.vmem %s8, %s11293
      $region64: #{inception_b.1} parent=59 // pred_fallthru
        _
    $region60: #{inception_b.1} parent=5 // pred_fallthru
      _
  $region6: #{inception_b.1} parent=0 // loop_footer
    %s18 = sadd.s32 1, %s14
  $region7: #{inception_b.1} parent=0 // loop_footer_branch
    %13 = sbr.rel target = $region3
  $region8: #{inception_b.1} parent=0 // loop_exit
    _

</llo_original>
